<compile_context>
chip_gen: v5e
topology: v5e:2x2
jax: 0.10.0
libtpu: 0.0.40
codegen_flags: <defaults>
</compile_context>

<pallas_src>
import functools

import jax
import jax.numpy as jnp
from jax.experimental import pallas as pl
from jax.experimental.pallas import tpu as pltpu


# -----------------------------------------------------------------------------
# Fused kernel: one (batch, H-tile) per grid step, everything on flat slabs.
# -----------------------------------------------------------------------------
def _fused_kernel(x_ref, w1_ref, b1_ref, w2_ref, b2_ref, w3_ref, b3_ref,
                  we_ref, be_ref, prow_ref, spat_ref,
                  out_ref,
                  in_pad, lcn_s, lcn_ss, norm_pad, h1_pad, h2_pad, rec_pad,
                  comb_pad, mask_pad, im2col,
                  *, H, W, Wp, TH, HEXT, HIN, BASE, L, C_in, F, dyn, K, dil,
                  lcn, RC):
    Cb = dyn + F
    CBASE = BASE + HIN * Wp            # flat slab index of (output row 0, x=0)
    r = (K - 1) // 2

    # ---- scratch hygiene ----------------------------------------------------
    # in_pad / mask_pad are written per-row (only W of each Wp-lane row), so
    # they are fully zeroed; the other slabs get a full masked interior store
    # below, so only their never-written halos need zeroing each step.
    in_pad[...] = jnp.zeros(in_pad.shape, in_pad.dtype)
    mask_pad[...] = jnp.zeros(mask_pad.shape, mask_pad.dtype)
    for buf in (lcn_s, lcn_ss, norm_pad, h1_pad, h2_pad, rec_pad, comb_pad):
        nch = buf.shape[0]
        buf[:, 0:BASE] = jnp.zeros((nch, BASE), buf.dtype)
        buf[:, BASE + L:BASE + L + BASE] = jnp.zeros((nch, BASE), buf.dtype)

    # ---- spread the input tile (+ recompute-halo rows) into the slab --------
    # TODO(synk): replace this unrolled per-row spread with a strided DMA of
    # the halo'd row range once the input is delivered via memory_space=ANY.
    y0 = pl.program_id(1) * TH
    for e in range(HEXT):
        y_img = y0 - HIN + e
        vf = jnp.logical_and(y_img >= 0, y_img < H).astype(jnp.float32)
        y_src = jnp.clip(y_img, 0, H - 1)
        row = x_ref[:, pl.ds(y_src, 1), :][:, 0, :] * vf           # (C_in, W)
        base_e = BASE + e * Wp
        in_pad[:, base_e:base_e + W] = row
        mask_pad[:, base_e:base_e + W] = jnp.broadcast_to(vf, (1, W))

    vmask = mask_pad[:, BASE:BASE + L]                             # (1, L)

    # ---- LCN: separable lcn x lcn box sums (row pass + column pass) ---------
    rl = lcn // 2
    s_h = jnp.zeros((3, L), jnp.float32)
    ss_h = jnp.zeros((3, L), jnp.float32)
    for dx in range(-rl, rl + 1):
        v = in_pad[0:3, BASE + dx:BASE + dx + L]
        s_h = s_h + v
        ss_h = ss_h + v * v
    lcn_s[:, BASE:BASE + L] = s_h
    lcn_ss[:, BASE:BASE + L] = ss_h

    box_s = jnp.zeros((3, L), jnp.float32)
    box_ss = jnp.zeros((3, L), jnp.float32)
    for dy in range(-rl, rl + 1):
        sh = dy * Wp
        box_s = box_s + lcn_s[:, BASE + sh:BASE + sh + L]
        box_ss = box_ss + lcn_ss[:, BASE + sh:BASE + sh + L]
    color = in_pad[0:3, BASE:BASE + L]
    mean = box_s * (1.0 / (lcn * lcn))
    std = box_ss - mean * mean + 1e-5            # matches the PyTorch reference
    norm_pad[:, BASE:BASE + L] = ((color - mean) / std) * vmask

    # ---- 3x3 convs: im2col into (9*c_in, L), single MXU matmul each ---------
    # TODO(synk): bf16 im2col + weights (f32 accumulation) would halve this
    # buffer and MXU passes on v6e/v7x; kept f32 here for numerical parity.
    def conv3x3(dst, dst_row0, w_r, b_r, sources, c_in_conv, d, relu):
        rows = 9 * c_in_conv
        t = 0
        for ky in range(3):
            for kx in range(3):
                shift = ((ky - 1) * Wp + (kx - 1)) * d
                off = 0
                for (src, c0, nch) in sources:
                    if nch == 0:
                        continue
                    im2col[t * c_in_conv + off:t * c_in_conv + off + nch, :] = \
                        src[c0:c0 + nch, BASE + shift:BASE + shift + L]
                    off += nch
                t += 1
        acc = jnp.dot(w_r[...], im2col[0:rows, :],
                      preferred_element_type=jnp.float32)
        acc = acc + b_r[...]                                  # (C_out, 1) bcast
        if relu:
            acc = jnp.maximum(acc, 0.0)
        acc = acc * vmask                     # zero padding outside the image
        dst[dst_row0:dst_row0 + acc.shape[0], BASE:BASE + L] = acc

    conv3x3(h1_pad, 0, w1_ref, b1_ref, [(norm_pad, 0, 3), (in_pad, 0, 3)],
            6, 1, True)
    conv3x3(h2_pad, 0, w2_ref, b2_ref, [(h1_pad, 0, 6)], 6, 1, True)
    conv3x3(rec_pad, 0, w3_ref, b3_ref, [(h2_pad, 0, 12)], 12, 1, False)

    # merged bilateral guidance slab: raw [0:dyn] channels + encoder features
    comb_pad[0:dyn, BASE:BASE + L] = in_pad[0:dyn, BASE:BASE + L]
    # TODO(synk): Encoder is an injected module upstream; conv3x3(dil)+ReLU
    # stand-in used here.
    conv3x3(comb_pad, dyn, we_ref, be_ref,
            [(rec_pad, 0, 3), (in_pad, 3, C_in - 3)], C_in, dil, True)

    # ---- normalized cross-bilateral filter (row-chunked accumulation) -------
    prow = prow_ref[...]                                           # (8, Cb)
    for row0 in range(0, TH, RC):
        nrows = min(RC, TH - row0)
        CL = nrows * Wp
        cstart = CBASE + row0 * Wp
        ctr = comb_pad[:, cstart:cstart + CL]                      # (Cb, CL)
        num = jnp.zeros((dyn, CL), jnp.float32)
        den = jnp.zeros((1, CL), jnp.float32)
        for ky in range(K):
            for kx in range(K):
                sh = ((ky - r) * Wp + (kx - r)) * dil
                xs = comb_pad[:, cstart + sh:cstart + sh + CL]
                valid = mask_pad[:, cstart + sh:cstart + sh + CL]
                dd = ctr - xs
                sgm8 = jnp.dot(prow, dd * dd,
                               preferred_element_type=jnp.float32)
                sgm = sgm8[0:1, :] + spat_ref[ky * K + kx]
                wgt = jnp.exp(sgm) * valid                         # (1, CL)
                num = num + wgt * xs[0:dyn]
                den = den + wgt
        # keep the (Wp - W) junk lanes finite (they are never stored)
        den = den + (1.0 - mask_pad[:, cstart:cstart + CL])
        filt = num * pl.reciprocal(den, approx=True)
        for yy in range(nrows):
            y = row0 + yy
            out_ref[0:dyn, y:y + 1, :] = \
                filt[:, yy * Wp:yy * Wp + W][:, None, :]

    # feature channels of the output
    for y in range(TH):
        s0 = CBASE + y * Wp
        out_ref[dyn:Cb, y:y + 1, :] = comb_pad[dyn:Cb, s0:s0 + W][:, None, :]


# -----------------------------------------------------------------------------
# Wrapper: single pallas_call, grid = (B, H / TH).
# -----------------------------------------------------------------------------
def _pick_tile(H, block_h):
    if H <= block_h:
        return H
    for th in range(block_h, 7, -1):
        if H % th == 0 and th % 8 == 0:
            return th
    return H


def aux_encoder_bilateral_filter(inp, P, num_hidden_channels, kernel_size,
                                 dilation, lcn_size=5, block_h=32):
    B, C_in, H, W = inp.shape
    F_ch = P["we"].shape[0]
    dyn = 3 + num_hidden_channels
    Cb = dyn + F_ch                       # bilateral guidance / output channels
    assert dyn <= C_in, "module requires num_input_channels >= 3 + hidden"

    r_bf = (kernel_size - 1) // 2
    RB = r_bf * dilation
    HIN = RB + dilation + 3 + lcn_size // 2     # recompute-halo rows per side
    PAD = max(lcn_size // 2, 1, dilation, RB)   # slab halo (max per-stage reach)

    TH = _pick_tile(H, block_h)
    HEXT = TH + 2 * HIN
    Wp = W + 2 * PAD
    L = HEXT * Wp                         # extended slab interior (lane-dense)
    BASE = PAD * Wp + PAD                 # flat index of extended row 0, x = 0
    SZ = L + 2 * BASE                     # slab length incl. zero halos
    RC = max(1, min(TH, 2048 // Wp))      # bilateral rows per accumulation chunk

    def flat_w(w):                        # (O, I, 3, 3) -> (O, 9*I), tap-major
        o, i, kh, kw = w.shape
        return jnp.transpose(w, (0, 2, 3, 1)).reshape(o, kh * kw * i)

    w1, b1 = flat_w(P["w1"]), P["b1"].reshape(-1, 1)
    w2, b2 = flat_w(P["w2"]), P["b2"].reshape(-1, 1)
    w3, b3 = flat_w(P["w3"]), P["b3"].reshape(-1, 1)
    we, be = flat_w(P["we"]), P["be"].reshape(-1, 1)

    # WeightTransformBilateralFilter (use_exp=False): -params * params
    tparams = -(P["bf_params"] * P["bf_params"])               # (Cb + 2,)
    prow = jnp.zeros((8, Cb), jnp.float32).at[0].set(tparams[:Cb])
    offs = ((jnp.arange(kernel_size) - r_bf) * dilation).astype(jnp.float32)
    o2 = offs * offs
    spat = (tparams[Cb] * o2[None, :]
            + tparams[Cb + 1] * o2[:, None]).reshape(-1)       # (K*K,)

    x = inp.astype(jnp.float32)

    kern = functools.partial(
        _fused_kernel, H=H, W=W, Wp=Wp, TH=TH, HEXT=HEXT, HIN=HIN, BASE=BASE,
        L=L, C_in=C_in, F=F_ch, dyn=dyn, K=kernel_size, dil=dilation,
        lcn=lcn_size, RC=RC)

    def full(a):
        nd = a.ndim
        return pl.BlockSpec(a.shape, lambda *_: (0,) * nd)

    # scoped-VMEM limit from the actual footprint (default 16/32 MiB is small)
    slab_ch = C_in + 3 + 3 + 3 + 6 + 12 + 3 + Cb + 1
    scratch_bytes = (slab_ch * SZ + 9 * max(12, C_in) * L) * 4
    io_bytes = 2 * 4 * (C_in * H * W + Cb * TH * W)
    wt_bytes = 2 * 4 * int(sum(int(a.size) for a in
                               (w1, b1, w2, b2, w3, b3, we, be, prow)))
    vmem_limit = min(int(1.5 * (scratch_bytes + io_bytes + wt_bytes))
                     + (8 << 20), 128 * 1024 * 1024)

    out = pl.pallas_call(
        kern,
        out_shape=jax.ShapeDtypeStruct((B, Cb, H, W), jnp.float32),
        grid=(B, H // TH),
        in_specs=[
            pl.BlockSpec((None, C_in, H, W), lambda b, t: (b, 0, 0, 0)),
            full(w1), full(b1), full(w2), full(b2),
            full(w3), full(b3), full(we), full(be),
            full(prow),
            pl.BlockSpec(memory_space=pltpu.MemorySpace.SMEM),
        ],
        out_specs=pl.BlockSpec((None, Cb, TH, W), lambda b, t: (b, 0, t, 0)),
        scratch_shapes=[
            pltpu.VMEM((C_in, SZ), jnp.float32),               # raw input slab
            pltpu.VMEM((3, SZ), jnp.float32),                  # LCN col sums
            pltpu.VMEM((3, SZ), jnp.float32),                  # LCN col sq sums
            pltpu.VMEM((3, SZ), jnp.float32),                  # norm_color
            pltpu.VMEM((6, SZ), jnp.float32),                  # recombiner h1
            pltpu.VMEM((12, SZ), jnp.float32),                 # recombiner h2
            pltpu.VMEM((3, SZ), jnp.float32),                  # recombined
            pltpu.VMEM((Cb, SZ), jnp.float32),                 # guidance slab
            pltpu.VMEM((1, SZ), jnp.float32),                  # validity mask
            pltpu.VMEM((9 * max(12, C_in), L), jnp.float32),   # im2col buffer
        ],
        compiler_params=pltpu.CompilerParams(
            dimension_semantics=("parallel", "parallel"),
            vmem_limit_bytes=vmem_limit),
    )(x, w1, b1, w2, b2, w3, b3, we, be, prow, spat)
    return out


# -----------------------------------------------------------------------------
# Parameter init (deterministic, PyTorch-Conv2d-like kaiming-uniform)
# -----------------------------------------------------------------------------
def init_conv(key, cout, cin, k):
    kw, kb = jax.random.split(key)
    bound = 1.0 / ((cin * k * k) ** 0.5)
    w = jax.random.uniform(kw, (cout, cin, k, k), jnp.float32, -bound, bound)
    b = jax.random.uniform(kb, (cout,), jnp.float32, -bound, bound)
    return w, b


def init_params(key, num_input_channels, num_hidden_channels,
                num_feature_channels):
    ks = jax.random.split(key, 5)
    P = {}
    P["w1"], P["b1"] = init_conv(ks[0], 6, 6, 3)
    P["w2"], P["b2"] = init_conv(ks[1], 12, 6, 3)
    P["w3"], P["b3"] = init_conv(ks[2], 3, 12, 3)
    P["we"], P["be"] = init_conv(ks[3], num_feature_channels,
                                 num_input_channels, 3)
    total_dim = num_feature_channels + num_hidden_channels + 3
    P["bf_params"] = jax.random.normal(ks[4], (total_dim + 2,), jnp.float32)
    return P


# -----------------------------------------------------------------------------
# Pure-JAX reference (same semantics) for validation
# -----------------------------------------------------------------------------
def _reference_forward(inp, P, num_hidden_channels, kernel_size, dilation,
                       lcn_size=5):
    dn = ("NCHW", "OIHW", "NCHW")

    def conv(x, w, b, dil=1):
        pad = dil * (w.shape[2] // 2)
        y = jax.lax.conv_general_dilated(
            x, w, window_strides=(1, 1), padding=[(pad, pad), (pad, pad)],
            rhs_dilation=(dil, dil), dimension_numbers=dn)
        return y + b.reshape(1, -1, 1, 1)

    color = inp[:, :3]
    ones_k = jnp.ones((3, 1, lcn_size, lcn_size), jnp.float32)
    pad = lcn_size // 2
    wsum = jax.lax.conv_general_dilated(
        color, ones_k, (1, 1), [(pad, pad), (pad, pad)],
        dimension_numbers=dn, feature_group_count=3)
    wsq = jax.lax.conv_general_dilated(
        color * color, ones_k, (1, 1), [(pad, pad), (pad, pad)],
        dimension_numbers=dn, feature_group_count=3)
    mean = wsum / (lcn_size * lcn_size)
    std = wsq - mean * mean + 1e-5
    norm_color = (color - mean) / std

    h = jax.nn.relu(conv(jnp.concatenate([norm_color, color], 1),
                         P["w1"], P["b1"]))
    h = jax.nn.relu(conv(h, P["w2"], P["b2"]))
    rec = conv(h, P["w3"], P["b3"])
    feat = jax.nn.relu(conv(jnp.concatenate([rec, inp[:, 3:]], 1),
                            P["we"], P["be"], dilation))

    comb = jnp.concatenate([inp[:, :3 + num_hidden_channels], feat], 1)
    tp = -(P["bf_params"] * P["bf_params"])
    B, C, H, W = comb.shape
    dyn = 3 + num_hidden_channels
    r = (kernel_size - 1) // 2
    pad = r * dilation
    cp = jnp.pad(comb, ((0, 0), (0, 0), (pad, pad), (pad, pad)))
    mp = jnp.pad(jnp.ones((H, W), jnp.float32), ((pad, pad), (pad, pad)))
    num = jnp.zeros((B, dyn, H, W), jnp.float32)
    den = jnp.zeros((B, 1, H, W), jnp.float32)
    for ky in range(kernel_size):
        for kx in range(kernel_size):
            dy = (ky - r) * dilation
            dx = (kx - r) * dilation
            y0, x0 = ky * dilation, kx * dilation
            xs = cp[:, :, y0:y0 + H, x0:x0 + W]
            valid = mp[y0:y0 + H, x0:x0 + W]
            diff = comb - xs
            s = jnp.einsum("c,bchw->bhw", tp[:C], diff * diff)
            s = s + tp[C] * (dx * dx) + tp[C + 1] * (dy * dy)
            wgt = jnp.exp(s)[:, None] * valid
            num = num + wgt * xs[:, :dyn]
            den = den + wgt
    return jnp.concatenate([num / den, feat], 1)


if __name__ == "__main__":
    B, H, W = 2, 16, 16
    num_input_channels = 8
    num_hidden_channels = 4
    num_feature_channels = 8
    kernel_size, dilation = 3, 1

    key = jax.random.PRNGKey(0)
    kx_, kp = jax.random.split(key)
    x = jax.random.normal(kx_, (B, num_input_channels, H, W), jnp.float32)
    P = init_params(kp, num_input_channels, num_hidden_channels,
                    num_feature_channels)

    # block_h=8 -> two H-tiles per batch element: exercises the tiled path.
    out = aux_encoder_bilateral_filter(x, P, num_hidden_channels, kernel_size,
                                       dilation, block_h=8)
    out = jax.block_until_ready(out)

    expected_channels = (num_hidden_channels + 3) + num_feature_channels
    assert out.shape == (B, expected_channels, H, W), out.shape
    assert bool(jnp.all(jnp.isfinite(out)))

    ref = _reference_forward(x, P, num_hidden_channels, kernel_size, dilation)
    err = float(jnp.max(jnp.abs(out - ref)))
    assert err < 3e-2, f"max abs err vs reference: {err}"
    print("KERNEL_OK")
</pallas_src>

<mosaic_0001>
module attributes {stable_mosaic.version = 11 : i64} {
  func.func @_fused_kernel(%arg0: i32, %arg1: i32, %arg2: memref<1x8x16x16xf32, #tpu.memory_space<vmem>>, %arg3: memref<6x54xf32, #tpu.memory_space<vmem>>, %arg4: memref<6x1xf32, #tpu.memory_space<vmem>>, %arg5: memref<12x54xf32, #tpu.memory_space<vmem>>, %arg6: memref<12x1xf32, #tpu.memory_space<vmem>>, %arg7: memref<3x108xf32, #tpu.memory_space<vmem>>, %arg8: memref<3x1xf32, #tpu.memory_space<vmem>>, %arg9: memref<8x72xf32, #tpu.memory_space<vmem>>, %arg10: memref<8x1xf32, #tpu.memory_space<vmem>>, %arg11: memref<8x15xf32, #tpu.memory_space<vmem>>, %arg12: memref<9xf32, #tpu.memory_space<smem>>, %arg13: memref<1x15x8x16xf32, #tpu.memory_space<vmem>>, %arg14: memref<8x524xf32, #tpu.memory_space<vmem>>, %arg15: memref<3x524xf32, #tpu.memory_space<vmem>>, %arg16: memref<3x524xf32, #tpu.memory_space<vmem>>, %arg17: memref<3x524xf32, #tpu.memory_space<vmem>>, %arg18: memref<6x524xf32, #tpu.memory_space<vmem>>, %arg19: memref<12x524xf32, #tpu.memory_space<vmem>>, %arg20: memref<3x524xf32, #tpu.memory_space<vmem>>, %arg21: memref<15x524xf32, #tpu.memory_space<vmem>>, %arg22: memref<1x524xf32, #tpu.memory_space<vmem>>, %arg23: memref<108x440xf32, #tpu.memory_space<vmem>>) attributes {dimension_semantics = [#tpu.dimension_semantics<parallel>, #tpu.dimension_semantics<parallel>], iteration_bounds = array<i64: 2, 2>, scalar_prefetch = 0 : i64, scratch_operands = 10 : i64, tpu.core_type = #tpu.core_type<tc>, window_params = [{transform_indices = @transform_0, window_bounds = array<i64: 1, 8, 16, 16>}, {pipeline_mode = #tpu.pipeline_mode<synchronous>, transform_indices = @transform_1, window_bounds = array<i64: 6, 54>}, {pipeline_mode = #tpu.pipeline_mode<synchronous>, transform_indices = @transform_2, window_bounds = array<i64: 6, 1>}, {pipeline_mode = #tpu.pipeline_mode<synchronous>, transform_indices = @transform_3, window_bounds = array<i64: 12, 54>}, {pipeline_mode = #tpu.pipeline_mode<synchronous>, transform_indices = @transform_4, window_bounds = array<i64: 12, 1>}, {pipeline_mode = #tpu.pipeline_mode<synchronous>, transform_indices = @transform_5, window_bounds = array<i64: 3, 108>}, {pipeline_mode = #tpu.pipeline_mode<synchronous>, transform_indices = @transform_6, window_bounds = array<i64: 3, 1>}, {pipeline_mode = #tpu.pipeline_mode<synchronous>, transform_indices = @transform_7, window_bounds = array<i64: 8, 72>}, {pipeline_mode = #tpu.pipeline_mode<synchronous>, transform_indices = @transform_8, window_bounds = array<i64: 8, 1>}, {pipeline_mode = #tpu.pipeline_mode<synchronous>, transform_indices = @transform_9, window_bounds = array<i64: 8, 15>}, {transform_indices = @transform_10, window_bounds = array<i64: 9>}, {transform_indices = @transform_11, window_bounds = array<i64: 1, 15, 8, 16>}]} {
    %cst = arith.constant 0.000000e+00 : f32
    %0 = vector.broadcast %cst : f32 to vector<8x524xf32>
    %c0 = arith.constant 0 : index
    %c0_0 = arith.constant 0 : index
    %1 = vector.load %arg14[%c0, %c0_0] : memref<8x524xf32, #tpu.memory_space<vmem>>, vector<8x524xf32>
    tpu.vector_store %arg14[%c0, %c0_0], %0 {strides = array<i32>} : memref<8x524xf32, #tpu.memory_space<vmem>>, vector<8x524xf32>,
    %cst_1 = arith.constant 0.000000e+00 : f32
    %2 = vector.broadcast %cst_1 : f32 to vector<1x524xf32>
    %c0_2 = arith.constant 0 : index
    %c0_3 = arith.constant 0 : index
    %3 = vector.load %arg22[%c0_2, %c0_3] : memref<1x524xf32, #tpu.memory_space<vmem>>, vector<1x524xf32>
    tpu.vector_store %arg22[%c0_2, %c0_3], %2 {strides = array<i32>} : memref<1x524xf32, #tpu.memory_space<vmem>>, vector<1x524xf32>,
    %cst_4 = arith.constant 0.000000e+00 : f32
    %4 = vector.broadcast %cst_4 : f32 to vector<3x42xf32>
    %c0_5 = arith.constant 0 : index
    %c0_6 = arith.constant 0 : index
    %5 = vector.load %arg15[%c0_5, %c0_6] : memref<3x524xf32, #tpu.memory_space<vmem>>, vector<3x42xf32>
    tpu.vector_store %arg15[%c0_5, %c0_6], %4 {strides = array<i32>} : memref<3x524xf32, #tpu.memory_space<vmem>>, vector<3x42xf32>,
    %cst_7 = arith.constant 0.000000e+00 : f32
    %6 = vector.broadcast %cst_7 : f32 to vector<3x42xf32>
    %c0_8 = arith.constant 0 : index
    %c482 = arith.constant 482 : index
    %7 = vector.load %arg15[%c0_8, %c482] : memref<3x524xf32, #tpu.memory_space<vmem>>, vector<3x42xf32>
    tpu.vector_store %arg15[%c0_8, %c482], %6 {strides = array<i32>} : memref<3x524xf32, #tpu.memory_space<vmem>>, vector<3x42xf32>,
    %cst_9 = arith.constant 0.000000e+00 : f32
    %8 = vector.broadcast %cst_9 : f32 to vector<3x42xf32>
    %c0_10 = arith.constant 0 : index
    %c0_11 = arith.constant 0 : index
    %9 = vector.load %arg16[%c0_10, %c0_11] : memref<3x524xf32, #tpu.memory_space<vmem>>, vector<3x42xf32>
    tpu.vector_store %arg16[%c0_10, %c0_11], %8 {strides = array<i32>} : memref<3x524xf32, #tpu.memory_space<vmem>>, vector<3x42xf32>,
    %cst_12 = arith.constant 0.000000e+00 : f32
    %10 = vector.broadcast %cst_12 : f32 to vector<3x42xf32>
    %c0_13 = arith.constant 0 : index
    %c482_14 = arith.constant 482 : index
    %11 = vector.load %arg16[%c0_13, %c482_14] : memref<3x524xf32, #tpu.memory_space<vmem>>, vector<3x42xf32>
    tpu.vector_store %arg16[%c0_13, %c482_14], %10 {strides = array<i32>} : memref<3x524xf32, #tpu.memory_space<vmem>>, vector<3x42xf32>,
    %cst_15 = arith.constant 0.000000e+00 : f32
    %12 = vector.broadcast %cst_15 : f32 to vector<3x42xf32>
    %c0_16 = arith.constant 0 : index
    %c0_17 = arith.constant 0 : index
    %13 = vector.load %arg17[%c0_16, %c0_17] : memref<3x524xf32, #tpu.memory_space<vmem>>, vector<3x42xf32>
    tpu.vector_store %arg17[%c0_16, %c0_17], %12 {strides = array<i32>} : memref<3x524xf32, #tpu.memory_space<vmem>>, vector<3x42xf32>,
    %cst_18 = arith.constant 0.000000e+00 : f32
    %14 = vector.broadcast %cst_18 : f32 to vector<3x42xf32>
    %c0_19 = arith.constant 0 : index
    %c482_20 = arith.constant 482 : index
    %15 = vector.load %arg17[%c0_19, %c482_20] : memref<3x524xf32, #tpu.memory_space<vmem>>, vector<3x42xf32>
    tpu.vector_store %arg17[%c0_19, %c482_20], %14 {strides = array<i32>} : memref<3x524xf32, #tpu.memory_space<vmem>>, vector<3x42xf32>,
    %cst_21 = arith.constant 0.000000e+00 : f32
    %16 = vector.broadcast %cst_21 : f32 to vector<6x42xf32>
    %c0_22 = arith.constant 0 : index
    %c0_23 = arith.constant 0 : index
    %17 = vector.load %arg18[%c0_22, %c0_23] : memref<6x524xf32, #tpu.memory_space<vmem>>, vector<6x42xf32>
    tpu.vector_store %arg18[%c0_22, %c0_23], %16 {strides = array<i32>} : memref<6x524xf32, #tpu.memory_space<vmem>>, vector<6x42xf32>,
    %cst_24 = arith.constant 0.000000e+00 : f32
    %18 = vector.broadcast %cst_24 : f32 to vector<6x42xf32>
    %c0_25 = arith.constant 0 : index
    %c482_26 = arith.constant 482 : index
    %19 = vector.load %arg18[%c0_25, %c482_26] : memref<6x524xf32, #tpu.memory_space<vmem>>, vector<6x42xf32>
    tpu.vector_store %arg18[%c0_25, %c482_26], %18 {strides = array<i32>} : memref<6x524xf32, #tpu.memory_space<vmem>>, vector<6x42xf32>,
    %cst_27 = arith.constant 0.000000e+00 : f32
    %20 = vector.broadcast %cst_27 : f32 to vector<12x42xf32>
    %c0_28 = arith.constant 0 : index
    %c0_29 = arith.constant 0 : index
    %21 = vector.load %arg19[%c0_28, %c0_29] : memref<12x524xf32, #tpu.memory_space<vmem>>, vector<12x42xf32>
    tpu.vector_store %arg19[%c0_28, %c0_29], %20 {strides = array<i32>} : memref<12x524xf32, #tpu.memory_space<vmem>>, vector<12x42xf32>,
    %cst_30 = arith.constant 0.000000e+00 : f32
    %22 = vector.broadcast %cst_30 : f32 to vector<12x42xf32>
    %c0_31 = arith.constant 0 : index
    %c482_32 = arith.constant 482 : index
    %23 = vector.load %arg19[%c0_31, %c482_32] : memref<12x524xf32, #tpu.memory_space<vmem>>, vector<12x42xf32>
    tpu.vector_store %arg19[%c0_31, %c482_32], %22 {strides = array<i32>} : memref<12x524xf32, #tpu.memory_space<vmem>>, vector<12x42xf32>,
    %cst_33 = arith.constant 0.000000e+00 : f32
    %24 = vector.broadcast %cst_33 : f32 to vector<3x42xf32>
    %c0_34 = arith.constant 0 : index
    %c0_35 = arith.constant 0 : index
    %25 = vector.load %arg20[%c0_34, %c0_35] : memref<3x524xf32, #tpu.memory_space<vmem>>, vector<3x42xf32>
    tpu.vector_store %arg20[%c0_34, %c0_35], %24 {strides = array<i32>} : memref<3x524xf32, #tpu.memory_space<vmem>>, vector<3x42xf32>,
    %cst_36 = arith.constant 0.000000e+00 : f32
    %26 = vector.broadcast %cst_36 : f32 to vector<3x42xf32>
    %c0_37 = arith.constant 0 : index
    %c482_38 = arith.constant 482 : index
    %27 = vector.load %arg20[%c0_37, %c482_38] : memref<3x524xf32, #tpu.memory_space<vmem>>, vector<3x42xf32>
    tpu.vector_store %arg20[%c0_37, %c482_38], %26 {strides = array<i32>} : memref<3x524xf32, #tpu.memory_space<vmem>>, vector<3x42xf32>,
    %cst_39 = arith.constant 0.000000e+00 : f32
    %28 = vector.broadcast %cst_39 : f32 to vector<15x42xf32>
    %c0_40 = arith.constant 0 : index
    %c0_41 = arith.constant 0 : index
    %29 = vector.load %arg21[%c0_40, %c0_41] : memref<15x524xf32, #tpu.memory_space<vmem>>, vector<15x42xf32>
    tpu.vector_store %arg21[%c0_40, %c0_41], %28 {strides = array<i32>} : memref<15x524xf32, #tpu.memory_space<vmem>>, vector<15x42xf32>,
    %cst_42 = arith.constant 0.000000e+00 : f32
    %30 = vector.broadcast %cst_42 : f32 to vector<15x42xf32>
    %c0_43 = arith.constant 0 : index
    %c482_44 = arith.constant 482 : index
    %31 = vector.load %arg21[%c0_43, %c482_44] : memref<15x524xf32, #tpu.memory_space<vmem>>, vector<15x42xf32>
    tpu.vector_store %arg21[%c0_43, %c482_44], %30 {strides = array<i32>} : memref<15x524xf32, #tpu.memory_space<vmem>>, vector<15x42xf32>,
    %c8_i32 = arith.constant 8 : i32
    %32 = arith.muli %arg1, %c8_i32 : i32
    %c7_i32 = arith.constant 7 : i32
    %33 = arith.subi %32, %c7_i32 : i32
    %c0_i32 = arith.constant 0 : i32
    %34 = arith.addi %33, %c0_i32 : i32
    %c0_i32_45 = arith.constant 0 : i32
    %35 = arith.cmpi sge, %34, %c0_i32_45 : i32
    %c16_i32 = arith.constant 16 : i32
    %36 = arith.cmpi slt, %34, %c16_i32 : i32
    %37 = arith.andi %35, %36 : i1
    %38 = arith.extui %37 : i1 to i32
    %39 = arith.sitofp %38 : i32 to f32
    %c0_i32_46 = arith.constant 0 : i32
    %c15_i32 = arith.constant 15 : i32
    %40 = arith.maxsi %c0_i32_46, %34 : i32
    %41 = arith.minsi %c15_i32, %40 : i32
    %c0_47 = arith.constant 0 : index
    %c0_48 = arith.constant 0 : index
    %42 = arith.index_cast %41 : i32 to index
    %c0_49 = arith.constant 0 : index
    %43 = vector.load %arg2[%c0_47, %c0_48, %42, %c0_49] : memref<1x8x16x16xf32, #tpu.memory_space<vmem>>, vector<1x8x1x16xf32>
    %44 = vector.shape_cast %43 : vector<1x8x1x16xf32> to vector<8x1x16xf32>
    %45 = vector.shape_cast %44 : vector<8x1x16xf32> to vector<8x16xf32>
    %46 = vector.broadcast %39 : f32 to vector<8x16xf32>
    %47 = arith.mulf %45, %46 : vector<8x16xf32>
    %c0_50 = arith.constant 0 : index
    %c42 = arith.constant 42 : index
    %48 = vector.load %arg14[%c0_50, %c42] : memref<8x524xf32, #tpu.memory_space<vmem>>, vector<8x16xf32>
    tpu.vector_store %arg14[%c0_50, %c42], %47 {strides = array<i32>} : memref<8x524xf32, #tpu.memory_space<vmem>>, vector<8x16xf32>,
    %49 = vector.broadcast %39 : f32 to vector<1x16xf32>
    %c0_51 = arith.constant 0 : index
    %c42_52 = arith.constant 42 : index
    %50 = vector.load %arg22[%c0_51, %c42_52] : memref<1x524xf32, #tpu.memory_space<vmem>>, vector<1x16xf32>
    tpu.vector_store %arg22[%c0_51, %c42_52], %49 {strides = array<i32>} : memref<1x524xf32, #tpu.memory_space<vmem>>, vector<1x16xf32>,
    %c7_i32_53 = arith.constant 7 : i32
    %51 = arith.subi %32, %c7_i32_53 : i32
    %c1_i32 = arith.constant 1 : i32
    %52 = arith.addi %51, %c1_i32 : i32
    %c0_i32_54 = arith.constant 0 : i32
    %53 = arith.cmpi sge, %52, %c0_i32_54 : i32
    %c16_i32_55 = arith.constant 16 : i32
    %54 = arith.cmpi slt, %52, %c16_i32_55 : i32
    %55 = arith.andi %53, %54 : i1
    %56 = arith.extui %55 : i1 to i32
    %57 = arith.sitofp %56 : i32 to f32
    %c0_i32_56 = arith.constant 0 : i32
    %c15_i32_57 = arith.constant 15 : i32
    %58 = arith.maxsi %c0_i32_56, %52 : i32
    %59 = arith.minsi %c15_i32_57, %58 : i32
    %c0_58 = arith.constant 0 : index
    %c0_59 = arith.constant 0 : index
    %60 = arith.index_cast %59 : i32 to index
    %c0_60 = arith.constant 0 : index
    %61 = vector.load %arg2[%c0_58, %c0_59, %60, %c0_60] : memref<1x8x16x16xf32, #tpu.memory_space<vmem>>, vector<1x8x1x16xf32>
    %62 = vector.shape_cast %61 : vector<1x8x1x16xf32> to vector<8x1x16xf32>
    %63 = vector.shape_cast %62 : vector<8x1x16xf32> to vector<8x16xf32>
    %64 = vector.broadcast %57 : f32 to vector<8x16xf32>
    %65 = arith.mulf %63, %64 : vector<8x16xf32>
    %c0_61 = arith.constant 0 : index
    %c62 = arith.constant 62 : index
    %66 = vector.load %arg14[%c0_61, %c62] : memref<8x524xf32, #tpu.memory_space<vmem>>, vector<8x16xf32>
    tpu.vector_store %arg14[%c0_61, %c62], %65 {strides = array<i32>} : memref<8x524xf32, #tpu.memory_space<vmem>>, vector<8x16xf32>,
    %67 = vector.broadcast %57 : f32 to vector<1x16xf32>
    %c0_62 = arith.constant 0 : index
    %c62_63 = arith.constant 62 : index
    %68 = vector.load %arg22[%c0_62, %c62_63] : memref<1x524xf32, #tpu.memory_space<vmem>>, vector<1x16xf32>
    tpu.vector_store %arg22[%c0_62, %c62_63], %67 {strides = array<i32>} : memref<1x524xf32, #tpu.memory_space<vmem>>, vector<1x16xf32>,
    %c7_i32_64 = arith.constant 7 : i32
    %69 = arith.subi %32, %c7_i32_64 : i32
    %c2_i32 = arith.constant 2 : i32
    %70 = arith.addi %69, %c2_i32 : i32
    %c0_i32_65 = arith.constant 0 : i32
    %71 = arith.cmpi sge, %70, %c0_i32_65 : i32
    %c16_i32_66 = arith.constant 16 : i32
    %72 = arith.cmpi slt, %70, %c16_i32_66 : i32
    %73 = arith.andi %71, %72 : i1
    %74 = arith.extui %73 : i1 to i32
    %75 = arith.sitofp %74 : i32 to f32
    %c0_i32_67 = arith.constant 0 : i32
    %c15_i32_68 = arith.constant 15 : i32
    %76 = arith.maxsi %c0_i32_67, %70 : i32
    %77 = arith.minsi %c15_i32_68, %76 : i32
    %c0_69 = arith.constant 0 : index
    %c0_70 = arith.constant 0 : index
    %78 = arith.index_cast %77 : i32 to index
    %c0_71 = arith.constant 0 : index
    %79 = vector.load %arg2[%c0_69, %c0_70, %78, %c0_71] : memref<1x8x16x16xf32, #tpu.memory_space<vmem>>, vector<1x8x1x16xf32>
    %80 = vector.shape_cast %79 : vector<1x8x1x16xf32> to vector<8x1x16xf32>
    %81 = vector.shape_cast %80 : vector<8x1x16xf32> to vector<8x16xf32>
    %82 = vector.broadcast %75 : f32 to vector<8x16xf32>
    %83 = arith.mulf %81, %82 : vector<8x16xf32>
    %c0_72 = arith.constant 0 : index
    %c82 = arith.constant 82 : index
    %84 = vector.load %arg14[%c0_72, %c82] : memref<8x524xf32, #tpu.memory_space<vmem>>, vector<8x16xf32>
    tpu.vector_store %arg14[%c0_72, %c82], %83 {strides = array<i32>} : memref<8x524xf32, #tpu.memory_space<vmem>>, vector<8x16xf32>,
    %85 = vector.broadcast %75 : f32 to vector<1x16xf32>
    %c0_73 = arith.constant 0 : index
    %c82_74 = arith.constant 82 : index
    %86 = vector.load %arg22[%c0_73, %c82_74] : memref<1x524xf32, #tpu.memory_space<vmem>>, vector<1x16xf32>
    tpu.vector_store %arg22[%c0_73, %c82_74], %85 {strides = array<i32>} : memref<1x524xf32, #tpu.memory_space<vmem>>, vector<1x16xf32>,
    %c7_i32_75 = arith.constant 7 : i32
    %87 = arith.subi %32, %c7_i32_75 : i32
    %c3_i32 = arith.constant 3 : i32
    %88 = arith.addi %87, %c3_i32 : i32
    %c0_i32_76 = arith.constant 0 : i32
    %89 = arith.cmpi sge, %88, %c0_i32_76 : i32
    %c16_i32_77 = arith.constant 16 : i32
    %90 = arith.cmpi slt, %88, %c16_i32_77 : i32
    %91 = arith.andi %89, %90 : i1
    %92 = arith.extui %91 : i1 to i32
    %93 = arith.sitofp %92 : i32 to f32
    %c0_i32_78 = arith.constant 0 : i32
    %c15_i32_79 = arith.constant 15 : i32
    %94 = arith.maxsi %c0_i32_78, %88 : i32
    %95 = arith.minsi %c15_i32_79, %94 : i32
    %c0_80 = arith.constant 0 : index
    %c0_81 = arith.constant 0 : index
    %96 = arith.index_cast %95 : i32 to index
    %c0_82 = arith.constant 0 : index
    %97 = vector.load %arg2[%c0_80, %c0_81, %96, %c0_82] : memref<1x8x16x16xf32, #tpu.memory_space<vmem>>, vector<1x8x1x16xf32>
    %98 = vector.shape_cast %97 : vector<1x8x1x16xf32> to vector<8x1x16xf32>
    %99 = vector.shape_cast %98 : vector<8x1x16xf32> to vector<8x16xf32>
    %100 = vector.broadcast %93 : f32 to vector<8x16xf32>
    %101 = arith.mulf %99, %100 : vector<8x16xf32>
    %c0_83 = arith.constant 0 : index
    %c102 = arith.constant 102 : index
    %102 = vector.load %arg14[%c0_83, %c102] : memref<8x524xf32, #tpu.memory_space<vmem>>, vector<8x16xf32>
    tpu.vector_store %arg14[%c0_83, %c102], %101 {strides = array<i32>} : memref<8x524xf32, #tpu.memory_space<vmem>>, vector<8x16xf32>,
    %103 = vector.broadcast %93 : f32 to vector<1x16xf32>
    %c0_84 = arith.constant 0 : index
    %c102_85 = arith.constant 102 : index
    %104 = vector.load %arg22[%c0_84, %c102_85] : memref<1x524xf32, #tpu.memory_space<vmem>>, vector<1x16xf32>
    tpu.vector_store %arg22[%c0_84, %c102_85], %103 {strides = array<i32>} : memref<1x524xf32, #tpu.memory_space<vmem>>, vector<1x16xf32>,
    %c7_i32_86 = arith.constant 7 : i32
    %105 = arith.subi %32, %c7_i32_86 : i32
    %c4_i32 = arith.constant 4 : i32
    %106 = arith.addi %105, %c4_i32 : i32
    %c0_i32_87 = arith.constant 0 : i32
    %107 = arith.cmpi sge, %106, %c0_i32_87 : i32
    %c16_i32_88 = arith.constant 16 : i32
    %108 = arith.cmpi slt, %106, %c16_i32_88 : i32
    %109 = arith.andi %107, %108 : i1
    %110 = arith.extui %109 : i1 to i32
    %111 = arith.sitofp %110 : i32 to f32
    %c0_i32_89 = arith.constant 0 : i32
    %c15_i32_90 = arith.constant 15 : i32
    %112 = arith.maxsi %c0_i32_89, %106 : i32
    %113 = arith.minsi %c15_i32_90, %112 : i32
    %c0_91 = arith.constant 0 : index
    %c0_92 = arith.constant 0 : index
    %114 = arith.index_cast %113 : i32 to index
    %c0_93 = arith.constant 0 : index
    %115 = vector.load %arg2[%c0_91, %c0_92, %114, %c0_93] : memref<1x8x16x16xf32, #tpu.memory_space<vmem>>, vector<1x8x1x16xf32>
    %116 = vector.shape_cast %115 : vector<1x8x1x16xf32> to vector<8x1x16xf32>
    %117 = vector.shape_cast %116 : vector<8x1x16xf32> to vector<8x16xf32>
    %118 = vector.broadcast %111 : f32 to vector<8x16xf32>
    %119 = arith.mulf %117, %118 : vector<8x16xf32>
    %c0_94 = arith.constant 0 : index
    %c122 = arith.constant 122 : index
    %120 = vector.load %arg14[%c0_94, %c122] : memref<8x524xf32, #tpu.memory_space<vmem>>, vector<8x16xf32>
    tpu.vector_store %arg14[%c0_94, %c122], %119 {strides = array<i32>} : memref<8x524xf32, #tpu.memory_space<vmem>>, vector<8x16xf32>,
    %121 = vector.broadcast %111 : f32 to vector<1x16xf32>
    %c0_95 = arith.constant 0 : index
    %c122_96 = arith.constant 122 : index
    %122 = vector.load %arg22[%c0_95, %c122_96] : memref<1x524xf32, #tpu.memory_space<vmem>>, vector<1x16xf32>
    tpu.vector_store %arg22[%c0_95, %c122_96], %121 {strides = array<i32>} : memref<1x524xf32, #tpu.memory_space<vmem>>, vector<1x16xf32>,
    %c7_i32_97 = arith.constant 7 : i32
    %123 = arith.subi %32, %c7_i32_97 : i32
    %c5_i32 = arith.constant 5 : i32
    %124 = arith.addi %123, %c5_i32 : i32
    %c0_i32_98 = arith.constant 0 : i32
    %125 = arith.cmpi sge, %124, %c0_i32_98 : i32
    %c16_i32_99 = arith.constant 16 : i32
    %126 = arith.cmpi slt, %124, %c16_i32_99 : i32
    %127 = arith.andi %125, %126 : i1
    %128 = arith.extui %127 : i1 to i32
    %129 = arith.sitofp %128 : i32 to f32
    %c0_i32_100 = arith.constant 0 : i32
    %c15_i32_101 = arith.constant 15 : i32
    %130 = arith.maxsi %c0_i32_100, %124 : i32
    %131 = arith.minsi %c15_i32_101, %130 : i32
    %c0_102 = arith.constant 0 : index
    %c0_103 = arith.constant 0 : index
    %132 = arith.index_cast %131 : i32 to index
    %c0_104 = arith.constant 0 : index
    %133 = vector.load %arg2[%c0_102, %c0_103, %132, %c0_104] : memref<1x8x16x16xf32, #tpu.memory_space<vmem>>, vector<1x8x1x16xf32>
    %134 = vector.shape_cast %133 : vector<1x8x1x16xf32> to vector<8x1x16xf32>
    %135 = vector.shape_cast %134 : vector<8x1x16xf32> to vector<8x16xf32>
    %136 = vector.broadcast %129 : f32 to vector<8x16xf32>
    %137 = arith.mulf %135, %136 : vector<8x16xf32>
    %c0_105 = arith.constant 0 : index
    %c142 = arith.constant 142 : index
    %138 = vector.load %arg14[%c0_105, %c142] : memref<8x524xf32, #tpu.memory_space<vmem>>, vector<8x16xf32>
    tpu.vector_store %arg14[%c0_105, %c142], %137 {strides = array<i32>} : memref<8x524xf32, #tpu.memory_space<vmem>>, vector<8x16xf32>,
    %139 = vector.broadcast %129 : f32 to vector<1x16xf32>
    %c0_106 = arith.constant 0 : index
    %c142_107 = arith.constant 142 : index
    %140 = vector.load %arg22[%c0_106, %c142_107] : memref<1x524xf32, #tpu.memory_space<vmem>>, vector<1x16xf32>
    tpu.vector_store %arg22[%c0_106, %c142_107], %139 {strides = array<i32>} : memref<1x524xf32, #tpu.memory_space<vmem>>, vector<1x16xf32>,
    %c7_i32_108 = arith.constant 7 : i32
    %141 = arith.subi %32, %c7_i32_108 : i32
    %c6_i32 = arith.constant 6 : i32
    %142 = arith.addi %141, %c6_i32 : i32
    %c0_i32_109 = arith.constant 0 : i32
    %143 = arith.cmpi sge, %142, %c0_i32_109 : i32
    %c16_i32_110 = arith.constant 16 : i32
    %144 = arith.cmpi slt, %142, %c16_i32_110 : i32
    %145 = arith.andi %143, %144 : i1
    %146 = arith.extui %145 : i1 to i32
    %147 = arith.sitofp %146 : i32 to f32
    %c0_i32_111 = arith.constant 0 : i32
    %c15_i32_112 = arith.constant 15 : i32
    %148 = arith.maxsi %c0_i32_111, %142 : i32
    %149 = arith.minsi %c15_i32_112, %148 : i32
    %c0_113 = arith.constant 0 : index
    %c0_114 = arith.constant 0 : index
    %150 = arith.index_cast %149 : i32 to index
    %c0_115 = arith.constant 0 : index
    %151 = vector.load %arg2[%c0_113, %c0_114, %150, %c0_115] : memref<1x8x16x16xf32, #tpu.memory_space<vmem>>, vector<1x8x1x16xf32>
    %152 = vector.shape_cast %151 : vector<1x8x1x16xf32> to vector<8x1x16xf32>
    %153 = vector.shape_cast %152 : vector<8x1x16xf32> to vector<8x16xf32>
    %154 = vector.broadcast %147 : f32 to vector<8x16xf32>
    %155 = arith.mulf %153, %154 : vector<8x16xf32>
    %c0_116 = arith.constant 0 : index
    %c162 = arith.constant 162 : index
    %156 = vector.load %arg14[%c0_116, %c162] : memref<8x524xf32, #tpu.memory_space<vmem>>, vector<8x16xf32>
    tpu.vector_store %arg14[%c0_116, %c162], %155 {strides = array<i32>} : memref<8x524xf32, #tpu.memory_space<vmem>>, vector<8x16xf32>,
    %157 = vector.broadcast %147 : f32 to vector<1x16xf32>
    %c0_117 = arith.constant 0 : index
    %c162_118 = arith.constant 162 : index
    %158 = vector.load %arg22[%c0_117, %c162_118] : memref<1x524xf32, #tpu.memory_space<vmem>>, vector<1x16xf32>
    tpu.vector_store %arg22[%c0_117, %c162_118], %157 {strides = array<i32>} : memref<1x524xf32, #tpu.memory_space<vmem>>, vector<1x16xf32>,
    %c7_i32_119 = arith.constant 7 : i32
    %159 = arith.subi %32, %c7_i32_119 : i32
    %c7_i32_120 = arith.constant 7 : i32
    %160 = arith.addi %159, %c7_i32_120 : i32
    %c0_i32_121 = arith.constant 0 : i32
    %161 = arith.cmpi sge, %160, %c0_i32_121 : i32
    %c16_i32_122 = arith.constant 16 : i32
    %162 = arith.cmpi slt, %160, %c16_i32_122 : i32
    %163 = arith.andi %161, %162 : i1
    %164 = arith.extui %163 : i1 to i32
    %165 = arith.sitofp %164 : i32 to f32
    %c0_i32_123 = arith.constant 0 : i32
    %c15_i32_124 = arith.constant 15 : i32
    %166 = arith.maxsi %c0_i32_123, %160 : i32
    %167 = arith.minsi %c15_i32_124, %166 : i32
    %c0_125 = arith.constant 0 : index
    %c0_126 = arith.constant 0 : index
    %168 = arith.index_cast %167 : i32 to index
    %c0_127 = arith.constant 0 : index
    %169 = vector.load %arg2[%c0_125, %c0_126, %168, %c0_127] : memref<1x8x16x16xf32, #tpu.memory_space<vmem>>, vector<1x8x1x16xf32>
    %170 = vector.shape_cast %169 : vector<1x8x1x16xf32> to vector<8x1x16xf32>
    %171 = vector.shape_cast %170 : vector<8x1x16xf32> to vector<8x16xf32>
    %172 = vector.broadcast %165 : f32 to vector<8x16xf32>
    %173 = arith.mulf %171, %172 : vector<8x16xf32>
    %c0_128 = arith.constant 0 : index
    %c182 = arith.constant 182 : index
    %174 = vector.load %arg14[%c0_128, %c182] : memref<8x524xf32, #tpu.memory_space<vmem>>, vector<8x16xf32>
    tpu.vector_store %arg14[%c0_128, %c182], %173 {strides = array<i32>} : memref<8x524xf32, #tpu.memory_space<vmem>>, vector<8x16xf32>,
    %175 = vector.broadcast %165 : f32 to vector<1x16xf32>
    %c0_129 = arith.constant 0 : index
    %c182_130 = arith.constant 182 : index
    %176 = vector.load %arg22[%c0_129, %c182_130] : memref<1x524xf32, #tpu.memory_space<vmem>>, vector<1x16xf32>
    tpu.vector_store %arg22[%c0_129, %c182_130], %175 {strides = array<i32>} : memref<1x524xf32, #tpu.memory_space<vmem>>, vector<1x16xf32>,
    %c7_i32_131 = arith.constant 7 : i32
    %177 = arith.subi %32, %c7_i32_131 : i32
    %c8_i32_132 = arith.constant 8 : i32
    %178 = arith.addi %177, %c8_i32_132 : i32
    %c0_i32_133 = arith.constant 0 : i32
    %179 = arith.cmpi sge, %178, %c0_i32_133 : i32
    %c16_i32_134 = arith.constant 16 : i32
    %180 = arith.cmpi slt, %178, %c16_i32_134 : i32
    %181 = arith.andi %179, %180 : i1
    %182 = arith.extui %181 : i1 to i32
    %183 = arith.sitofp %182 : i32 to f32
    %c0_i32_135 = arith.constant 0 : i32
    %c15_i32_136 = arith.constant 15 : i32
    %184 = arith.maxsi %c0_i32_135, %178 : i32
    %185 = arith.minsi %c15_i32_136, %184 : i32
    %c0_137 = arith.constant 0 : index
    %c0_138 = arith.constant 0 : index
    %186 = arith.index_cast %185 : i32 to index
    %c0_139 = arith.constant 0 : index
    %187 = vector.load %arg2[%c0_137, %c0_138, %186, %c0_139] : memref<1x8x16x16xf32, #tpu.memory_space<vmem>>, vector<1x8x1x16xf32>
    %188 = vector.shape_cast %187 : vector<1x8x1x16xf32> to vector<8x1x16xf32>
    %189 = vector.shape_cast %188 : vector<8x1x16xf32> to vector<8x16xf32>
    %190 = vector.broadcast %183 : f32 to vector<8x16xf32>
    %191 = arith.mulf %189, %190 : vector<8x16xf32>
    %c0_140 = arith.constant 0 : index
    %c202 = arith.constant 202 : index
    %192 = vector.load %arg14[%c0_140, %c202] : memref<8x524xf32, #tpu.memory_space<vmem>>, vector<8x16xf32>
    tpu.vector_store %arg14[%c0_140, %c202], %191 {strides = array<i32>} : memref<8x524xf32, #tpu.memory_space<vmem>>, vector<8x16xf32>,
    %193 = vector.broadcast %183 : f32 to vector<1x16xf32>
    %c0_141 = arith.constant 0 : index
    %c202_142 = arith.constant 202 : index
    %194 = vector.load %arg22[%c0_141, %c202_142] : memref<1x524xf32, #tpu.memory_space<vmem>>, vector<1x16xf32>
    tpu.vector_store %arg22[%c0_141, %c202_142], %193 {strides = array<i32>} : memref<1x524xf32, #tpu.memory_space<vmem>>, vector<1x16xf32>,
    %c7_i32_143 = arith.constant 7 : i32
    %195 = arith.subi %32, %c7_i32_143 : i32
    %c9_i32 = arith.constant 9 : i32
    %196 = arith.addi %195, %c9_i32 : i32
    %c0_i32_144 = arith.constant 0 : i32
    %197 = arith.cmpi sge, %196, %c0_i32_144 : i32
    %c16_i32_145 = arith.constant 16 : i32
    %198 = arith.cmpi slt, %196, %c16_i32_145 : i32
    %199 = arith.andi %197, %198 : i1
    %200 = arith.extui %199 : i1 to i32
    %201 = arith.sitofp %200 : i32 to f32
    %c0_i32_146 = arith.constant 0 : i32
    %c15_i32_147 = arith.constant 15 : i32
    %202 = arith.maxsi %c0_i32_146, %196 : i32
    %203 = arith.minsi %c15_i32_147, %202 : i32
    %c0_148 = arith.constant 0 : index
    %c0_149 = arith.constant 0 : index
    %204 = arith.index_cast %203 : i32 to index
    %c0_150 = arith.constant 0 : index
    %205 = vector.load %arg2[%c0_148, %c0_149, %204, %c0_150] : memref<1x8x16x16xf32, #tpu.memory_space<vmem>>, vector<1x8x1x16xf32>
    %206 = vector.shape_cast %205 : vector<1x8x1x16xf32> to vector<8x1x16xf32>
    %207 = vector.shape_cast %206 : vector<8x1x16xf32> to vector<8x16xf32>
    %208 = vector.broadcast %201 : f32 to vector<8x16xf32>
    %209 = arith.mulf %207, %208 : vector<8x16xf32>
    %c0_151 = arith.constant 0 : index
    %c222 = arith.constant 222 : index
    %210 = vector.load %arg14[%c0_151, %c222] : memref<8x524xf32, #tpu.memory_space<vmem>>, vector<8x16xf32>
    tpu.vector_store %arg14[%c0_151, %c222], %209 {strides = array<i32>} : memref<8x524xf32, #tpu.memory_space<vmem>>, vector<8x16xf32>,
    %211 = vector.broadcast %201 : f32 to vector<1x16xf32>
    %c0_152 = arith.constant 0 : index
    %c222_153 = arith.constant 222 : index
    %212 = vector.load %arg22[%c0_152, %c222_153] : memref<1x524xf32, #tpu.memory_space<vmem>>, vector<1x16xf32>
    tpu.vector_store %arg22[%c0_152, %c222_153], %211 {strides = array<i32>} : memref<1x524xf32, #tpu.memory_space<vmem>>, vector<1x16xf32>,
    %c7_i32_154 = arith.constant 7 : i32
    %213 = arith.subi %32, %c7_i32_154 : i32
    %c10_i32 = arith.constant 10 : i32
    %214 = arith.addi %213, %c10_i32 : i32
    %c0_i32_155 = arith.constant 0 : i32
    %215 = arith.cmpi sge, %214, %c0_i32_155 : i32
    %c16_i32_156 = arith.constant 16 : i32
    %216 = arith.cmpi slt, %214, %c16_i32_156 : i32
    %217 = arith.andi %215, %216 : i1
    %218 = arith.extui %217 : i1 to i32
    %219 = arith.sitofp %218 : i32 to f32
    %c0_i32_157 = arith.constant 0 : i32
    %c15_i32_158 = arith.constant 15 : i32
    %220 = arith.maxsi %c0_i32_157, %214 : i32
    %221 = arith.minsi %c15_i32_158, %220 : i32
    %c0_159 = arith.constant 0 : index
    %c0_160 = arith.constant 0 : index
    %222 = arith.index_cast %221 : i32 to index
    %c0_161 = arith.constant 0 : index
    %223 = vector.load %arg2[%c0_159, %c0_160, %222, %c0_161] : memref<1x8x16x16xf32, #tpu.memory_space<vmem>>, vector<1x8x1x16xf32>
    %224 = vector.shape_cast %223 : vector<1x8x1x16xf32> to vector<8x1x16xf32>
    %225 = vector.shape_cast %224 : vector<8x1x16xf32> to vector<8x16xf32>
    %226 = vector.broadcast %219 : f32 to vector<8x16xf32>
    %227 = arith.mulf %225, %226 : vector<8x16xf32>
    %c0_162 = arith.constant 0 : index
    %c242 = arith.constant 242 : index
    %228 = vector.load %arg14[%c0_162, %c242] : memref<8x524xf32, #tpu.memory_space<vmem>>, vector<8x16xf32>
    tpu.vector_store %arg14[%c0_162, %c242], %227 {strides = array<i32>} : memref<8x524xf32, #tpu.memory_space<vmem>>, vector<8x16xf32>,
    %229 = vector.broadcast %219 : f32 to vector<1x16xf32>
    %c0_163 = arith.constant 0 : index
    %c242_164 = arith.constant 242 : index
    %230 = vector.load %arg22[%c0_163, %c242_164] : memref<1x524xf32, #tpu.memory_space<vmem>>, vector<1x16xf32>
    tpu.vector_store %arg22[%c0_163, %c242_164], %229 {strides = array<i32>} : memref<1x524xf32, #tpu.memory_space<vmem>>, vector<1x16xf32>,
    %c7_i32_165 = arith.constant 7 : i32
    %231 = arith.subi %32, %c7_i32_165 : i32
    %c11_i32 = arith.constant 11 : i32
    %232 = arith.addi %231, %c11_i32 : i32
    %c0_i32_166 = arith.constant 0 : i32
    %233 = arith.cmpi sge, %232, %c0_i32_166 : i32
    %c16_i32_167 = arith.constant 16 : i32
    %234 = arith.cmpi slt, %232, %c16_i32_167 : i32
    %235 = arith.andi %233, %234 : i1
    %236 = arith.extui %235 : i1 to i32
    %237 = arith.sitofp %236 : i32 to f32
    %c0_i32_168 = arith.constant 0 : i32
    %c15_i32_169 = arith.constant 15 : i32
    %238 = arith.maxsi %c0_i32_168, %232 : i32
    %239 = arith.minsi %c15_i32_169, %238 : i32
    %c0_170 = arith.constant 0 : index
    %c0_171 = arith.constant 0 : index
    %240 = arith.index_cast %239 : i32 to index
    %c0_172 = arith.constant 0 : index
    %241 = vector.load %arg2[%c0_170, %c0_171, %240, %c0_172] : memref<1x8x16x16xf32, #tpu.memory_space<vmem>>, vector<1x8x1x16xf32>
    %242 = vector.shape_cast %241 : vector<1x8x1x16xf32> to vector<8x1x16xf32>
    %243 = vector.shape_cast %242 : vector<8x1x16xf32> to vector<8x16xf32>
    %244 = vector.broadcast %237 : f32 to vector<8x16xf32>
    %245 = arith.mulf %243, %244 : vector<8x16xf32>
    %c0_173 = arith.constant 0 : index
    %c262 = arith.constant 262 : index
    %246 = vector.load %arg14[%c0_173, %c262] : memref<8x524xf32, #tpu.memory_space<vmem>>, vector<8x16xf32>
    tpu.vector_store %arg14[%c0_173, %c262], %245 {strides = array<i32>} : memref<8x524xf32, #tpu.memory_space<vmem>>, vector<8x16xf32>,
    %247 = vector.broadcast %237 : f32 to vector<1x16xf32>
    %c0_174 = arith.constant 0 : index
    %c262_175 = arith.constant 262 : index
    %248 = vector.load %arg22[%c0_174, %c262_175] : memref<1x524xf32, #tpu.memory_space<vmem>>, vector<1x16xf32>
    tpu.vector_store %arg22[%c0_174, %c262_175], %247 {strides = array<i32>} : memref<1x524xf32, #tpu.memory_space<vmem>>, vector<1x16xf32>,
    %c7_i32_176 = arith.constant 7 : i32
    %249 = arith.subi %32, %c7_i32_176 : i32
    %c12_i32 = arith.constant 12 : i32
    %250 = arith.addi %249, %c12_i32 : i32
    %c0_i32_177 = arith.constant 0 : i32
    %251 = arith.cmpi sge, %250, %c0_i32_177 : i32
    %c16_i32_178 = arith.constant 16 : i32
    %252 = arith.cmpi slt, %250, %c16_i32_178 : i32
    %253 = arith.andi %251, %252 : i1
    %254 = arith.extui %253 : i1 to i32
    %255 = arith.sitofp %254 : i32 to f32
    %c0_i32_179 = arith.constant 0 : i32
    %c15_i32_180 = arith.constant 15 : i32
    %256 = arith.maxsi %c0_i32_179, %250 : i32
    %257 = arith.minsi %c15_i32_180, %256 : i32
    %c0_181 = arith.constant 0 : index
    %c0_182 = arith.constant 0 : index
    %258 = arith.index_cast %257 : i32 to index
    %c0_183 = arith.constant 0 : index
    %259 = vector.load %arg2[%c0_181, %c0_182, %258, %c0_183] : memref<1x8x16x16xf32, #tpu.memory_space<vmem>>, vector<1x8x1x16xf32>
    %260 = vector.shape_cast %259 : vector<1x8x1x16xf32> to vector<8x1x16xf32>
    %261 = vector.shape_cast %260 : vector<8x1x16xf32> to vector<8x16xf32>
    %262 = vector.broadcast %255 : f32 to vector<8x16xf32>
    %263 = arith.mulf %261, %262 : vector<8x16xf32>
    %c0_184 = arith.constant 0 : index
    %c282 = arith.constant 282 : index
    %264 = vector.load %arg14[%c0_184, %c282] : memref<8x524xf32, #tpu.memory_space<vmem>>, vector<8x16xf32>
    tpu.vector_store %arg14[%c0_184, %c282], %263 {strides = array<i32>} : memref<8x524xf32, #tpu.memory_space<vmem>>, vector<8x16xf32>,
    %265 = vector.broadcast %255 : f32 to vector<1x16xf32>
    %c0_185 = arith.constant 0 : index
    %c282_186 = arith.constant 282 : index
    %266 = vector.load %arg22[%c0_185, %c282_186] : memref<1x524xf32, #tpu.memory_space<vmem>>, vector<1x16xf32>
    tpu.vector_store %arg22[%c0_185, %c282_186], %265 {strides = array<i32>} : memref<1x524xf32, #tpu.memory_space<vmem>>, vector<1x16xf32>,
    %c7_i32_187 = arith.constant 7 : i32
    %267 = arith.subi %32, %c7_i32_187 : i32
    %c13_i32 = arith.constant 13 : i32
    %268 = arith.addi %267, %c13_i32 : i32
    %c0_i32_188 = arith.constant 0 : i32
    %269 = arith.cmpi sge, %268, %c0_i32_188 : i32
    %c16_i32_189 = arith.constant 16 : i32
    %270 = arith.cmpi slt, %268, %c16_i32_189 : i32
    %271 = arith.andi %269, %270 : i1
    %272 = arith.extui %271 : i1 to i32
    %273 = arith.sitofp %272 : i32 to f32
    %c0_i32_190 = arith.constant 0 : i32
    %c15_i32_191 = arith.constant 15 : i32
    %274 = arith.maxsi %c0_i32_190, %268 : i32
    %275 = arith.minsi %c15_i32_191, %274 : i32
    %c0_192 = arith.constant 0 : index
    %c0_193 = arith.constant 0 : index
    %276 = arith.index_cast %275 : i32 to index
    %c0_194 = arith.constant 0 : index
    %277 = vector.load %arg2[%c0_192, %c0_193, %276, %c0_194] : memref<1x8x16x16xf32, #tpu.memory_space<vmem>>, vector<1x8x1x16xf32>
    %278 = vector.shape_cast %277 : vector<1x8x1x16xf32> to vector<8x1x16xf32>
    %279 = vector.shape_cast %278 : vector<8x1x16xf32> to vector<8x16xf32>
    %280 = vector.broadcast %273 : f32 to vector<8x16xf32>
    %281 = arith.mulf %279, %280 : vector<8x16xf32>
    %c0_195 = arith.constant 0 : index
    %c302 = arith.constant 302 : index
    %282 = vector.load %arg14[%c0_195, %c302] : memref<8x524xf32, #tpu.memory_space<vmem>>, vector<8x16xf32>
    tpu.vector_store %arg14[%c0_195, %c302], %281 {strides = array<i32>} : memref<8x524xf32, #tpu.memory_space<vmem>>, vector<8x16xf32>,
    %283 = vector.broadcast %273 : f32 to vector<1x16xf32>
    %c0_196 = arith.constant 0 : index
    %c302_197 = arith.constant 302 : index
    %284 = vector.load %arg22[%c0_196, %c302_197] : memref<1x524xf32, #tpu.memory_space<vmem>>, vector<1x16xf32>
    tpu.vector_store %arg22[%c0_196, %c302_197], %283 {strides = array<i32>} : memref<1x524xf32, #tpu.memory_space<vmem>>, vector<1x16xf32>,
    %c7_i32_198 = arith.constant 7 : i32
    %285 = arith.subi %32, %c7_i32_198 : i32
    %c14_i32 = arith.constant 14 : i32
    %286 = arith.addi %285, %c14_i32 : i32
    %c0_i32_199 = arith.constant 0 : i32
    %287 = arith.cmpi sge, %286, %c0_i32_199 : i32
    %c16_i32_200 = arith.constant 16 : i32
    %288 = arith.cmpi slt, %286, %c16_i32_200 : i32
    %289 = arith.andi %287, %288 : i1
    %290 = arith.extui %289 : i1 to i32
    %291 = arith.sitofp %290 : i32 to f32
    %c0_i32_201 = arith.constant 0 : i32
    %c15_i32_202 = arith.constant 15 : i32
    %292 = arith.maxsi %c0_i32_201, %286 : i32
    %293 = arith.minsi %c15_i32_202, %292 : i32
    %c0_203 = arith.constant 0 : index
    %c0_204 = arith.constant 0 : index
    %294 = arith.index_cast %293 : i32 to index
    %c0_205 = arith.constant 0 : index
    %295 = vector.load %arg2[%c0_203, %c0_204, %294, %c0_205] : memref<1x8x16x16xf32, #tpu.memory_space<vmem>>, vector<1x8x1x16xf32>
    %296 = vector.shape_cast %295 : vector<1x8x1x16xf32> to vector<8x1x16xf32>
    %297 = vector.shape_cast %296 : vector<8x1x16xf32> to vector<8x16xf32>
    %298 = vector.broadcast %291 : f32 to vector<8x16xf32>
    %299 = arith.mulf %297, %298 : vector<8x16xf32>
    %c0_206 = arith.constant 0 : index
    %c322 = arith.constant 322 : index
    %300 = vector.load %arg14[%c0_206, %c322] : memref<8x524xf32, #tpu.memory_space<vmem>>, vector<8x16xf32>
    tpu.vector_store %arg14[%c0_206, %c322], %299 {strides = array<i32>} : memref<8x524xf32, #tpu.memory_space<vmem>>, vector<8x16xf32>,
    %301 = vector.broadcast %291 : f32 to vector<1x16xf32>
    %c0_207 = arith.constant 0 : index
    %c322_208 = arith.constant 322 : index
    %302 = vector.load %arg22[%c0_207, %c322_208] : memref<1x524xf32, #tpu.memory_space<vmem>>, vector<1x16xf32>
    tpu.vector_store %arg22[%c0_207, %c322_208], %301 {strides = array<i32>} : memref<1x524xf32, #tpu.memory_space<vmem>>, vector<1x16xf32>,
    %c7_i32_209 = arith.constant 7 : i32
    %303 = arith.subi %32, %c7_i32_209 : i32
    %c15_i32_210 = arith.constant 15 : i32
    %304 = arith.addi %303, %c15_i32_210 : i32
    %c0_i32_211 = arith.constant 0 : i32
    %305 = arith.cmpi sge, %304, %c0_i32_211 : i32
    %c16_i32_212 = arith.constant 16 : i32
    %306 = arith.cmpi slt, %304, %c16_i32_212 : i32
    %307 = arith.andi %305, %306 : i1
    %308 = arith.extui %307 : i1 to i32
    %309 = arith.sitofp %308 : i32 to f32
    %c0_i32_213 = arith.constant 0 : i32
    %c15_i32_214 = arith.constant 15 : i32
    %310 = arith.maxsi %c0_i32_213, %304 : i32
    %311 = arith.minsi %c15_i32_214, %310 : i32
    %c0_215 = arith.constant 0 : index
    %c0_216 = arith.constant 0 : index
    %312 = arith.index_cast %311 : i32 to index
    %c0_217 = arith.constant 0 : index
    %313 = vector.load %arg2[%c0_215, %c0_216, %312, %c0_217] : memref<1x8x16x16xf32, #tpu.memory_space<vmem>>, vector<1x8x1x16xf32>
    %314 = vector.shape_cast %313 : vector<1x8x1x16xf32> to vector<8x1x16xf32>
    %315 = vector.shape_cast %314 : vector<8x1x16xf32> to vector<8x16xf32>
    %316 = vector.broadcast %309 : f32 to vector<8x16xf32>
    %317 = arith.mulf %315, %316 : vector<8x16xf32>
    %c0_218 = arith.constant 0 : index
    %c342 = arith.constant 342 : index
    %318 = vector.load %arg14[%c0_218, %c342] : memref<8x524xf32, #tpu.memory_space<vmem>>, vector<8x16xf32>
    tpu.vector_store %arg14[%c0_218, %c342], %317 {strides = array<i32>} : memref<8x524xf32, #tpu.memory_space<vmem>>, vector<8x16xf32>,
    %319 = vector.broadcast %309 : f32 to vector<1x16xf32>
    %c0_219 = arith.constant 0 : index
    %c342_220 = arith.constant 342 : index
    %320 = vector.load %arg22[%c0_219, %c342_220] : memref<1x524xf32, #tpu.memory_space<vmem>>, vector<1x16xf32>
    tpu.vector_store %arg22[%c0_219, %c342_220], %319 {strides = array<i32>} : memref<1x524xf32, #tpu.memory_space<vmem>>, vector<1x16xf32>,
    %c7_i32_221 = arith.constant 7 : i32
    %321 = arith.subi %32, %c7_i32_221 : i32
    %c16_i32_222 = arith.constant 16 : i32
    %322 = arith.addi %321, %c16_i32_222 : i32
    %c0_i32_223 = arith.constant 0 : i32
    %323 = arith.cmpi sge, %322, %c0_i32_223 : i32
    %c16_i32_224 = arith.constant 16 : i32
    %324 = arith.cmpi slt, %322, %c16_i32_224 : i32
    %325 = arith.andi %323, %324 : i1
    %326 = arith.extui %325 : i1 to i32
    %327 = arith.sitofp %326 : i32 to f32
    %c0_i32_225 = arith.constant 0 : i32
    %c15_i32_226 = arith.constant 15 : i32
    %328 = arith.maxsi %c0_i32_225, %322 : i32
    %329 = arith.minsi %c15_i32_226, %328 : i32
    %c0_227 = arith.constant 0 : index
    %c0_228 = arith.constant 0 : index
    %330 = arith.index_cast %329 : i32 to index
    %c0_229 = arith.constant 0 : index
    %331 = vector.load %arg2[%c0_227, %c0_228, %330, %c0_229] : memref<1x8x16x16xf32, #tpu.memory_space<vmem>>, vector<1x8x1x16xf32>
    %332 = vector.shape_cast %331 : vector<1x8x1x16xf32> to vector<8x1x16xf32>
    %333 = vector.shape_cast %332 : vector<8x1x16xf32> to vector<8x16xf32>
    %334 = vector.broadcast %327 : f32 to vector<8x16xf32>
    %335 = arith.mulf %333, %334 : vector<8x16xf32>
    %c0_230 = arith.constant 0 : index
    %c362 = arith.constant 362 : index
    %336 = vector.load %arg14[%c0_230, %c362] : memref<8x524xf32, #tpu.memory_space<vmem>>, vector<8x16xf32>
    tpu.vector_store %arg14[%c0_230, %c362], %335 {strides = array<i32>} : memref<8x524xf32, #tpu.memory_space<vmem>>, vector<8x16xf32>,
    %337 = vector.broadcast %327 : f32 to vector<1x16xf32>
    %c0_231 = arith.constant 0 : index
    %c362_232 = arith.constant 362 : index
    %338 = vector.load %arg22[%c0_231, %c362_232] : memref<1x524xf32, #tpu.memory_space<vmem>>, vector<1x16xf32>
    tpu.vector_store %arg22[%c0_231, %c362_232], %337 {strides = array<i32>} : memref<1x524xf32, #tpu.memory_space<vmem>>, vector<1x16xf32>,
    %c7_i32_233 = arith.constant 7 : i32
    %339 = arith.subi %32, %c7_i32_233 : i32
    %c17_i32 = arith.constant 17 : i32
    %340 = arith.addi %339, %c17_i32 : i32
    %c0_i32_234 = arith.constant 0 : i32
    %341 = arith.cmpi sge, %340, %c0_i32_234 : i32
    %c16_i32_235 = arith.constant 16 : i32
    %342 = arith.cmpi slt, %340, %c16_i32_235 : i32
    %343 = arith.andi %341, %342 : i1
    %344 = arith.extui %343 : i1 to i32
    %345 = arith.sitofp %344 : i32 to f32
    %c0_i32_236 = arith.constant 0 : i32
    %c15_i32_237 = arith.constant 15 : i32
    %346 = arith.maxsi %c0_i32_236, %340 : i32
    %347 = arith.minsi %c15_i32_237, %346 : i32
    %c0_238 = arith.constant 0 : index
    %c0_239 = arith.constant 0 : index
    %348 = arith.index_cast %347 : i32 to index
    %c0_240 = arith.constant 0 : index
    %349 = vector.load %arg2[%c0_238, %c0_239, %348, %c0_240] : memref<1x8x16x16xf32, #tpu.memory_space<vmem>>, vector<1x8x1x16xf32>
    %350 = vector.shape_cast %349 : vector<1x8x1x16xf32> to vector<8x1x16xf32>
    %351 = vector.shape_cast %350 : vector<8x1x16xf32> to vector<8x16xf32>
    %352 = vector.broadcast %345 : f32 to vector<8x16xf32>
    %353 = arith.mulf %351, %352 : vector<8x16xf32>
    %c0_241 = arith.constant 0 : index
    %c382 = arith.constant 382 : index
    %354 = vector.load %arg14[%c0_241, %c382] : memref<8x524xf32, #tpu.memory_space<vmem>>, vector<8x16xf32>
    tpu.vector_store %arg14[%c0_241, %c382], %353 {strides = array<i32>} : memref<8x524xf32, #tpu.memory_space<vmem>>, vector<8x16xf32>,
    %355 = vector.broadcast %345 : f32 to vector<1x16xf32>
    %c0_242 = arith.constant 0 : index
    %c382_243 = arith.constant 382 : index
    %356 = vector.load %arg22[%c0_242, %c382_243] : memref<1x524xf32, #tpu.memory_space<vmem>>, vector<1x16xf32>
    tpu.vector_store %arg22[%c0_242, %c382_243], %355 {strides = array<i32>} : memref<1x524xf32, #tpu.memory_space<vmem>>, vector<1x16xf32>,
    %c7_i32_244 = arith.constant 7 : i32
    %357 = arith.subi %32, %c7_i32_244 : i32
    %c18_i32 = arith.constant 18 : i32
    %358 = arith.addi %357, %c18_i32 : i32
    %c0_i32_245 = arith.constant 0 : i32
    %359 = arith.cmpi sge, %358, %c0_i32_245 : i32
    %c16_i32_246 = arith.constant 16 : i32
    %360 = arith.cmpi slt, %358, %c16_i32_246 : i32
    %361 = arith.andi %359, %360 : i1
    %362 = arith.extui %361 : i1 to i32
    %363 = arith.sitofp %362 : i32 to f32
    %c0_i32_247 = arith.constant 0 : i32
    %c15_i32_248 = arith.constant 15 : i32
    %364 = arith.maxsi %c0_i32_247, %358 : i32
    %365 = arith.minsi %c15_i32_248, %364 : i32
    %c0_249 = arith.constant 0 : index
    %c0_250 = arith.constant 0 : index
    %366 = arith.index_cast %365 : i32 to index
    %c0_251 = arith.constant 0 : index
    %367 = vector.load %arg2[%c0_249, %c0_250, %366, %c0_251] : memref<1x8x16x16xf32, #tpu.memory_space<vmem>>, vector<1x8x1x16xf32>
    %368 = vector.shape_cast %367 : vector<1x8x1x16xf32> to vector<8x1x16xf32>
    %369 = vector.shape_cast %368 : vector<8x1x16xf32> to vector<8x16xf32>
    %370 = vector.broadcast %363 : f32 to vector<8x16xf32>
    %371 = arith.mulf %369, %370 : vector<8x16xf32>
    %c0_252 = arith.constant 0 : index
    %c402 = arith.constant 402 : index
    %372 = vector.load %arg14[%c0_252, %c402] : memref<8x524xf32, #tpu.memory_space<vmem>>, vector<8x16xf32>
    tpu.vector_store %arg14[%c0_252, %c402], %371 {strides = array<i32>} : memref<8x524xf32, #tpu.memory_space<vmem>>, vector<8x16xf32>,
    %373 = vector.broadcast %363 : f32 to vector<1x16xf32>
    %c0_253 = arith.constant 0 : index
    %c402_254 = arith.constant 402 : index
    %374 = vector.load %arg22[%c0_253, %c402_254] : memref<1x524xf32, #tpu.memory_space<vmem>>, vector<1x16xf32>
    tpu.vector_store %arg22[%c0_253, %c402_254], %373 {strides = array<i32>} : memref<1x524xf32, #tpu.memory_space<vmem>>, vector<1x16xf32>,
    %c7_i32_255 = arith.constant 7 : i32
    %375 = arith.subi %32, %c7_i32_255 : i32
    %c19_i32 = arith.constant 19 : i32
    %376 = arith.addi %375, %c19_i32 : i32
    %c0_i32_256 = arith.constant 0 : i32
    %377 = arith.cmpi sge, %376, %c0_i32_256 : i32
    %c16_i32_257 = arith.constant 16 : i32
    %378 = arith.cmpi slt, %376, %c16_i32_257 : i32
    %379 = arith.andi %377, %378 : i1
    %380 = arith.extui %379 : i1 to i32
    %381 = arith.sitofp %380 : i32 to f32
    %c0_i32_258 = arith.constant 0 : i32
    %c15_i32_259 = arith.constant 15 : i32
    %382 = arith.maxsi %c0_i32_258, %376 : i32
    %383 = arith.minsi %c15_i32_259, %382 : i32
    %c0_260 = arith.constant 0 : index
    %c0_261 = arith.constant 0 : index
    %384 = arith.index_cast %383 : i32 to index
    %c0_262 = arith.constant 0 : index
    %385 = vector.load %arg2[%c0_260, %c0_261, %384, %c0_262] : memref<1x8x16x16xf32, #tpu.memory_space<vmem>>, vector<1x8x1x16xf32>
    %386 = vector.shape_cast %385 : vector<1x8x1x16xf32> to vector<8x1x16xf32>
    %387 = vector.shape_cast %386 : vector<8x1x16xf32> to vector<8x16xf32>
    %388 = vector.broadcast %381 : f32 to vector<8x16xf32>
    %389 = arith.mulf %387, %388 : vector<8x16xf32>
    %c0_263 = arith.constant 0 : index
    %c422 = arith.constant 422 : index
    %390 = vector.load %arg14[%c0_263, %c422] : memref<8x524xf32, #tpu.memory_space<vmem>>, vector<8x16xf32>
    tpu.vector_store %arg14[%c0_263, %c422], %389 {strides = array<i32>} : memref<8x524xf32, #tpu.memory_space<vmem>>, vector<8x16xf32>,
    %391 = vector.broadcast %381 : f32 to vector<1x16xf32>
    %c0_264 = arith.constant 0 : index
    %c422_265 = arith.constant 422 : index
    %392 = vector.load %arg22[%c0_264, %c422_265] : memref<1x524xf32, #tpu.memory_space<vmem>>, vector<1x16xf32>
    tpu.vector_store %arg22[%c0_264, %c422_265], %391 {strides = array<i32>} : memref<1x524xf32, #tpu.memory_space<vmem>>, vector<1x16xf32>,
    %c7_i32_266 = arith.constant 7 : i32
    %393 = arith.subi %32, %c7_i32_266 : i32
    %c20_i32 = arith.constant 20 : i32
    %394 = arith.addi %393, %c20_i32 : i32
    %c0_i32_267 = arith.constant 0 : i32
    %395 = arith.cmpi sge, %394, %c0_i32_267 : i32
    %c16_i32_268 = arith.constant 16 : i32
    %396 = arith.cmpi slt, %394, %c16_i32_268 : i32
    %397 = arith.andi %395, %396 : i1
    %398 = arith.extui %397 : i1 to i32
    %399 = arith.sitofp %398 : i32 to f32
    %c0_i32_269 = arith.constant 0 : i32
    %c15_i32_270 = arith.constant 15 : i32
    %400 = arith.maxsi %c0_i32_269, %394 : i32
    %401 = arith.minsi %c15_i32_270, %400 : i32
    %c0_271 = arith.constant 0 : index
    %c0_272 = arith.constant 0 : index
    %402 = arith.index_cast %401 : i32 to index
    %c0_273 = arith.constant 0 : index
    %403 = vector.load %arg2[%c0_271, %c0_272, %402, %c0_273] : memref<1x8x16x16xf32, #tpu.memory_space<vmem>>, vector<1x8x1x16xf32>
    %404 = vector.shape_cast %403 : vector<1x8x1x16xf32> to vector<8x1x16xf32>
    %405 = vector.shape_cast %404 : vector<8x1x16xf32> to vector<8x16xf32>
    %406 = vector.broadcast %399 : f32 to vector<8x16xf32>
    %407 = arith.mulf %405, %406 : vector<8x16xf32>
    %c0_274 = arith.constant 0 : index
    %c442 = arith.constant 442 : index
    %408 = vector.load %arg14[%c0_274, %c442] : memref<8x524xf32, #tpu.memory_space<vmem>>, vector<8x16xf32>
    tpu.vector_store %arg14[%c0_274, %c442], %407 {strides = array<i32>} : memref<8x524xf32, #tpu.memory_space<vmem>>, vector<8x16xf32>,
    %409 = vector.broadcast %399 : f32 to vector<1x16xf32>
    %c0_275 = arith.constant 0 : index
    %c442_276 = arith.constant 442 : index
    %410 = vector.load %arg22[%c0_275, %c442_276] : memref<1x524xf32, #tpu.memory_space<vmem>>, vector<1x16xf32>
    tpu.vector_store %arg22[%c0_275, %c442_276], %409 {strides = array<i32>} : memref<1x524xf32, #tpu.memory_space<vmem>>, vector<1x16xf32>,
    %c7_i32_277 = arith.constant 7 : i32
    %411 = arith.subi %32, %c7_i32_277 : i32
    %c21_i32 = arith.constant 21 : i32
    %412 = arith.addi %411, %c21_i32 : i32
    %c0_i32_278 = arith.constant 0 : i32
    %413 = arith.cmpi sge, %412, %c0_i32_278 : i32
    %c16_i32_279 = arith.constant 16 : i32
    %414 = arith.cmpi slt, %412, %c16_i32_279 : i32
    %415 = arith.andi %413, %414 : i1
    %416 = arith.extui %415 : i1 to i32
    %417 = arith.sitofp %416 : i32 to f32
    %c0_i32_280 = arith.constant 0 : i32
    %c15_i32_281 = arith.constant 15 : i32
    %418 = arith.maxsi %c0_i32_280, %412 : i32
    %419 = arith.minsi %c15_i32_281, %418 : i32
    %c0_282 = arith.constant 0 : index
    %c0_283 = arith.constant 0 : index
    %420 = arith.index_cast %419 : i32 to index
    %c0_284 = arith.constant 0 : index
    %421 = vector.load %arg2[%c0_282, %c0_283, %420, %c0_284] : memref<1x8x16x16xf32, #tpu.memory_space<vmem>>, vector<1x8x1x16xf32>
    %422 = vector.shape_cast %421 : vector<1x8x1x16xf32> to vector<8x1x16xf32>
    %423 = vector.shape_cast %422 : vector<8x1x16xf32> to vector<8x16xf32>
    %424 = vector.broadcast %417 : f32 to vector<8x16xf32>
    %425 = arith.mulf %423, %424 : vector<8x16xf32>
    %c0_285 = arith.constant 0 : index
    %c462 = arith.constant 462 : index
    %426 = vector.load %arg14[%c0_285, %c462] : memref<8x524xf32, #tpu.memory_space<vmem>>, vector<8x16xf32>
    tpu.vector_store %arg14[%c0_285, %c462], %425 {strides = array<i32>} : memref<8x524xf32, #tpu.memory_space<vmem>>, vector<8x16xf32>,
    %427 = vector.broadcast %417 : f32 to vector<1x16xf32>
    %c0_286 = arith.constant 0 : index
    %c462_287 = arith.constant 462 : index
    %428 = vector.load %arg22[%c0_286, %c462_287] : memref<1x524xf32, #tpu.memory_space<vmem>>, vector<1x16xf32>
    tpu.vector_store %arg22[%c0_286, %c462_287], %427 {strides = array<i32>} : memref<1x524xf32, #tpu.memory_space<vmem>>, vector<1x16xf32>,
    %c0_288 = arith.constant 0 : index
    %c42_289 = arith.constant 42 : index
    %429 = vector.load %arg22[%c0_288, %c42_289] : memref<1x524xf32, #tpu.memory_space<vmem>>, vector<1x440xf32>
    %cst_290 = arith.constant 0.000000e+00 : f32
    %430 = vector.broadcast %cst_290 : f32 to vector<3x440xf32>
    %cst_291 = arith.constant 0.000000e+00 : f32
    %431 = vector.broadcast %cst_291 : f32 to vector<3x440xf32>
    %c0_292 = arith.constant 0 : index
    %c40 = arith.constant 40 : index
    %432 = vector.load %arg14[%c0_292, %c40] : memref<8x524xf32, #tpu.memory_space<vmem>>, vector<3x440xf32>
    %433 = arith.addf %430, %432 : vector<3x440xf32>
    %434 = arith.mulf %432, %432 : vector<3x440xf32>
    %435 = arith.addf %431, %434 : vector<3x440xf32>
    %c0_293 = arith.constant 0 : index
    %c41 = arith.constant 41 : index
    %436 = vector.load %arg14[%c0_293, %c41] : memref<8x524xf32, #tpu.memory_space<vmem>>, vector<3x440xf32>
    %437 = arith.addf %433, %436 : vector<3x440xf32>
    %438 = arith.mulf %436, %436 : vector<3x440xf32>
    %439 = arith.addf %435, %438 : vector<3x440xf32>
    %c0_294 = arith.constant 0 : index
    %c42_295 = arith.constant 42 : index
    %440 = vector.load %arg14[%c0_294, %c42_295] : memref<8x524xf32, #tpu.memory_space<vmem>>, vector<3x440xf32>
    %441 = arith.addf %437, %440 : vector<3x440xf32>
    %442 = arith.mulf %440, %440 : vector<3x440xf32>
    %443 = arith.addf %439, %442 : vector<3x440xf32>
    %c0_296 = arith.constant 0 : index
    %c43 = arith.constant 43 : index
    %444 = vector.load %arg14[%c0_296, %c43] : memref<8x524xf32, #tpu.memory_space<vmem>>, vector<3x440xf32>
    %445 = arith.addf %441, %444 : vector<3x440xf32>
    %446 = arith.mulf %444, %444 : vector<3x440xf32>
    %447 = arith.addf %443, %446 : vector<3x440xf32>
    %c0_297 = arith.constant 0 : index
    %c44 = arith.constant 44 : index
    %448 = vector.load %arg14[%c0_297, %c44] : memref<8x524xf32, #tpu.memory_space<vmem>>, vector<3x440xf32>
    %449 = arith.addf %445, %448 : vector<3x440xf32>
    %450 = arith.mulf %448, %448 : vector<3x440xf32>
    %451 = arith.addf %447, %450 : vector<3x440xf32>
    %c0_298 = arith.constant 0 : index
    %c42_299 = arith.constant 42 : index
    %452 = vector.load %arg15[%c0_298, %c42_299] : memref<3x524xf32, #tpu.memory_space<vmem>>, vector<3x440xf32>
    tpu.vector_store %arg15[%c0_298, %c42_299], %449 {strides = array<i32>} : memref<3x524xf32, #tpu.memory_space<vmem>>, vector<3x440xf32>,
    %c0_300 = arith.constant 0 : index
    %c42_301 = arith.constant 42 : index
    %453 = vector.load %arg16[%c0_300, %c42_301] : memref<3x524xf32, #tpu.memory_space<vmem>>, vector<3x440xf32>
    tpu.vector_store %arg16[%c0_300, %c42_301], %451 {strides = array<i32>} : memref<3x524xf32, #tpu.memory_space<vmem>>, vector<3x440xf32>,
    %cst_302 = arith.constant 0.000000e+00 : f32
    %454 = vector.broadcast %cst_302 : f32 to vector<3x440xf32>
    %cst_303 = arith.constant 0.000000e+00 : f32
    %455 = vector.broadcast %cst_303 : f32 to vector<3x440xf32>
    %c0_304 = arith.constant 0 : index
    %c2 = arith.constant 2 : index
    %456 = vector.load %arg15[%c0_304, %c2] : memref<3x524xf32, #tpu.memory_space<vmem>>, vector<3x440xf32>
    %457 = arith.addf %454, %456 : vector<3x440xf32>
    %c0_305 = arith.constant 0 : index
    %c2_306 = arith.constant 2 : index
    %458 = vector.load %arg16[%c0_305, %c2_306] : memref<3x524xf32, #tpu.memory_space<vmem>>, vector<3x440xf32>
    %459 = arith.addf %455, %458 : vector<3x440xf32>
    %c0_307 = arith.constant 0 : index
    %c22 = arith.constant 22 : index
    %460 = vector.load %arg15[%c0_307, %c22] : memref<3x524xf32, #tpu.memory_space<vmem>>, vector<3x440xf32>
    %461 = arith.addf %457, %460 : vector<3x440xf32>
    %c0_308 = arith.constant 0 : index
    %c22_309 = arith.constant 22 : index
    %462 = vector.load %arg16[%c0_308, %c22_309] : memref<3x524xf32, #tpu.memory_space<vmem>>, vector<3x440xf32>
    %463 = arith.addf %459, %462 : vector<3x440xf32>
    %c0_310 = arith.constant 0 : index
    %c42_311 = arith.constant 42 : index
    %464 = vector.load %arg15[%c0_310, %c42_311] : memref<3x524xf32, #tpu.memory_space<vmem>>, vector<3x440xf32>
    %465 = arith.addf %461, %464 : vector<3x440xf32>
    %c0_312 = arith.constant 0 : index
    %c42_313 = arith.constant 42 : index
    %466 = vector.load %arg16[%c0_312, %c42_313] : memref<3x524xf32, #tpu.memory_space<vmem>>, vector<3x440xf32>
    %467 = arith.addf %463, %466 : vector<3x440xf32>
    %c0_314 = arith.constant 0 : index
    %c62_315 = arith.constant 62 : index
    %468 = vector.load %arg15[%c0_314, %c62_315] : memref<3x524xf32, #tpu.memory_space<vmem>>, vector<3x440xf32>
    %469 = arith.addf %465, %468 : vector<3x440xf32>
    %c0_316 = arith.constant 0 : index
    %c62_317 = arith.constant 62 : index
    %470 = vector.load %arg16[%c0_316, %c62_317] : memref<3x524xf32, #tpu.memory_space<vmem>>, vector<3x440xf32>
    %471 = arith.addf %467, %470 : vector<3x440xf32>
    %c0_318 = arith.constant 0 : index
    %c82_319 = arith.constant 82 : index
    %472 = vector.load %arg15[%c0_318, %c82_319] : memref<3x524xf32, #tpu.memory_space<vmem>>, vector<3x440xf32>
    %473 = arith.addf %469, %472 : vector<3x440xf32>
    %c0_320 = arith.constant 0 : index
    %c82_321 = arith.constant 82 : index
    %474 = vector.load %arg16[%c0_320, %c82_321] : memref<3x524xf32, #tpu.memory_space<vmem>>, vector<3x440xf32>
    %475 = arith.addf %471, %474 : vector<3x440xf32>
    %c0_322 = arith.constant 0 : index
    %c42_323 = arith.constant 42 : index
    %476 = vector.load %arg14[%c0_322, %c42_323] : memref<8x524xf32, #tpu.memory_space<vmem>>, vector<3x440xf32>
    %cst_324 = arith.constant 4.000000e-02 : f32
    %477 = vector.broadcast %cst_324 : f32 to vector<3x440xf32>
    %478 = arith.mulf %473, %477 : vector<3x440xf32>
    %479 = arith.mulf %478, %478 : vector<3x440xf32>
    %480 = arith.subf %475, %479 : vector<3x440xf32>
    %cst_325 = arith.constant 9.99999974E-6 : f32
    %481 = vector.broadcast %cst_325 : f32 to vector<3x440xf32>
    %482 = arith.addf %480, %481 : vector<3x440xf32>
    %483 = arith.subf %476, %478 : vector<3x440xf32>
    %484 = arith.divf %483, %482 : vector<3x440xf32>
    %485 = vector.broadcast %429 : vector<1x440xf32> to vector<3x440xf32>
    %486 = arith.mulf %484, %485 : vector<3x440xf32>
    %c0_326 = arith.constant 0 : index
    %c42_327 = arith.constant 42 : index
    %487 = vector.load %arg17[%c0_326, %c42_327] : memref<3x524xf32, #tpu.memory_space<vmem>>, vector<3x440xf32>
    tpu.vector_store %arg17[%c0_326, %c42_327], %486 {strides = array<i32>} : memref<3x524xf32, #tpu.memory_space<vmem>>, vector<3x440xf32>,
    %c0_328 = arith.constant 0 : index
    %c21 = arith.constant 21 : index
    %488 = vector.load %arg17[%c0_328, %c21] : memref<3x524xf32, #tpu.memory_space<vmem>>, vector<3x440xf32>
    %c0_329 = arith.constant 0 : index
    %c0_330 = arith.constant 0 : index
    %489 = vector.load %arg23[%c0_329, %c0_330] : memref<108x440xf32, #tpu.memory_space<vmem>>, vector<3x440xf32>
    tpu.vector_store %arg23[%c0_329, %c0_330], %488 {strides = array<i32>} : memref<108x440xf32, #tpu.memory_space<vmem>>, vector<3x440xf32>,
    %c0_331 = arith.constant 0 : index
    %c21_332 = arith.constant 21 : index
    %490 = vector.load %arg14[%c0_331, %c21_332] : memref<8x524xf32, #tpu.memory_space<vmem>>, vector<3x440xf32>
    %c3 = arith.constant 3 : index
    %c0_333 = arith.constant 0 : index
    %491 = vector.load %arg23[%c3, %c0_333] : memref<108x440xf32, #tpu.memory_space<vmem>>, vector<3x440xf32>
    tpu.vector_store %arg23[%c3, %c0_333], %490 {strides = array<i32>} : memref<108x440xf32, #tpu.memory_space<vmem>>, vector<3x440xf32>,
    %c0_334 = arith.constant 0 : index
    %c22_335 = arith.constant 22 : index
    %492 = vector.load %arg17[%c0_334, %c22_335] : memref<3x524xf32, #tpu.memory_space<vmem>>, vector<3x440xf32>
    %c6 = arith.constant 6 : index
    %c0_336 = arith.constant 0 : index
    %493 = vector.load %arg23[%c6, %c0_336] : memref<108x440xf32, #tpu.memory_space<vmem>>, vector<3x440xf32>
    tpu.vector_store %arg23[%c6, %c0_336], %492 {strides = array<i32>} : memref<108x440xf32, #tpu.memory_space<vmem>>, vector<3x440xf32>,
    %c0_337 = arith.constant 0 : index
    %c22_338 = arith.constant 22 : index
    %494 = vector.load %arg14[%c0_337, %c22_338] : memref<8x524xf32, #tpu.memory_space<vmem>>, vector<3x440xf32>
    %c9 = arith.constant 9 : index
    %c0_339 = arith.constant 0 : index
    %495 = vector.load %arg23[%c9, %c0_339] : memref<108x440xf32, #tpu.memory_space<vmem>>, vector<3x440xf32>
    tpu.vector_store %arg23[%c9, %c0_339], %494 {strides = array<i32>} : memref<108x440xf32, #tpu.memory_space<vmem>>, vector<3x440xf32>,
    %c0_340 = arith.constant 0 : index
    %c23 = arith.constant 23 : index
    %496 = vector.load %arg17[%c0_340, %c23] : memref<3x524xf32, #tpu.memory_space<vmem>>, vector<3x440xf32>
    %c12 = arith.constant 12 : index
    %c0_341 = arith.constant 0 : index
    %497 = vector.load %arg23[%c12, %c0_341] : memref<108x440xf32, #tpu.memory_space<vmem>>, vector<3x440xf32>
    tpu.vector_store %arg23[%c12, %c0_341], %496 {strides = array<i32>} : memref<108x440xf32, #tpu.memory_space<vmem>>, vector<3x440xf32>,
    %c0_342 = arith.constant 0 : index
    %c23_343 = arith.constant 23 : index
    %498 = vector.load %arg14[%c0_342, %c23_343] : memref<8x524xf32, #tpu.memory_space<vmem>>, vector<3x440xf32>
    %c15 = arith.constant 15 : index
    %c0_344 = arith.constant 0 : index
    %499 = vector.load %arg23[%c15, %c0_344] : memref<108x440xf32, #tpu.memory_space<vmem>>, vector<3x440xf32>
    tpu.vector_store %arg23[%c15, %c0_344], %498 {strides = array<i32>} : memref<108x440xf32, #tpu.memory_space<vmem>>, vector<3x440xf32>,
    %c0_345 = arith.constant 0 : index
    %c41_346 = arith.constant 41 : index
    %500 = vector.load %arg17[%c0_345, %c41_346] : memref<3x524xf32, #tpu.memory_space<vmem>>, vector<3x440xf32>
    %c18 = arith.constant 18 : index
    %c0_347 = arith.constant 0 : index
    %501 = vector.load %arg23[%c18, %c0_347] : memref<108x440xf32, #tpu.memory_space<vmem>>, vector<3x440xf32>
    tpu.vector_store %arg23[%c18, %c0_347], %500 {strides = array<i32>} : memref<108x440xf32, #tpu.memory_space<vmem>>, vector<3x440xf32>,
    %c0_348 = arith.constant 0 : index
    %c41_349 = arith.constant 41 : index
    %502 = vector.load %arg14[%c0_348, %c41_349] : memref<8x524xf32, #tpu.memory_space<vmem>>, vector<3x440xf32>
    %c21_350 = arith.constant 21 : index
    %c0_351 = arith.constant 0 : index
    %503 = vector.load %arg23[%c21_350, %c0_351] : memref<108x440xf32, #tpu.memory_space<vmem>>, vector<3x440xf32>
    tpu.vector_store %arg23[%c21_350, %c0_351], %502 {strides = array<i32>} : memref<108x440xf32, #tpu.memory_space<vmem>>, vector<3x440xf32>,
    %c0_352 = arith.constant 0 : index
    %c42_353 = arith.constant 42 : index
    %504 = vector.load %arg17[%c0_352, %c42_353] : memref<3x524xf32, #tpu.memory_space<vmem>>, vector<3x440xf32>
    %c24 = arith.constant 24 : index
    %c0_354 = arith.constant 0 : index
    %505 = vector.load %arg23[%c24, %c0_354] : memref<108x440xf32, #tpu.memory_space<vmem>>, vector<3x440xf32>
    tpu.vector_store %arg23[%c24, %c0_354], %504 {strides = array<i32>} : memref<108x440xf32, #tpu.memory_space<vmem>>, vector<3x440xf32>,
    %c0_355 = arith.constant 0 : index
    %c42_356 = arith.constant 42 : index
    %506 = vector.load %arg14[%c0_355, %c42_356] : memref<8x524xf32, #tpu.memory_space<vmem>>, vector<3x440xf32>
    %c27 = arith.constant 27 : index
    %c0_357 = arith.constant 0 : index
    %507 = vector.load %arg23[%c27, %c0_357] : memref<108x440xf32, #tpu.memory_space<vmem>>, vector<3x440xf32>
    tpu.vector_store %arg23[%c27, %c0_357], %506 {strides = array<i32>} : memref<108x440xf32, #tpu.memory_space<vmem>>, vector<3x440xf32>,
    %c0_358 = arith.constant 0 : index
    %c43_359 = arith.constant 43 : index
    %508 = vector.load %arg17[%c0_358, %c43_359] : memref<3x524xf32, #tpu.memory_space<vmem>>, vector<3x440xf32>
    %c30 = arith.constant 30 : index
    %c0_360 = arith.constant 0 : index
    %509 = vector.load %arg23[%c30, %c0_360] : memref<108x440xf32, #tpu.memory_space<vmem>>, vector<3x440xf32>
    tpu.vector_store %arg23[%c30, %c0_360], %508 {strides = array<i32>} : memref<108x440xf32, #tpu.memory_space<vmem>>, vector<3x440xf32>,
    %c0_361 = arith.constant 0 : index
    %c43_362 = arith.constant 43 : index
    %510 = vector.load %arg14[%c0_361, %c43_362] : memref<8x524xf32, #tpu.memory_space<vmem>>, vector<3x440xf32>
    %c33 = arith.constant 33 : index
    %c0_363 = arith.constant 0 : index
    %511 = vector.load %arg23[%c33, %c0_363] : memref<108x440xf32, #tpu.memory_space<vmem>>, vector<3x440xf32>
    tpu.vector_store %arg23[%c33, %c0_363], %510 {strides = array<i32>} : memref<108x440xf32, #tpu.memory_space<vmem>>, vector<3x440xf32>,
    %c0_364 = arith.constant 0 : index
    %c61 = arith.constant 61 : index
    %512 = vector.load %arg17[%c0_364, %c61] : memref<3x524xf32, #tpu.memory_space<vmem>>, vector<3x440xf32>
    %c36 = arith.constant 36 : index
    %c0_365 = arith.constant 0 : index
    %513 = vector.load %arg23[%c36, %c0_365] : memref<108x440xf32, #tpu.memory_space<vmem>>, vector<3x440xf32>
    tpu.vector_store %arg23[%c36, %c0_365], %512 {strides = array<i32>} : memref<108x440xf32, #tpu.memory_space<vmem>>, vector<3x440xf32>,
    %c0_366 = arith.constant 0 : index
    %c61_367 = arith.constant 61 : index
    %514 = vector.load %arg14[%c0_366, %c61_367] : memref<8x524xf32, #tpu.memory_space<vmem>>, vector<3x440xf32>
    %c39 = arith.constant 39 : index
    %c0_368 = arith.constant 0 : index
    %515 = vector.load %arg23[%c39, %c0_368] : memref<108x440xf32, #tpu.memory_space<vmem>>, vector<3x440xf32>
    tpu.vector_store %arg23[%c39, %c0_368], %514 {strides = array<i32>} : memref<108x440xf32, #tpu.memory_space<vmem>>, vector<3x440xf32>,
    %c0_369 = arith.constant 0 : index
    %c62_370 = arith.constant 62 : index
    %516 = vector.load %arg17[%c0_369, %c62_370] : memref<3x524xf32, #tpu.memory_space<vmem>>, vector<3x440xf32>
    %c42_371 = arith.constant 42 : index
    %c0_372 = arith.constant 0 : index
    %517 = vector.load %arg23[%c42_371, %c0_372] : memref<108x440xf32, #tpu.memory_space<vmem>>, vector<3x440xf32>
    tpu.vector_store %arg23[%c42_371, %c0_372], %516 {strides = array<i32>} : memref<108x440xf32, #tpu.memory_space<vmem>>, vector<3x440xf32>,
    %c0_373 = arith.constant 0 : index
    %c62_374 = arith.constant 62 : index
    %518 = vector.load %arg14[%c0_373, %c62_374] : memref<8x524xf32, #tpu.memory_space<vmem>>, vector<3x440xf32>
    %c45 = arith.constant 45 : index
    %c0_375 = arith.constant 0 : index
    %519 = vector.load %arg23[%c45, %c0_375] : memref<108x440xf32, #tpu.memory_space<vmem>>, vector<3x440xf32>
    tpu.vector_store %arg23[%c45, %c0_375], %518 {strides = array<i32>} : memref<108x440xf32, #tpu.memory_space<vmem>>, vector<3x440xf32>,
    %c0_376 = arith.constant 0 : index
    %c63 = arith.constant 63 : index
    %520 = vector.load %arg17[%c0_376, %c63] : memref<3x524xf32, #tpu.memory_space<vmem>>, vector<3x440xf32>
    %c48 = arith.constant 48 : index
    %c0_377 = arith.constant 0 : index
    %521 = vector.load %arg23[%c48, %c0_377] : memref<108x440xf32, #tpu.memory_space<vmem>>, vector<3x440xf32>
    tpu.vector_store %arg23[%c48, %c0_377], %520 {strides = array<i32>} : memref<108x440xf32, #tpu.memory_space<vmem>>, vector<3x440xf32>,
    %c0_378 = arith.constant 0 : index
    %c63_379 = arith.constant 63 : index
    %522 = vector.load %arg14[%c0_378, %c63_379] : memref<8x524xf32, #tpu.memory_space<vmem>>, vector<3x440xf32>
    %c51 = arith.constant 51 : index
    %c0_380 = arith.constant 0 : index
    %523 = vector.load %arg23[%c51, %c0_380] : memref<108x440xf32, #tpu.memory_space<vmem>>, vector<3x440xf32>
    tpu.vector_store %arg23[%c51, %c0_380], %522 {strides = array<i32>} : memref<108x440xf32, #tpu.memory_space<vmem>>, vector<3x440xf32>,
    %c0_381 = arith.constant 0 : index
    %c0_382 = arith.constant 0 : index
    %524 = vector.load %arg3[%c0_381, %c0_382] : memref<6x54xf32, #tpu.memory_space<vmem>>, vector<6x54xf32>
    %c0_383 = arith.constant 0 : index
    %c0_384 = arith.constant 0 : index
    %525 = vector.load %arg23[%c0_383, %c0_384] : memref<108x440xf32, #tpu.memory_space<vmem>>, vector<54x440xf32>
    %cst_385 = arith.constant dense<0.000000e+00> : vector<6x440xf32>
    %526 = tpu.matmul %524, %525, %cst_385 {dimension_numbers = #tpu.dot_dimension_numbers<[1], [0], [0], [1], [0, 0, 1, 1], [], []>} : vector<6x54xf32>, vector<54x440xf32>, vector<6x440xf32> -> vector<6x440xf32>
    %c0_386 = arith.constant 0 : index
    %c0_387 = arith.constant 0 : index
    %527 = vector.load %arg4[%c0_386, %c0_387] : memref<6x1xf32, #tpu.memory_space<vmem>>, vector<6x1xf32>
    %528 = vector.broadcast %527 : vector<6x1xf32> to vector<6x440xf32>
    %529 = arith.addf %526, %528 : vector<6x440xf32>
    %cst_388 = arith.constant 0.000000e+00 : f32
    %530 = vector.broadcast %cst_388 : f32 to vector<6x440xf32>
    %531 = arith.maximumf %529, %530 : vector<6x440xf32>
    %532 = vector.broadcast %429 : vector<1x440xf32> to vector<6x440xf32>
    %533 = arith.mulf %531, %532 : vector<6x440xf32>
    %c0_389 = arith.constant 0 : index
    %c42_390 = arith.constant 42 : index
    %534 = vector.load %arg18[%c0_389, %c42_390] : memref<6x524xf32, #tpu.memory_space<vmem>>, vector<6x440xf32>
    tpu.vector_store %arg18[%c0_389, %c42_390], %533 {strides = array<i32>} : memref<6x524xf32, #tpu.memory_space<vmem>>, vector<6x440xf32>,
    %c0_391 = arith.constant 0 : index
    %c21_392 = arith.constant 21 : index
    %535 = vector.load %arg18[%c0_391, %c21_392] : memref<6x524xf32, #tpu.memory_space<vmem>>, vector<6x440xf32>
    %c0_393 = arith.constant 0 : index
    %c0_394 = arith.constant 0 : index
    %536 = vector.load %arg23[%c0_393, %c0_394] : memref<108x440xf32, #tpu.memory_space<vmem>>, vector<6x440xf32>
    tpu.vector_store %arg23[%c0_393, %c0_394], %535 {strides = array<i32>} : memref<108x440xf32, #tpu.memory_space<vmem>>, vector<6x440xf32>,
    %c0_395 = arith.constant 0 : index
    %c22_396 = arith.constant 22 : index
    %537 = vector.load %arg18[%c0_395, %c22_396] : memref<6x524xf32, #tpu.memory_space<vmem>>, vector<6x440xf32>
    %c6_397 = arith.constant 6 : index
    %c0_398 = arith.constant 0 : index
    %538 = vector.load %arg23[%c6_397, %c0_398] : memref<108x440xf32, #tpu.memory_space<vmem>>, vector<6x440xf32>
    tpu.vector_store %arg23[%c6_397, %c0_398], %537 {strides = array<i32>} : memref<108x440xf32, #tpu.memory_space<vmem>>, vector<6x440xf32>,
    %c0_399 = arith.constant 0 : index
    %c23_400 = arith.constant 23 : index
    %539 = vector.load %arg18[%c0_399, %c23_400] : memref<6x524xf32, #tpu.memory_space<vmem>>, vector<6x440xf32>
    %c12_401 = arith.constant 12 : index
    %c0_402 = arith.constant 0 : index
    %540 = vector.load %arg23[%c12_401, %c0_402] : memref<108x440xf32, #tpu.memory_space<vmem>>, vector<6x440xf32>
    tpu.vector_store %arg23[%c12_401, %c0_402], %539 {strides = array<i32>} : memref<108x440xf32, #tpu.memory_space<vmem>>, vector<6x440xf32>,
    %c0_403 = arith.constant 0 : index
    %c41_404 = arith.constant 41 : index
    %541 = vector.load %arg18[%c0_403, %c41_404] : memref<6x524xf32, #tpu.memory_space<vmem>>, vector<6x440xf32>
    %c18_405 = arith.constant 18 : index
    %c0_406 = arith.constant 0 : index
    %542 = vector.load %arg23[%c18_405, %c0_406] : memref<108x440xf32, #tpu.memory_space<vmem>>, vector<6x440xf32>
    tpu.vector_store %arg23[%c18_405, %c0_406], %541 {strides = array<i32>} : memref<108x440xf32, #tpu.memory_space<vmem>>, vector<6x440xf32>,
    %c0_407 = arith.constant 0 : index
    %c42_408 = arith.constant 42 : index
    %543 = vector.load %arg18[%c0_407, %c42_408] : memref<6x524xf32, #tpu.memory_space<vmem>>, vector<6x440xf32>
    %c24_409 = arith.constant 24 : index
    %c0_410 = arith.constant 0 : index
    %544 = vector.load %arg23[%c24_409, %c0_410] : memref<108x440xf32, #tpu.memory_space<vmem>>, vector<6x440xf32>
    tpu.vector_store %arg23[%c24_409, %c0_410], %543 {strides = array<i32>} : memref<108x440xf32, #tpu.memory_space<vmem>>, vector<6x440xf32>,
    %c0_411 = arith.constant 0 : index
    %c43_412 = arith.constant 43 : index
    %545 = vector.load %arg18[%c0_411, %c43_412] : memref<6x524xf32, #tpu.memory_space<vmem>>, vector<6x440xf32>
    %c30_413 = arith.constant 30 : index
    %c0_414 = arith.constant 0 : index
    %546 = vector.load %arg23[%c30_413, %c0_414] : memref<108x440xf32, #tpu.memory_space<vmem>>, vector<6x440xf32>
    tpu.vector_store %arg23[%c30_413, %c0_414], %545 {strides = array<i32>} : memref<108x440xf32, #tpu.memory_space<vmem>>, vector<6x440xf32>,
    %c0_415 = arith.constant 0 : index
    %c61_416 = arith.constant 61 : index
    %547 = vector.load %arg18[%c0_415, %c61_416] : memref<6x524xf32, #tpu.memory_space<vmem>>, vector<6x440xf32>
    %c36_417 = arith.constant 36 : index
    %c0_418 = arith.constant 0 : index
    %548 = vector.load %arg23[%c36_417, %c0_418] : memref<108x440xf32, #tpu.memory_space<vmem>>, vector<6x440xf32>
    tpu.vector_store %arg23[%c36_417, %c0_418], %547 {strides = array<i32>} : memref<108x440xf32, #tpu.memory_space<vmem>>, vector<6x440xf32>,
    %c0_419 = arith.constant 0 : index
    %c62_420 = arith.constant 62 : index
    %549 = vector.load %arg18[%c0_419, %c62_420] : memref<6x524xf32, #tpu.memory_space<vmem>>, vector<6x440xf32>
    %c42_421 = arith.constant 42 : index
    %c0_422 = arith.constant 0 : index
    %550 = vector.load %arg23[%c42_421, %c0_422] : memref<108x440xf32, #tpu.memory_space<vmem>>, vector<6x440xf32>
    tpu.vector_store %arg23[%c42_421, %c0_422], %549 {strides = array<i32>} : memref<108x440xf32, #tpu.memory_space<vmem>>, vector<6x440xf32>,
    %c0_423 = arith.constant 0 : index
    %c63_424 = arith.constant 63 : index
    %551 = vector.load %arg18[%c0_423, %c63_424] : memref<6x524xf32, #tpu.memory_space<vmem>>, vector<6x440xf32>
    %c48_425 = arith.constant 48 : index
    %c0_426 = arith.constant 0 : index
    %552 = vector.load %arg23[%c48_425, %c0_426] : memref<108x440xf32, #tpu.memory_space<vmem>>, vector<6x440xf32>
    tpu.vector_store %arg23[%c48_425, %c0_426], %551 {strides = array<i32>} : memref<108x440xf32, #tpu.memory_space<vmem>>, vector<6x440xf32>,
    %c0_427 = arith.constant 0 : index
    %c0_428 = arith.constant 0 : index
    %553 = vector.load %arg5[%c0_427, %c0_428] : memref<12x54xf32, #tpu.memory_space<vmem>>, vector<12x54xf32>
    %c0_429 = arith.constant 0 : index
    %c0_430 = arith.constant 0 : index
    %554 = vector.load %arg23[%c0_429, %c0_430] : memref<108x440xf32, #tpu.memory_space<vmem>>, vector<54x440xf32>
    %cst_431 = arith.constant dense<0.000000e+00> : vector<12x440xf32>
    %555 = tpu.matmul %553, %554, %cst_431 {dimension_numbers = #tpu.dot_dimension_numbers<[1], [0], [0], [1], [0, 0, 1, 1], [], []>} : vector<12x54xf32>, vector<54x440xf32>, vector<12x440xf32> -> vector<12x440xf32>
    %c0_432 = arith.constant 0 : index
    %c0_433 = arith.constant 0 : index
    %556 = vector.load %arg6[%c0_432, %c0_433] : memref<12x1xf32, #tpu.memory_space<vmem>>, vector<12x1xf32>
    %557 = vector.broadcast %556 : vector<12x1xf32> to vector<12x440xf32>
    %558 = arith.addf %555, %557 : vector<12x440xf32>
    %cst_434 = arith.constant 0.000000e+00 : f32
    %559 = vector.broadcast %cst_434 : f32 to vector<12x440xf32>
    %560 = arith.maximumf %558, %559 : vector<12x440xf32>
    %561 = vector.broadcast %429 : vector<1x440xf32> to vector<12x440xf32>
    %562 = arith.mulf %560, %561 : vector<12x440xf32>
    %c0_435 = arith.constant 0 : index
    %c42_436 = arith.constant 42 : index
    %563 = vector.load %arg19[%c0_435, %c42_436] : memref<12x524xf32, #tpu.memory_space<vmem>>, vector<12x440xf32>
    tpu.vector_store %arg19[%c0_435, %c42_436], %562 {strides = array<i32>} : memref<12x524xf32, #tpu.memory_space<vmem>>, vector<12x440xf32>,
    %c0_437 = arith.constant 0 : index
    %c21_438 = arith.constant 21 : index
    %564 = vector.load %arg19[%c0_437, %c21_438] : memref<12x524xf32, #tpu.memory_space<vmem>>, vector<12x440xf32>
    %c0_439 = arith.constant 0 : index
    %c0_440 = arith.constant 0 : index
    %565 = vector.load %arg23[%c0_439, %c0_440] : memref<108x440xf32, #tpu.memory_space<vmem>>, vector<12x440xf32>
    tpu.vector_store %arg23[%c0_439, %c0_440], %564 {strides = array<i32>} : memref<108x440xf32, #tpu.memory_space<vmem>>, vector<12x440xf32>,
    %c0_441 = arith.constant 0 : index
    %c22_442 = arith.constant 22 : index
    %566 = vector.load %arg19[%c0_441, %c22_442] : memref<12x524xf32, #tpu.memory_space<vmem>>, vector<12x440xf32>
    %c12_443 = arith.constant 12 : index
    %c0_444 = arith.constant 0 : index
    %567 = vector.load %arg23[%c12_443, %c0_444] : memref<108x440xf32, #tpu.memory_space<vmem>>, vector<12x440xf32>
    tpu.vector_store %arg23[%c12_443, %c0_444], %566 {strides = array<i32>} : memref<108x440xf32, #tpu.memory_space<vmem>>, vector<12x440xf32>,
    %c0_445 = arith.constant 0 : index
    %c23_446 = arith.constant 23 : index
    %568 = vector.load %arg19[%c0_445, %c23_446] : memref<12x524xf32, #tpu.memory_space<vmem>>, vector<12x440xf32>
    %c24_447 = arith.constant 24 : index
    %c0_448 = arith.constant 0 : index
    %569 = vector.load %arg23[%c24_447, %c0_448] : memref<108x440xf32, #tpu.memory_space<vmem>>, vector<12x440xf32>
    tpu.vector_store %arg23[%c24_447, %c0_448], %568 {strides = array<i32>} : memref<108x440xf32, #tpu.memory_space<vmem>>, vector<12x440xf32>,
    %c0_449 = arith.constant 0 : index
    %c41_450 = arith.constant 41 : index
    %570 = vector.load %arg19[%c0_449, %c41_450] : memref<12x524xf32, #tpu.memory_space<vmem>>, vector<12x440xf32>
    %c36_451 = arith.constant 36 : index
    %c0_452 = arith.constant 0 : index
    %571 = vector.load %arg23[%c36_451, %c0_452] : memref<108x440xf32, #tpu.memory_space<vmem>>, vector<12x440xf32>
    tpu.vector_store %arg23[%c36_451, %c0_452], %570 {strides = array<i32>} : memref<108x440xf32, #tpu.memory_space<vmem>>, vector<12x440xf32>,
    %c0_453 = arith.constant 0 : index
    %c42_454 = arith.constant 42 : index
    %572 = vector.load %arg19[%c0_453, %c42_454] : memref<12x524xf32, #tpu.memory_space<vmem>>, vector<12x440xf32>
    %c48_455 = arith.constant 48 : index
    %c0_456 = arith.constant 0 : index
    %573 = vector.load %arg23[%c48_455, %c0_456] : memref<108x440xf32, #tpu.memory_space<vmem>>, vector<12x440xf32>
    tpu.vector_store %arg23[%c48_455, %c0_456], %572 {strides = array<i32>} : memref<108x440xf32, #tpu.memory_space<vmem>>, vector<12x440xf32>,
    %c0_457 = arith.constant 0 : index
    %c43_458 = arith.constant 43 : index
    %574 = vector.load %arg19[%c0_457, %c43_458] : memref<12x524xf32, #tpu.memory_space<vmem>>, vector<12x440xf32>
    %c60 = arith.constant 60 : index
    %c0_459 = arith.constant 0 : index
    %575 = vector.load %arg23[%c60, %c0_459] : memref<108x440xf32, #tpu.memory_space<vmem>>, vector<12x440xf32>
    tpu.vector_store %arg23[%c60, %c0_459], %574 {strides = array<i32>} : memref<108x440xf32, #tpu.memory_space<vmem>>, vector<12x440xf32>,
    %c0_460 = arith.constant 0 : index
    %c61_461 = arith.constant 61 : index
    %576 = vector.load %arg19[%c0_460, %c61_461] : memref<12x524xf32, #tpu.memory_space<vmem>>, vector<12x440xf32>
    %c72 = arith.constant 72 : index
    %c0_462 = arith.constant 0 : index
    %577 = vector.load %arg23[%c72, %c0_462] : memref<108x440xf32, #tpu.memory_space<vmem>>, vector<12x440xf32>
    tpu.vector_store %arg23[%c72, %c0_462], %576 {strides = array<i32>} : memref<108x440xf32, #tpu.memory_space<vmem>>, vector<12x440xf32>,
    %c0_463 = arith.constant 0 : index
    %c62_464 = arith.constant 62 : index
    %578 = vector.load %arg19[%c0_463, %c62_464] : memref<12x524xf32, #tpu.memory_space<vmem>>, vector<12x440xf32>
    %c84 = arith.constant 84 : index
    %c0_465 = arith.constant 0 : index
    %579 = vector.load %arg23[%c84, %c0_465] : memref<108x440xf32, #tpu.memory_space<vmem>>, vector<12x440xf32>
    tpu.vector_store %arg23[%c84, %c0_465], %578 {strides = array<i32>} : memref<108x440xf32, #tpu.memory_space<vmem>>, vector<12x440xf32>,
    %c0_466 = arith.constant 0 : index
    %c63_467 = arith.constant 63 : index
    %580 = vector.load %arg19[%c0_466, %c63_467] : memref<12x524xf32, #tpu.memory_space<vmem>>, vector<12x440xf32>
    %c96 = arith.constant 96 : index
    %c0_468 = arith.constant 0 : index
    %581 = vector.load %arg23[%c96, %c0_468] : memref<108x440xf32, #tpu.memory_space<vmem>>, vector<12x440xf32>
    tpu.vector_store %arg23[%c96, %c0_468], %580 {strides = array<i32>} : memref<108x440xf32, #tpu.memory_space<vmem>>, vector<12x440xf32>,
    %c0_469 = arith.constant 0 : index
    %c0_470 = arith.constant 0 : index
    %582 = vector.load %arg7[%c0_469, %c0_470] : memref<3x108xf32, #tpu.memory_space<vmem>>, vector<3x108xf32>
    %c0_471 = arith.constant 0 : index
    %c0_472 = arith.constant 0 : index
    %583 = vector.load %arg23[%c0_471, %c0_472] : memref<108x440xf32, #tpu.memory_space<vmem>>, vector<108x440xf32>
    %cst_473 = arith.constant dense<0.000000e+00> : vector<3x440xf32>
    %584 = tpu.matmul %582, %583, %cst_473 {dimension_numbers = #tpu.dot_dimension_numbers<[1], [0], [0], [1], [0, 0, 1, 1], [], []>} : vector<3x108xf32>, vector<108x440xf32>, vector<3x440xf32> -> vector<3x440xf32>
    %c0_474 = arith.constant 0 : index
    %c0_475 = arith.constant 0 : index
    %585 = vector.load %arg8[%c0_474, %c0_475] : memref<3x1xf32, #tpu.memory_space<vmem>>, vector<3x1xf32>
    %586 = vector.broadcast %585 : vector<3x1xf32> to vector<3x440xf32>
    %587 = arith.addf %584, %586 : vector<3x440xf32>
    %588 = vector.broadcast %429 : vector<1x440xf32> to vector<3x440xf32>
    %589 = arith.mulf %587, %588 : vector<3x440xf32>
    %c0_476 = arith.constant 0 : index
    %c42_477 = arith.constant 42 : index
    %590 = vector.load %arg20[%c0_476, %c42_477] : memref<3x524xf32, #tpu.memory_space<vmem>>, vector<3x440xf32>
    tpu.vector_store %arg20[%c0_476, %c42_477], %589 {strides = array<i32>} : memref<3x524xf32, #tpu.memory_space<vmem>>, vector<3x440xf32>,
    %c0_478 = arith.constant 0 : index
    %c42_479 = arith.constant 42 : index
    %591 = vector.load %arg14[%c0_478, %c42_479] : memref<8x524xf32, #tpu.memory_space<vmem>>, vector<7x440xf32>
    %c0_480 = arith.constant 0 : index
    %c42_481 = arith.constant 42 : index
    %592 = vector.load %arg21[%c0_480, %c42_481] : memref<15x524xf32, #tpu.memory_space<vmem>>, vector<7x440xf32>
    tpu.vector_store %arg21[%c0_480, %c42_481], %591 {strides = array<i32>} : memref<15x524xf32, #tpu.memory_space<vmem>>, vector<7x440xf32>,
    %c0_482 = arith.constant 0 : index
    %c21_483 = arith.constant 21 : index
    %593 = vector.load %arg20[%c0_482, %c21_483] : memref<3x524xf32, #tpu.memory_space<vmem>>, vector<3x440xf32>
    %c0_484 = arith.constant 0 : index
    %c0_485 = arith.constant 0 : index
    %594 = vector.load %arg23[%c0_484, %c0_485] : memref<108x440xf32, #tpu.memory_space<vmem>>, vector<3x440xf32>
    tpu.vector_store %arg23[%c0_484, %c0_485], %593 {strides = array<i32>} : memref<108x440xf32, #tpu.memory_space<vmem>>, vector<3x440xf32>,
    %c3_486 = arith.constant 3 : index
    %c21_487 = arith.constant 21 : index
    %595 = vector.load %arg14[%c3_486, %c21_487] : memref<8x524xf32, #tpu.memory_space<vmem>>, vector<5x440xf32>
    %c3_488 = arith.constant 3 : index
    %c0_489 = arith.constant 0 : index
    %596 = vector.load %arg23[%c3_488, %c0_489] : memref<108x440xf32, #tpu.memory_space<vmem>>, vector<5x440xf32>
    tpu.vector_store %arg23[%c3_488, %c0_489], %595 {strides = array<i32>} : memref<108x440xf32, #tpu.memory_space<vmem>>, vector<5x440xf32>,
    %c0_490 = arith.constant 0 : index
    %c22_491 = arith.constant 22 : index
    %597 = vector.load %arg20[%c0_490, %c22_491] : memref<3x524xf32, #tpu.memory_space<vmem>>, vector<3x440xf32>
    %c8 = arith.constant 8 : index
    %c0_492 = arith.constant 0 : index
    %598 = vector.load %arg23[%c8, %c0_492] : memref<108x440xf32, #tpu.memory_space<vmem>>, vector<3x440xf32>
    tpu.vector_store %arg23[%c8, %c0_492], %597 {strides = array<i32>} : memref<108x440xf32, #tpu.memory_space<vmem>>, vector<3x440xf32>,
    %c3_493 = arith.constant 3 : index
    %c22_494 = arith.constant 22 : index
    %599 = vector.load %arg14[%c3_493, %c22_494] : memref<8x524xf32, #tpu.memory_space<vmem>>, vector<5x440xf32>
    %c11 = arith.constant 11 : index
    %c0_495 = arith.constant 0 : index
    %600 = vector.load %arg23[%c11, %c0_495] : memref<108x440xf32, #tpu.memory_space<vmem>>, vector<5x440xf32>
    tpu.vector_store %arg23[%c11, %c0_495], %599 {strides = array<i32>} : memref<108x440xf32, #tpu.memory_space<vmem>>, vector<5x440xf32>,
    %c0_496 = arith.constant 0 : index
    %c23_497 = arith.constant 23 : index
    %601 = vector.load %arg20[%c0_496, %c23_497] : memref<3x524xf32, #tpu.memory_space<vmem>>, vector<3x440xf32>
    %c16 = arith.constant 16 : index
    %c0_498 = arith.constant 0 : index
    %602 = vector.load %arg23[%c16, %c0_498] : memref<108x440xf32, #tpu.memory_space<vmem>>, vector<3x440xf32>
    tpu.vector_store %arg23[%c16, %c0_498], %601 {strides = array<i32>} : memref<108x440xf32, #tpu.memory_space<vmem>>, vector<3x440xf32>,
    %c3_499 = arith.constant 3 : index
    %c23_500 = arith.constant 23 : index
    %603 = vector.load %arg14[%c3_499, %c23_500] : memref<8x524xf32, #tpu.memory_space<vmem>>, vector<5x440xf32>
    %c19 = arith.constant 19 : index
    %c0_501 = arith.constant 0 : index
    %604 = vector.load %arg23[%c19, %c0_501] : memref<108x440xf32, #tpu.memory_space<vmem>>, vector<5x440xf32>
    tpu.vector_store %arg23[%c19, %c0_501], %603 {strides = array<i32>} : memref<108x440xf32, #tpu.memory_space<vmem>>, vector<5x440xf32>,
    %c0_502 = arith.constant 0 : index
    %c41_503 = arith.constant 41 : index
    %605 = vector.load %arg20[%c0_502, %c41_503] : memref<3x524xf32, #tpu.memory_space<vmem>>, vector<3x440xf32>
    %c24_504 = arith.constant 24 : index
    %c0_505 = arith.constant 0 : index
    %606 = vector.load %arg23[%c24_504, %c0_505] : memref<108x440xf32, #tpu.memory_space<vmem>>, vector<3x440xf32>
    tpu.vector_store %arg23[%c24_504, %c0_505], %605 {strides = array<i32>} : memref<108x440xf32, #tpu.memory_space<vmem>>, vector<3x440xf32>,
    %c3_506 = arith.constant 3 : index
    %c41_507 = arith.constant 41 : index
    %607 = vector.load %arg14[%c3_506, %c41_507] : memref<8x524xf32, #tpu.memory_space<vmem>>, vector<5x440xf32>
    %c27_508 = arith.constant 27 : index
    %c0_509 = arith.constant 0 : index
    %608 = vector.load %arg23[%c27_508, %c0_509] : memref<108x440xf32, #tpu.memory_space<vmem>>, vector<5x440xf32>
    tpu.vector_store %arg23[%c27_508, %c0_509], %607 {strides = array<i32>} : memref<108x440xf32, #tpu.memory_space<vmem>>, vector<5x440xf32>,
    %c0_510 = arith.constant 0 : index
    %c42_511 = arith.constant 42 : index
    %609 = vector.load %arg20[%c0_510, %c42_511] : memref<3x524xf32, #tpu.memory_space<vmem>>, vector<3x440xf32>
    %c32 = arith.constant 32 : index
    %c0_512 = arith.constant 0 : index
    %610 = vector.load %arg23[%c32, %c0_512] : memref<108x440xf32, #tpu.memory_space<vmem>>, vector<3x440xf32>
    tpu.vector_store %arg23[%c32, %c0_512], %609 {strides = array<i32>} : memref<108x440xf32, #tpu.memory_space<vmem>>, vector<3x440xf32>,
    %c3_513 = arith.constant 3 : index
    %c42_514 = arith.constant 42 : index
    %611 = vector.load %arg14[%c3_513, %c42_514] : memref<8x524xf32, #tpu.memory_space<vmem>>, vector<5x440xf32>
    %c35 = arith.constant 35 : index
    %c0_515 = arith.constant 0 : index
    %612 = vector.load %arg23[%c35, %c0_515] : memref<108x440xf32, #tpu.memory_space<vmem>>, vector<5x440xf32>
    tpu.vector_store %arg23[%c35, %c0_515], %611 {strides = array<i32>} : memref<108x440xf32, #tpu.memory_space<vmem>>, vector<5x440xf32>,
    %c0_516 = arith.constant 0 : index
    %c43_517 = arith.constant 43 : index
    %613 = vector.load %arg20[%c0_516, %c43_517] : memref<3x524xf32, #tpu.memory_space<vmem>>, vector<3x440xf32>
    %c40_518 = arith.constant 40 : index
    %c0_519 = arith.constant 0 : index
    %614 = vector.load %arg23[%c40_518, %c0_519] : memref<108x440xf32, #tpu.memory_space<vmem>>, vector<3x440xf32>
    tpu.vector_store %arg23[%c40_518, %c0_519], %613 {strides = array<i32>} : memref<108x440xf32, #tpu.memory_space<vmem>>, vector<3x440xf32>,
    %c3_520 = arith.constant 3 : index
    %c43_521 = arith.constant 43 : index
    %615 = vector.load %arg14[%c3_520, %c43_521] : memref<8x524xf32, #tpu.memory_space<vmem>>, vector<5x440xf32>
    %c43_522 = arith.constant 43 : index
    %c0_523 = arith.constant 0 : index
    %616 = vector.load %arg23[%c43_522, %c0_523] : memref<108x440xf32, #tpu.memory_space<vmem>>, vector<5x440xf32>
    tpu.vector_store %arg23[%c43_522, %c0_523], %615 {strides = array<i32>} : memref<108x440xf32, #tpu.memory_space<vmem>>, vector<5x440xf32>,
    %c0_524 = arith.constant 0 : index
    %c61_525 = arith.constant 61 : index
    %617 = vector.load %arg20[%c0_524, %c61_525] : memref<3x524xf32, #tpu.memory_space<vmem>>, vector<3x440xf32>
    %c48_526 = arith.constant 48 : index
    %c0_527 = arith.constant 0 : index
    %618 = vector.load %arg23[%c48_526, %c0_527] : memref<108x440xf32, #tpu.memory_space<vmem>>, vector<3x440xf32>
    tpu.vector_store %arg23[%c48_526, %c0_527], %617 {strides = array<i32>} : memref<108x440xf32, #tpu.memory_space<vmem>>, vector<3x440xf32>,
    %c3_528 = arith.constant 3 : index
    %c61_529 = arith.constant 61 : index
    %619 = vector.load %arg14[%c3_528, %c61_529] : memref<8x524xf32, #tpu.memory_space<vmem>>, vector<5x440xf32>
    %c51_530 = arith.constant 51 : index
    %c0_531 = arith.constant 0 : index
    %620 = vector.load %arg23[%c51_530, %c0_531] : memref<108x440xf32, #tpu.memory_space<vmem>>, vector<5x440xf32>
    tpu.vector_store %arg23[%c51_530, %c0_531], %619 {strides = array<i32>} : memref<108x440xf32, #tpu.memory_space<vmem>>, vector<5x440xf32>,
    %c0_532 = arith.constant 0 : index
    %c62_533 = arith.constant 62 : index
    %621 = vector.load %arg20[%c0_532, %c62_533] : memref<3x524xf32, #tpu.memory_space<vmem>>, vector<3x440xf32>
    %c56 = arith.constant 56 : index
    %c0_534 = arith.constant 0 : index
    %622 = vector.load %arg23[%c56, %c0_534] : memref<108x440xf32, #tpu.memory_space<vmem>>, vector<3x440xf32>
    tpu.vector_store %arg23[%c56, %c0_534], %621 {strides = array<i32>} : memref<108x440xf32, #tpu.memory_space<vmem>>, vector<3x440xf32>,
    %c3_535 = arith.constant 3 : index
    %c62_536 = arith.constant 62 : index
    %623 = vector.load %arg14[%c3_535, %c62_536] : memref<8x524xf32, #tpu.memory_space<vmem>>, vector<5x440xf32>
    %c59 = arith.constant 59 : index
    %c0_537 = arith.constant 0 : index
    %624 = vector.load %arg23[%c59, %c0_537] : memref<108x440xf32, #tpu.memory_space<vmem>>, vector<5x440xf32>
    tpu.vector_store %arg23[%c59, %c0_537], %623 {strides = array<i32>} : memref<108x440xf32, #tpu.memory_space<vmem>>, vector<5x440xf32>,
    %c0_538 = arith.constant 0 : index
    %c63_539 = arith.constant 63 : index
    %625 = vector.load %arg20[%c0_538, %c63_539] : memref<3x524xf32, #tpu.memory_space<vmem>>, vector<3x440xf32>
    %c64 = arith.constant 64 : index
    %c0_540 = arith.constant 0 : index
    %626 = vector.load %arg23[%c64, %c0_540] : memref<108x440xf32, #tpu.memory_space<vmem>>, vector<3x440xf32>
    tpu.vector_store %arg23[%c64, %c0_540], %625 {strides = array<i32>} : memref<108x440xf32, #tpu.memory_space<vmem>>, vector<3x440xf32>,
    %c3_541 = arith.constant 3 : index
    %c63_542 = arith.constant 63 : index
    %627 = vector.load %arg14[%c3_541, %c63_542] : memref<8x524xf32, #tpu.memory_space<vmem>>, vector<5x440xf32>
    %c67 = arith.constant 67 : index
    %c0_543 = arith.constant 0 : index
    %628 = vector.load %arg23[%c67, %c0_543] : memref<108x440xf32, #tpu.memory_space<vmem>>, vector<5x440xf32>
    tpu.vector_store %arg23[%c67, %c0_543], %627 {strides = array<i32>} : memref<108x440xf32, #tpu.memory_space<vmem>>, vector<5x440xf32>,
    %c0_544 = arith.constant 0 : index
    %c0_545 = arith.constant 0 : index
    %629 = vector.load %arg9[%c0_544, %c0_545] : memref<8x72xf32, #tpu.memory_space<vmem>>, vector<8x72xf32>
    %c0_546 = arith.constant 0 : index
    %c0_547 = arith.constant 0 : index
    %630 = vector.load %arg23[%c0_546, %c0_547] : memref<108x440xf32, #tpu.memory_space<vmem>>, vector<72x440xf32>
    %cst_548 = arith.constant dense<0.000000e+00> : vector<8x440xf32>
    %631 = tpu.matmul %629, %630, %cst_548 {dimension_numbers = #tpu.dot_dimension_numbers<[1], [0], [0], [1], [0, 0, 1, 1], [], []>} : vector<8x72xf32>, vector<72x440xf32>, vector<8x440xf32> -> vector<8x440xf32>
    %c0_549 = arith.constant 0 : index
    %c0_550 = arith.constant 0 : index
    %632 = vector.load %arg10[%c0_549, %c0_550] : memref<8x1xf32, #tpu.memory_space<vmem>>, vector<8x1xf32>
    %633 = vector.broadcast %632 : vector<8x1xf32> to vector<8x440xf32>
    %634 = arith.addf %631, %633 : vector<8x440xf32>
    %cst_551 = arith.constant 0.000000e+00 : f32
    %635 = vector.broadcast %cst_551 : f32 to vector<8x440xf32>
    %636 = arith.maximumf %634, %635 : vector<8x440xf32>
    %637 = vector.broadcast %429 : vector<1x440xf32> to vector<8x440xf32>
    %638 = arith.mulf %636, %637 : vector<8x440xf32>
    %c7 = arith.constant 7 : index
    %c42_552 = arith.constant 42 : index
    %639 = vector.load %arg21[%c7, %c42_552] : memref<15x524xf32, #tpu.memory_space<vmem>>, vector<8x440xf32>
    tpu.vector_store %arg21[%c7, %c42_552], %638 {strides = array<i32>} : memref<15x524xf32, #tpu.memory_space<vmem>>, vector<8x440xf32>,
    %c0_553 = arith.constant 0 : index
    %c0_554 = arith.constant 0 : index
    %640 = vector.load %arg11[%c0_553, %c0_554] : memref<8x15xf32, #tpu.memory_space<vmem>>, vector<8x15xf32>
    %c0_555 = arith.constant 0 : index
    %c182_556 = arith.constant 182 : index
    %641 = vector.load %arg21[%c0_555, %c182_556] : memref<15x524xf32, #tpu.memory_space<vmem>>, vector<15x160xf32>
    %cst_557 = arith.constant 0.000000e+00 : f32
    %642 = vector.broadcast %cst_557 : f32 to vector<7x160xf32>
    %cst_558 = arith.constant 0.000000e+00 : f32
    %643 = vector.broadcast %cst_558 : f32 to vector<1x160xf32>
    %c0_559 = arith.constant 0 : index
    %c161 = arith.constant 161 : index
    %644 = vector.load %arg21[%c0_559, %c161] : memref<15x524xf32, #tpu.memory_space<vmem>>, vector<15x160xf32>
    %c0_560 = arith.constant 0 : index
    %c161_561 = arith.constant 161 : index
    %645 = vector.load %arg22[%c0_560, %c161_561] : memref<1x524xf32, #tpu.memory_space<vmem>>, vector<1x160xf32>
    %646 = arith.subf %641, %644 : vector<15x160xf32>
    %647 = arith.mulf %646, %646 : vector<15x160xf32>
    %cst_562 = arith.constant dense<0.000000e+00> : vector<8x160xf32>
    %648 = tpu.matmul %640, %647, %cst_562 {dimension_numbers = #tpu.dot_dimension_numbers<[1], [0], [0], [1], [0, 0, 1, 1], [], []>} : vector<8x15xf32>, vector<15x160xf32>, vector<8x160xf32> -> vector<8x160xf32>
    %649 = vector.extract_strided_slice %648 {offsets = [0, 0], sizes = [1, 160], strides = [1, 1]} : vector<8x160xf32> to vector<1x160xf32>
    %c0_563 = arith.constant 0 : index
    %650 = memref.load %arg12[%c0_563] : memref<9xf32, #tpu.memory_space<smem>>
    %651 = vector.broadcast %650 : f32 to vector<1x160xf32>
    %652 = arith.addf %649, %651 : vector<1x160xf32>
    %653 = math.exp %652 : vector<1x160xf32>
    %654 = arith.mulf %653, %645 : vector<1x160xf32>
    %655 = vector.extract_strided_slice %644 {offsets = [0, 0], sizes = [7, 160], strides = [1, 1]} : vector<15x160xf32> to vector<7x160xf32>
    %656 = vector.broadcast %654 : vector<1x160xf32> to vector<7x160xf32>
    %657 = arith.mulf %656, %655 : vector<7x160xf32>
    %658 = arith.addf %642, %657 : vector<7x160xf32>
    %659 = arith.addf %643, %654 : vector<1x160xf32>
    %c0_564 = arith.constant 0 : index
    %c162_565 = arith.constant 162 : index
    %660 = vector.load %arg21[%c0_564, %c162_565] : memref<15x524xf32, #tpu.memory_space<vmem>>, vector<15x160xf32>
    %c0_566 = arith.constant 0 : index
    %c162_567 = arith.constant 162 : index
    %661 = vector.load %arg22[%c0_566, %c162_567] : memref<1x524xf32, #tpu.memory_space<vmem>>, vector<1x160xf32>
    %662 = arith.subf %641, %660 : vector<15x160xf32>
    %663 = arith.mulf %662, %662 : vector<15x160xf32>
    %cst_568 = arith.constant dense<0.000000e+00> : vector<8x160xf32>
    %664 = tpu.matmul %640, %663, %cst_568 {dimension_numbers = #tpu.dot_dimension_numbers<[1], [0], [0], [1], [0, 0, 1, 1], [], []>} : vector<8x15xf32>, vector<15x160xf32>, vector<8x160xf32> -> vector<8x160xf32>
    %665 = vector.extract_strided_slice %664 {offsets = [0, 0], sizes = [1, 160], strides = [1, 1]} : vector<8x160xf32> to vector<1x160xf32>
    %c1 = arith.constant 1 : index
    %666 = memref.load %arg12[%c1] : memref<9xf32, #tpu.memory_space<smem>>
    %667 = vector.broadcast %666 : f32 to vector<1x160xf32>
    %668 = arith.addf %665, %667 : vector<1x160xf32>
    %669 = math.exp %668 : vector<1x160xf32>
    %670 = arith.mulf %669, %661 : vector<1x160xf32>
    %671 = vector.extract_strided_slice %660 {offsets = [0, 0], sizes = [7, 160], strides = [1, 1]} : vector<15x160xf32> to vector<7x160xf32>
    %672 = vector.broadcast %670 : vector<1x160xf32> to vector<7x160xf32>
    %673 = arith.mulf %672, %671 : vector<7x160xf32>
    %674 = arith.addf %658, %673 : vector<7x160xf32>
    %675 = arith.addf %659, %670 : vector<1x160xf32>
    %c0_569 = arith.constant 0 : index
    %c163 = arith.constant 163 : index
    %676 = vector.load %arg21[%c0_569, %c163] : memref<15x524xf32, #tpu.memory_space<vmem>>, vector<15x160xf32>
    %c0_570 = arith.constant 0 : index
    %c163_571 = arith.constant 163 : index
    %677 = vector.load %arg22[%c0_570, %c163_571] : memref<1x524xf32, #tpu.memory_space<vmem>>, vector<1x160xf32>
    %678 = arith.subf %641, %676 : vector<15x160xf32>
    %679 = arith.mulf %678, %678 : vector<15x160xf32>
    %cst_572 = arith.constant dense<0.000000e+00> : vector<8x160xf32>
    %680 = tpu.matmul %640, %679, %cst_572 {dimension_numbers = #tpu.dot_dimension_numbers<[1], [0], [0], [1], [0, 0, 1, 1], [], []>} : vector<8x15xf32>, vector<15x160xf32>, vector<8x160xf32> -> vector<8x160xf32>
    %681 = vector.extract_strided_slice %680 {offsets = [0, 0], sizes = [1, 160], strides = [1, 1]} : vector<8x160xf32> to vector<1x160xf32>
    %c2_573 = arith.constant 2 : index
    %682 = memref.load %arg12[%c2_573] : memref<9xf32, #tpu.memory_space<smem>>
    %683 = vector.broadcast %682 : f32 to vector<1x160xf32>
    %684 = arith.addf %681, %683 : vector<1x160xf32>
    %685 = math.exp %684 : vector<1x160xf32>
    %686 = arith.mulf %685, %677 : vector<1x160xf32>
    %687 = vector.extract_strided_slice %676 {offsets = [0, 0], sizes = [7, 160], strides = [1, 1]} : vector<15x160xf32> to vector<7x160xf32>
    %688 = vector.broadcast %686 : vector<1x160xf32> to vector<7x160xf32>
    %689 = arith.mulf %688, %687 : vector<7x160xf32>
    %690 = arith.addf %674, %689 : vector<7x160xf32>
    %691 = arith.addf %675, %686 : vector<1x160xf32>
    %c0_574 = arith.constant 0 : index
    %c181 = arith.constant 181 : index
    %692 = vector.load %arg21[%c0_574, %c181] : memref<15x524xf32, #tpu.memory_space<vmem>>, vector<15x160xf32>
    %c0_575 = arith.constant 0 : index
    %c181_576 = arith.constant 181 : index
    %693 = vector.load %arg22[%c0_575, %c181_576] : memref<1x524xf32, #tpu.memory_space<vmem>>, vector<1x160xf32>
    %694 = arith.subf %641, %692 : vector<15x160xf32>
    %695 = arith.mulf %694, %694 : vector<15x160xf32>
    %cst_577 = arith.constant dense<0.000000e+00> : vector<8x160xf32>
    %696 = tpu.matmul %640, %695, %cst_577 {dimension_numbers = #tpu.dot_dimension_numbers<[1], [0], [0], [1], [0, 0, 1, 1], [], []>} : vector<8x15xf32>, vector<15x160xf32>, vector<8x160xf32> -> vector<8x160xf32>
    %697 = vector.extract_strided_slice %696 {offsets = [0, 0], sizes = [1, 160], strides = [1, 1]} : vector<8x160xf32> to vector<1x160xf32>
    %c3_578 = arith.constant 3 : index
    %698 = memref.load %arg12[%c3_578] : memref<9xf32, #tpu.memory_space<smem>>
    %699 = vector.broadcast %698 : f32 to vector<1x160xf32>
    %700 = arith.addf %697, %699 : vector<1x160xf32>
    %701 = math.exp %700 : vector<1x160xf32>
    %702 = arith.mulf %701, %693 : vector<1x160xf32>
    %703 = vector.extract_strided_slice %692 {offsets = [0, 0], sizes = [7, 160], strides = [1, 1]} : vector<15x160xf32> to vector<7x160xf32>
    %704 = vector.broadcast %702 : vector<1x160xf32> to vector<7x160xf32>
    %705 = arith.mulf %704, %703 : vector<7x160xf32>
    %706 = arith.addf %690, %705 : vector<7x160xf32>
    %707 = arith.addf %691, %702 : vector<1x160xf32>
    %c0_579 = arith.constant 0 : index
    %c182_580 = arith.constant 182 : index
    %708 = vector.load %arg21[%c0_579, %c182_580] : memref<15x524xf32, #tpu.memory_space<vmem>>, vector<15x160xf32>
    %c0_581 = arith.constant 0 : index
    %c182_582 = arith.constant 182 : index
    %709 = vector.load %arg22[%c0_581, %c182_582] : memref<1x524xf32, #tpu.memory_space<vmem>>, vector<1x160xf32>
    %710 = arith.subf %641, %708 : vector<15x160xf32>
    %711 = arith.mulf %710, %710 : vector<15x160xf32>
    %cst_583 = arith.constant dense<0.000000e+00> : vector<8x160xf32>
    %712 = tpu.matmul %640, %711, %cst_583 {dimension_numbers = #tpu.dot_dimension_numbers<[1], [0], [0], [1], [0, 0, 1, 1], [], []>} : vector<8x15xf32>, vector<15x160xf32>, vector<8x160xf32> -> vector<8x160xf32>
    %713 = vector.extract_strided_slice %712 {offsets = [0, 0], sizes = [1, 160], strides = [1, 1]} : vector<8x160xf32> to vector<1x160xf32>
    %c4 = arith.constant 4 : index
    %714 = memref.load %arg12[%c4] : memref<9xf32, #tpu.memory_space<smem>>
    %715 = vector.broadcast %714 : f32 to vector<1x160xf32>
    %716 = arith.addf %713, %715 : vector<1x160xf32>
    %717 = math.exp %716 : vector<1x160xf32>
    %718 = arith.mulf %717, %709 : vector<1x160xf32>
    %719 = vector.extract_strided_slice %708 {offsets = [0, 0], sizes = [7, 160], strides = [1, 1]} : vector<15x160xf32> to vector<7x160xf32>
    %720 = vector.broadcast %718 : vector<1x160xf32> to vector<7x160xf32>
    %721 = arith.mulf %720, %719 : vector<7x160xf32>
    %722 = arith.addf %706, %721 : vector<7x160xf32>
    %723 = arith.addf %707, %718 : vector<1x160xf32>
    %c0_584 = arith.constant 0 : index
    %c183 = arith.constant 183 : index
    %724 = vector.load %arg21[%c0_584, %c183] : memref<15x524xf32, #tpu.memory_space<vmem>>, vector<15x160xf32>
    %c0_585 = arith.constant 0 : index
    %c183_586 = arith.constant 183 : index
    %725 = vector.load %arg22[%c0_585, %c183_586] : memref<1x524xf32, #tpu.memory_space<vmem>>, vector<1x160xf32>
    %726 = arith.subf %641, %724 : vector<15x160xf32>
    %727 = arith.mulf %726, %726 : vector<15x160xf32>
    %cst_587 = arith.constant dense<0.000000e+00> : vector<8x160xf32>
    %728 = tpu.matmul %640, %727, %cst_587 {dimension_numbers = #tpu.dot_dimension_numbers<[1], [0], [0], [1], [0, 0, 1, 1], [], []>} : vector<8x15xf32>, vector<15x160xf32>, vector<8x160xf32> -> vector<8x160xf32>
    %729 = vector.extract_strided_slice %728 {offsets = [0, 0], sizes = [1, 160], strides = [1, 1]} : vector<8x160xf32> to vector<1x160xf32>
    %c5 = arith.constant 5 : index
    %730 = memref.load %arg12[%c5] : memref<9xf32, #tpu.memory_space<smem>>
    %731 = vector.broadcast %730 : f32 to vector<1x160xf32>
    %732 = arith.addf %729, %731 : vector<1x160xf32>
    %733 = math.exp %732 : vector<1x160xf32>
    %734 = arith.mulf %733, %725 : vector<1x160xf32>
    %735 = vector.extract_strided_slice %724 {offsets = [0, 0], sizes = [7, 160], strides = [1, 1]} : vector<15x160xf32> to vector<7x160xf32>
    %736 = vector.broadcast %734 : vector<1x160xf32> to vector<7x160xf32>
    %737 = arith.mulf %736, %735 : vector<7x160xf32>
    %738 = arith.addf %722, %737 : vector<7x160xf32>
    %739 = arith.addf %723, %734 : vector<1x160xf32>
    %c0_588 = arith.constant 0 : index
    %c201 = arith.constant 201 : index
    %740 = vector.load %arg21[%c0_588, %c201] : memref<15x524xf32, #tpu.memory_space<vmem>>, vector<15x160xf32>
    %c0_589 = arith.constant 0 : index
    %c201_590 = arith.constant 201 : index
    %741 = vector.load %arg22[%c0_589, %c201_590] : memref<1x524xf32, #tpu.memory_space<vmem>>, vector<1x160xf32>
    %742 = arith.subf %641, %740 : vector<15x160xf32>
    %743 = arith.mulf %742, %742 : vector<15x160xf32>
    %cst_591 = arith.constant dense<0.000000e+00> : vector<8x160xf32>
    %744 = tpu.matmul %640, %743, %cst_591 {dimension_numbers = #tpu.dot_dimension_numbers<[1], [0], [0], [1], [0, 0, 1, 1], [], []>} : vector<8x15xf32>, vector<15x160xf32>, vector<8x160xf32> -> vector<8x160xf32>
    %745 = vector.extract_strided_slice %744 {offsets = [0, 0], sizes = [1, 160], strides = [1, 1]} : vector<8x160xf32> to vector<1x160xf32>
    %c6_592 = arith.constant 6 : index
    %746 = memref.load %arg12[%c6_592] : memref<9xf32, #tpu.memory_space<smem>>
    %747 = vector.broadcast %746 : f32 to vector<1x160xf32>
    %748 = arith.addf %745, %747 : vector<1x160xf32>
    %749 = math.exp %748 : vector<1x160xf32>
    %750 = arith.mulf %749, %741 : vector<1x160xf32>
    %751 = vector.extract_strided_slice %740 {offsets = [0, 0], sizes = [7, 160], strides = [1, 1]} : vector<15x160xf32> to vector<7x160xf32>
    %752 = vector.broadcast %750 : vector<1x160xf32> to vector<7x160xf32>
    %753 = arith.mulf %752, %751 : vector<7x160xf32>
    %754 = arith.addf %738, %753 : vector<7x160xf32>
    %755 = arith.addf %739, %750 : vector<1x160xf32>
    %c0_593 = arith.constant 0 : index
    %c202_594 = arith.constant 202 : index
    %756 = vector.load %arg21[%c0_593, %c202_594] : memref<15x524xf32, #tpu.memory_space<vmem>>, vector<15x160xf32>
    %c0_595 = arith.constant 0 : index
    %c202_596 = arith.constant 202 : index
    %757 = vector.load %arg22[%c0_595, %c202_596] : memref<1x524xf32, #tpu.memory_space<vmem>>, vector<1x160xf32>
    %758 = arith.subf %641, %756 : vector<15x160xf32>
    %759 = arith.mulf %758, %758 : vector<15x160xf32>
    %cst_597 = arith.constant dense<0.000000e+00> : vector<8x160xf32>
    %760 = tpu.matmul %640, %759, %cst_597 {dimension_numbers = #tpu.dot_dimension_numbers<[1], [0], [0], [1], [0, 0, 1, 1], [], []>} : vector<8x15xf32>, vector<15x160xf32>, vector<8x160xf32> -> vector<8x160xf32>
    %761 = vector.extract_strided_slice %760 {offsets = [0, 0], sizes = [1, 160], strides = [1, 1]} : vector<8x160xf32> to vector<1x160xf32>
    %c7_598 = arith.constant 7 : index
    %762 = memref.load %arg12[%c7_598] : memref<9xf32, #tpu.memory_space<smem>>
    %763 = vector.broadcast %762 : f32 to vector<1x160xf32>
    %764 = arith.addf %761, %763 : vector<1x160xf32>
    %765 = math.exp %764 : vector<1x160xf32>
    %766 = arith.mulf %765, %757 : vector<1x160xf32>
    %767 = vector.extract_strided_slice %756 {offsets = [0, 0], sizes = [7, 160], strides = [1, 1]} : vector<15x160xf32> to vector<7x160xf32>
    %768 = vector.broadcast %766 : vector<1x160xf32> to vector<7x160xf32>
    %769 = arith.mulf %768, %767 : vector<7x160xf32>
    %770 = arith.addf %754, %769 : vector<7x160xf32>
    %771 = arith.addf %755, %766 : vector<1x160xf32>
    %c0_599 = arith.constant 0 : index
    %c203 = arith.constant 203 : index
    %772 = vector.load %arg21[%c0_599, %c203] : memref<15x524xf32, #tpu.memory_space<vmem>>, vector<15x160xf32>
    %c0_600 = arith.constant 0 : index
    %c203_601 = arith.constant 203 : index
    %773 = vector.load %arg22[%c0_600, %c203_601] : memref<1x524xf32, #tpu.memory_space<vmem>>, vector<1x160xf32>
    %774 = arith.subf %641, %772 : vector<15x160xf32>
    %775 = arith.mulf %774, %774 : vector<15x160xf32>
    %cst_602 = arith.constant dense<0.000000e+00> : vector<8x160xf32>
    %776 = tpu.matmul %640, %775, %cst_602 {dimension_numbers = #tpu.dot_dimension_numbers<[1], [0], [0], [1], [0, 0, 1, 1], [], []>} : vector<8x15xf32>, vector<15x160xf32>, vector<8x160xf32> -> vector<8x160xf32>
    %777 = vector.extract_strided_slice %776 {offsets = [0, 0], sizes = [1, 160], strides = [1, 1]} : vector<8x160xf32> to vector<1x160xf32>
    %c8_603 = arith.constant 8 : index
    %778 = memref.load %arg12[%c8_603] : memref<9xf32, #tpu.memory_space<smem>>
    %779 = vector.broadcast %778 : f32 to vector<1x160xf32>
    %780 = arith.addf %777, %779 : vector<1x160xf32>
    %781 = math.exp %780 : vector<1x160xf32>
    %782 = arith.mulf %781, %773 : vector<1x160xf32>
    %783 = vector.extract_strided_slice %772 {offsets = [0, 0], sizes = [7, 160], strides = [1, 1]} : vector<15x160xf32> to vector<7x160xf32>
    %784 = vector.broadcast %782 : vector<1x160xf32> to vector<7x160xf32>
    %785 = arith.mulf %784, %783 : vector<7x160xf32>
    %786 = arith.addf %770, %785 : vector<7x160xf32>
    %787 = arith.addf %771, %782 : vector<1x160xf32>
    %c0_604 = arith.constant 0 : index
    %c182_605 = arith.constant 182 : index
    %788 = vector.load %arg22[%c0_604, %c182_605] : memref<1x524xf32, #tpu.memory_space<vmem>>, vector<1x160xf32>
    %cst_606 = arith.constant 1.000000e+00 : f32
    %789 = vector.broadcast %cst_606 : f32 to vector<1x160xf32>
    %790 = arith.subf %789, %788 : vector<1x160xf32>
    %791 = arith.addf %787, %790 : vector<1x160xf32>
    %792 = tpu.reciprocal %791 {approx = true} : vector<1x160xf32> -> vector<1x160xf32>
    %793 = vector.broadcast %792 : vector<1x160xf32> to vector<7x160xf32>
    %794 = arith.mulf %786, %793 : vector<7x160xf32>
    %795 = vector.extract_strided_slice %794 {offsets = [0, 0], sizes = [7, 16], strides = [1, 1]} : vector<7x160xf32> to vector<7x16xf32>
    %796 = vector.shape_cast %795 : vector<7x16xf32> to vector<7x1x16xf32>
    %c0_607 = arith.constant 0 : index
    %c0_608 = arith.constant 0 : index
    %c0_609 = arith.constant 0 : index
    %c0_610 = arith.constant 0 : index
    %797 = vector.load %arg13[%c0_607, %c0_608, %c0_609, %c0_610] : memref<1x15x8x16xf32, #tpu.memory_space<vmem>>, vector<1x7x1x16xf32>
    %798 = vector.shape_cast %797 : vector<1x7x1x16xf32> to vector<7x1x16xf32>
    %799 = vector.shape_cast %796 : vector<7x1x16xf32> to vector<1x7x1x16xf32>
    tpu.vector_store %arg13[%c0_607, %c0_608, %c0_609, %c0_610], %799 {strides = array<i32>} : memref<1x15x8x16xf32, #tpu.memory_space<vmem>>, vector<1x7x1x16xf32>,
    %800 = vector.extract_strided_slice %794 {offsets = [0, 20], sizes = [7, 16], strides = [1, 1]} : vector<7x160xf32> to vector<7x16xf32>
    %801 = vector.shape_cast %800 : vector<7x16xf32> to vector<7x1x16xf32>
    %c0_611 = arith.constant 0 : index
    %c0_612 = arith.constant 0 : index
    %c1_613 = arith.constant 1 : index
    %c0_614 = arith.constant 0 : index
    %802 = vector.load %arg13[%c0_611, %c0_612, %c1_613, %c0_614] : memref<1x15x8x16xf32, #tpu.memory_space<vmem>>, vector<1x7x1x16xf32>
    %803 = vector.shape_cast %802 : vector<1x7x1x16xf32> to vector<7x1x16xf32>
    %804 = vector.shape_cast %801 : vector<7x1x16xf32> to vector<1x7x1x16xf32>
    tpu.vector_store %arg13[%c0_611, %c0_612, %c1_613, %c0_614], %804 {strides = array<i32>} : memref<1x15x8x16xf32, #tpu.memory_space<vmem>>, vector<1x7x1x16xf32>,
    %805 = vector.extract_strided_slice %794 {offsets = [0, 40], sizes = [7, 16], strides = [1, 1]} : vector<7x160xf32> to vector<7x16xf32>
    %806 = vector.shape_cast %805 : vector<7x16xf32> to vector<7x1x16xf32>
    %c0_615 = arith.constant 0 : index
    %c0_616 = arith.constant 0 : index
    %c2_617 = arith.constant 2 : index
    %c0_618 = arith.constant 0 : index
    %807 = vector.load %arg13[%c0_615, %c0_616, %c2_617, %c0_618] : memref<1x15x8x16xf32, #tpu.memory_space<vmem>>, vector<1x7x1x16xf32>
    %808 = vector.shape_cast %807 : vector<1x7x1x16xf32> to vector<7x1x16xf32>
    %809 = vector.shape_cast %806 : vector<7x1x16xf32> to vector<1x7x1x16xf32>
    tpu.vector_store %arg13[%c0_615, %c0_616, %c2_617, %c0_618], %809 {strides = array<i32>} : memref<1x15x8x16xf32, #tpu.memory_space<vmem>>, vector<1x7x1x16xf32>,
    %810 = vector.extract_strided_slice %794 {offsets = [0, 60], sizes = [7, 16], strides = [1, 1]} : vector<7x160xf32> to vector<7x16xf32>
    %811 = vector.shape_cast %810 : vector<7x16xf32> to vector<7x1x16xf32>
    %c0_619 = arith.constant 0 : index
    %c0_620 = arith.constant 0 : index
    %c3_621 = arith.constant 3 : index
    %c0_622 = arith.constant 0 : index
    %812 = vector.load %arg13[%c0_619, %c0_620, %c3_621, %c0_622] : memref<1x15x8x16xf32, #tpu.memory_space<vmem>>, vector<1x7x1x16xf32>
    %813 = vector.shape_cast %812 : vector<1x7x1x16xf32> to vector<7x1x16xf32>
    %814 = vector.shape_cast %811 : vector<7x1x16xf32> to vector<1x7x1x16xf32>
    tpu.vector_store %arg13[%c0_619, %c0_620, %c3_621, %c0_622], %814 {strides = array<i32>} : memref<1x15x8x16xf32, #tpu.memory_space<vmem>>, vector<1x7x1x16xf32>,
    %815 = vector.extract_strided_slice %794 {offsets = [0, 80], sizes = [7, 16], strides = [1, 1]} : vector<7x160xf32> to vector<7x16xf32>
    %816 = vector.shape_cast %815 : vector<7x16xf32> to vector<7x1x16xf32>
    %c0_623 = arith.constant 0 : index
    %c0_624 = arith.constant 0 : index
    %c4_625 = arith.constant 4 : index
    %c0_626 = arith.constant 0 : index
    %817 = vector.load %arg13[%c0_623, %c0_624, %c4_625, %c0_626] : memref<1x15x8x16xf32, #tpu.memory_space<vmem>>, vector<1x7x1x16xf32>
    %818 = vector.shape_cast %817 : vector<1x7x1x16xf32> to vector<7x1x16xf32>
    %819 = vector.shape_cast %816 : vector<7x1x16xf32> to vector<1x7x1x16xf32>
    tpu.vector_store %arg13[%c0_623, %c0_624, %c4_625, %c0_626], %819 {strides = array<i32>} : memref<1x15x8x16xf32, #tpu.memory_space<vmem>>, vector<1x7x1x16xf32>,
    %820 = vector.extract_strided_slice %794 {offsets = [0, 100], sizes = [7, 16], strides = [1, 1]} : vector<7x160xf32> to vector<7x16xf32>
    %821 = vector.shape_cast %820 : vector<7x16xf32> to vector<7x1x16xf32>
    %c0_627 = arith.constant 0 : index
    %c0_628 = arith.constant 0 : index
    %c5_629 = arith.constant 5 : index
    %c0_630 = arith.constant 0 : index
    %822 = vector.load %arg13[%c0_627, %c0_628, %c5_629, %c0_630] : memref<1x15x8x16xf32, #tpu.memory_space<vmem>>, vector<1x7x1x16xf32>
    %823 = vector.shape_cast %822 : vector<1x7x1x16xf32> to vector<7x1x16xf32>
    %824 = vector.shape_cast %821 : vector<7x1x16xf32> to vector<1x7x1x16xf32>
    tpu.vector_store %arg13[%c0_627, %c0_628, %c5_629, %c0_630], %824 {strides = array<i32>} : memref<1x15x8x16xf32, #tpu.memory_space<vmem>>, vector<1x7x1x16xf32>,
    %825 = vector.extract_strided_slice %794 {offsets = [0, 120], sizes = [7, 16], strides = [1, 1]} : vector<7x160xf32> to vector<7x16xf32>
    %826 = vector.shape_cast %825 : vector<7x16xf32> to vector<7x1x16xf32>
    %c0_631 = arith.constant 0 : index
    %c0_632 = arith.constant 0 : index
    %c6_633 = arith.constant 6 : index
    %c0_634 = arith.constant 0 : index
    %827 = vector.load %arg13[%c0_631, %c0_632, %c6_633, %c0_634] : memref<1x15x8x16xf32, #tpu.memory_space<vmem>>, vector<1x7x1x16xf32>
    %828 = vector.shape_cast %827 : vector<1x7x1x16xf32> to vector<7x1x16xf32>
    %829 = vector.shape_cast %826 : vector<7x1x16xf32> to vector<1x7x1x16xf32>
    tpu.vector_store %arg13[%c0_631, %c0_632, %c6_633, %c0_634], %829 {strides = array<i32>} : memref<1x15x8x16xf32, #tpu.memory_space<vmem>>, vector<1x7x1x16xf32>,
    %830 = vector.extract_strided_slice %794 {offsets = [0, 140], sizes = [7, 16], strides = [1, 1]} : vector<7x160xf32> to vector<7x16xf32>
    %831 = vector.shape_cast %830 : vector<7x16xf32> to vector<7x1x16xf32>
    %c0_635 = arith.constant 0 : index
    %c0_636 = arith.constant 0 : index
    %c7_637 = arith.constant 7 : index
    %c0_638 = arith.constant 0 : index
    %832 = vector.load %arg13[%c0_635, %c0_636, %c7_637, %c0_638] : memref<1x15x8x16xf32, #tpu.memory_space<vmem>>, vector<1x7x1x16xf32>
    %833 = vector.shape_cast %832 : vector<1x7x1x16xf32> to vector<7x1x16xf32>
    %834 = vector.shape_cast %831 : vector<7x1x16xf32> to vector<1x7x1x16xf32>
    tpu.vector_store %arg13[%c0_635, %c0_636, %c7_637, %c0_638], %834 {strides = array<i32>} : memref<1x15x8x16xf32, #tpu.memory_space<vmem>>, vector<1x7x1x16xf32>,
    %c7_639 = arith.constant 7 : index
    %c182_640 = arith.constant 182 : index
    %835 = vector.load %arg21[%c7_639, %c182_640] : memref<15x524xf32, #tpu.memory_space<vmem>>, vector<8x16xf32>
    %836 = vector.shape_cast %835 : vector<8x16xf32> to vector<8x1x16xf32>
    %c0_641 = arith.constant 0 : index
    %c7_642 = arith.constant 7 : index
    %c0_643 = arith.constant 0 : index
    %c0_644 = arith.constant 0 : index
    %837 = vector.load %arg13[%c0_641, %c7_642, %c0_643, %c0_644] : memref<1x15x8x16xf32, #tpu.memory_space<vmem>>, vector<1x8x1x16xf32>
    %838 = vector.shape_cast %837 : vector<1x8x1x16xf32> to vector<8x1x16xf32>
    %839 = vector.shape_cast %836 : vector<8x1x16xf32> to vector<1x8x1x16xf32>
    tpu.vector_store %arg13[%c0_641, %c7_642, %c0_643, %c0_644], %839 {strides = array<i32>} : memref<1x15x8x16xf32, #tpu.memory_space<vmem>>, vector<1x8x1x16xf32>,
    %c7_645 = arith.constant 7 : index
    %c202_646 = arith.constant 202 : index
    %840 = vector.load %arg21[%c7_645, %c202_646] : memref<15x524xf32, #tpu.memory_space<vmem>>, vector<8x16xf32>
    %841 = vector.shape_cast %840 : vector<8x16xf32> to vector<8x1x16xf32>
    %c0_647 = arith.constant 0 : index
    %c7_648 = arith.constant 7 : index
    %c1_649 = arith.constant 1 : index
    %c0_650 = arith.constant 0 : index
    %842 = vector.load %arg13[%c0_647, %c7_648, %c1_649, %c0_650] : memref<1x15x8x16xf32, #tpu.memory_space<vmem>>, vector<1x8x1x16xf32>
    %843 = vector.shape_cast %842 : vector<1x8x1x16xf32> to vector<8x1x16xf32>
    %844 = vector.shape_cast %841 : vector<8x1x16xf32> to vector<1x8x1x16xf32>
    tpu.vector_store %arg13[%c0_647, %c7_648, %c1_649, %c0_650], %844 {strides = array<i32>} : memref<1x15x8x16xf32, #tpu.memory_space<vmem>>, vector<1x8x1x16xf32>,
    %c7_651 = arith.constant 7 : index
    %c222_652 = arith.constant 222 : index
    %845 = vector.load %arg21[%c7_651, %c222_652] : memref<15x524xf32, #tpu.memory_space<vmem>>, vector<8x16xf32>
    %846 = vector.shape_cast %845 : vector<8x16xf32> to vector<8x1x16xf32>
    %c0_653 = arith.constant 0 : index
    %c7_654 = arith.constant 7 : index
    %c2_655 = arith.constant 2 : index
    %c0_656 = arith.constant 0 : index
    %847 = vector.load %arg13[%c0_653, %c7_654, %c2_655, %c0_656] : memref<1x15x8x16xf32, #tpu.memory_space<vmem>>, vector<1x8x1x16xf32>
    %848 = vector.shape_cast %847 : vector<1x8x1x16xf32> to vector<8x1x16xf32>
    %849 = vector.shape_cast %846 : vector<8x1x16xf32> to vector<1x8x1x16xf32>
    tpu.vector_store %arg13[%c0_653, %c7_654, %c2_655, %c0_656], %849 {strides = array<i32>} : memref<1x15x8x16xf32, #tpu.memory_space<vmem>>, vector<1x8x1x16xf32>,
    %c7_657 = arith.constant 7 : index
    %c242_658 = arith.constant 242 : index
    %850 = vector.load %arg21[%c7_657, %c242_658] : memref<15x524xf32, #tpu.memory_space<vmem>>, vector<8x16xf32>
    %851 = vector.shape_cast %850 : vector<8x16xf32> to vector<8x1x16xf32>
    %c0_659 = arith.constant 0 : index
    %c7_660 = arith.constant 7 : index
    %c3_661 = arith.constant 3 : index
    %c0_662 = arith.constant 0 : index
    %852 = vector.load %arg13[%c0_659, %c7_660, %c3_661, %c0_662] : memref<1x15x8x16xf32, #tpu.memory_space<vmem>>, vector<1x8x1x16xf32>
    %853 = vector.shape_cast %852 : vector<1x8x1x16xf32> to vector<8x1x16xf32>
    %854 = vector.shape_cast %851 : vector<8x1x16xf32> to vector<1x8x1x16xf32>
    tpu.vector_store %arg13[%c0_659, %c7_660, %c3_661, %c0_662], %854 {strides = array<i32>} : memref<1x15x8x16xf32, #tpu.memory_space<vmem>>, vector<1x8x1x16xf32>,
    %c7_663 = arith.constant 7 : index
    %c262_664 = arith.constant 262 : index
    %855 = vector.load %arg21[%c7_663, %c262_664] : memref<15x524xf32, #tpu.memory_space<vmem>>, vector<8x16xf32>
    %856 = vector.shape_cast %855 : vector<8x16xf32> to vector<8x1x16xf32>
    %c0_665 = arith.constant 0 : index
    %c7_666 = arith.constant 7 : index
    %c4_667 = arith.constant 4 : index
    %c0_668 = arith.constant 0 : index
    %857 = vector.load %arg13[%c0_665, %c7_666, %c4_667, %c0_668] : memref<1x15x8x16xf32, #tpu.memory_space<vmem>>, vector<1x8x1x16xf32>
    %858 = vector.shape_cast %857 : vector<1x8x1x16xf32> to vector<8x1x16xf32>
    %859 = vector.shape_cast %856 : vector<8x1x16xf32> to vector<1x8x1x16xf32>
    tpu.vector_store %arg13[%c0_665, %c7_666, %c4_667, %c0_668], %859 {strides = array<i32>} : memref<1x15x8x16xf32, #tpu.memory_space<vmem>>, vector<1x8x1x16xf32>,
    %c7_669 = arith.constant 7 : index
    %c282_670 = arith.constant 282 : index
    %860 = vector.load %arg21[%c7_669, %c282_670] : memref<15x524xf32, #tpu.memory_space<vmem>>, vector<8x16xf32>
    %861 = vector.shape_cast %860 : vector<8x16xf32> to vector<8x1x16xf32>
    %c0_671 = arith.constant 0 : index
    %c7_672 = arith.constant 7 : index
    %c5_673 = arith.constant 5 : index
    %c0_674 = arith.constant 0 : index
    %862 = vector.load %arg13[%c0_671, %c7_672, %c5_673, %c0_674] : memref<1x15x8x16xf32, #tpu.memory_space<vmem>>, vector<1x8x1x16xf32>
    %863 = vector.shape_cast %862 : vector<1x8x1x16xf32> to vector<8x1x16xf32>
    %864 = vector.shape_cast %861 : vector<8x1x16xf32> to vector<1x8x1x16xf32>
    tpu.vector_store %arg13[%c0_671, %c7_672, %c5_673, %c0_674], %864 {strides = array<i32>} : memref<1x15x8x16xf32, #tpu.memory_space<vmem>>, vector<1x8x1x16xf32>,
    %c7_675 = arith.constant 7 : index
    %c302_676 = arith.constant 302 : index
    %865 = vector.load %arg21[%c7_675, %c302_676] : memref<15x524xf32, #tpu.memory_space<vmem>>, vector<8x16xf32>
    %866 = vector.shape_cast %865 : vector<8x16xf32> to vector<8x1x16xf32>
    %c0_677 = arith.constant 0 : index
    %c7_678 = arith.constant 7 : index
    %c6_679 = arith.constant 6 : index
    %c0_680 = arith.constant 0 : index
    %867 = vector.load %arg13[%c0_677, %c7_678, %c6_679, %c0_680] : memref<1x15x8x16xf32, #tpu.memory_space<vmem>>, vector<1x8x1x16xf32>
    %868 = vector.shape_cast %867 : vector<1x8x1x16xf32> to vector<8x1x16xf32>
    %869 = vector.shape_cast %866 : vector<8x1x16xf32> to vector<1x8x1x16xf32>
    tpu.vector_store %arg13[%c0_677, %c7_678, %c6_679, %c0_680], %869 {strides = array<i32>} : memref<1x15x8x16xf32, #tpu.memory_space<vmem>>, vector<1x8x1x16xf32>,
    %c7_681 = arith.constant 7 : index
    %c322_682 = arith.constant 322 : index
    %870 = vector.load %arg21[%c7_681, %c322_682] : memref<15x524xf32, #tpu.memory_space<vmem>>, vector<8x16xf32>
    %871 = vector.shape_cast %870 : vector<8x16xf32> to vector<8x1x16xf32>
    %c0_683 = arith.constant 0 : index
    %c7_684 = arith.constant 7 : index
    %c7_685 = arith.constant 7 : index
    %c0_686 = arith.constant 0 : index
    %872 = vector.load %arg13[%c0_683, %c7_684, %c7_685, %c0_686] : memref<1x15x8x16xf32, #tpu.memory_space<vmem>>, vector<1x8x1x16xf32>
    %873 = vector.shape_cast %872 : vector<1x8x1x16xf32> to vector<8x1x16xf32>
    %874 = vector.shape_cast %871 : vector<8x1x16xf32> to vector<1x8x1x16xf32>
    tpu.vector_store %arg13[%c0_683, %c7_684, %c7_685, %c0_686], %874 {strides = array<i32>} : memref<1x15x8x16xf32, #tpu.memory_space<vmem>>, vector<1x8x1x16xf32>,
    return
  }
  func.func @transform_0(%arg0: i32, %arg1: i32) -> (i32, i32, i32, i32) {
    %c0_i32 = arith.constant 0 : i32
    %c0_i32_0 = arith.constant 0 : i32
    %c0_i32_1 = arith.constant 0 : i32
    %c0_i32_2 = arith.constant 0 : i32
    return %arg0, %c0_i32, %c0_i32_0, %c0_i32_1 : i32, i32, i32, i32
  }
  func.func @transform_1(%arg0: i32, %arg1: i32) -> (i32, i32) {
    %c0_i32 = arith.constant 0 : i32
    %c0_i32_0 = arith.constant 0 : i32
    %c0_i32_1 = arith.constant 0 : i32
    return %c0_i32, %c0_i32_0 : i32, i32
  }
  func.func @transform_2(%arg0: i32, %arg1: i32) -> (i32, i32) {
    %c0_i32 = arith.constant 0 : i32
    %c0_i32_0 = arith.constant 0 : i32
    %c0_i32_1 = arith.constant 0 : i32
    return %c0_i32, %c0_i32_0 : i32, i32
  }
  func.func @transform_3(%arg0: i32, %arg1: i32) -> (i32, i32) {
    %c0_i32 = arith.constant 0 : i32
    %c0_i32_0 = arith.constant 0 : i32
    %c0_i32_1 = arith.constant 0 : i32
    return %c0_i32, %c0_i32_0 : i32, i32
  }
  func.func @transform_4(%arg0: i32, %arg1: i32) -> (i32, i32) {
    %c0_i32 = arith.constant 0 : i32
    %c0_i32_0 = arith.constant 0 : i32
    %c0_i32_1 = arith.constant 0 : i32
    return %c0_i32, %c0_i32_0 : i32, i32
  }
  func.func @transform_5(%arg0: i32, %arg1: i32) -> (i32, i32) {
    %c0_i32 = arith.constant 0 : i32
    %c0_i32_0 = arith.constant 0 : i32
    %c0_i32_1 = arith.constant 0 : i32
    return %c0_i32, %c0_i32_0 : i32, i32
  }
  func.func @transform_6(%arg0: i32, %arg1: i32) -> (i32, i32) {
    %c0_i32 = arith.constant 0 : i32
    %c0_i32_0 = arith.constant 0 : i32
    %c0_i32_1 = arith.constant 0 : i32
    return %c0_i32, %c0_i32_0 : i32, i32
  }
  func.func @transform_7(%arg0: i32, %arg1: i32) -> (i32, i32) {
    %c0_i32 = arith.constant 0 : i32
    %c0_i32_0 = arith.constant 0 : i32
    %c0_i32_1 = arith.constant 0 : i32
    return %c0_i32, %c0_i32_0 : i32, i32
  }
  func.func @transform_8(%arg0: i32, %arg1: i32) -> (i32, i32) {
    %c0_i32 = arith.constant 0 : i32
    %c0_i32_0 = arith.constant 0 : i32
    %c0_i32_1 = arith.constant 0 : i32
    return %c0_i32, %c0_i32_0 : i32, i32
  }
  func.func @transform_9(%arg0: i32, %arg1: i32) -> (i32, i32) {
    %c0_i32 = arith.constant 0 : i32
    %c0_i32_0 = arith.constant 0 : i32
    %c0_i32_1 = arith.constant 0 : i32
    return %c0_i32, %c0_i32_0 : i32, i32
  }
  func.func @transform_10(%arg0: i32, %arg1: i32) -> i32 {
    %c0_i32 = arith.constant 0 : i32
    %c0_i32_0 = arith.constant 0 : i32
    return %c0_i32 : i32
  }
  func.func @transform_11(%arg0: i32, %arg1: i32) -> (i32, i32, i32, i32) {
    %c0_i32 = arith.constant 0 : i32
    %c0_i32_0 = arith.constant 0 : i32
    %c0_i32_1 = arith.constant 0 : i32
    return %arg0, %c0_i32, %arg1, %c0_i32_0 : i32, i32, i32, i32
  }
}

</mosaic_0001>

<llo_original>
// kernel: tpu_custom_call.1
$region0: #{tpu_custom_call.1}
  #allocation0 [shape = 'u32[]', space=smem, size = 0x4, offset = 0x4, fixed_abs, tag = 'smem constant byte address 0x4 - core index']
  #allocation1 [shape = 'u32[72,128]{1,0:T(1,128)}', space=vmem, size = 0x9000, scoped, tag = 'internal scratch']
  #allocation2 [shape = 'f32[8,524]{1,0:T(8,128)}', space=vmem, size = 0x5000, scoped, tag = 'scratch operand']
  #allocation3 [shape = 'f32[3,524]{1,0:T(4,128)}', space=vmem, size = 0x2800, scoped, tag = 'scratch operand']
  #allocation4 [shape = 'f32[3,524]{1,0:T(4,128)}', space=vmem, size = 0x2800, scoped, tag = 'scratch operand']
  #allocation5 [shape = 'f32[3,524]{1,0:T(4,128)}', space=vmem, size = 0x2800, scoped, tag = 'scratch operand']
  #allocation6 [shape = 'f32[6,524]{1,0:T(8,128)}', space=vmem, size = 0x5000, scoped, tag = 'scratch operand']
  #allocation7 [shape = 'f32[12,524]{1,0:T(8,128)}', space=vmem, size = 0xa000, scoped, tag = 'scratch operand']
  #allocation8 [shape = 'f32[3,524]{1,0:T(4,128)}', space=vmem, size = 0x2800, scoped, tag = 'scratch operand']
  #allocation9 [shape = 'f32[15,524]{1,0:T(8,128)}', space=vmem, size = 0xa000, scoped, tag = 'scratch operand']
  #allocation10 [shape = 'f32[1,524]{1,0:T(1,128)}', space=vmem, size = 0xa00, scoped, tag = 'scratch operand']
  #allocation11 [shape = 'f32[108,440]{1,0:T(8,128)}', space=vmem, size = 0x38000, scoped, tag = 'scratch operand']
  %s0 = inlined_call_operand.hbm [shape: f32[2,8,16,16], index: 0, kind: input, shape index: {}]
  %s1 = inlined_call_operand.vmem [shape: f32[6,54], index: 1, kind: input, shape index: {}]
  %s2 = inlined_call_operand.vmem [shape: f32[6,1], index: 2, kind: input, shape index: {}]
  %s3 = inlined_call_operand.vmem [shape: f32[12,54], index: 3, kind: input, shape index: {}]
  %s4 = inlined_call_operand.vmem [shape: f32[12,1], index: 4, kind: input, shape index: {}]
  %s5 = inlined_call_operand.vmem [shape: f32[3,108], index: 5, kind: input, shape index: {}]
  %s6 = inlined_call_operand.vmem [shape: f32[3,1], index: 6, kind: input, shape index: {}]
  %s7 = inlined_call_operand.vmem [shape: f32[8,72], index: 7, kind: input, shape index: {}]
  %s8 = inlined_call_operand.vmem [shape: f32[8,1], index: 8, kind: input, shape index: {}]
  %s9 = inlined_call_operand.hbm [shape: f32[8,15], index: 9, kind: input, shape index: {}]
  %s10 = inlined_call_operand.vmem [shape: f32[9], index: 10, kind: input, shape index: {}]
  %s11 = inlined_call_operand.hbm [shape: f32[2,15,16,16], index: 11, kind: output, shape index: {}]
  %s12 = sld [smem:[#allocation0]]
  $region89: #{tpu_custom_call.1} parent=0
    _
  %s14 = ssub.s32 1, %s12
  %s15 = scalar_select 0, %s14, %s12
  $region1: #{tpu_custom_call.1} parent=0
    #allocation12 [shape = 'u8[131072]{0}', space=vmem, size = 0x20000, scoped, tag = 'input window, operand 0']
    #allocation13 [shape = 's32[2]{0}', space=sflag, size = 0x8, scoped, tag = 'scoped memory for tpu_custom_call.1']
    #allocation14 [shape = 's32[2]{0}', space=sflag, size = 0x8, scoped, tag = 'scoped memory for tpu_custom_call.1']
    #allocation15 [shape = 's32[2]{0}', space=sflag, size = 0x8, scoped, tag = 'scoped memory for tpu_custom_call.1']
    #allocation16 [shape = 'u8[4096]{0}', space=vmem, size = 0x1000, scoped, tag = 'input window, operand 9, single buffered']
    #allocation17 [shape = 's32[1]{0}', space=sflag, size = 0x4, scoped, tag = 'scoped memory for tpu_custom_call.1']
    #allocation18 [shape = 'u8[512]{0}', space=smem, size = 0x200, scoped, tag = 'input window, operand 10, single buffered']
    #allocation19 [shape = 'u8[122880]{0}', space=vmem, size = 0x1e000, scoped, tag = 'output window, operand 0']
    %16 = vsyncpa [#allocation13], 0
    %s17 = scalar_lea.sflag [#allocation13], 1
    %18 = vsyncpa %s17, 0
    %19 = vsyncpa [#allocation17], 0
    %20 = vsyncpa [#allocation15], 0
    %21 = vsyncpa [#allocation14], 0
    %s22 = scalar_lea.sflag [#allocation14], 1
    %23 = vsyncpa %s22, 0
    loop: start=0, step=1, limit=6
    $region2: #{tpu_custom_call.1} parent=1 // loop_pre_header
      _
    $region3: #{tpu_custom_call.1} parent=1 // loop_header
      %s25 = sphi 0, %s29
      %p26 = scmp.ge.s32.totalorder %s25, 6
      %s32 = sphi 0, %s44
      %s33 = sphi 0, %s40
      %s34 = sphi 0, %s32
      %s35 = sphi 0, %s33
      %s36 = sphi 0, %s34
      %s37 = sphi 0, %s35
      %s47 = sphi 0, %s49
      %s50 = sphi 0, %s47
      %s51 = sphi 0, %s50
      %s67 = sphi 0, %s51
      %s71 = sphi 0, %s71
      %s73 = sphi 0, %s71
      %s74 = sphi 0, %s73
      %s88 = sphi 0, %s74
      %s92 = sphi 0, %s92
      %s94 = sphi 0, %s92
      %s95 = sphi 0, %s94
      %s109 = sphi 0, %s95
      %s113 = sphi 0, %s113
      %s115 = sphi 0, %s113
      %s116 = sphi 0, %s115
      %s130 = sphi 0, %s116
      %s134 = sphi 0, %s134
      %s136 = sphi 0, %s134
      %s137 = sphi 0, %s136
      %s151 = sphi 0, %s137
      %s155 = sphi 0, %s155
      %s157 = sphi 0, %s155
      %s158 = sphi 0, %s157
      %s172 = sphi 0, %s158
      %s176 = sphi 0, %s176
      %s178 = sphi 0, %s176
      %s179 = sphi 0, %s178
      %s193 = sphi 0, %s179
      %s197 = sphi 0, %s197
      %s199 = sphi 0, %s197
      %s200 = sphi 0, %s199
      %s214 = sphi 0, %s200
      %s218 = sphi 0, %s218
      %s220 = sphi 0, %s218
      %s221 = sphi 0, %s220
      %s235 = sphi 0, %s221
      %s239 = sphi 0, %s239
      %s241 = sphi 0, %s239
      %s242 = sphi 0, %s241
      %s256 = sphi 0, %s242
      %s260 = sphi 0, %s260
      %s262 = sphi 0, %s260
      %s263 = sphi 0, %s262
      %s277 = sphi 0, %s263
      %s285 = sphi 0, %s287
      %s288 = sphi 0, %s285
      %s289 = sphi 0, %s288
      %s305 = sphi 0, %s289
    $region4: #{tpu_custom_call.1} parent=1 // loop_header_branch
      %28 = sbr.rel (%p26) target = $region8
    $region5: #{tpu_custom_call.1} parent=1 // loop_body
      %s30 = ssub.s32 %s25, 1
      %s31 = ssub.s32 %s25, 2
      %s38 = sadd.s32 1, %s33
      %p39 = scmp.ge.s32.totalorder %s38, 2
      %s40 = scalar_select %p39, 0, %s38
      %s41 = sadd.s32 1, %s32
      %s42 = scalar_select %p39, %s41, %s32
      %p43 = scmp.ge.s32.totalorder %s42, 2
      %s44 = scalar_select %p43, 0, %s42
      %s45 = ssub.s32 %s32, %s44
      %p46 = scmp.eq.s32.totalorder %s45, 0
      %s48 = sadd.s32 %s47, 1
      %s49 = scalar_select %p46, %s47, %s48
      %p52 = pneg %p46
      %p53 = scmp.eq.s32.totalorder %s25, 3
      %p54 = por %p52, %p53
      %p55 = scmp.ne.s32.totalorder %s47, %s50
      %p56 = scmp.eq.s32.totalorder %s25, 0
      %p57 = por %p55, %p56
      %p58 = scmp.ne.s32.totalorder %s47, %s50
      %p59 = scmp.eq.s32.totalorder %s30, 3
      %p60 = por %p58, %p59
      %p61 = scmp.ne.s32.totalorder %s50, %s51
      %p62 = scmp.eq.s32.totalorder %s30, 0
      %p63 = por %p61, %p62
      %p64 = scmp.ne.s32.totalorder %s50, %s51
      %p65 = scmp.eq.s32.totalorder %s31, 3
      %p66 = por %p64, %p65
      %p68 = scmp.ne.s32.totalorder %s51, %s67
      %p69 = scmp.eq.s32.totalorder %s31, 0
      %p70 = por %p68, %p69
      %s72 = sadd.s32 %s71, 1
      %p75 = scmp.eq.s32.totalorder %s25, 3
      %p76 = scmp.ne.s32.totalorder %s71, %s73
      %p77 = scmp.eq.s32.totalorder %s25, 0
      %p78 = por %p76, %p77
      %p79 = scmp.ne.s32.totalorder %s71, %s73
      %p80 = scmp.eq.s32.totalorder %s30, 3
      %p81 = por %p79, %p80
      %p82 = scmp.ne.s32.totalorder %s73, %s74
      %p83 = scmp.eq.s32.totalorder %s30, 0
      %p84 = por %p82, %p83
      %p85 = scmp.ne.s32.totalorder %s73, %s74
      %p86 = scmp.eq.s32.totalorder %s31, 3
      %p87 = por %p85, %p86
      %p89 = scmp.ne.s32.totalorder %s74, %s88
      %p90 = scmp.eq.s32.totalorder %s31, 0
      %p91 = por %p89, %p90
      %s93 = sadd.s32 %s92, 1
      %p96 = scmp.eq.s32.totalorder %s25, 3
      %p97 = scmp.ne.s32.totalorder %s92, %s94
      %p98 = scmp.eq.s32.totalorder %s25, 0
      %p99 = por %p97, %p98
      %p100 = scmp.ne.s32.totalorder %s92, %s94
      %p101 = scmp.eq.s32.totalorder %s30, 3
      %p102 = por %p100, %p101
      %p103 = scmp.ne.s32.totalorder %s94, %s95
      %p104 = scmp.eq.s32.totalorder %s30, 0
      %p105 = por %p103, %p104
      %p106 = scmp.ne.s32.totalorder %s94, %s95
      %p107 = scmp.eq.s32.totalorder %s31, 3
      %p108 = por %p106, %p107
      %p110 = scmp.ne.s32.totalorder %s95, %s109
      %p111 = scmp.eq.s32.totalorder %s31, 0
      %p112 = por %p110, %p111
      %s114 = sadd.s32 %s113, 1
      %p117 = scmp.eq.s32.totalorder %s25, 3
      %p118 = scmp.ne.s32.totalorder %s113, %s115
      %p119 = scmp.eq.s32.totalorder %s25, 0
      %p120 = por %p118, %p119
      %p121 = scmp.ne.s32.totalorder %s113, %s115
      %p122 = scmp.eq.s32.totalorder %s30, 3
      %p123 = por %p121, %p122
      %p124 = scmp.ne.s32.totalorder %s115, %s116
      %p125 = scmp.eq.s32.totalorder %s30, 0
      %p126 = por %p124, %p125
      %p127 = scmp.ne.s32.totalorder %s115, %s116
      %p128 = scmp.eq.s32.totalorder %s31, 3
      %p129 = por %p127, %p128
      %p131 = scmp.ne.s32.totalorder %s116, %s130
      %p132 = scmp.eq.s32.totalorder %s31, 0
      %p133 = por %p131, %p132
      %s135 = sadd.s32 %s134, 1
      %p138 = scmp.eq.s32.totalorder %s25, 3
      %p139 = scmp.ne.s32.totalorder %s134, %s136
      %p140 = scmp.eq.s32.totalorder %s25, 0
      %p141 = por %p139, %p140
      %p142 = scmp.ne.s32.totalorder %s134, %s136
      %p143 = scmp.eq.s32.totalorder %s30, 3
      %p144 = por %p142, %p143
      %p145 = scmp.ne.s32.totalorder %s136, %s137
      %p146 = scmp.eq.s32.totalorder %s30, 0
      %p147 = por %p145, %p146
      %p148 = scmp.ne.s32.totalorder %s136, %s137
      %p149 = scmp.eq.s32.totalorder %s31, 3
      %p150 = por %p148, %p149
      %p152 = scmp.ne.s32.totalorder %s137, %s151
      %p153 = scmp.eq.s32.totalorder %s31, 0
      %p154 = por %p152, %p153
      %s156 = sadd.s32 %s155, 1
      %p159 = scmp.eq.s32.totalorder %s25, 3
      %p160 = scmp.ne.s32.totalorder %s155, %s157
      %p161 = scmp.eq.s32.totalorder %s25, 0
      %p162 = por %p160, %p161
      %p163 = scmp.ne.s32.totalorder %s155, %s157
      %p164 = scmp.eq.s32.totalorder %s30, 3
      %p165 = por %p163, %p164
      %p166 = scmp.ne.s32.totalorder %s157, %s158
      %p167 = scmp.eq.s32.totalorder %s30, 0
      %p168 = por %p166, %p167
      %p169 = scmp.ne.s32.totalorder %s157, %s158
      %p170 = scmp.eq.s32.totalorder %s31, 3
      %p171 = por %p169, %p170
      %p173 = scmp.ne.s32.totalorder %s158, %s172
      %p174 = scmp.eq.s32.totalorder %s31, 0
      %p175 = por %p173, %p174
      %s177 = sadd.s32 %s176, 1
      %p180 = scmp.eq.s32.totalorder %s25, 3
      %p181 = scmp.ne.s32.totalorder %s176, %s178
      %p182 = scmp.eq.s32.totalorder %s25, 0
      %p183 = por %p181, %p182
      %p184 = scmp.ne.s32.totalorder %s176, %s178
      %p185 = scmp.eq.s32.totalorder %s30, 3
      %p186 = por %p184, %p185
      %p187 = scmp.ne.s32.totalorder %s178, %s179
      %p188 = scmp.eq.s32.totalorder %s30, 0
      %p189 = por %p187, %p188
      %p190 = scmp.ne.s32.totalorder %s178, %s179
      %p191 = scmp.eq.s32.totalorder %s31, 3
      %p192 = por %p190, %p191
      %p194 = scmp.ne.s32.totalorder %s179, %s193
      %p195 = scmp.eq.s32.totalorder %s31, 0
      %p196 = por %p194, %p195
      %s198 = sadd.s32 %s197, 1
      %p201 = scmp.eq.s32.totalorder %s25, 3
      %p202 = scmp.ne.s32.totalorder %s197, %s199
      %p203 = scmp.eq.s32.totalorder %s25, 0
      %p204 = por %p202, %p203
      %p205 = scmp.ne.s32.totalorder %s197, %s199
      %p206 = scmp.eq.s32.totalorder %s30, 3
      %p207 = por %p205, %p206
      %p208 = scmp.ne.s32.totalorder %s199, %s200
      %p209 = scmp.eq.s32.totalorder %s30, 0
      %p210 = por %p208, %p209
      %p211 = scmp.ne.s32.totalorder %s199, %s200
      %p212 = scmp.eq.s32.totalorder %s31, 3
      %p213 = por %p211, %p212
      %p215 = scmp.ne.s32.totalorder %s200, %s214
      %p216 = scmp.eq.s32.totalorder %s31, 0
      %p217 = por %p215, %p216
      %s219 = sadd.s32 %s218, 1
      %p222 = scmp.eq.s32.totalorder %s25, 3
      %p223 = scmp.ne.s32.totalorder %s218, %s220
      %p224 = scmp.eq.s32.totalorder %s25, 0
      %p225 = por %p223, %p224
      %p226 = scmp.ne.s32.totalorder %s218, %s220
      %p227 = scmp.eq.s32.totalorder %s30, 3
      %p228 = por %p226, %p227
      %p229 = scmp.ne.s32.totalorder %s220, %s221
      %p230 = scmp.eq.s32.totalorder %s30, 0
      %p231 = por %p229, %p230
      %p232 = scmp.ne.s32.totalorder %s220, %s221
      %p233 = scmp.eq.s32.totalorder %s31, 3
      %p234 = por %p232, %p233
      %p236 = scmp.ne.s32.totalorder %s221, %s235
      %p237 = scmp.eq.s32.totalorder %s31, 0
      %p238 = por %p236, %p237
      %s240 = sadd.s32 %s239, 1
      %p243 = scmp.eq.s32.totalorder %s25, 3
      %p244 = scmp.ne.s32.totalorder %s239, %s241
      %p245 = scmp.eq.s32.totalorder %s25, 0
      %p246 = por %p244, %p245
      %p247 = scmp.ne.s32.totalorder %s239, %s241
      %p248 = scmp.eq.s32.totalorder %s30, 3
      %p249 = por %p247, %p248
      %p250 = scmp.ne.s32.totalorder %s241, %s242
      %p251 = scmp.eq.s32.totalorder %s30, 0
      %p252 = por %p250, %p251
      %p253 = scmp.ne.s32.totalorder %s241, %s242
      %p254 = scmp.eq.s32.totalorder %s31, 3
      %p255 = por %p253, %p254
      %p257 = scmp.ne.s32.totalorder %s242, %s256
      %p258 = scmp.eq.s32.totalorder %s31, 0
      %p259 = por %p257, %p258
      %s261 = sadd.s32 %s260, 1
      %p264 = scmp.eq.s32.totalorder %s25, 3
      %p265 = scmp.ne.s32.totalorder %s260, %s262
      %p266 = scmp.eq.s32.totalorder %s25, 0
      %p267 = por %p265, %p266
      %p268 = scmp.ne.s32.totalorder %s260, %s262
      %p269 = scmp.eq.s32.totalorder %s30, 3
      %p270 = por %p268, %p269
      %p271 = scmp.ne.s32.totalorder %s262, %s263
      %p272 = scmp.eq.s32.totalorder %s30, 0
      %p273 = por %p271, %p272
      %p274 = scmp.ne.s32.totalorder %s262, %s263
      %p275 = scmp.eq.s32.totalorder %s31, 3
      %p276 = por %p274, %p275
      %p278 = scmp.ne.s32.totalorder %s263, %s277
      %p279 = scmp.eq.s32.totalorder %s31, 0
      %p280 = por %p278, %p279
      %s281 = ssub.s32 %s32, %s44
      %s282 = ssub.s32 %s33, %s40
      %s283 = sor.u32 %s281, %s282
      %p284 = scmp.eq.s32.totalorder %s283, 0
      %s286 = sadd.s32 %s285, 1
      %s287 = scalar_select %p284, %s285, %s286
      %p290 = pneg %p284
      %p291 = scmp.eq.s32.totalorder %s25, 3
      %p292 = por %p290, %p291
      %p293 = scmp.ne.s32.totalorder %s285, %s288
      %p294 = scmp.eq.s32.totalorder %s25, 0
      %p295 = por %p293, %p294
      %p296 = scmp.ne.s32.totalorder %s285, %s288
      %p297 = scmp.eq.s32.totalorder %s30, 3
      %p298 = por %p296, %p297
      %p299 = scmp.ne.s32.totalorder %s288, %s289
      %p300 = scmp.eq.s32.totalorder %s30, 0
      %p301 = por %p299, %p300
      %p302 = scmp.ne.s32.totalorder %s288, %s289
      %p303 = scmp.eq.s32.totalorder %s31, 3
      %p304 = por %p302, %p303
      %p306 = scmp.ne.s32.totalorder %s289, %s305
      %p307 = scmp.eq.s32.totalorder %s31, 0
      %p308 = por %p306, %p307
      %p309 = scmp.le.s32.totalorder 1, %s25
      %p310 = scmp.lt.s32.totalorder %s25, 5
      %p311 = pnand %p309, %p310
      %p312 = pneg %p311
      // Predicated region
      $region9: #{tpu_custom_call.1} parent=5 // pred_check
        _
      $region10: #{tpu_custom_call.1} parent=5 // pred_check_branch
        %314 = sbr.rel (%p311) target = $region12
      $region11: #{tpu_custom_call.1} parent=5 // pred_region
        %s315 = ssub.s32 %s25, 1
        // Predicated region
        $region13: #{tpu_custom_call.1} parent=11 // pred_check
          %p316 = pneg %p84
        $region14: #{tpu_custom_call.1} parent=11 // pred_check_branch
          %318 = sbr.rel (%p316) target = $region16
        $region15: #{tpu_custom_call.1} parent=11 // pred_region
          _
        $region16: #{tpu_custom_call.1} parent=11 // pred_fallthru
          _
        // Predicated region
        $region17: #{tpu_custom_call.1} parent=11 // pred_check
          %p319 = pneg %p105
        $region18: #{tpu_custom_call.1} parent=11 // pred_check_branch
          %321 = sbr.rel (%p319) target = $region20
        $region19: #{tpu_custom_call.1} parent=11 // pred_region
          _
        $region20: #{tpu_custom_call.1} parent=11 // pred_fallthru
          _
        // Predicated region
        $region21: #{tpu_custom_call.1} parent=11 // pred_check
          %p322 = pneg %p126
        $region22: #{tpu_custom_call.1} parent=11 // pred_check_branch
          %324 = sbr.rel (%p322) target = $region24
        $region23: #{tpu_custom_call.1} parent=11 // pred_region
          _
        $region24: #{tpu_custom_call.1} parent=11 // pred_fallthru
          _
        // Predicated region
        $region25: #{tpu_custom_call.1} parent=11 // pred_check
          %p325 = pneg %p147
        $region26: #{tpu_custom_call.1} parent=11 // pred_check_branch
          %327 = sbr.rel (%p325) target = $region28
        $region27: #{tpu_custom_call.1} parent=11 // pred_region
          _
        $region28: #{tpu_custom_call.1} parent=11 // pred_fallthru
          _
        // Predicated region
        $region29: #{tpu_custom_call.1} parent=11 // pred_check
          %p328 = pneg %p168
        $region30: #{tpu_custom_call.1} parent=11 // pred_check_branch
          %330 = sbr.rel (%p328) target = $region32
        $region31: #{tpu_custom_call.1} parent=11 // pred_region
          _
        $region32: #{tpu_custom_call.1} parent=11 // pred_fallthru
          _
        // Predicated region
        $region33: #{tpu_custom_call.1} parent=11 // pred_check
          %p331 = pneg %p189
        $region34: #{tpu_custom_call.1} parent=11 // pred_check_branch
          %333 = sbr.rel (%p331) target = $region36
        $region35: #{tpu_custom_call.1} parent=11 // pred_region
          _
        $region36: #{tpu_custom_call.1} parent=11 // pred_fallthru
          _
        // Predicated region
        $region37: #{tpu_custom_call.1} parent=11 // pred_check
          %p334 = pneg %p210
        $region38: #{tpu_custom_call.1} parent=11 // pred_check_branch
          %336 = sbr.rel (%p334) target = $region40
        $region39: #{tpu_custom_call.1} parent=11 // pred_region
          _
        $region40: #{tpu_custom_call.1} parent=11 // pred_fallthru
          _
        // Predicated region
        $region41: #{tpu_custom_call.1} parent=11 // pred_check
          %p337 = pneg %p231
        $region42: #{tpu_custom_call.1} parent=11 // pred_check_branch
          %339 = sbr.rel (%p337) target = $region44
        $region43: #{tpu_custom_call.1} parent=11 // pred_region
          _
        $region44: #{tpu_custom_call.1} parent=11 // pred_fallthru
          _
        // Predicated region
        $region45: #{tpu_custom_call.1} parent=11 // pred_check
          %p340 = pneg %p252
        $region46: #{tpu_custom_call.1} parent=11 // pred_check_branch
          %342 = sbr.rel (%p340) target = $region48
        $region47: #{tpu_custom_call.1} parent=11 // pred_region
          %344 = vsyncadd [#allocation17], 0
          %s346 = sshll.u32 %s9, 4
          %s347 = int_to_ptr.hbm [resolvable:$true] %s346
          %s348 = sshll.u32 [#allocation16], 4
          %s349 = int_to_ptr.vmem [resolvable:$true] %s348
          %351 = dma.hbm_to_vmem [thread:$0]  %s347, 128, %s349, [#allocation17]
        $region48: #{tpu_custom_call.1} parent=11 // pred_fallthru
          _
        // Predicated region
        $region49: #{tpu_custom_call.1} parent=11 // pred_check
          %p352 = pneg %p273
        $region50: #{tpu_custom_call.1} parent=11 // pred_check_branch
          %354 = sbr.rel (%p352) target = $region52
        $region51: #{tpu_custom_call.1} parent=11 // pred_region
          %356 = vsyncadd [#allocation15], 0
          %s358 = sshll.u32 %s10, 4
          %s359 = int_to_ptr.vmem [resolvable:$true] %s358
          %361 = dma.vmem_to_smem %s359, 16, [#allocation18], [#allocation15]
        $region52: #{tpu_custom_call.1} parent=11 // pred_fallthru
          _
      $region12: #{tpu_custom_call.1} parent=5 // pred_fallthru
        _
      %p362 = scmp.lt.s32.totalorder %s25, 4
      // Predicated region
      $region53: #{tpu_custom_call.1} parent=5 // pred_check
        %p363 = pneg %p362
      $region54: #{tpu_custom_call.1} parent=5 // pred_check_branch
        %365 = sbr.rel (%p363) target = $region56
      $region55: #{tpu_custom_call.1} parent=5 // pred_region
        // Predicated region
        $region57: #{tpu_custom_call.1} parent=55 // pred_check
          %p366 = pneg %p57
        $region58: #{tpu_custom_call.1} parent=55 // pred_check_branch
          %368 = sbr.rel (%p366) target = $region60
        $region59: #{tpu_custom_call.1} parent=55 // pred_region
          %s369 = sand.u32 %s47, 1
          %s370 = scalar_lea.sflag [#allocation13], %s369
          %s371 = sand.u32 %s47, 1
          %s372 = smul.addr %s371, 128
          %s373 = scalar_lea.vmem [#allocation12], %s372
          %375 = vsyncadd %s370, 0
          %s376 = smul.addr %s32, 16
          %s377 = smul.addr %s376, 8
          %s378 = scalar_lea.hbm %s0, %s377
          %s379 = sshll.u32 %s378, 4
          %s380 = int_to_ptr.hbm [resolvable:$true] %s379
          %s381 = sshll.u32 %s373, 4
          %s382 = int_to_ptr.vmem [resolvable:$true] %s381
          %387 = dma.hbm_to_vmem [thread:$0]  %s380, 2048, %s382, %s370, 128, 128, 8
        $region60: #{tpu_custom_call.1} parent=55 // pred_fallthru
          _
      $region56: #{tpu_custom_call.1} parent=5 // pred_fallthru
        _
      %p388 = scmp.le.s32.totalorder 1, %s25
      %p389 = scmp.lt.s32.totalorder %s25, 5
      %p390 = pnand %p388, %p389
      %p391 = pneg %p390
      // Predicated region
      $region61: #{tpu_custom_call.1} parent=5 // pred_check
        _
      $region62: #{tpu_custom_call.1} parent=5 // pred_check_branch
        %393 = sbr.rel (%p390) target = $region64
      $region63: #{tpu_custom_call.1} parent=5 // pred_region
        %s394 = ssub.s32 %s25, 1
        %s395 = sand.u32 %s50, 1
        %s396 = scalar_lea.sflag [#allocation13], %s395
        %s397 = sand.u32 %s50, 1
        %s398 = smul.addr %s397, 128
        %s399 = scalar_lea.vmem [#allocation12], %s398
        // Predicated region
        $region65: #{tpu_custom_call.1} parent=63 // pred_check
          %p400 = pneg %p63
        $region66: #{tpu_custom_call.1} parent=63 // pred_check_branch
          %402 = sbr.rel (%p400) target = $region68
        $region67: #{tpu_custom_call.1} parent=63 // pred_region
          %404 = dma.done %s396, 2048
        $region68: #{tpu_custom_call.1} parent=63 // pred_fallthru
          _
        // Predicated region
        $region69: #{tpu_custom_call.1} parent=63 // pred_check
          %p405 = pneg %p252
        $region70: #{tpu_custom_call.1} parent=63 // pred_check_branch
          %407 = sbr.rel (%p405) target = $region72
        $region71: #{tpu_custom_call.1} parent=63 // pred_region
          %409 = dma.done [#allocation17], 128
        $region72: #{tpu_custom_call.1} parent=63 // pred_fallthru
          _
        // Predicated region
        $region73: #{tpu_custom_call.1} parent=63 // pred_check
          %p410 = pneg %p273
        $region74: #{tpu_custom_call.1} parent=63 // pred_check_branch
          %412 = sbr.rel (%p410) target = $region76
        $region75: #{tpu_custom_call.1} parent=63 // pred_region
          %414 = dma.done [#allocation15], 16
        $region76: #{tpu_custom_call.1} parent=63 // pred_fallthru
          _
        %415 = sfence
        %s416 = sand.u32 %s50, 1
        %s417 = scalar_lea.sflag [#allocation13], %s416
        %s418 = sand.u32 %s50, 1
        %s419 = smul.addr %s418, 128
        %s420 = scalar_lea.vmem [#allocation12], %s419
        %p421 = pneg %p63
        %p422 = pneg %p60
        %p423 = pneg %p84
        %p424 = pneg %p81
        %p425 = pneg %p105
        %p426 = pneg %p102
        %p427 = pneg %p126
        %p428 = pneg %p123
        %p429 = pneg %p147
        %p430 = pneg %p144
        %p431 = pneg %p168
        %p432 = pneg %p165
        %p433 = pneg %p189
        %p434 = pneg %p186
        %p435 = pneg %p210
        %p436 = pneg %p207
        %p437 = pneg %p231
        %p438 = pneg %p228
        %p439 = pneg %p252
        %p440 = pneg %p249
        %p441 = pneg %p273
        %p442 = pneg %p270
        %p443 = pneg %p301
        %p444 = pneg %p298
        %s445 = sand.u32 %s288, 1
        %s446 = scalar_lea.sflag [#allocation14], %s445
        %s447 = sand.u32 %s288, 1
        %s448 = smul.addr %s447, 120
        %s449 = scalar_lea.vmem [#allocation19], %s448
        %450 = vst [vmem:[#allocation2] sm:$0xff] 0.0
        %451 = vst [vmem:[#allocation2 + $0x8] sm:$0xff] 0.0
        %452 = vst [vmem:[#allocation2 + $0x10] sm:$0xff] 0.0
        %453 = vst [vmem:[#allocation2 + $0x18] sm:$0xff] 0.0
        %vm454 = vcmask 97280
        %455 = vst.msk [vmem:[#allocation2 + $0x20] sm:$0xff] %vm454, 0.0
        %v456 = vlaneseq
        %vm457 = vcmp.ge.s32.totalorder %v456, 0
        %vm458 = vcmp.lt.s32.totalorder %v456, 524
        %vm459 = vmand %vm457, %vm458
        %460 = vst.msk [vmem:[#allocation10] sm:$0x1f] %vm459, 0.0
        %vm461 = vcmask 337920
        %462 = vst.msk [vmem:[#allocation3] sm:$0x7] %vm461, 0.0
        %vm463 = vcmask 1043216
        %vm464 = vcmask 96260
        %vm465 = vmor %vm464, %vm463
        %466 = vst.msk [vmem:[#allocation3 + $0xc] sm:$0x77] %vm465, 0.0
        %467 = vst.msk [vmem:[#allocation4] sm:$0x7] %vm461, 0.0
        %468 = vst.msk [vmem:[#allocation4 + $0xc] sm:$0x77] %vm465, 0.0
        %469 = vst.msk [vmem:[#allocation5] sm:$0x7] %vm461, 0.0
        %470 = vst.msk [vmem:[#allocation5 + $0xc] sm:$0x77] %vm465, 0.0
        %vm471 = vcmask 340992
        %472 = vst.msk [vmem:[#allocation6] sm:$0x3f] %vm471, 0.0
        %vm473 = vcmask 1046288
        %474 = vst.msk [vmem:[#allocation6 + $0x18] sm:$0x3f] %vm473, 0.0
        %vm475 = vcmask 95232
        %476 = vst.msk [vmem:[#allocation6 + $0x20] sm:$0x3f] %vm475, 0.0
        %vm477 = vcmask 343040
        %478 = vst.msk [vmem:[#allocation7] sm:$0xff] %vm477, 0.0
        %vm479 = vcmask 338944
        %480 = vst.msk [vmem:[#allocation7 + $0x28] sm:$0xf] %vm479, 0.0
        %vm481 = vcmask 1048336
        %482 = vst.msk [vmem:[#allocation7 + $0x18] sm:$0xff] %vm481, 0.0
        %483 = vst.msk [vmem:[#allocation7 + $0x20] sm:$0xff] %vm454, 0.0
        %vm484 = vcmask 1044240
        %485 = vst.msk [vmem:[#allocation7 + $0x40] sm:$0xf] %vm484, 0.0
        %vm486 = vcmask 93184
        %487 = vst.msk [vmem:[#allocation7 + $0x48] sm:$0xf] %vm486, 0.0
        %488 = vst.msk [vmem:[#allocation8] sm:$0x7] %vm461, 0.0
        %489 = vst.msk [vmem:[#allocation8 + $0xc] sm:$0x77] %vm465, 0.0
        %490 = vst.msk [vmem:[#allocation9] sm:$0xff] %vm477, 0.0
        %vm491 = vcmask 342016
        %492 = vst.msk [vmem:[#allocation9 + $0x28] sm:$0x7f] %vm491, 0.0
        %493 = vst.msk [vmem:[#allocation9 + $0x18] sm:$0xff] %vm481, 0.0
        %494 = vst.msk [vmem:[#allocation9 + $0x20] sm:$0xff] %vm454, 0.0
        %vm495 = vcmask 1047312
        %496 = vst.msk [vmem:[#allocation9 + $0x40] sm:$0x7f] %vm495, 0.0
        %vm497 = vcmask 96256
        %498 = vst.msk [vmem:[#allocation9 + $0x48] sm:$0x7f] %vm497, 0.0
        %s499 = smul.u32 %s35, 8
        %s500 = ssub.s32 %s499, 7
        %p501 = scmp.ge.s32.totalorder %s500, 0
        %p502 = scmp.lt.s32.totalorder %s500, 16
        %p503 = pnand %p501, %p502
        %p504 = pneg %p503
        %s505 = scalar_select %p504, 1, 0
        %s506 = scvt.s32.f32 %s505
        %p507 = scmp.gt.s32.totalorder %s500, 0
        %s508 = scalar_select %p507, %s500, 0
        %p509 = scmp.lt.s32.totalorder %s508, 15
        %s510 = scalar_select %p509, %s508, 15
        %s511 = scalar_lea.vmem %s399, %s510 [#allocation12]
        %v512 = vld [vmem:[%s511] sm:$0x1]
        %v513 = vld [vmem:[%s511 + $0x10] sm:$0x1]
        %v514 = vld [vmem:[%s511 + $0x20] sm:$0x1]
        %v515 = vld [vmem:[%s511 + $0x30] sm:$0x1]
        %v516 = vld [vmem:[%s511 + $0x40] sm:$0x1]
        %v517 = vld [vmem:[%s511 + $0x50] sm:$0x1]
        %v518 = vld [vmem:[%s511 + $0x60] sm:$0x1]
        %v519 = vld [vmem:[%s511 + $0x70] sm:$0x1]
        %v520 = vstv %s506
        %v521 = vmul.f32 %v512, %v520
        %v522 = vmul.f32 %v513, %v520
        %v523 = vmul.f32 %v514, %v520
        %v524 = vmul.f32 %v515, %v520
        %v525 = vmul.f32 %v516, %v520
        %v526 = vmul.f32 %v517, %v520
        %v527 = vmul.f32 %v518, %v520
        %v528 = vmul.f32 %v519, %v520
        %v537 = vrot.slane %v522, 7
        %vm538 = vcmask 1041409
        %v539 = vsel %vm538, %v537, %v521
        %v540 = vrot.slane %v523, 6
        %vm541 = vcmask 1042434
        %v542 = vsel %vm541, %v540, %v539
        %v543 = vrot.slane %v524, 5
        %vm544 = vcmask 1043459
        %v545 = vsel %vm544, %v543, %v542
        %v546 = vrot.slane %v525, 4
        %vm547 = vcmask 1044484
        %v548 = vsel %vm547, %v546, %v545
        %v549 = vrot.slane %v526, 3
        %vm550 = vcmask 1045509
        %v551 = vsel %vm550, %v549, %v548
        %v552 = vrot.slane %v527, 2
        %vm553 = vcmask 1046534
        %v554 = vsel %vm553, %v552, %v551
        %v555 = vrot.slane %v528, 1
        %vm556 = vcmask 1047559
        %v557 = vsel %vm556, %v555, %v554
        %558 = vrot.lane.b32.xlu0 %v557, 42
        %v559 = vpop.permute.xlu0 %558
        %vm561 = vcmask 474448
        %562 = vst.msk [vmem:[#allocation2] sm:$0xff] %vm561, %v559
        %vm563 = vcmp.ge.s32.totalorder %v456, 42
        %vm564 = vcmp.lt.s32.totalorder %v456, 58
        %vm565 = vmand %vm563, %vm564
        %566 = vst.msk [vmem:[#allocation10] sm:$0x1] %vm565, %v520
        %s567 = sadd.s32 %s499, 4294967290
        %p568 = scmp.ge.s32.totalorder %s567, 0
        %p569 = scmp.lt.s32.totalorder %s567, 16
        %p570 = pnand %p568, %p569
        %p571 = pneg %p570
        %s572 = scalar_select %p571, 1, 0
        %s573 = scvt.s32.f32 %s572
        %p574 = scmp.gt.s32.totalorder %s567, 0
        %s575 = scalar_select %p574, %s567, 0
        %p576 = scmp.lt.s32.totalorder %s575, 15
        %s577 = scalar_select %p576, %s575, 15
        %s578 = scalar_lea.vmem %s399, %s577 [#allocation12]
        %v579 = vld [vmem:[%s578] sm:$0x1]
        %v580 = vld [vmem:[%s578 + $0x10] sm:$0x1]
        %v581 = vld [vmem:[%s578 + $0x20] sm:$0x1]
        %v582 = vld [vmem:[%s578 + $0x30] sm:$0x1]
        %v583 = vld [vmem:[%s578 + $0x40] sm:$0x1]
        %v584 = vld [vmem:[%s578 + $0x50] sm:$0x1]
        %v585 = vld [vmem:[%s578 + $0x60] sm:$0x1]
        %v586 = vld [vmem:[%s578 + $0x70] sm:$0x1]
        %v587 = vstv %s573
        %v588 = vmul.f32 %v579, %v587
        %v589 = vmul.f32 %v580, %v587
        %v590 = vmul.f32 %v581, %v587
        %v591 = vmul.f32 %v582, %v587
        %v592 = vmul.f32 %v583, %v587
        %v593 = vmul.f32 %v584, %v587
        %v594 = vmul.f32 %v585, %v587
        %v595 = vmul.f32 %v586, %v587
        %v604 = vrot.slane %v589, 7
        %v605 = vsel %vm538, %v604, %v588
        %v606 = vrot.slane %v590, 6
        %v607 = vsel %vm541, %v606, %v605
        %v608 = vrot.slane %v591, 5
        %v609 = vsel %vm544, %v608, %v607
        %v610 = vrot.slane %v592, 4
        %v611 = vsel %vm547, %v610, %v609
        %v612 = vrot.slane %v593, 3
        %v613 = vsel %vm550, %v612, %v611
        %v614 = vrot.slane %v594, 2
        %v615 = vsel %vm553, %v614, %v613
        %v616 = vrot.slane %v595, 1
        %v617 = vsel %vm556, %v616, %v615
        %618 = vrot.lane.b32.xlu0 %v617, 62
        %v619 = vpop.permute.xlu0 %618
        %vm621 = vcmask 638448
        %622 = vst.msk [vmem:[#allocation2] sm:$0xff] %vm621, %v619
        %vm623 = vcmp.ge.s32.totalorder %v456, 62
        %vm624 = vcmp.lt.s32.totalorder %v456, 78
        %vm625 = vmand %vm623, %vm624
        %626 = vst.msk [vmem:[#allocation10] sm:$0x1] %vm625, %v587
        %s627 = sadd.s32 %s499, 4294967291
        %p628 = scmp.ge.s32.totalorder %s627, 0
        %p629 = scmp.lt.s32.totalorder %s627, 16
        %p630 = pnand %p628, %p629
        %p631 = pneg %p630
        %s632 = scalar_select %p631, 1, 0
        %s633 = scvt.s32.f32 %s632
        %p634 = scmp.gt.s32.totalorder %s627, 0
        %s635 = scalar_select %p634, %s627, 0
        %p636 = scmp.lt.s32.totalorder %s635, 15
        %s637 = scalar_select %p636, %s635, 15
        %s638 = scalar_lea.vmem %s399, %s637 [#allocation12]
        %v639 = vld [vmem:[%s638] sm:$0x1]
        %v640 = vld [vmem:[%s638 + $0x10] sm:$0x1]
        %v641 = vld [vmem:[%s638 + $0x20] sm:$0x1]
        %v642 = vld [vmem:[%s638 + $0x30] sm:$0x1]
        %v643 = vld [vmem:[%s638 + $0x40] sm:$0x1]
        %v644 = vld [vmem:[%s638 + $0x50] sm:$0x1]
        %v645 = vld [vmem:[%s638 + $0x60] sm:$0x1]
        %v646 = vld [vmem:[%s638 + $0x70] sm:$0x1]
        %v647 = vstv %s633
        %v648 = vmul.f32 %v639, %v647
        %v649 = vmul.f32 %v640, %v647
        %v650 = vmul.f32 %v641, %v647
        %v651 = vmul.f32 %v642, %v647
        %v652 = vmul.f32 %v643, %v647
        %v653 = vmul.f32 %v644, %v647
        %v654 = vmul.f32 %v645, %v647
        %v655 = vmul.f32 %v646, %v647
        %v664 = vrot.slane %v649, 7
        %v665 = vsel %vm538, %v664, %v648
        %v666 = vrot.slane %v650, 6
        %v667 = vsel %vm541, %v666, %v665
        %v668 = vrot.slane %v651, 5
        %v669 = vsel %vm544, %v668, %v667
        %v670 = vrot.slane %v652, 4
        %v671 = vsel %vm547, %v670, %v669
        %v672 = vrot.slane %v653, 3
        %v673 = vsel %vm550, %v672, %v671
        %v674 = vrot.slane %v654, 2
        %v675 = vsel %vm553, %v674, %v673
        %v676 = vrot.slane %v655, 1
        %v677 = vsel %vm556, %v676, %v675
        %678 = vrot.lane.b32.xlu0 %v677, 82
        %v679 = vpop.permute.xlu0 %678
        %vm681 = vcmask 802448
        %682 = vst.msk [vmem:[#allocation2] sm:$0xff] %vm681, %v679
        %vm683 = vcmp.ge.s32.totalorder %v456, 82
        %vm684 = vcmp.lt.s32.totalorder %v456, 98
        %vm685 = vmand %vm683, %vm684
        %686 = vst.msk [vmem:[#allocation10] sm:$0x1] %vm685, %v647
        %s687 = sadd.s32 %s499, 4294967292
        %p688 = scmp.ge.s32.totalorder %s687, 0
        %p689 = scmp.lt.s32.totalorder %s687, 16
        %p690 = pnand %p688, %p689
        %p691 = pneg %p690
        %s692 = scalar_select %p691, 1, 0
        %s693 = scvt.s32.f32 %s692
        %p694 = scmp.gt.s32.totalorder %s687, 0
        %s695 = scalar_select %p694, %s687, 0
        %p696 = scmp.lt.s32.totalorder %s695, 15
        %s697 = scalar_select %p696, %s695, 15
        %s698 = scalar_lea.vmem %s399, %s697 [#allocation12]
        %v699 = vld [vmem:[%s698] sm:$0x1]
        %v700 = vld [vmem:[%s698 + $0x10] sm:$0x1]
        %v701 = vld [vmem:[%s698 + $0x20] sm:$0x1]
        %v702 = vld [vmem:[%s698 + $0x30] sm:$0x1]
        %v703 = vld [vmem:[%s698 + $0x40] sm:$0x1]
        %v704 = vld [vmem:[%s698 + $0x50] sm:$0x1]
        %v705 = vld [vmem:[%s698 + $0x60] sm:$0x1]
        %v706 = vld [vmem:[%s698 + $0x70] sm:$0x1]
        %v707 = vstv %s693
        %v708 = vmul.f32 %v699, %v707
        %v709 = vmul.f32 %v700, %v707
        %v710 = vmul.f32 %v701, %v707
        %v711 = vmul.f32 %v702, %v707
        %v712 = vmul.f32 %v703, %v707
        %v713 = vmul.f32 %v704, %v707
        %v714 = vmul.f32 %v705, %v707
        %v715 = vmul.f32 %v706, %v707
        %v724 = vrot.slane %v709, 7
        %v725 = vsel %vm538, %v724, %v708
        %v726 = vrot.slane %v710, 6
        %v727 = vsel %vm541, %v726, %v725
        %v728 = vrot.slane %v711, 5
        %v729 = vsel %vm544, %v728, %v727
        %v730 = vrot.slane %v712, 4
        %v731 = vsel %vm547, %v730, %v729
        %v732 = vrot.slane %v713, 3
        %v733 = vsel %vm550, %v732, %v731
        %v734 = vrot.slane %v714, 2
        %v735 = vsel %vm553, %v734, %v733
        %v736 = vrot.slane %v715, 1
        %v737 = vsel %vm556, %v736, %v735
        %738 = vrot.lane.b32.xlu0 %v737, 102
        %v739 = vpop.permute.xlu0 %738
        %vm741 = vcmask 966448
        %742 = vst.msk [vmem:[#allocation2] sm:$0xff] %vm741, %v739
        %vm743 = vcmp.ge.s32.totalorder %v456, 102
        %vm744 = vcmp.lt.s32.totalorder %v456, 118
        %vm745 = vmand %vm743, %vm744
        %746 = vst.msk [vmem:[#allocation10] sm:$0x1] %vm745, %v707
        %s747 = sadd.s32 %s499, 4294967293
        %p748 = scmp.ge.s32.totalorder %s747, 0
        %p749 = scmp.lt.s32.totalorder %s747, 16
        %p750 = pnand %p748, %p749
        %p751 = pneg %p750
        %s752 = scalar_select %p751, 1, 0
        %s753 = scvt.s32.f32 %s752
        %p754 = scmp.gt.s32.totalorder %s747, 0
        %s755 = scalar_select %p754, %s747, 0
        %p756 = scmp.lt.s32.totalorder %s755, 15
        %s757 = scalar_select %p756, %s755, 15
        %s758 = scalar_lea.vmem %s399, %s757 [#allocation12]
        %v759 = vld [vmem:[%s758] sm:$0x1]
        %v760 = vld [vmem:[%s758 + $0x10] sm:$0x1]
        %v761 = vld [vmem:[%s758 + $0x20] sm:$0x1]
        %v762 = vld [vmem:[%s758 + $0x30] sm:$0x1]
        %v763 = vld [vmem:[%s758 + $0x40] sm:$0x1]
        %v764 = vld [vmem:[%s758 + $0x50] sm:$0x1]
        %v765 = vld [vmem:[%s758 + $0x60] sm:$0x1]
        %v766 = vld [vmem:[%s758 + $0x70] sm:$0x1]
        %v767 = vstv %s753
        %v768 = vmul.f32 %v759, %v767
        %v769 = vmul.f32 %v760, %v767
        %v770 = vmul.f32 %v761, %v767
        %v771 = vmul.f32 %v762, %v767
        %v772 = vmul.f32 %v763, %v767
        %v773 = vmul.f32 %v764, %v767
        %v774 = vmul.f32 %v765, %v767
        %v775 = vmul.f32 %v766, %v767
        %v784 = vrot.slane %v769, 7
        %v785 = vsel %vm538, %v784, %v768
        %v786 = vrot.slane %v770, 6
        %v787 = vsel %vm541, %v786, %v785
        %v788 = vrot.slane %v771, 5
        %v789 = vsel %vm544, %v788, %v787
        %v790 = vrot.slane %v772, 4
        %v791 = vsel %vm547, %v790, %v789
        %v792 = vrot.slane %v773, 3
        %v793 = vsel %vm550, %v792, %v791
        %v794 = vrot.slane %v774, 2
        %v795 = vsel %vm553, %v794, %v793
        %v796 = vrot.slane %v775, 1
        %v797 = vsel %vm556, %v796, %v795
        %798 = vrot.lane.b32.xlu0 %v797, 122
        %v799 = vpop.permute.xlu0 %798
        %vm801 = vcmask 1048528
        %802 = vst.msk [vmem:[#allocation2] sm:$0xff] %vm801, %v799
        %vm803 = vcmask 80896
        %804 = vst.msk [vmem:[#allocation2 + $0x8] sm:$0xff] %vm803, %v799
        %vm805 = vcmp.ge.s32.totalorder %v456, 122
        %vm806 = vcmp.lt.s32.totalorder %v456, 138
        %vm807 = vmand %vm805, %vm806
        %808 = vst.msk [vmem:[#allocation10] sm:$0x3] %vm807, %v767
        %s809 = sadd.s32 %s499, 4294967294
        %p810 = scmp.ge.s32.totalorder %s809, 0
        %p811 = scmp.lt.s32.totalorder %s809, 16
        %p812 = pnand %p810, %p811
        %p813 = pneg %p812
        %s814 = scalar_select %p813, 1, 0
        %s815 = scvt.s32.f32 %s814
        %p816 = scmp.gt.s32.totalorder %s809, 0
        %s817 = scalar_select %p816, %s809, 0
        %p818 = scmp.lt.s32.totalorder %s817, 15
        %s819 = scalar_select %p818, %s817, 15
        %s820 = scalar_lea.vmem %s399, %s819 [#allocation12]
        %v821 = vld [vmem:[%s820] sm:$0x1]
        %v822 = vld [vmem:[%s820 + $0x10] sm:$0x1]
        %v823 = vld [vmem:[%s820 + $0x20] sm:$0x1]
        %v824 = vld [vmem:[%s820 + $0x30] sm:$0x1]
        %v825 = vld [vmem:[%s820 + $0x40] sm:$0x1]
        %v826 = vld [vmem:[%s820 + $0x50] sm:$0x1]
        %v827 = vld [vmem:[%s820 + $0x60] sm:$0x1]
        %v828 = vld [vmem:[%s820 + $0x70] sm:$0x1]
        %v829 = vstv %s815
        %v830 = vmul.f32 %v821, %v829
        %v831 = vmul.f32 %v822, %v829
        %v832 = vmul.f32 %v823, %v829
        %v833 = vmul.f32 %v824, %v829
        %v834 = vmul.f32 %v825, %v829
        %v835 = vmul.f32 %v826, %v829
        %v836 = vmul.f32 %v827, %v829
        %v837 = vmul.f32 %v828, %v829
        %v846 = vrot.slane %v831, 7
        %v847 = vsel %vm538, %v846, %v830
        %v848 = vrot.slane %v832, 6
        %v849 = vsel %vm541, %v848, %v847
        %v850 = vrot.slane %v833, 5
        %v851 = vsel %vm544, %v850, %v849
        %v852 = vrot.slane %v834, 4
        %v853 = vsel %vm547, %v852, %v851
        %v854 = vrot.slane %v835, 3
        %v855 = vsel %vm550, %v854, %v853
        %v856 = vrot.slane %v836, 2
        %v857 = vsel %vm553, %v856, %v855
        %v858 = vrot.slane %v837, 1
        %v859 = vsel %vm556, %v858, %v857
        %860 = vrot.lane.b32.xlu0 %v859, 14
        %v861 = vpop.permute.xlu0 %860
        %vm863 = vcmask 244848
        %864 = vst.msk [vmem:[#allocation2 + $0x8] sm:$0xff] %vm863, %v861
        %vm865 = vcmp.ge.s32.totalorder %v456, 14
        %vm866 = vcmp.lt.s32.totalorder %v456, 30
        %vm867 = vmand %vm865, %vm866
        %868 = vst.msk [vmem:[#allocation10 + $0x1] sm:$0x1] %vm867, %v829
        %s869 = sadd.s32 %s499, 4294967295
        %p870 = scmp.ge.s32.totalorder %s869, 0
        %p871 = scmp.lt.s32.totalorder %s869, 16
        %p872 = pnand %p870, %p871
        %p873 = pneg %p872
        %s874 = scalar_select %p873, 1, 0
        %s875 = scvt.s32.f32 %s874
        %p876 = scmp.gt.s32.totalorder %s869, 0
        %s877 = scalar_select %p876, %s869, 0
        %p878 = scmp.lt.s32.totalorder %s877, 15
        %s879 = scalar_select %p878, %s877, 15
        %s880 = scalar_lea.vmem %s399, %s879 [#allocation12]
        %v881 = vld [vmem:[%s880] sm:$0x1]
        %v882 = vld [vmem:[%s880 + $0x10] sm:$0x1]
        %v883 = vld [vmem:[%s880 + $0x20] sm:$0x1]
        %v884 = vld [vmem:[%s880 + $0x30] sm:$0x1]
        %v885 = vld [vmem:[%s880 + $0x40] sm:$0x1]
        %v886 = vld [vmem:[%s880 + $0x50] sm:$0x1]
        %v887 = vld [vmem:[%s880 + $0x60] sm:$0x1]
        %v888 = vld [vmem:[%s880 + $0x70] sm:$0x1]
        %v889 = vstv %s875
        %v890 = vmul.f32 %v881, %v889
        %v891 = vmul.f32 %v882, %v889
        %v892 = vmul.f32 %v883, %v889
        %v893 = vmul.f32 %v884, %v889
        %v894 = vmul.f32 %v885, %v889
        %v895 = vmul.f32 %v886, %v889
        %v896 = vmul.f32 %v887, %v889
        %v897 = vmul.f32 %v888, %v889
        %v906 = vrot.slane %v891, 7
        %v907 = vsel %vm538, %v906, %v890
        %v908 = vrot.slane %v892, 6
        %v909 = vsel %vm541, %v908, %v907
        %v910 = vrot.slane %v893, 5
        %v911 = vsel %vm544, %v910, %v909
        %v912 = vrot.slane %v894, 4
        %v913 = vsel %vm547, %v912, %v911
        %v914 = vrot.slane %v895, 3
        %v915 = vsel %vm550, %v914, %v913
        %v916 = vrot.slane %v896, 2
        %v917 = vsel %vm553, %v916, %v915
        %v918 = vrot.slane %v897, 1
        %v919 = vsel %vm556, %v918, %v917
        %920 = vrot.lane.b32.xlu0 %v919, 34
        %v921 = vpop.permute.xlu0 %920
        %vm923 = vcmask 408848
        %924 = vst.msk [vmem:[#allocation2 + $0x8] sm:$0xff] %vm923, %v921
        %vm925 = vcmp.ge.s32.totalorder %v456, 34
        %vm926 = vcmp.lt.s32.totalorder %v456, 50
        %vm927 = vmand %vm925, %vm926
        %928 = vst.msk [vmem:[#allocation10 + $0x1] sm:$0x1] %vm927, %v889
        %p929 = scmp.ge.s32.totalorder %s499, 0
        %p930 = scmp.lt.s32.totalorder %s499, 16
        %p931 = pnand %p929, %p930
        %p932 = pneg %p931
        %s933 = scalar_select %p932, 1, 0
        %s934 = scvt.s32.f32 %s933
        %p935 = scmp.gt.s32.totalorder %s499, 0
        %s936 = scalar_select %p935, %s499, 0
        %p937 = scmp.lt.s32.totalorder %s936, 15
        %s938 = scalar_select %p937, %s936, 15
        %s939 = scalar_lea.vmem %s399, %s938 [#allocation12]
        %v940 = vld [vmem:[%s939] sm:$0x1]
        %v941 = vld [vmem:[%s939 + $0x10] sm:$0x1]
        %v942 = vld [vmem:[%s939 + $0x20] sm:$0x1]
        %v943 = vld [vmem:[%s939 + $0x30] sm:$0x1]
        %v944 = vld [vmem:[%s939 + $0x40] sm:$0x1]
        %v945 = vld [vmem:[%s939 + $0x50] sm:$0x1]
        %v946 = vld [vmem:[%s939 + $0x60] sm:$0x1]
        %v947 = vld [vmem:[%s939 + $0x70] sm:$0x1]
        %v948 = vstv %s934
        %v949 = vmul.f32 %v940, %v948
        %v950 = vmul.f32 %v941, %v948
        %v951 = vmul.f32 %v942, %v948
        %v952 = vmul.f32 %v943, %v948
        %v953 = vmul.f32 %v944, %v948
        %v954 = vmul.f32 %v945, %v948
        %v955 = vmul.f32 %v946, %v948
        %v956 = vmul.f32 %v947, %v948
        %v965 = vrot.slane %v950, 7
        %v966 = vsel %vm538, %v965, %v949
        %v967 = vrot.slane %v951, 6
        %v968 = vsel %vm541, %v967, %v966
        %v969 = vrot.slane %v952, 5
        %v970 = vsel %vm544, %v969, %v968
        %v971 = vrot.slane %v953, 4
        %v972 = vsel %vm547, %v971, %v970
        %v973 = vrot.slane %v954, 3
        %v974 = vsel %vm550, %v973, %v972
        %v975 = vrot.slane %v955, 2
        %v976 = vsel %vm553, %v975, %v974
        %v977 = vrot.slane %v956, 1
        %v978 = vsel %vm556, %v977, %v976
        %979 = vrot.lane.b32.xlu0 %v978, 54
        %v980 = vpop.permute.xlu0 %979
        %vm982 = vcmask 572848
        %983 = vst.msk [vmem:[#allocation2 + $0x8] sm:$0xff] %vm982, %v980
        %vm984 = vcmp.ge.s32.totalorder %v456, 54
        %vm985 = vcmp.lt.s32.totalorder %v456, 70
        %vm986 = vmand %vm984, %vm985
        %987 = vst.msk [vmem:[#allocation10 + $0x1] sm:$0x1] %vm986, %v948
        %s988 = sadd.s32 %s499, 1
        %p989 = scmp.ge.s32.totalorder %s988, 0
        %p990 = scmp.lt.s32.totalorder %s988, 16
        %p991 = pnand %p989, %p990
        %p992 = pneg %p991
        %s993 = scalar_select %p992, 1, 0
        %s994 = scvt.s32.f32 %s993
        %p995 = scmp.gt.s32.totalorder %s988, 0
        %s996 = scalar_select %p995, %s988, 0
        %p997 = scmp.lt.s32.totalorder %s996, 15
        %s998 = scalar_select %p997, %s996, 15
        %s999 = scalar_lea.vmem %s399, %s998 [#allocation12]
        %v1000 = vld [vmem:[%s999] sm:$0x1]
        %v1001 = vld [vmem:[%s999 + $0x10] sm:$0x1]
        %v1002 = vld [vmem:[%s999 + $0x20] sm:$0x1]
        %v1003 = vld [vmem:[%s999 + $0x30] sm:$0x1]
        %v1004 = vld [vmem:[%s999 + $0x40] sm:$0x1]
        %v1005 = vld [vmem:[%s999 + $0x50] sm:$0x1]
        %v1006 = vld [vmem:[%s999 + $0x60] sm:$0x1]
        %v1007 = vld [vmem:[%s999 + $0x70] sm:$0x1]
        %v1008 = vstv %s994
        %v1009 = vmul.f32 %v1000, %v1008
        %v1010 = vmul.f32 %v1001, %v1008
        %v1011 = vmul.f32 %v1002, %v1008
        %v1012 = vmul.f32 %v1003, %v1008
        %v1013 = vmul.f32 %v1004, %v1008
        %v1014 = vmul.f32 %v1005, %v1008
        %v1015 = vmul.f32 %v1006, %v1008
        %v1016 = vmul.f32 %v1007, %v1008
        %v1025 = vrot.slane %v1010, 7
        %v1026 = vsel %vm538, %v1025, %v1009
        %v1027 = vrot.slane %v1011, 6
        %v1028 = vsel %vm541, %v1027, %v1026
        %v1029 = vrot.slane %v1012, 5
        %v1030 = vsel %vm544, %v1029, %v1028
        %v1031 = vrot.slane %v1013, 4
        %v1032 = vsel %vm547, %v1031, %v1030
        %v1033 = vrot.slane %v1014, 3
        %v1034 = vsel %vm550, %v1033, %v1032
        %v1035 = vrot.slane %v1015, 2
        %v1036 = vsel %vm553, %v1035, %v1034
        %v1037 = vrot.slane %v1016, 1
        %v1038 = vsel %vm556, %v1037, %v1036
        %1039 = vrot.lane.b32.xlu0 %v1038, 74
        %v1040 = vpop.permute.xlu0 %1039
        %vm1042 = vcmask 736848
        %1043 = vst.msk [vmem:[#allocation2 + $0x8] sm:$0xff] %vm1042, %v1040
        %vm1044 = vcmp.ge.s32.totalorder %v456, 74
        %vm1045 = vcmp.lt.s32.totalorder %v456, 90
        %vm1046 = vmand %vm1044, %vm1045
        %1047 = vst.msk [vmem:[#allocation10 + $0x1] sm:$0x1] %vm1046, %v1008
        %s1048 = sadd.s32 %s499, 2
        %p1049 = scmp.ge.s32.totalorder %s1048, 0
        %p1050 = scmp.lt.s32.totalorder %s1048, 16
        %p1051 = pnand %p1049, %p1050
        %p1052 = pneg %p1051
        %s1053 = scalar_select %p1052, 1, 0
        %s1054 = scvt.s32.f32 %s1053
        %p1055 = scmp.gt.s32.totalorder %s1048, 0
        %s1056 = scalar_select %p1055, %s1048, 0
        %p1057 = scmp.lt.s32.totalorder %s1056, 15
        %s1058 = scalar_select %p1057, %s1056, 15
        %s1059 = scalar_lea.vmem %s399, %s1058 [#allocation12]
        %v1060 = vld [vmem:[%s1059] sm:$0x1]
        %v1061 = vld [vmem:[%s1059 + $0x10] sm:$0x1]
        %v1062 = vld [vmem:[%s1059 + $0x20] sm:$0x1]
        %v1063 = vld [vmem:[%s1059 + $0x30] sm:$0x1]
        %v1064 = vld [vmem:[%s1059 + $0x40] sm:$0x1]
        %v1065 = vld [vmem:[%s1059 + $0x50] sm:$0x1]
        %v1066 = vld [vmem:[%s1059 + $0x60] sm:$0x1]
        %v1067 = vld [vmem:[%s1059 + $0x70] sm:$0x1]
        %v1068 = vstv %s1054
        %v1069 = vmul.f32 %v1060, %v1068
        %v1070 = vmul.f32 %v1061, %v1068
        %v1071 = vmul.f32 %v1062, %v1068
        %v1072 = vmul.f32 %v1063, %v1068
        %v1073 = vmul.f32 %v1064, %v1068
        %v1074 = vmul.f32 %v1065, %v1068
        %v1075 = vmul.f32 %v1066, %v1068
        %v1076 = vmul.f32 %v1067, %v1068
        %v1085 = vrot.slane %v1070, 7
        %v1086 = vsel %vm538, %v1085, %v1069
        %v1087 = vrot.slane %v1071, 6
        %v1088 = vsel %vm541, %v1087, %v1086
        %v1089 = vrot.slane %v1072, 5
        %v1090 = vsel %vm544, %v1089, %v1088
        %v1091 = vrot.slane %v1073, 4
        %v1092 = vsel %vm547, %v1091, %v1090
        %v1093 = vrot.slane %v1074, 3
        %v1094 = vsel %vm550, %v1093, %v1092
        %v1095 = vrot.slane %v1075, 2
        %v1096 = vsel %vm553, %v1095, %v1094
        %v1097 = vrot.slane %v1076, 1
        %v1098 = vsel %vm556, %v1097, %v1096
        %1099 = vrot.lane.b32.xlu0 %v1098, 94
        %v1100 = vpop.permute.xlu0 %1099
        %vm1102 = vcmask 900848
        %1103 = vst.msk [vmem:[#allocation2 + $0x8] sm:$0xff] %vm1102, %v1100
        %vm1104 = vcmp.ge.s32.totalorder %v456, 94
        %vm1105 = vcmp.lt.s32.totalorder %v456, 110
        %vm1106 = vmand %vm1104, %vm1105
        %1107 = vst.msk [vmem:[#allocation10 + $0x1] sm:$0x1] %vm1106, %v1068
        %s1108 = sadd.s32 %s499, 3
        %p1109 = scmp.ge.s32.totalorder %s1108, 0
        %p1110 = scmp.lt.s32.totalorder %s1108, 16
        %p1111 = pnand %p1109, %p1110
        %p1112 = pneg %p1111
        %s1113 = scalar_select %p1112, 1, 0
        %s1114 = scvt.s32.f32 %s1113
        %p1115 = scmp.gt.s32.totalorder %s1108, 0
        %s1116 = scalar_select %p1115, %s1108, 0
        %p1117 = scmp.lt.s32.totalorder %s1116, 15
        %s1118 = scalar_select %p1117, %s1116, 15
        %s1119 = scalar_lea.vmem %s399, %s1118 [#allocation12]
        %v1120 = vld [vmem:[%s1119] sm:$0x1]
        %v1121 = vld [vmem:[%s1119 + $0x10] sm:$0x1]
        %v1122 = vld [vmem:[%s1119 + $0x20] sm:$0x1]
        %v1123 = vld [vmem:[%s1119 + $0x30] sm:$0x1]
        %v1124 = vld [vmem:[%s1119 + $0x40] sm:$0x1]
        %v1125 = vld [vmem:[%s1119 + $0x50] sm:$0x1]
        %v1126 = vld [vmem:[%s1119 + $0x60] sm:$0x1]
        %v1127 = vld [vmem:[%s1119 + $0x70] sm:$0x1]
        %v1128 = vstv %s1114
        %v1129 = vmul.f32 %v1120, %v1128
        %v1130 = vmul.f32 %v1121, %v1128
        %v1131 = vmul.f32 %v1122, %v1128
        %v1132 = vmul.f32 %v1123, %v1128
        %v1133 = vmul.f32 %v1124, %v1128
        %v1134 = vmul.f32 %v1125, %v1128
        %v1135 = vmul.f32 %v1126, %v1128
        %v1136 = vmul.f32 %v1127, %v1128
        %v1145 = vrot.slane %v1130, 7
        %v1146 = vsel %vm538, %v1145, %v1129
        %v1147 = vrot.slane %v1131, 6
        %v1148 = vsel %vm541, %v1147, %v1146
        %v1149 = vrot.slane %v1132, 5
        %v1150 = vsel %vm544, %v1149, %v1148
        %v1151 = vrot.slane %v1133, 4
        %v1152 = vsel %vm547, %v1151, %v1150
        %v1153 = vrot.slane %v1134, 3
        %v1154 = vsel %vm550, %v1153, %v1152
        %v1155 = vrot.slane %v1135, 2
        %v1156 = vsel %vm553, %v1155, %v1154
        %v1157 = vrot.slane %v1136, 1
        %v1158 = vsel %vm556, %v1157, %v1156
        %1159 = vrot.lane.b32.xlu0 %v1158, 114
        %v1160 = vpop.permute.xlu0 %1159
        %vm1162 = vcmask 1048464
        %1163 = vst.msk [vmem:[#allocation2 + $0x8] sm:$0xff] %vm1162, %v1160
        %vm1164 = vcmask 15360
        %1165 = vst.msk [vmem:[#allocation2 + $0x10] sm:$0xff] %vm1164, %v1160
        %vm1166 = vcmp.ge.s32.totalorder %v456, 114
        %vm1167 = vcmp.lt.s32.totalorder %v456, 130
        %vm1168 = vmand %vm1166, %vm1167
        %1169 = vst.msk [vmem:[#allocation10 + $0x1] sm:$0x3] %vm1168, %v1128
        %s1170 = sadd.s32 %s499, 4
        %p1171 = scmp.ge.s32.totalorder %s1170, 0
        %p1172 = scmp.lt.s32.totalorder %s1170, 16
        %p1173 = pnand %p1171, %p1172
        %p1174 = pneg %p1173
        %s1175 = scalar_select %p1174, 1, 0
        %s1176 = scvt.s32.f32 %s1175
        %p1177 = scmp.gt.s32.totalorder %s1170, 0
        %s1178 = scalar_select %p1177, %s1170, 0
        %p1179 = scmp.lt.s32.totalorder %s1178, 15
        %s1180 = scalar_select %p1179, %s1178, 15
        %s1181 = scalar_lea.vmem %s399, %s1180 [#allocation12]
        %v1182 = vld [vmem:[%s1181] sm:$0x1]
        %v1183 = vld [vmem:[%s1181 + $0x10] sm:$0x1]
        %v1184 = vld [vmem:[%s1181 + $0x20] sm:$0x1]
        %v1185 = vld [vmem:[%s1181 + $0x30] sm:$0x1]
        %v1186 = vld [vmem:[%s1181 + $0x40] sm:$0x1]
        %v1187 = vld [vmem:[%s1181 + $0x50] sm:$0x1]
        %v1188 = vld [vmem:[%s1181 + $0x60] sm:$0x1]
        %v1189 = vld [vmem:[%s1181 + $0x70] sm:$0x1]
        %v1190 = vstv %s1176
        %v1191 = vmul.f32 %v1182, %v1190
        %v1192 = vmul.f32 %v1183, %v1190
        %v1193 = vmul.f32 %v1184, %v1190
        %v1194 = vmul.f32 %v1185, %v1190
        %v1195 = vmul.f32 %v1186, %v1190
        %v1196 = vmul.f32 %v1187, %v1190
        %v1197 = vmul.f32 %v1188, %v1190
        %v1198 = vmul.f32 %v1189, %v1190
        %v1207 = vrot.slane %v1192, 7
        %v1208 = vsel %vm538, %v1207, %v1191
        %v1209 = vrot.slane %v1193, 6
        %v1210 = vsel %vm541, %v1209, %v1208
        %v1211 = vrot.slane %v1194, 5
        %v1212 = vsel %vm544, %v1211, %v1210
        %v1213 = vrot.slane %v1195, 4
        %v1214 = vsel %vm547, %v1213, %v1212
        %v1215 = vrot.slane %v1196, 3
        %v1216 = vsel %vm550, %v1215, %v1214
        %v1217 = vrot.slane %v1197, 2
        %v1218 = vsel %vm553, %v1217, %v1216
        %v1219 = vrot.slane %v1198, 1
        %v1220 = vsel %vm556, %v1219, %v1218
        %1221 = vrot.lane.b32.xlu0 %v1220, 6
        %v1222 = vpop.permute.xlu0 %1221
        %vm1224 = vcmask 179248
        %1225 = vst.msk [vmem:[#allocation2 + $0x10] sm:$0xff] %vm1224, %v1222
        %vm1226 = vcmp.ge.s32.totalorder %v456, 6
        %vm1227 = vcmp.lt.s32.totalorder %v456, 22
        %vm1228 = vmand %vm1226, %vm1227
        %1229 = vst.msk [vmem:[#allocation10 + $0x2] sm:$0x1] %vm1228, %v1190
        %s1230 = sadd.s32 %s499, 5
        %p1231 = scmp.ge.s32.totalorder %s1230, 0
        %p1232 = scmp.lt.s32.totalorder %s1230, 16
        %p1233 = pnand %p1231, %p1232
        %p1234 = pneg %p1233
        %s1235 = scalar_select %p1234, 1, 0
        %s1236 = scvt.s32.f32 %s1235
        %p1237 = scmp.gt.s32.totalorder %s1230, 0
        %s1238 = scalar_select %p1237, %s1230, 0
        %p1239 = scmp.lt.s32.totalorder %s1238, 15
        %s1240 = scalar_select %p1239, %s1238, 15
        %s1241 = scalar_lea.vmem %s399, %s1240 [#allocation12]
        %v1242 = vld [vmem:[%s1241] sm:$0x1]
        %v1243 = vld [vmem:[%s1241 + $0x10] sm:$0x1]
        %v1244 = vld [vmem:[%s1241 + $0x20] sm:$0x1]
        %v1245 = vld [vmem:[%s1241 + $0x30] sm:$0x1]
        %v1246 = vld [vmem:[%s1241 + $0x40] sm:$0x1]
        %v1247 = vld [vmem:[%s1241 + $0x50] sm:$0x1]
        %v1248 = vld [vmem:[%s1241 + $0x60] sm:$0x1]
        %v1249 = vld [vmem:[%s1241 + $0x70] sm:$0x1]
        %v1250 = vstv %s1236
        %v1251 = vmul.f32 %v1242, %v1250
        %v1252 = vmul.f32 %v1243, %v1250
        %v1253 = vmul.f32 %v1244, %v1250
        %v1254 = vmul.f32 %v1245, %v1250
        %v1255 = vmul.f32 %v1246, %v1250
        %v1256 = vmul.f32 %v1247, %v1250
        %v1257 = vmul.f32 %v1248, %v1250
        %v1258 = vmul.f32 %v1249, %v1250
        %v1267 = vrot.slane %v1252, 7
        %v1268 = vsel %vm538, %v1267, %v1251
        %v1269 = vrot.slane %v1253, 6
        %v1270 = vsel %vm541, %v1269, %v1268
        %v1271 = vrot.slane %v1254, 5
        %v1272 = vsel %vm544, %v1271, %v1270
        %v1273 = vrot.slane %v1255, 4
        %v1274 = vsel %vm547, %v1273, %v1272
        %v1275 = vrot.slane %v1256, 3
        %v1276 = vsel %vm550, %v1275, %v1274
        %v1277 = vrot.slane %v1257, 2
        %v1278 = vsel %vm553, %v1277, %v1276
        %v1279 = vrot.slane %v1258, 1
        %v1280 = vsel %vm556, %v1279, %v1278
        %1281 = vrot.lane.b32.xlu0 %v1280, 26
        %v1282 = vpop.permute.xlu0 %1281
        %vm1284 = vcmask 343248
        %1285 = vst.msk [vmem:[#allocation2 + $0x10] sm:$0xff] %vm1284, %v1282
        %vm1286 = vcmp.ge.s32.totalorder %v456, 26
        %vm1287 = vcmp.lt.s32.totalorder %v456, 42
        %vm1288 = vmand %vm1286, %vm1287
        %1289 = vst.msk [vmem:[#allocation10 + $0x2] sm:$0x1] %vm1288, %v1250
        %s1290 = sadd.s32 %s499, 6
        %p1291 = scmp.ge.s32.totalorder %s1290, 0
        %p1292 = scmp.lt.s32.totalorder %s1290, 16
        %p1293 = pnand %p1291, %p1292
        %p1294 = pneg %p1293
        %s1295 = scalar_select %p1294, 1, 0
        %s1296 = scvt.s32.f32 %s1295
        %p1297 = scmp.gt.s32.totalorder %s1290, 0
        %s1298 = scalar_select %p1297, %s1290, 0
        %p1299 = scmp.lt.s32.totalorder %s1298, 15
        %s1300 = scalar_select %p1299, %s1298, 15
        %s1301 = scalar_lea.vmem %s399, %s1300 [#allocation12]
        %v1302 = vld [vmem:[%s1301] sm:$0x1]
        %v1303 = vld [vmem:[%s1301 + $0x10] sm:$0x1]
        %v1304 = vld [vmem:[%s1301 + $0x20] sm:$0x1]
        %v1305 = vld [vmem:[%s1301 + $0x30] sm:$0x1]
        %v1306 = vld [vmem:[%s1301 + $0x40] sm:$0x1]
        %v1307 = vld [vmem:[%s1301 + $0x50] sm:$0x1]
        %v1308 = vld [vmem:[%s1301 + $0x60] sm:$0x1]
        %v1309 = vld [vmem:[%s1301 + $0x70] sm:$0x1]
        %v1310 = vstv %s1296
        %v1311 = vmul.f32 %v1302, %v1310
        %v1312 = vmul.f32 %v1303, %v1310
        %v1313 = vmul.f32 %v1304, %v1310
        %v1314 = vmul.f32 %v1305, %v1310
        %v1315 = vmul.f32 %v1306, %v1310
        %v1316 = vmul.f32 %v1307, %v1310
        %v1317 = vmul.f32 %v1308, %v1310
        %v1318 = vmul.f32 %v1309, %v1310
        %v1327 = vrot.slane %v1312, 7
        %v1328 = vsel %vm538, %v1327, %v1311
        %v1329 = vrot.slane %v1313, 6
        %v1330 = vsel %vm541, %v1329, %v1328
        %v1331 = vrot.slane %v1314, 5
        %v1332 = vsel %vm544, %v1331, %v1330
        %v1333 = vrot.slane %v1315, 4
        %v1334 = vsel %vm547, %v1333, %v1332
        %v1335 = vrot.slane %v1316, 3
        %v1336 = vsel %vm550, %v1335, %v1334
        %v1337 = vrot.slane %v1317, 2
        %v1338 = vsel %vm553, %v1337, %v1336
        %v1339 = vrot.slane %v1318, 1
        %v1340 = vsel %vm556, %v1339, %v1338
        %1341 = vrot.lane.b32.xlu0 %v1340, 46
        %v1342 = vpop.permute.xlu0 %1341
        %vm1344 = vcmask 507248
        %1345 = vst.msk [vmem:[#allocation2 + $0x10] sm:$0xff] %vm1344, %v1342
        %vm1346 = vcmp.ge.s32.totalorder %v456, 46
        %vm1347 = vcmp.lt.s32.totalorder %v456, 62
        %vm1348 = vmand %vm1346, %vm1347
        %1349 = vst.msk [vmem:[#allocation10 + $0x2] sm:$0x1] %vm1348, %v1310
        %s1350 = sadd.s32 %s499, 7
        %p1351 = scmp.ge.s32.totalorder %s1350, 0
        %p1352 = scmp.lt.s32.totalorder %s1350, 16
        %p1353 = pnand %p1351, %p1352
        %p1354 = pneg %p1353
        %s1355 = scalar_select %p1354, 1, 0
        %s1356 = scvt.s32.f32 %s1355
        %p1357 = scmp.gt.s32.totalorder %s1350, 0
        %s1358 = scalar_select %p1357, %s1350, 0
        %p1359 = scmp.lt.s32.totalorder %s1358, 15
        %s1360 = scalar_select %p1359, %s1358, 15
        %s1361 = scalar_lea.vmem %s399, %s1360 [#allocation12]
        %v1362 = vld [vmem:[%s1361] sm:$0x1]
        %v1363 = vld [vmem:[%s1361 + $0x10] sm:$0x1]
        %v1364 = vld [vmem:[%s1361 + $0x20] sm:$0x1]
        %v1365 = vld [vmem:[%s1361 + $0x30] sm:$0x1]
        %v1366 = vld [vmem:[%s1361 + $0x40] sm:$0x1]
        %v1367 = vld [vmem:[%s1361 + $0x50] sm:$0x1]
        %v1368 = vld [vmem:[%s1361 + $0x60] sm:$0x1]
        %v1369 = vld [vmem:[%s1361 + $0x70] sm:$0x1]
        %v1370 = vstv %s1356
        %v1371 = vmul.f32 %v1362, %v1370
        %v1372 = vmul.f32 %v1363, %v1370
        %v1373 = vmul.f32 %v1364, %v1370
        %v1374 = vmul.f32 %v1365, %v1370
        %v1375 = vmul.f32 %v1366, %v1370
        %v1376 = vmul.f32 %v1367, %v1370
        %v1377 = vmul.f32 %v1368, %v1370
        %v1378 = vmul.f32 %v1369, %v1370
        %v1387 = vrot.slane %v1372, 7
        %v1388 = vsel %vm538, %v1387, %v1371
        %v1389 = vrot.slane %v1373, 6
        %v1390 = vsel %vm541, %v1389, %v1388
        %v1391 = vrot.slane %v1374, 5
        %v1392 = vsel %vm544, %v1391, %v1390
        %v1393 = vrot.slane %v1375, 4
        %v1394 = vsel %vm547, %v1393, %v1392
        %v1395 = vrot.slane %v1376, 3
        %v1396 = vsel %vm550, %v1395, %v1394
        %v1397 = vrot.slane %v1377, 2
        %v1398 = vsel %vm553, %v1397, %v1396
        %v1399 = vrot.slane %v1378, 1
        %v1400 = vsel %vm556, %v1399, %v1398
        %1401 = vrot.lane.b32.xlu0 %v1400, 66
        %v1402 = vpop.permute.xlu0 %1401
        %vm1404 = vcmask 671248
        %1405 = vst.msk [vmem:[#allocation2 + $0x10] sm:$0xff] %vm1404, %v1402
        %vm1406 = vcmp.ge.s32.totalorder %v456, 66
        %vm1407 = vcmp.lt.s32.totalorder %v456, 82
        %vm1408 = vmand %vm1406, %vm1407
        %1409 = vst.msk [vmem:[#allocation10 + $0x2] sm:$0x1] %vm1408, %v1370
        %s1410 = sadd.s32 %s499, 8
        %p1411 = scmp.ge.s32.totalorder %s1410, 0
        %p1412 = scmp.lt.s32.totalorder %s1410, 16
        %p1413 = pnand %p1411, %p1412
        %p1414 = pneg %p1413
        %s1415 = scalar_select %p1414, 1, 0
        %s1416 = scvt.s32.f32 %s1415
        %p1417 = scmp.gt.s32.totalorder %s1410, 0
        %s1418 = scalar_select %p1417, %s1410, 0
        %p1419 = scmp.lt.s32.totalorder %s1418, 15
        %s1420 = scalar_select %p1419, %s1418, 15
        %s1421 = scalar_lea.vmem %s399, %s1420 [#allocation12]
        %v1422 = vld [vmem:[%s1421] sm:$0x1]
        %v1423 = vld [vmem:[%s1421 + $0x10] sm:$0x1]
        %v1424 = vld [vmem:[%s1421 + $0x20] sm:$0x1]
        %v1425 = vld [vmem:[%s1421 + $0x30] sm:$0x1]
        %v1426 = vld [vmem:[%s1421 + $0x40] sm:$0x1]
        %v1427 = vld [vmem:[%s1421 + $0x50] sm:$0x1]
        %v1428 = vld [vmem:[%s1421 + $0x60] sm:$0x1]
        %v1429 = vld [vmem:[%s1421 + $0x70] sm:$0x1]
        %v1430 = vstv %s1416
        %v1431 = vmul.f32 %v1422, %v1430
        %v1432 = vmul.f32 %v1423, %v1430
        %v1433 = vmul.f32 %v1424, %v1430
        %v1434 = vmul.f32 %v1425, %v1430
        %v1435 = vmul.f32 %v1426, %v1430
        %v1436 = vmul.f32 %v1427, %v1430
        %v1437 = vmul.f32 %v1428, %v1430
        %v1438 = vmul.f32 %v1429, %v1430
        %v1447 = vrot.slane %v1432, 7
        %v1448 = vsel %vm538, %v1447, %v1431
        %v1449 = vrot.slane %v1433, 6
        %v1450 = vsel %vm541, %v1449, %v1448
        %v1451 = vrot.slane %v1434, 5
        %v1452 = vsel %vm544, %v1451, %v1450
        %v1453 = vrot.slane %v1435, 4
        %v1454 = vsel %vm547, %v1453, %v1452
        %v1455 = vrot.slane %v1436, 3
        %v1456 = vsel %vm550, %v1455, %v1454
        %v1457 = vrot.slane %v1437, 2
        %v1458 = vsel %vm553, %v1457, %v1456
        %v1459 = vrot.slane %v1438, 1
        %v1460 = vsel %vm556, %v1459, %v1458
        %1461 = vrot.lane.b32.xlu0 %v1460, 86
        %v1462 = vpop.permute.xlu0 %1461
        %vm1464 = vcmask 835248
        %1465 = vst.msk [vmem:[#allocation2 + $0x10] sm:$0xff] %vm1464, %v1462
        %vm1466 = vcmp.ge.s32.totalorder %v456, 86
        %vm1467 = vcmp.lt.s32.totalorder %v456, 102
        %vm1468 = vmand %vm1466, %vm1467
        %1469 = vst.msk [vmem:[#allocation10 + $0x2] sm:$0x1] %vm1468, %v1430
        %s1470 = sadd.s32 %s499, 9
        %p1471 = scmp.ge.s32.totalorder %s1470, 0
        %p1472 = scmp.lt.s32.totalorder %s1470, 16
        %p1473 = pnand %p1471, %p1472
        %p1474 = pneg %p1473
        %s1475 = scalar_select %p1474, 1, 0
        %s1476 = scvt.s32.f32 %s1475
        %p1477 = scmp.gt.s32.totalorder %s1470, 0
        %s1478 = scalar_select %p1477, %s1470, 0
        %p1479 = scmp.lt.s32.totalorder %s1478, 15
        %s1480 = scalar_select %p1479, %s1478, 15
        %s1481 = scalar_lea.vmem %s399, %s1480 [#allocation12]
        %v1482 = vld [vmem:[%s1481] sm:$0x1]
        %v1483 = vld [vmem:[%s1481 + $0x10] sm:$0x1]
        %v1484 = vld [vmem:[%s1481 + $0x20] sm:$0x1]
        %v1485 = vld [vmem:[%s1481 + $0x30] sm:$0x1]
        %v1486 = vld [vmem:[%s1481 + $0x40] sm:$0x1]
        %v1487 = vld [vmem:[%s1481 + $0x50] sm:$0x1]
        %v1488 = vld [vmem:[%s1481 + $0x60] sm:$0x1]
        %v1489 = vld [vmem:[%s1481 + $0x70] sm:$0x1]
        %v1490 = vstv %s1476
        %v1491 = vmul.f32 %v1482, %v1490
        %v1492 = vmul.f32 %v1483, %v1490
        %v1493 = vmul.f32 %v1484, %v1490
        %v1494 = vmul.f32 %v1485, %v1490
        %v1495 = vmul.f32 %v1486, %v1490
        %v1496 = vmul.f32 %v1487, %v1490
        %v1497 = vmul.f32 %v1488, %v1490
        %v1498 = vmul.f32 %v1489, %v1490
        %v1507 = vrot.slane %v1492, 7
        %v1508 = vsel %vm538, %v1507, %v1491
        %v1509 = vrot.slane %v1493, 6
        %v1510 = vsel %vm541, %v1509, %v1508
        %v1511 = vrot.slane %v1494, 5
        %v1512 = vsel %vm544, %v1511, %v1510
        %v1513 = vrot.slane %v1495, 4
        %v1514 = vsel %vm547, %v1513, %v1512
        %v1515 = vrot.slane %v1496, 3
        %v1516 = vsel %vm550, %v1515, %v1514
        %v1517 = vrot.slane %v1497, 2
        %v1518 = vsel %vm553, %v1517, %v1516
        %v1519 = vrot.slane %v1498, 1
        %v1520 = vsel %vm556, %v1519, %v1518
        %1521 = vrot.lane.b32.xlu0 %v1520, 106
        %v1522 = vpop.permute.xlu0 %1521
        %vm1524 = vcmask 999248
        %1525 = vst.msk [vmem:[#allocation2 + $0x10] sm:$0xff] %vm1524, %v1522
        %vm1526 = vcmp.ge.s32.totalorder %v456, 106
        %vm1527 = vcmp.lt.s32.totalorder %v456, 122
        %vm1528 = vmand %vm1526, %vm1527
        %1529 = vst.msk [vmem:[#allocation10 + $0x2] sm:$0x1] %vm1528, %v1490
        %s1530 = sadd.s32 %s499, 10
        %p1531 = scmp.ge.s32.totalorder %s1530, 0
        %p1532 = scmp.lt.s32.totalorder %s1530, 16
        %p1533 = pnand %p1531, %p1532
        %p1534 = pneg %p1533
        %s1535 = scalar_select %p1534, 1, 0
        %s1536 = scvt.s32.f32 %s1535
        %p1537 = scmp.gt.s32.totalorder %s1530, 0
        %s1538 = scalar_select %p1537, %s1530, 0
        %p1539 = scmp.lt.s32.totalorder %s1538, 15
        %s1540 = scalar_select %p1539, %s1538, 15
        %s1541 = scalar_lea.vmem %s399, %s1540 [#allocation12]
        %v1542 = vld [vmem:[%s1541] sm:$0x1]
        %v1543 = vld [vmem:[%s1541 + $0x10] sm:$0x1]
        %v1544 = vld [vmem:[%s1541 + $0x20] sm:$0x1]
        %v1545 = vld [vmem:[%s1541 + $0x30] sm:$0x1]
        %v1546 = vld [vmem:[%s1541 + $0x40] sm:$0x1]
        %v1547 = vld [vmem:[%s1541 + $0x50] sm:$0x1]
        %v1548 = vld [vmem:[%s1541 + $0x60] sm:$0x1]
        %v1549 = vld [vmem:[%s1541 + $0x70] sm:$0x1]
        %v1550 = vstv %s1536
        %v1551 = vmul.f32 %v1542, %v1550
        %v1552 = vmul.f32 %v1543, %v1550
        %v1553 = vmul.f32 %v1544, %v1550
        %v1554 = vmul.f32 %v1545, %v1550
        %v1555 = vmul.f32 %v1546, %v1550
        %v1556 = vmul.f32 %v1547, %v1550
        %v1557 = vmul.f32 %v1548, %v1550
        %v1558 = vmul.f32 %v1549, %v1550
        %v1567 = vrot.slane %v1552, 7
        %v1568 = vsel %vm538, %v1567, %v1551
        %v1569 = vrot.slane %v1553, 6
        %v1570 = vsel %vm541, %v1569, %v1568
        %v1571 = vrot.slane %v1554, 5
        %v1572 = vsel %vm544, %v1571, %v1570
        %v1573 = vrot.slane %v1555, 4
        %v1574 = vsel %vm547, %v1573, %v1572
        %v1575 = vrot.slane %v1556, 3
        %v1576 = vsel %vm550, %v1575, %v1574
        %v1577 = vrot.slane %v1557, 2
        %v1578 = vsel %vm553, %v1577, %v1576
        %v1579 = vrot.slane %v1558, 1
        %v1580 = vsel %vm556, %v1579, %v1578
        %1581 = vrot.lane.b32.xlu0 %v1580, 126
        %v1582 = vpop.permute.xlu0 %1581
        %vm1584 = vcmask 1048560
        %1585 = vst.msk [vmem:[#allocation2 + $0x10] sm:$0xff] %vm1584, %v1582
        %vm1586 = vcmask 113664
        %1587 = vst.msk [vmem:[#allocation2 + $0x18] sm:$0xff] %vm1586, %v1582
        %vm1588 = vcmp.ge.s32.totalorder %v456, 126
        %vm1589 = vcmp.lt.s32.totalorder %v456, 142
        %vm1590 = vmand %vm1588, %vm1589
        %1591 = vst.msk [vmem:[#allocation10 + $0x2] sm:$0x3] %vm1590, %v1550
        %s1592 = sadd.s32 %s499, 11
        %p1593 = scmp.ge.s32.totalorder %s1592, 0
        %p1594 = scmp.lt.s32.totalorder %s1592, 16
        %p1595 = pnand %p1593, %p1594
        %p1596 = pneg %p1595
        %s1597 = scalar_select %p1596, 1, 0
        %s1598 = scvt.s32.f32 %s1597
        %p1599 = scmp.gt.s32.totalorder %s1592, 0
        %s1600 = scalar_select %p1599, %s1592, 0
        %p1601 = scmp.lt.s32.totalorder %s1600, 15
        %s1602 = scalar_select %p1601, %s1600, 15
        %s1603 = scalar_lea.vmem %s399, %s1602 [#allocation12]
        %v1604 = vld [vmem:[%s1603] sm:$0x1]
        %v1605 = vld [vmem:[%s1603 + $0x10] sm:$0x1]
        %v1606 = vld [vmem:[%s1603 + $0x20] sm:$0x1]
        %v1607 = vld [vmem:[%s1603 + $0x30] sm:$0x1]
        %v1608 = vld [vmem:[%s1603 + $0x40] sm:$0x1]
        %v1609 = vld [vmem:[%s1603 + $0x50] sm:$0x1]
        %v1610 = vld [vmem:[%s1603 + $0x60] sm:$0x1]
        %v1611 = vld [vmem:[%s1603 + $0x70] sm:$0x1]
        %v1612 = vstv %s1598
        %v1613 = vmul.f32 %v1604, %v1612
        %v1614 = vmul.f32 %v1605, %v1612
        %v1615 = vmul.f32 %v1606, %v1612
        %v1616 = vmul.f32 %v1607, %v1612
        %v1617 = vmul.f32 %v1608, %v1612
        %v1618 = vmul.f32 %v1609, %v1612
        %v1619 = vmul.f32 %v1610, %v1612
        %v1620 = vmul.f32 %v1611, %v1612
        %v1629 = vrot.slane %v1614, 7
        %v1630 = vsel %vm538, %v1629, %v1613
        %v1631 = vrot.slane %v1615, 6
        %v1632 = vsel %vm541, %v1631, %v1630
        %v1633 = vrot.slane %v1616, 5
        %v1634 = vsel %vm544, %v1633, %v1632
        %v1635 = vrot.slane %v1617, 4
        %v1636 = vsel %vm547, %v1635, %v1634
        %v1637 = vrot.slane %v1618, 3
        %v1638 = vsel %vm550, %v1637, %v1636
        %v1639 = vrot.slane %v1619, 2
        %v1640 = vsel %vm553, %v1639, %v1638
        %v1641 = vrot.slane %v1620, 1
        %v1642 = vsel %vm556, %v1641, %v1640
        %1643 = vrot.lane.b32.xlu0 %v1642, 18
        %v1644 = vpop.permute.xlu0 %1643
        %vm1646 = vcmask 277648
        %1647 = vst.msk [vmem:[#allocation2 + $0x18] sm:$0xff] %vm1646, %v1644
        %vm1648 = vcmp.ge.s32.totalorder %v456, 18
        %vm1649 = vcmp.lt.s32.totalorder %v456, 34
        %vm1650 = vmand %vm1648, %vm1649
        %1651 = vst.msk [vmem:[#allocation10 + $0x3] sm:$0x1] %vm1650, %v1612
        %s1652 = sadd.s32 %s499, 12
        %p1653 = scmp.ge.s32.totalorder %s1652, 0
        %p1654 = scmp.lt.s32.totalorder %s1652, 16
        %p1655 = pnand %p1653, %p1654
        %p1656 = pneg %p1655
        %s1657 = scalar_select %p1656, 1, 0
        %s1658 = scvt.s32.f32 %s1657
        %p1659 = scmp.gt.s32.totalorder %s1652, 0
        %s1660 = scalar_select %p1659, %s1652, 0
        %p1661 = scmp.lt.s32.totalorder %s1660, 15
        %s1662 = scalar_select %p1661, %s1660, 15
        %s1663 = scalar_lea.vmem %s399, %s1662 [#allocation12]
        %v1664 = vld [vmem:[%s1663] sm:$0x1]
        %v1665 = vld [vmem:[%s1663 + $0x10] sm:$0x1]
        %v1666 = vld [vmem:[%s1663 + $0x20] sm:$0x1]
        %v1667 = vld [vmem:[%s1663 + $0x30] sm:$0x1]
        %v1668 = vld [vmem:[%s1663 + $0x40] sm:$0x1]
        %v1669 = vld [vmem:[%s1663 + $0x50] sm:$0x1]
        %v1670 = vld [vmem:[%s1663 + $0x60] sm:$0x1]
        %v1671 = vld [vmem:[%s1663 + $0x70] sm:$0x1]
        %v1672 = vstv %s1658
        %v1673 = vmul.f32 %v1664, %v1672
        %v1674 = vmul.f32 %v1665, %v1672
        %v1675 = vmul.f32 %v1666, %v1672
        %v1676 = vmul.f32 %v1667, %v1672
        %v1677 = vmul.f32 %v1668, %v1672
        %v1678 = vmul.f32 %v1669, %v1672
        %v1679 = vmul.f32 %v1670, %v1672
        %v1680 = vmul.f32 %v1671, %v1672
        %v1689 = vrot.slane %v1674, 7
        %v1690 = vsel %vm538, %v1689, %v1673
        %v1691 = vrot.slane %v1675, 6
        %v1692 = vsel %vm541, %v1691, %v1690
        %v1693 = vrot.slane %v1676, 5
        %v1694 = vsel %vm544, %v1693, %v1692
        %v1695 = vrot.slane %v1677, 4
        %v1696 = vsel %vm547, %v1695, %v1694
        %v1697 = vrot.slane %v1678, 3
        %v1698 = vsel %vm550, %v1697, %v1696
        %v1699 = vrot.slane %v1679, 2
        %v1700 = vsel %vm553, %v1699, %v1698
        %v1701 = vrot.slane %v1680, 1
        %v1702 = vsel %vm556, %v1701, %v1700
        %1703 = vrot.lane.b32.xlu0 %v1702, 38
        %v1704 = vpop.permute.xlu0 %1703
        %vm1706 = vcmask 441648
        %1707 = vst.msk [vmem:[#allocation2 + $0x18] sm:$0xff] %vm1706, %v1704
        %vm1708 = vcmp.ge.s32.totalorder %v456, 38
        %vm1709 = vcmp.lt.s32.totalorder %v456, 54
        %vm1710 = vmand %vm1708, %vm1709
        %1711 = vst.msk [vmem:[#allocation10 + $0x3] sm:$0x1] %vm1710, %v1672
        %s1712 = sadd.s32 %s499, 13
        %p1713 = scmp.ge.s32.totalorder %s1712, 0
        %p1714 = scmp.lt.s32.totalorder %s1712, 16
        %p1715 = pnand %p1713, %p1714
        %p1716 = pneg %p1715
        %s1717 = scalar_select %p1716, 1, 0
        %s1718 = scvt.s32.f32 %s1717
        %p1719 = scmp.gt.s32.totalorder %s1712, 0
        %s1720 = scalar_select %p1719, %s1712, 0
        %p1721 = scmp.lt.s32.totalorder %s1720, 15
        %s1722 = scalar_select %p1721, %s1720, 15
        %s1723 = scalar_lea.vmem %s399, %s1722 [#allocation12]
        %v1724 = vld [vmem:[%s1723] sm:$0x1]
        %v1725 = vld [vmem:[%s1723 + $0x10] sm:$0x1]
        %v1726 = vld [vmem:[%s1723 + $0x20] sm:$0x1]
        %v1727 = vld [vmem:[%s1723 + $0x30] sm:$0x1]
        %v1728 = vld [vmem:[%s1723 + $0x40] sm:$0x1]
        %v1729 = vld [vmem:[%s1723 + $0x50] sm:$0x1]
        %v1730 = vld [vmem:[%s1723 + $0x60] sm:$0x1]
        %v1731 = vld [vmem:[%s1723 + $0x70] sm:$0x1]
        %v1732 = vstv %s1718
        %v1733 = vmul.f32 %v1724, %v1732
        %v1734 = vmul.f32 %v1725, %v1732
        %v1735 = vmul.f32 %v1726, %v1732
        %v1736 = vmul.f32 %v1727, %v1732
        %v1737 = vmul.f32 %v1728, %v1732
        %v1738 = vmul.f32 %v1729, %v1732
        %v1739 = vmul.f32 %v1730, %v1732
        %v1740 = vmul.f32 %v1731, %v1732
        %v1749 = vrot.slane %v1734, 7
        %v1750 = vsel %vm538, %v1749, %v1733
        %v1751 = vrot.slane %v1735, 6
        %v1752 = vsel %vm541, %v1751, %v1750
        %v1753 = vrot.slane %v1736, 5
        %v1754 = vsel %vm544, %v1753, %v1752
        %v1755 = vrot.slane %v1737, 4
        %v1756 = vsel %vm547, %v1755, %v1754
        %v1757 = vrot.slane %v1738, 3
        %v1758 = vsel %vm550, %v1757, %v1756
        %v1759 = vrot.slane %v1739, 2
        %v1760 = vsel %vm553, %v1759, %v1758
        %v1761 = vrot.slane %v1740, 1
        %v1762 = vsel %vm556, %v1761, %v1760
        %1763 = vrot.lane.b32.xlu0 %v1762, 58
        %v1764 = vpop.permute.xlu0 %1763
        %vm1766 = vcmask 605648
        %1767 = vst.msk [vmem:[#allocation2 + $0x18] sm:$0xff] %vm1766, %v1764
        %vm1768 = vcmp.ge.s32.totalorder %v456, 58
        %vm1769 = vcmp.lt.s32.totalorder %v456, 74
        %vm1770 = vmand %vm1768, %vm1769
        %1771 = vst.msk [vmem:[#allocation10 + $0x3] sm:$0x1] %vm1770, %v1732
        %s1772 = sadd.s32 %s499, 14
        %p1773 = scmp.ge.s32.totalorder %s1772, 0
        %p1774 = scmp.lt.s32.totalorder %s1772, 16
        %p1775 = pnand %p1773, %p1774
        %p1776 = pneg %p1775
        %s1777 = scalar_select %p1776, 1, 0
        %s1778 = scvt.s32.f32 %s1777
        %p1779 = scmp.gt.s32.totalorder %s1772, 0
        %s1780 = scalar_select %p1779, %s1772, 0
        %p1781 = scmp.lt.s32.totalorder %s1780, 15
        %s1782 = scalar_select %p1781, %s1780, 15
        %s1783 = scalar_lea.vmem %s399, %s1782 [#allocation12]
        %v1784 = vld [vmem:[%s1783] sm:$0x1]
        %v1785 = vld [vmem:[%s1783 + $0x10] sm:$0x1]
        %v1786 = vld [vmem:[%s1783 + $0x20] sm:$0x1]
        %v1787 = vld [vmem:[%s1783 + $0x30] sm:$0x1]
        %v1788 = vld [vmem:[%s1783 + $0x40] sm:$0x1]
        %v1789 = vld [vmem:[%s1783 + $0x50] sm:$0x1]
        %v1790 = vld [vmem:[%s1783 + $0x60] sm:$0x1]
        %v1791 = vld [vmem:[%s1783 + $0x70] sm:$0x1]
        %v1792 = vstv %s1778
        %v1793 = vmul.f32 %v1784, %v1792
        %v1794 = vmul.f32 %v1785, %v1792
        %v1795 = vmul.f32 %v1786, %v1792
        %v1796 = vmul.f32 %v1787, %v1792
        %v1797 = vmul.f32 %v1788, %v1792
        %v1798 = vmul.f32 %v1789, %v1792
        %v1799 = vmul.f32 %v1790, %v1792
        %v1800 = vmul.f32 %v1791, %v1792
        %v1809 = vrot.slane %v1794, 7
        %v1810 = vsel %vm538, %v1809, %v1793
        %v1811 = vrot.slane %v1795, 6
        %v1812 = vsel %vm541, %v1811, %v1810
        %v1813 = vrot.slane %v1796, 5
        %v1814 = vsel %vm544, %v1813, %v1812
        %v1815 = vrot.slane %v1797, 4
        %v1816 = vsel %vm547, %v1815, %v1814
        %v1817 = vrot.slane %v1798, 3
        %v1818 = vsel %vm550, %v1817, %v1816
        %v1819 = vrot.slane %v1799, 2
        %v1820 = vsel %vm553, %v1819, %v1818
        %v1821 = vrot.slane %v1800, 1
        %v1822 = vsel %vm556, %v1821, %v1820
        %1823 = vrot.lane.b32.xlu0 %v1822, 78
        %v1824 = vpop.permute.xlu0 %1823
        %vm1826 = vcmask 769648
        %1827 = vst.msk [vmem:[#allocation2 + $0x18] sm:$0xff] %vm1826, %v1824
        %vm1828 = vcmp.ge.s32.totalorder %v456, 78
        %vm1829 = vcmp.lt.s32.totalorder %v456, 94
        %vm1830 = vmand %vm1828, %vm1829
        %1831 = vst.msk [vmem:[#allocation10 + $0x3] sm:$0x1] %vm1830, %v1792
        %v1832 = vld [vmem:[#allocation10] sm:$0xf]
        %v1833 = vld [vmem:[#allocation2] sm:$0x7]
        %v1834 = vld [vmem:[#allocation2 + $0x8] sm:$0x7]
        %v1835 = vld [vmem:[#allocation2 + $0x10] sm:$0x7]
        %v1836 = vld [vmem:[#allocation2 + $0x18] sm:$0x7]
        %v1837 = vadd.f32 %v1833, 0.0
        %v1838 = vadd.f32 %v1834, 0.0
        %v1839 = vadd.f32 %v1835, 0.0
        %v1840 = vadd.f32 %v1836, 0.0
        %v1841 = vmul.f32 %v1833, %v1833
        %v1842 = vmul.f32 %v1834, %v1834
        %v1843 = vmul.f32 %v1835, %v1835
        %v1844 = vmul.f32 %v1836, %v1836
        %v1845 = vadd.f32 %v1841, 0.0
        %v1846 = vadd.f32 %v1842, 0.0
        %v1847 = vadd.f32 %v1843, 0.0
        %v1848 = vadd.f32 %v1844, 0.0
        %1853 = vrot.lane.b32.xlu0 %v1833, 127
        %v1854 = vpop.permute.xlu0 %1853
        %1855 = vrot.lane.b32.xlu0 %v1834, 127
        %v1856 = vpop.permute.xlu0 %1855
        %1857 = vrot.lane.b32.xlu0 %v1835, 127
        %v1858 = vpop.permute.xlu0 %1857
        %1859 = vrot.lane.b32.xlu0 %v1836, 127
        %v1860 = vpop.permute.xlu0 %1859
        %vm1861 = vcmask 1039360
        %v1862 = vsel %vm1861, %v1854, %v1856
        %v1863 = vsel %vm1861, %v1856, %v1858
        %v1864 = vsel %vm1861, %v1858, %v1860
        %v1869 = vadd.f32 %v1837, %v1862
        %v1870 = vadd.f32 %v1838, %v1863
        %v1871 = vadd.f32 %v1839, %v1864
        %v1872 = vadd.f32 %v1840, %v1860
        %1877 = vrot.lane.b32.xlu0 %v1841, 127
        %v1878 = vpop.permute.xlu0 %1877
        %1879 = vrot.lane.b32.xlu0 %v1842, 127
        %v1880 = vpop.permute.xlu0 %1879
        %1881 = vrot.lane.b32.xlu0 %v1843, 127
        %v1882 = vpop.permute.xlu0 %1881
        %1883 = vrot.lane.b32.xlu0 %v1844, 127
        %v1884 = vpop.permute.xlu0 %1883
        %v1885 = vsel %vm1861, %v1878, %v1880
        %v1886 = vsel %vm1861, %v1880, %v1882
        %v1887 = vsel %vm1861, %v1882, %v1884
        %v1892 = vadd.f32 %v1845, %v1885
        %v1893 = vadd.f32 %v1846, %v1886
        %v1894 = vadd.f32 %v1847, %v1887
        %v1895 = vadd.f32 %v1848, %v1884
        %1896 = vrot.lane.b32.xlu0 %v1833, 126
        %v1897 = vpop.permute.xlu0 %1896
        %1898 = vrot.lane.b32.xlu0 %v1834, 126
        %v1899 = vpop.permute.xlu0 %1898
        %1900 = vrot.lane.b32.xlu0 %v1835, 126
        %v1901 = vpop.permute.xlu0 %1900
        %1902 = vrot.lane.b32.xlu0 %v1836, 126
        %v1903 = vpop.permute.xlu0 %1902
        %vm1904 = vcmask 1031168
        %v1905 = vsel %vm1904, %v1897, %v1899
        %v1906 = vsel %vm1904, %v1899, %v1901
        %v1907 = vsel %vm1904, %v1901, %v1903
        %v1912 = vadd.f32 %v1869, %v1905
        %v1913 = vadd.f32 %v1870, %v1906
        %v1914 = vadd.f32 %v1871, %v1907
        %v1915 = vadd.f32 %v1872, %v1903
        %1916 = vrot.lane.b32.xlu0 %v1841, 126
        %v1917 = vpop.permute.xlu0 %1916
        %1918 = vrot.lane.b32.xlu0 %v1842, 126
        %v1919 = vpop.permute.xlu0 %1918
        %1920 = vrot.lane.b32.xlu0 %v1843, 126
        %v1921 = vpop.permute.xlu0 %1920
        %1922 = vrot.lane.b32.xlu0 %v1844, 126
        %v1923 = vpop.permute.xlu0 %1922
        %v1924 = vsel %vm1904, %v1917, %v1919
        %v1925 = vsel %vm1904, %v1919, %v1921
        %v1926 = vsel %vm1904, %v1921, %v1923
        %v1931 = vadd.f32 %v1892, %v1924
        %v1932 = vadd.f32 %v1893, %v1925
        %v1933 = vadd.f32 %v1894, %v1926
        %v1934 = vadd.f32 %v1895, %v1923
        %1935 = vrot.lane.b32.xlu0 %v1833, 125
        %v1936 = vpop.permute.xlu0 %1935
        %1937 = vrot.lane.b32.xlu0 %v1834, 125
        %v1938 = vpop.permute.xlu0 %1937
        %1939 = vrot.lane.b32.xlu0 %v1835, 125
        %v1940 = vpop.permute.xlu0 %1939
        %1941 = vrot.lane.b32.xlu0 %v1836, 125
        %v1942 = vpop.permute.xlu0 %1941
        %vm1943 = vcmask 1022976
        %v1944 = vsel %vm1943, %v1936, %v1938
        %v1945 = vsel %vm1943, %v1938, %v1940
        %v1946 = vsel %vm1943, %v1940, %v1942
        %v1951 = vadd.f32 %v1912, %v1944
        %v1952 = vadd.f32 %v1913, %v1945
        %v1953 = vadd.f32 %v1914, %v1946
        %v1954 = vadd.f32 %v1915, %v1942
        %1955 = vrot.lane.b32.xlu0 %v1841, 125
        %v1956 = vpop.permute.xlu0 %1955
        %1957 = vrot.lane.b32.xlu0 %v1842, 125
        %v1958 = vpop.permute.xlu0 %1957
        %1959 = vrot.lane.b32.xlu0 %v1843, 125
        %v1960 = vpop.permute.xlu0 %1959
        %1961 = vrot.lane.b32.xlu0 %v1844, 125
        %v1962 = vpop.permute.xlu0 %1961
        %v1963 = vsel %vm1943, %v1956, %v1958
        %v1964 = vsel %vm1943, %v1958, %v1960
        %v1965 = vsel %vm1943, %v1960, %v1962
        %v1970 = vadd.f32 %v1931, %v1963
        %v1971 = vadd.f32 %v1932, %v1964
        %v1972 = vadd.f32 %v1933, %v1965
        %v1973 = vadd.f32 %v1934, %v1962
        %1974 = vrot.lane.b32.xlu0 %v1833, 124
        %v1975 = vpop.permute.xlu0 %1974
        %1976 = vrot.lane.b32.xlu0 %v1834, 124
        %v1977 = vpop.permute.xlu0 %1976
        %1978 = vrot.lane.b32.xlu0 %v1835, 124
        %v1979 = vpop.permute.xlu0 %1978
        %1980 = vrot.lane.b32.xlu0 %v1836, 124
        %v1981 = vpop.permute.xlu0 %1980
        %vm1982 = vcmask 1014784
        %v1983 = vsel %vm1982, %v1975, %v1977
        %v1984 = vsel %vm1982, %v1977, %v1979
        %v1985 = vsel %vm1982, %v1979, %v1981
        %v1990 = vadd.f32 %v1951, %v1983
        %v1991 = vadd.f32 %v1952, %v1984
        %v1992 = vadd.f32 %v1953, %v1985
        %v1993 = vadd.f32 %v1954, %v1981
        %1994 = vrot.lane.b32.xlu0 %v1841, 124
        %v1995 = vpop.permute.xlu0 %1994
        %1996 = vrot.lane.b32.xlu0 %v1842, 124
        %v1997 = vpop.permute.xlu0 %1996
        %1998 = vrot.lane.b32.xlu0 %v1843, 124
        %v1999 = vpop.permute.xlu0 %1998
        %2000 = vrot.lane.b32.xlu0 %v1844, 124
        %v2001 = vpop.permute.xlu0 %2000
        %v2002 = vsel %vm1982, %v1995, %v1997
        %v2003 = vsel %vm1982, %v1997, %v1999
        %v2004 = vsel %vm1982, %v1999, %v2001
        %v2009 = vadd.f32 %v1970, %v2002
        %v2010 = vadd.f32 %v1971, %v2003
        %v2011 = vadd.f32 %v1972, %v2004
        %v2012 = vadd.f32 %v1973, %v2001
        %v2017 = vrot.slane %v1991, 4
        %v2018 = vrot.slane %v1993, 4
        %vm2019 = vcmask 1043456
        %v2020 = vsel %vm2019, %v1990, %v2017
        %v2021 = vsel %vm2019, %v1992, %v2018
        %2022 = vrot.lane.b32.xlu0 %v2020, 2
        %v2023 = vpop.permute.xlu0 %2022
        %2024 = vrot.lane.b32.xlu0 %v2021, 2
        %v2025 = vpop.permute.xlu0 %2024
        %v2026 = vrot.slane %v2023, 4
        %v2027 = vrot.slane %v2025, 4
        %v2028 = vsel %vm1164, %v2026, %v2023
        %v2029 = vsel %vm2019, %v2026, %v2027
        %v2030 = vsel %vm1164, %v2029, %v2025
        %vm2033 = vcmask 1042768
        %vm2034 = vcmask 1046532
        %vm2035 = vmor %vm2034, %vm2033
        %2036 = vst.msk [vmem:[#allocation3] sm:$0x77] %vm2035, %v2028
        %vm2037 = vcmask 1042432
        %vm2038 = vcmask 800772
        %vm2039 = vmor %vm2038, %vm2037
        %2040 = vst.msk [vmem:[#allocation3 + $0x8] sm:$0x77] %vm2039, %v2030
        %v2045 = vrot.slane %v2010, 4
        %v2046 = vrot.slane %v2012, 4
        %v2047 = vsel %vm2019, %v2009, %v2045
        %v2048 = vsel %vm2019, %v2011, %v2046
        %2049 = vrot.lane.b32.xlu0 %v2047, 2
        %v2050 = vpop.permute.xlu0 %2049
        %2051 = vrot.lane.b32.xlu0 %v2048, 2
        %v2052 = vpop.permute.xlu0 %2051
        %v2053 = vrot.slane %v2050, 4
        %v2054 = vrot.slane %v2052, 4
        %v2055 = vsel %vm1164, %v2053, %v2050
        %v2056 = vsel %vm2019, %v2053, %v2054
        %v2057 = vsel %vm1164, %v2056, %v2052
        %2060 = vst.msk [vmem:[#allocation4] sm:$0x77] %vm2035, %v2055
        %2061 = vst.msk [vmem:[#allocation4 + $0x8] sm:$0x77] %vm2039, %v2057
        %v2062 = vld [vmem:[#allocation3] sm:$0x77]
        %v2063 = vld [vmem:[#allocation3 + $0x8] sm:$0x77]
        %v2064 = vadd.f32 %v2062, 0.0
        %v2065 = vadd.f32 %v2063, 0.0
        %v2066 = vld [vmem:[#allocation4] sm:$0x77]
        %v2067 = vld [vmem:[#allocation4 + $0x8] sm:$0x77]
        %v2068 = vadd.f32 %v2066, 0.0
        %v2069 = vadd.f32 %v2067, 0.0
        %2072 = vrot.lane.b32.xlu0 %v2062, 108
        %v2073 = vpop.permute.xlu0 %2072
        %2074 = vrot.lane.b32.xlu0 %v2063, 108
        %v2075 = vpop.permute.xlu0 %2074
        %v2076 = vrot.slane %v2073, 4
        %v2077 = vrot.slane %v2075, 4
        %v2078 = vsel %vm2019, %v2076, %v2077
        %vm2079 = vcmask 883712
        %v2080 = vsel %vm2079, %v2073, %v2078
        %v2081 = vsel %vm2079, %v2075, %v2077
        %v2084 = vadd.f32 %v2064, %v2080
        %v2085 = vadd.f32 %v2065, %v2081
        %2088 = vrot.lane.b32.xlu0 %v2066, 108
        %v2089 = vpop.permute.xlu0 %2088
        %2090 = vrot.lane.b32.xlu0 %v2067, 108
        %v2091 = vpop.permute.xlu0 %2090
        %v2092 = vrot.slane %v2089, 4
        %v2093 = vrot.slane %v2091, 4
        %v2094 = vsel %vm2019, %v2092, %v2093
        %v2095 = vsel %vm2079, %v2089, %v2094
        %v2096 = vsel %vm2079, %v2091, %v2093
        %v2099 = vadd.f32 %v2068, %v2095
        %v2100 = vadd.f32 %v2069, %v2096
        %2101 = vrot.lane.b32.xlu0 %v2062, 88
        %v2102 = vpop.permute.xlu0 %2101
        %2103 = vrot.lane.b32.xlu0 %v2063, 88
        %v2104 = vpop.permute.xlu0 %2103
        %v2105 = vrot.slane %v2102, 4
        %v2106 = vrot.slane %v2104, 4
        %v2107 = vsel %vm2019, %v2105, %v2106
        %vm2108 = vcmask 719872
        %v2109 = vsel %vm2108, %v2102, %v2107
        %v2110 = vsel %vm2108, %v2104, %v2106
        %v2113 = vadd.f32 %v2084, %v2109
        %v2114 = vadd.f32 %v2085, %v2110
        %2115 = vrot.lane.b32.xlu0 %v2066, 88
        %v2116 = vpop.permute.xlu0 %2115
        %2117 = vrot.lane.b32.xlu0 %v2067, 88
        %v2118 = vpop.permute.xlu0 %2117
        %v2119 = vrot.slane %v2116, 4
        %v2120 = vrot.slane %v2118, 4
        %v2121 = vsel %vm2019, %v2119, %v2120
        %v2122 = vsel %vm2108, %v2116, %v2121
        %v2123 = vsel %vm2108, %v2118, %v2120
        %v2126 = vadd.f32 %v2099, %v2122
        %v2127 = vadd.f32 %v2100, %v2123
        %2128 = vrot.lane.b32.xlu0 %v2062, 68
        %v2129 = vpop.permute.xlu0 %2128
        %2130 = vrot.lane.b32.xlu0 %v2063, 68
        %v2131 = vpop.permute.xlu0 %2130
        %v2132 = vrot.slane %v2129, 4
        %v2133 = vrot.slane %v2131, 4
        %v2134 = vsel %vm2019, %v2132, %v2133
        %vm2135 = vcmask 556032
        %v2136 = vsel %vm2135, %v2129, %v2134
        %v2137 = vsel %vm2135, %v2131, %v2133
        %v2140 = vadd.f32 %v2113, %v2136
        %v2141 = vadd.f32 %v2114, %v2137
        %2142 = vrot.lane.b32.xlu0 %v2066, 68
        %v2143 = vpop.permute.xlu0 %2142
        %2144 = vrot.lane.b32.xlu0 %v2067, 68
        %v2145 = vpop.permute.xlu0 %2144
        %v2146 = vrot.slane %v2143, 4
        %v2147 = vrot.slane %v2145, 4
        %v2148 = vsel %vm2019, %v2146, %v2147
        %v2149 = vsel %vm2135, %v2143, %v2148
        %v2150 = vsel %vm2135, %v2145, %v2147
        %v2153 = vadd.f32 %v2126, %v2149
        %v2154 = vadd.f32 %v2127, %v2150
        %v2155 = vld [vmem:[#allocation3 + $0x10] sm:$0x7]
        %2157 = vrot.lane.b32.xlu0 %v2062, 48
        %v2158 = vpop.permute.xlu0 %2157
        %2159 = vrot.lane.b32.xlu0 %v2063, 48
        %v2160 = vpop.permute.xlu0 %2159
        %2161 = vrot.lane.b32.xlu0 %v2155, 48
        %v2162 = vpop.permute.xlu0 %2161
        %v2163 = vrot.slane %v2158, 4
        %v2164 = vrot.slane %v2160, 4
        %v2165 = vrot.slane %v2162, 4
        %v2166 = vsel %vm2019, %v2163, %v2164
        %vm2167 = vcmask 392192
        %v2168 = vsel %vm2167, %v2158, %v2166
        %v2169 = vsel %vm2019, %v2164, %v2165
        %v2170 = vsel %vm2167, %v2160, %v2169
        %v2173 = vadd.f32 %v2140, %v2168
        %v2174 = vadd.f32 %v2141, %v2170
        %v2175 = vld [vmem:[#allocation4 + $0x10] sm:$0x7]
        %2177 = vrot.lane.b32.xlu0 %v2066, 48
        %v2178 = vpop.permute.xlu0 %2177
        %2179 = vrot.lane.b32.xlu0 %v2067, 48
        %v2180 = vpop.permute.xlu0 %2179
        %2181 = vrot.lane.b32.xlu0 %v2175, 48
        %v2182 = vpop.permute.xlu0 %2181
        %v2183 = vrot.slane %v2178, 4
        %v2184 = vrot.slane %v2180, 4
        %v2185 = vrot.slane %v2182, 4
        %v2186 = vsel %vm2019, %v2183, %v2184
        %v2187 = vsel %vm2167, %v2178, %v2186
        %v2188 = vsel %vm2019, %v2184, %v2185
        %v2189 = vsel %vm2167, %v2180, %v2188
        %v2192 = vadd.f32 %v2153, %v2187
        %v2193 = vadd.f32 %v2154, %v2189
        %v2194 = vld [vmem:[#allocation2] sm:$0x7]
        %v2195 = vld [vmem:[#allocation2 + $0x8] sm:$0x7]
        %v2196 = vld [vmem:[#allocation2 + $0x10] sm:$0x7]
        %v2197 = vld [vmem:[#allocation2 + $0x18] sm:$0x7]
        %v2198 = vmul.f32 %v2173, 0.04
        %v2199 = vmul.f32 %v2174, 0.04
        %v2200 = vmul.f32 %v2198, %v2198
        %v2201 = vmul.f32 %v2199, %v2199
        %v2202 = vsub.f32 %v2192, %v2200
        %v2203 = vsub.f32 %v2193, %v2201
        %v2204 = vadd.f32 %v2202, 1e-05
        %v2205 = vadd.f32 %v2203, 1e-05
        %2208 = vst [vmem:[#allocation1] ss:$2 sm:$0xff] %v2198
        %s2209 = scalar_lea.vmem [#allocation1], 16
        %2210 = vst [vmem:[%s2209] ss:$2 sm:$0xff] %v2199
        %v2211 = vld.sshfl [vmem:[#allocation1] sm:$0xff pattern:$0x75316420]
        %v2212 = vld.sshfl [vmem:[#allocation1 + $0x8] sm:$0xff pattern:$0x75316420]
        %v2213 = vld.sshfl [vmem:[#allocation1 + $0x10] sm:$0xff pattern:$0x75316420]
        %v2214 = vld.sshfl [vmem:[#allocation1 + $0x18] sm:$0xff pattern:$0x75316420]
        %2215 = vrot.lane.b32.xlu0 %v2211, 40
        %v2216 = vpop.permute.xlu0 %2215
        %2217 = vrot.lane.b32.xlu0 %v2212, 40
        %v2218 = vpop.permute.xlu0 %2217
        %2219 = vrot.lane.b32.xlu0 %v2213, 40
        %v2220 = vpop.permute.xlu0 %2219
        %2221 = vrot.lane.b32.xlu0 %v2214, 40
        %v2222 = vpop.permute.xlu0 %2221
        %vm2223 = vcmask 326656
        %v2224 = vsel %vm2223, %v2216, %v2218
        %v2225 = vsel %vm2223, %v2218, %v2220
        %v2226 = vsel %vm2223, %v2220, %v2222
        %v2231 = vsub.f32 %v2194, %v2216
        %v2232 = vsub.f32 %v2195, %v2224
        %v2233 = vsub.f32 %v2196, %v2225
        %v2234 = vsub.f32 %v2197, %v2226
        %2237 = vst [vmem:[#allocation1] ss:$2 sm:$0xff] %v2204
        %s2238 = scalar_lea.vmem [#allocation1], 16
        %2239 = vst [vmem:[%s2238] ss:$2 sm:$0xff] %v2205
        %v2240 = vld.sshfl [vmem:[#allocation1] sm:$0xff pattern:$0x75316420]
        %v2241 = vld.sshfl [vmem:[#allocation1 + $0x8] sm:$0xff pattern:$0x75316420]
        %v2242 = vld.sshfl [vmem:[#allocation1 + $0x10] sm:$0xff pattern:$0x75316420]
        %v2243 = vld.sshfl [vmem:[#allocation1 + $0x18] sm:$0xff pattern:$0x75316420]
        %2244 = vrot.lane.b32.xlu0 %v2240, 40
        %v2245 = vpop.permute.xlu0 %2244
        %2246 = vrot.lane.b32.xlu0 %v2241, 40
        %v2247 = vpop.permute.xlu0 %2246
        %2248 = vrot.lane.b32.xlu0 %v2242, 40
        %v2249 = vpop.permute.xlu0 %2248
        %2250 = vrot.lane.b32.xlu0 %v2243, 40
        %v2251 = vpop.permute.xlu0 %2250
        %v2252 = vsel %vm2223, %v2245, %v2247
        %v2253 = vsel %vm2223, %v2247, %v2249
        %v2254 = vsel %vm2223, %v2249, %v2251
        %v2259 = vrcp.pop %v2245
        %v2260 = vmul.f32 %v2245, %v2259
        %v2261 = vsub.f32 1.0, %v2260
        %v2262 = vmul.f32 %v2259, %v2261
        %v2263 = vadd.f32 %v2259, %v2262
        %vm2264 = vweird.f32 %v2245
        %vm2265 = vweird.f32 %v2259
        %vm2266 = vmor %vm2264, %vm2265
        %v2267 = vsel %vm2266, %v2259, %v2263
        %v2268 = vand.u32 2147483647, %v2245
        %vm2269 = vcmp.eq.f32.partialorder %v2268, 8.507059e+37
        %v2270 = vand.u32 %v2245, 2147483648
        %v2271 = vor.u32 1.1754944e-38, %v2270
        %v2272 = vsel %vm2269, %v2271, %v2267
        %v2273 = vmul.f32 %v2231, %v2272
        %v2274 = vrcp.pop %v2252
        %v2275 = vmul.f32 %v2252, %v2274
        %v2276 = vsub.f32 1.0, %v2275
        %v2277 = vmul.f32 %v2274, %v2276
        %v2278 = vadd.f32 %v2274, %v2277
        %vm2279 = vweird.f32 %v2252
        %vm2280 = vweird.f32 %v2274
        %vm2281 = vmor %vm2279, %vm2280
        %v2282 = vsel %vm2281, %v2274, %v2278
        %v2283 = vand.u32 2147483647, %v2252
        %vm2284 = vcmp.eq.f32.partialorder %v2283, 8.507059e+37
        %v2285 = vand.u32 %v2252, 2147483648
        %v2286 = vor.u32 1.1754944e-38, %v2285
        %v2287 = vsel %vm2284, %v2286, %v2282
        %v2288 = vmul.f32 %v2232, %v2287
        %v2289 = vrcp.pop %v2253
        %v2290 = vmul.f32 %v2253, %v2289
        %v2291 = vsub.f32 1.0, %v2290
        %v2292 = vmul.f32 %v2289, %v2291
        %v2293 = vadd.f32 %v2289, %v2292
        %vm2294 = vweird.f32 %v2253
        %vm2295 = vweird.f32 %v2289
        %vm2296 = vmor %vm2294, %vm2295
        %v2297 = vsel %vm2296, %v2289, %v2293
        %v2298 = vand.u32 2147483647, %v2253
        %vm2299 = vcmp.eq.f32.partialorder %v2298, 8.507059e+37
        %v2300 = vand.u32 %v2253, 2147483648
        %v2301 = vor.u32 1.1754944e-38, %v2300
        %v2302 = vsel %vm2299, %v2301, %v2297
        %v2303 = vmul.f32 %v2233, %v2302
        %v2304 = vrcp.pop %v2254
        %v2305 = vmul.f32 %v2254, %v2304
        %v2306 = vsub.f32 1.0, %v2305
        %v2307 = vmul.f32 %v2304, %v2306
        %v2308 = vadd.f32 %v2304, %v2307
        %vm2309 = vweird.f32 %v2254
        %vm2310 = vweird.f32 %v2304
        %vm2311 = vmor %vm2309, %vm2310
        %v2312 = vsel %vm2311, %v2304, %v2308
        %v2313 = vand.u32 2147483647, %v2254
        %vm2314 = vcmp.eq.f32.partialorder %v2313, 8.507059e+37
        %v2315 = vand.u32 %v2254, 2147483648
        %v2316 = vor.u32 1.1754944e-38, %v2315
        %v2317 = vsel %vm2314, %v2316, %v2312
        %v2318 = vmul.f32 %v2234, %v2317
        %v2320 = vperm.slane %v1832, 0
        %v2321 = vperm.slane %v1832, 1
        %v2322 = vperm.slane %v1832, 2
        %v2323 = vperm.slane %v1832, 3
        %v2328 = vmul.f32 %v2273, %v2320
        %v2329 = vmul.f32 %v2288, %v2321
        %v2330 = vmul.f32 %v2303, %v2322
        %v2331 = vmul.f32 %v2318, %v2323
        %v2336 = vrot.slane %v2329, 4
        %v2337 = vrot.slane %v2331, 4
        %v2338 = vsel %vm2019, %v2328, %v2336
        %v2339 = vsel %vm2019, %v2330, %v2337
        %2342 = vst.msk [vmem:[#allocation5] sm:$0x77] %vm2035, %v2338
        %2343 = vst.msk [vmem:[#allocation5 + $0x8] sm:$0x77] %vm2039, %v2339
        %v2344 = vld [vmem:[#allocation5] sm:$0x77]
        %v2345 = vld [vmem:[#allocation5 + $0x8] sm:$0x77]
        %2348 = vst [vmem:[#allocation1] ss:$2 sm:$0xff] %v2344
        %s2349 = scalar_lea.vmem [#allocation1], 16
        %2350 = vst [vmem:[%s2349] ss:$2 sm:$0xff] %v2345
        %v2351 = vld.sshfl [vmem:[#allocation1] sm:$0xff pattern:$0x75316420]
        %v2352 = vld.sshfl [vmem:[#allocation1 + $0x8] sm:$0xff pattern:$0x75316420]
        %v2353 = vld.sshfl [vmem:[#allocation1 + $0x10] sm:$0xff pattern:$0x75316420]
        %v2354 = vld.sshfl [vmem:[#allocation1 + $0x18] sm:$0xff pattern:$0x75316420]
        %2355 = vrot.lane.b32.xlu0 %v2351, 107
        %v2356 = vpop.permute.xlu0 %2355
        %2357 = vrot.lane.b32.xlu0 %v2352, 107
        %v2358 = vpop.permute.xlu0 %2357
        %2359 = vrot.lane.b32.xlu0 %v2353, 107
        %v2360 = vpop.permute.xlu0 %2359
        %2361 = vrot.lane.b32.xlu0 %v2354, 107
        %v2362 = vpop.permute.xlu0 %2361
        %vm2363 = vcmask 875520
        %v2364 = vsel %vm2363, %v2356, %v2358
        %v2365 = vsel %vm2363, %v2358, %v2360
        %v2366 = vsel %vm2363, %v2360, %v2362
        %2371 = vst [vmem:[#allocation11] sm:$0x7] %v2364
        %2372 = vst [vmem:[#allocation11 + $0x8] sm:$0x7] %v2365
        %2373 = vst [vmem:[#allocation11 + $0x10] sm:$0x7] %v2366
        %vm2374 = vcmask 452608
        %2375 = vst.msk [vmem:[#allocation11 + $0x18] sm:$0x7] %vm2374, %v2362
        %v2376 = vld [vmem:[#allocation2] sm:$0x7]
        %v2377 = vld [vmem:[#allocation2 + $0x8] sm:$0x7]
        %v2378 = vld [vmem:[#allocation2 + $0x10] sm:$0x7]
        %v2379 = vld [vmem:[#allocation2 + $0x18] sm:$0x7]
        %v2384 = vrot.slane %v2376, 5
        %v2385 = vrot.slane %v2377, 5
        %v2386 = vrot.slane %v2378, 5
        %v2387 = vrot.slane %v2379, 5
        %2388 = vrot.lane.b32.xlu0 %v2384, 107
        %v2389 = vpop.permute.xlu0 %2388
        %2390 = vrot.lane.b32.xlu0 %v2385, 107
        %v2391 = vpop.permute.xlu0 %2390
        %2392 = vrot.lane.b32.xlu0 %v2386, 107
        %v2393 = vpop.permute.xlu0 %2392
        %2394 = vrot.lane.b32.xlu0 %v2387, 107
        %v2395 = vpop.permute.xlu0 %2394
        %v2396 = vsel %vm2363, %v2389, %v2391
        %v2397 = vsel %vm2363, %v2391, %v2393
        %v2398 = vsel %vm2363, %v2393, %v2395
        %2403 = vst [vmem:[#allocation11] sm:$0x38] %v2396
        %2404 = vst [vmem:[#allocation11 + $0x8] sm:$0x38] %v2397
        %2405 = vst [vmem:[#allocation11 + $0x10] sm:$0x38] %v2398
        %vm2406 = vcmask 455683
        %2407 = vst.msk [vmem:[#allocation11 + $0x18] sm:$0x38] %vm2406, %v2395
        %v2408 = vld [vmem:[#allocation5] sm:$0x77]
        %v2409 = vld [vmem:[#allocation5 + $0x8] sm:$0x77]
        %2412 = vst [vmem:[#allocation1] ss:$2 sm:$0xff] %v2408
        %s2413 = scalar_lea.vmem [#allocation1], 16
        %2414 = vst [vmem:[%s2413] ss:$2 sm:$0xff] %v2409
        %v2415 = vld.sshfl [vmem:[#allocation1] sm:$0xff pattern:$0x75316420]
        %v2416 = vld.sshfl [vmem:[#allocation1 + $0x8] sm:$0xff pattern:$0x75316420]
        %v2417 = vld.sshfl [vmem:[#allocation1 + $0x10] sm:$0xff pattern:$0x75316420]
        %v2418 = vld.sshfl [vmem:[#allocation1 + $0x18] sm:$0xff pattern:$0x75316420]
        %v2419 = vrot.slane %v2415, 2
        %v2420 = vrot.slane %v2416, 2
        %v2421 = vrot.slane %v2417, 2
        %v2422 = vrot.slane %v2418, 2
        %2423 = vrot.lane.b32.xlu0 %v2419, 106
        %v2424 = vpop.permute.xlu0 %2423
        %2425 = vrot.lane.b32.xlu0 %v2420, 106
        %v2426 = vpop.permute.xlu0 %2425
        %2427 = vrot.lane.b32.xlu0 %v2421, 106
        %v2428 = vpop.permute.xlu0 %2427
        %2429 = vrot.lane.b32.xlu0 %v2422, 106
        %v2430 = vpop.permute.xlu0 %2429
        %vm2431 = vcmask 867328
        %v2432 = vsel %vm2431, %v2424, %v2426
        %v2433 = vsel %vm2431, %v2426, %v2428
        %v2434 = vsel %vm2431, %v2428, %v2430
        %2439 = vst [vmem:[#allocation11] sm:$0xc0] %v2432
        %2440 = vst [vmem:[#allocation11 + $0x8] sm:$0xc0] %v2433
        %2441 = vst [vmem:[#allocation11 + $0x10] sm:$0xc0] %v2434
        %vm2442 = vcmask 457734
        %2443 = vst.msk [vmem:[#allocation11 + $0x18] sm:$0xc0] %vm2442, %v2430
        %2444 = vst [vmem:[#allocation11 + $0x20] sm:$0x1] %v2432
        %2445 = vst [vmem:[#allocation11 + $0x28] sm:$0x1] %v2433
        %2446 = vst [vmem:[#allocation11 + $0x30] sm:$0x1] %v2434
        %vm2447 = vcmask 450560
        %2448 = vst.msk [vmem:[#allocation11 + $0x38] sm:$0x1] %vm2447, %v2430
        %v2449 = vld [vmem:[#allocation2] sm:$0x7]
        %v2450 = vld [vmem:[#allocation2 + $0x8] sm:$0x7]
        %v2451 = vld [vmem:[#allocation2 + $0x10] sm:$0x7]
        %v2452 = vld [vmem:[#allocation2 + $0x18] sm:$0x7]
        %v2457 = vrot.slane %v2449, 7
        %v2458 = vrot.slane %v2450, 7
        %v2459 = vrot.slane %v2451, 7
        %v2460 = vrot.slane %v2452, 7
        %2461 = vrot.lane.b32.xlu0 %v2457, 106
        %v2462 = vpop.permute.xlu0 %2461
        %2463 = vrot.lane.b32.xlu0 %v2458, 106
        %v2464 = vpop.permute.xlu0 %2463
        %2465 = vrot.lane.b32.xlu0 %v2459, 106
        %v2466 = vpop.permute.xlu0 %2465
        %2467 = vrot.lane.b32.xlu0 %v2460, 106
        %v2468 = vpop.permute.xlu0 %2467
        %v2469 = vsel %vm2431, %v2462, %v2464
        %v2470 = vsel %vm2431, %v2464, %v2466
        %v2471 = vsel %vm2431, %v2466, %v2468
        %2476 = vst [vmem:[#allocation11 + $0x20] sm:$0xe] %v2469
        %2477 = vst [vmem:[#allocation11 + $0x28] sm:$0xe] %v2470
        %2478 = vst [vmem:[#allocation11 + $0x30] sm:$0xe] %v2471
        %vm2479 = vcmask 453633
        %2480 = vst.msk [vmem:[#allocation11 + $0x38] sm:$0xe] %vm2479, %v2468
        %v2481 = vld [vmem:[#allocation5] sm:$0x77]
        %v2482 = vld [vmem:[#allocation5 + $0x8] sm:$0x77]
        %s2485 = scalar_lea.vmem [#allocation1], 1
        %2486 = vst [vmem:[%s2485] ss:$2 sm:$0xff] %v2481
        %s2487 = scalar_lea.vmem [#allocation1], 17
        %2488 = vst [vmem:[%s2487] ss:$2 sm:$0xff] %v2482
        %v2489 = vld.sshfl [vmem:[#allocation1] sm:$0xff pattern:$0x75316420]
        %v2490 = vld.sshfl [vmem:[#allocation1 + $0x8] sm:$0xff pattern:$0x75316420]
        %v2491 = vld.sshfl [vmem:[#allocation1 + $0x10] sm:$0xff pattern:$0x75316420]
        %v2492 = vld.sshfl [vmem:[#allocation1 + $0x18] sm:$0xff pattern:$0x75316420]
        %2493 = vrot.lane.b32.xlu0 %v2489, 105
        %v2494 = vpop.permute.xlu0 %2493
        %2495 = vrot.lane.b32.xlu0 %v2490, 105
        %v2496 = vpop.permute.xlu0 %2495
        %2497 = vrot.lane.b32.xlu0 %v2491, 105
        %v2498 = vpop.permute.xlu0 %2497
        %2499 = vrot.lane.b32.xlu0 %v2492, 105
        %v2500 = vpop.permute.xlu0 %2499
        %vm2501 = vcmask 859136
        %v2502 = vsel %vm2501, %v2494, %v2496
        %v2503 = vsel %vm2501, %v2496, %v2498
        %v2504 = vsel %vm2501, %v2498, %v2500
        %2509 = vst [vmem:[#allocation11 + $0x20] sm:$0x70] %v2502
        %2510 = vst [vmem:[#allocation11 + $0x28] sm:$0x70] %v2503
        %2511 = vst [vmem:[#allocation11 + $0x30] sm:$0x70] %v2504
        %vm2512 = vcmask 456708
        %2513 = vst.msk [vmem:[#allocation11 + $0x38] sm:$0x70] %vm2512, %v2500
        %v2514 = vld [vmem:[#allocation2] sm:$0x7]
        %v2515 = vld [vmem:[#allocation2 + $0x8] sm:$0x7]
        %v2516 = vld [vmem:[#allocation2 + $0x10] sm:$0x7]
        %v2517 = vld [vmem:[#allocation2 + $0x18] sm:$0x7]
        %v2522 = vrot.slane %v2514, 1
        %v2523 = vrot.slane %v2515, 1
        %v2524 = vrot.slane %v2516, 1
        %v2525 = vrot.slane %v2517, 1
        %2526 = vrot.lane.b32.xlu0 %v2522, 105
        %v2527 = vpop.permute.xlu0 %2526
        %2528 = vrot.lane.b32.xlu0 %v2523, 105
        %v2529 = vpop.permute.xlu0 %2528
        %2530 = vrot.lane.b32.xlu0 %v2524, 105
        %v2531 = vpop.permute.xlu0 %2530
        %2532 = vrot.lane.b32.xlu0 %v2525, 105
        %v2533 = vpop.permute.xlu0 %2532
        %v2534 = vsel %vm2501, %v2527, %v2529
        %v2535 = vsel %vm2501, %v2529, %v2531
        %v2536 = vsel %vm2501, %v2531, %v2533
        %2541 = vst [vmem:[#allocation11 + $0x20] sm:$0x80] %v2534
        %2542 = vst [vmem:[#allocation11 + $0x28] sm:$0x80] %v2535
        %2543 = vst [vmem:[#allocation11 + $0x30] sm:$0x80] %v2536
        %vm2544 = vcmask 457735
        %2545 = vst.msk [vmem:[#allocation11 + $0x38] sm:$0x80] %vm2544, %v2533
        %2546 = vst [vmem:[#allocation11 + $0x40] sm:$0x3] %v2534
        %2547 = vst [vmem:[#allocation11 + $0x48] sm:$0x3] %v2535
        %2548 = vst [vmem:[#allocation11 + $0x50] sm:$0x3] %v2536
        %vm2549 = vcmask 451584
        %2550 = vst.msk [vmem:[#allocation11 + $0x58] sm:$0x3] %vm2549, %v2533
        %v2551 = vld [vmem:[#allocation5] sm:$0x77]
        %v2552 = vld [vmem:[#allocation5 + $0x8] sm:$0x77]
        %2555 = vst [vmem:[#allocation1] ss:$2 sm:$0xff] %v2551
        %s2556 = scalar_lea.vmem [#allocation1], 16
        %2557 = vst [vmem:[%s2556] ss:$2 sm:$0xff] %v2552
        %v2558 = vld.sshfl [vmem:[#allocation1] sm:$0xff pattern:$0x75316420]
        %v2559 = vld.sshfl [vmem:[#allocation1 + $0x8] sm:$0xff pattern:$0x75316420]
        %v2560 = vld.sshfl [vmem:[#allocation1 + $0x10] sm:$0xff pattern:$0x75316420]
        %v2561 = vld.sshfl [vmem:[#allocation1 + $0x18] sm:$0xff pattern:$0x75316420]
        %v2562 = vrot.slane %v2558, 6
        %v2563 = vrot.slane %v2559, 6
        %v2564 = vrot.slane %v2560, 6
        %v2565 = vrot.slane %v2561, 6
        %2566 = vrot.lane.b32.xlu0 %v2562, 87
        %v2567 = vpop.permute.xlu0 %2566
        %2568 = vrot.lane.b32.xlu0 %v2563, 87
        %v2569 = vpop.permute.xlu0 %2568
        %2570 = vrot.lane.b32.xlu0 %v2564, 87
        %v2571 = vpop.permute.xlu0 %2570
        %2572 = vrot.lane.b32.xlu0 %v2565, 87
        %v2573 = vpop.permute.xlu0 %2572
        %vm2574 = vcmask 711680
        %v2575 = vsel %vm2574, %v2567, %v2569
        %v2576 = vsel %vm2574, %v2569, %v2571
        %v2577 = vsel %vm2574, %v2571, %v2573
        %2582 = vst [vmem:[#allocation11 + $0x40] sm:$0x1c] %v2575
        %2583 = vst [vmem:[#allocation11 + $0x48] sm:$0x1c] %v2576
        %2584 = vst [vmem:[#allocation11 + $0x50] sm:$0x1c] %v2577
        %vm2585 = vcmask 454658
        %2586 = vst.msk [vmem:[#allocation11 + $0x58] sm:$0x1c] %vm2585, %v2573
        %v2587 = vld [vmem:[#allocation2] sm:$0x7]
        %v2588 = vld [vmem:[#allocation2 + $0x8] sm:$0x7]
        %v2589 = vld [vmem:[#allocation2 + $0x10] sm:$0x7]
        %v2590 = vld [vmem:[#allocation2 + $0x18] sm:$0x7]
        %v2595 = vrot.slane %v2587, 3
        %v2596 = vrot.slane %v2588, 3
        %v2597 = vrot.slane %v2589, 3
        %v2598 = vrot.slane %v2590, 3
        %2599 = vrot.lane.b32.xlu0 %v2595, 87
        %v2600 = vpop.permute.xlu0 %2599
        %2601 = vrot.lane.b32.xlu0 %v2596, 87
        %v2602 = vpop.permute.xlu0 %2601
        %2603 = vrot.lane.b32.xlu0 %v2597, 87
        %v2604 = vpop.permute.xlu0 %2603
        %2605 = vrot.lane.b32.xlu0 %v2598, 87
        %v2606 = vpop.permute.xlu0 %2605
        %v2607 = vsel %vm2574, %v2600, %v2602
        %v2608 = vsel %vm2574, %v2602, %v2604
        %v2609 = vsel %vm2574, %v2604, %v2606
        %2614 = vst [vmem:[#allocation11 + $0x40] sm:$0xe0] %v2607
        %2615 = vst [vmem:[#allocation11 + $0x48] sm:$0xe0] %v2608
        %2616 = vst [vmem:[#allocation11 + $0x50] sm:$0xe0] %v2609
        %vm2617 = vcmask 457733
        %2618 = vst.msk [vmem:[#allocation11 + $0x58] sm:$0xe0] %vm2617, %v2606
        %v2619 = vld [vmem:[#allocation5] sm:$0x77]
        %v2620 = vld [vmem:[#allocation5 + $0x8] sm:$0x77]
        %2623 = vst [vmem:[#allocation1] ss:$2 sm:$0xff] %v2619
        %s2624 = scalar_lea.vmem [#allocation1], 16
        %2625 = vst [vmem:[%s2624] ss:$2 sm:$0xff] %v2620
        %v2626 = vld.sshfl [vmem:[#allocation1] sm:$0xff pattern:$0x75316420]
        %v2627 = vld.sshfl [vmem:[#allocation1 + $0x8] sm:$0xff pattern:$0x75316420]
        %v2628 = vld.sshfl [vmem:[#allocation1 + $0x10] sm:$0xff pattern:$0x75316420]
        %v2629 = vld.sshfl [vmem:[#allocation1 + $0x18] sm:$0xff pattern:$0x75316420]
        %2630 = vrot.lane.b32.xlu0 %v2626, 86
        %v2631 = vpop.permute.xlu0 %2630
        %2632 = vrot.lane.b32.xlu0 %v2627, 86
        %v2633 = vpop.permute.xlu0 %2632
        %2634 = vrot.lane.b32.xlu0 %v2628, 86
        %v2635 = vpop.permute.xlu0 %2634
        %2636 = vrot.lane.b32.xlu0 %v2629, 86
        %v2637 = vpop.permute.xlu0 %2636
        %vm2638 = vcmask 703488
        %v2639 = vsel %vm2638, %v2631, %v2633
        %v2640 = vsel %vm2638, %v2633, %v2635
        %v2641 = vsel %vm2638, %v2635, %v2637
        %2646 = vst [vmem:[#allocation11 + $0x60] sm:$0x7] %v2639
        %2647 = vst [vmem:[#allocation11 + $0x68] sm:$0x7] %v2640
        %2648 = vst [vmem:[#allocation11 + $0x70] sm:$0x7] %v2641
        %2649 = vst.msk [vmem:[#allocation11 + $0x78] sm:$0x7] %vm2374, %v2637
        %v2650 = vld [vmem:[#allocation2] sm:$0x7]
        %v2651 = vld [vmem:[#allocation2 + $0x8] sm:$0x7]
        %v2652 = vld [vmem:[#allocation2 + $0x10] sm:$0x7]
        %v2653 = vld [vmem:[#allocation2 + $0x18] sm:$0x7]
        %v2658 = vrot.slane %v2650, 5
        %v2659 = vrot.slane %v2651, 5
        %v2660 = vrot.slane %v2652, 5
        %v2661 = vrot.slane %v2653, 5
        %2662 = vrot.lane.b32.xlu0 %v2658, 86
        %v2663 = vpop.permute.xlu0 %2662
        %2664 = vrot.lane.b32.xlu0 %v2659, 86
        %v2665 = vpop.permute.xlu0 %2664
        %2666 = vrot.lane.b32.xlu0 %v2660, 86
        %v2667 = vpop.permute.xlu0 %2666
        %2668 = vrot.lane.b32.xlu0 %v2661, 86
        %v2669 = vpop.permute.xlu0 %2668
        %v2670 = vsel %vm2638, %v2663, %v2665
        %v2671 = vsel %vm2638, %v2665, %v2667
        %v2672 = vsel %vm2638, %v2667, %v2669
        %2677 = vst [vmem:[#allocation11 + $0x60] sm:$0x38] %v2670
        %2678 = vst [vmem:[#allocation11 + $0x68] sm:$0x38] %v2671
        %2679 = vst [vmem:[#allocation11 + $0x70] sm:$0x38] %v2672
        %2680 = vst.msk [vmem:[#allocation11 + $0x78] sm:$0x38] %vm2406, %v2669
        %v2681 = vld [vmem:[#allocation5] sm:$0x77]
        %v2682 = vld [vmem:[#allocation5 + $0x8] sm:$0x77]
        %2685 = vst [vmem:[#allocation1] ss:$2 sm:$0xff] %v2681
        %s2686 = scalar_lea.vmem [#allocation1], 16
        %2687 = vst [vmem:[%s2686] ss:$2 sm:$0xff] %v2682
        %v2688 = vld.sshfl [vmem:[#allocation1] sm:$0xff pattern:$0x75316420]
        %v2689 = vld.sshfl [vmem:[#allocation1 + $0x8] sm:$0xff pattern:$0x75316420]
        %v2690 = vld.sshfl [vmem:[#allocation1 + $0x10] sm:$0xff pattern:$0x75316420]
        %v2691 = vld.sshfl [vmem:[#allocation1 + $0x18] sm:$0xff pattern:$0x75316420]
        %v2692 = vrot.slane %v2688, 2
        %v2693 = vrot.slane %v2689, 2
        %v2694 = vrot.slane %v2690, 2
        %v2695 = vrot.slane %v2691, 2
        %2696 = vrot.lane.b32.xlu0 %v2692, 85
        %v2697 = vpop.permute.xlu0 %2696
        %2698 = vrot.lane.b32.xlu0 %v2693, 85
        %v2699 = vpop.permute.xlu0 %2698
        %2700 = vrot.lane.b32.xlu0 %v2694, 85
        %v2701 = vpop.permute.xlu0 %2700
        %2702 = vrot.lane.b32.xlu0 %v2695, 85
        %v2703 = vpop.permute.xlu0 %2702
        %vm2704 = vcmask 695296
        %v2705 = vsel %vm2704, %v2697, %v2699
        %v2706 = vsel %vm2704, %v2699, %v2701
        %v2707 = vsel %vm2704, %v2701, %v2703
        %2712 = vst [vmem:[#allocation11 + $0x60] sm:$0xc0] %v2705
        %2713 = vst [vmem:[#allocation11 + $0x68] sm:$0xc0] %v2706
        %2714 = vst [vmem:[#allocation11 + $0x70] sm:$0xc0] %v2707
        %2715 = vst.msk [vmem:[#allocation11 + $0x78] sm:$0xc0] %vm2442, %v2703
        %2716 = vst [vmem:[#allocation11 + $0x80] sm:$0x1] %v2705
        %2717 = vst [vmem:[#allocation11 + $0x88] sm:$0x1] %v2706
        %2718 = vst [vmem:[#allocation11 + $0x90] sm:$0x1] %v2707
        %2719 = vst.msk [vmem:[#allocation11 + $0x98] sm:$0x1] %vm2447, %v2703
        %v2720 = vld [vmem:[#allocation2] sm:$0x7]
        %v2721 = vld [vmem:[#allocation2 + $0x8] sm:$0x7]
        %v2722 = vld [vmem:[#allocation2 + $0x10] sm:$0x7]
        %v2723 = vld [vmem:[#allocation2 + $0x18] sm:$0x7]
        %v2728 = vrot.slane %v2720, 7
        %v2729 = vrot.slane %v2721, 7
        %v2730 = vrot.slane %v2722, 7
        %v2731 = vrot.slane %v2723, 7
        %2732 = vrot.lane.b32.xlu0 %v2728, 85
        %v2733 = vpop.permute.xlu0 %2732
        %2734 = vrot.lane.b32.xlu0 %v2729, 85
        %v2735 = vpop.permute.xlu0 %2734
        %2736 = vrot.lane.b32.xlu0 %v2730, 85
        %v2737 = vpop.permute.xlu0 %2736
        %2738 = vrot.lane.b32.xlu0 %v2731, 85
        %v2739 = vpop.permute.xlu0 %2738
        %v2740 = vsel %vm2704, %v2733, %v2735
        %v2741 = vsel %vm2704, %v2735, %v2737
        %v2742 = vsel %vm2704, %v2737, %v2739
        %2747 = vst [vmem:[#allocation11 + $0x80] sm:$0xe] %v2740
        %2748 = vst [vmem:[#allocation11 + $0x88] sm:$0xe] %v2741
        %2749 = vst [vmem:[#allocation11 + $0x90] sm:$0xe] %v2742
        %2750 = vst.msk [vmem:[#allocation11 + $0x98] sm:$0xe] %vm2479, %v2739
        %v2751 = vld [vmem:[#allocation5] sm:$0x77]
        %v2752 = vld [vmem:[#allocation5 + $0x8] sm:$0x77]
        %s2755 = scalar_lea.vmem [#allocation1], 1
        %2756 = vst [vmem:[%s2755] ss:$2 sm:$0xff] %v2751
        %s2757 = scalar_lea.vmem [#allocation1], 17
        %2758 = vst [vmem:[%s2757] ss:$2 sm:$0xff] %v2752
        %v2759 = vld.sshfl [vmem:[#allocation1] sm:$0xff pattern:$0x75316420]
        %v2760 = vld.sshfl [vmem:[#allocation1 + $0x8] sm:$0xff pattern:$0x75316420]
        %v2761 = vld.sshfl [vmem:[#allocation1 + $0x10] sm:$0xff pattern:$0x75316420]
        %v2762 = vld.sshfl [vmem:[#allocation1 + $0x18] sm:$0xff pattern:$0x75316420]
        %2763 = vrot.lane.b32.xlu0 %v2759, 67
        %v2764 = vpop.permute.xlu0 %2763
        %2765 = vrot.lane.b32.xlu0 %v2760, 67
        %v2766 = vpop.permute.xlu0 %2765
        %2767 = vrot.lane.b32.xlu0 %v2761, 67
        %v2768 = vpop.permute.xlu0 %2767
        %2769 = vrot.lane.b32.xlu0 %v2762, 67
        %v2770 = vpop.permute.xlu0 %2769
        %vm2771 = vcmask 547840
        %v2772 = vsel %vm2771, %v2764, %v2766
        %v2773 = vsel %vm2771, %v2766, %v2768
        %v2774 = vsel %vm2771, %v2768, %v2770
        %2779 = vst [vmem:[#allocation11 + $0x80] sm:$0x70] %v2772
        %2780 = vst [vmem:[#allocation11 + $0x88] sm:$0x70] %v2773
        %2781 = vst [vmem:[#allocation11 + $0x90] sm:$0x70] %v2774
        %2782 = vst.msk [vmem:[#allocation11 + $0x98] sm:$0x70] %vm2512, %v2770
        %v2783 = vld [vmem:[#allocation2] sm:$0x7]
        %v2784 = vld [vmem:[#allocation2 + $0x8] sm:$0x7]
        %v2785 = vld [vmem:[#allocation2 + $0x10] sm:$0x7]
        %v2786 = vld [vmem:[#allocation2 + $0x18] sm:$0x7]
        %v2791 = vrot.slane %v2783, 1
        %v2792 = vrot.slane %v2784, 1
        %v2793 = vrot.slane %v2785, 1
        %v2794 = vrot.slane %v2786, 1
        %2795 = vrot.lane.b32.xlu0 %v2791, 67
        %v2796 = vpop.permute.xlu0 %2795
        %2797 = vrot.lane.b32.xlu0 %v2792, 67
        %v2798 = vpop.permute.xlu0 %2797
        %2799 = vrot.lane.b32.xlu0 %v2793, 67
        %v2800 = vpop.permute.xlu0 %2799
        %2801 = vrot.lane.b32.xlu0 %v2794, 67
        %v2802 = vpop.permute.xlu0 %2801
        %v2803 = vsel %vm2771, %v2796, %v2798
        %v2804 = vsel %vm2771, %v2798, %v2800
        %v2805 = vsel %vm2771, %v2800, %v2802
        %2810 = vst [vmem:[#allocation11 + $0x80] sm:$0x80] %v2803
        %2811 = vst [vmem:[#allocation11 + $0x88] sm:$0x80] %v2804
        %2812 = vst [vmem:[#allocation11 + $0x90] sm:$0x80] %v2805
        %2813 = vst.msk [vmem:[#allocation11 + $0x98] sm:$0x80] %vm2544, %v2802
        %2814 = vst [vmem:[#allocation11 + $0xa0] sm:$0x3] %v2803
        %2815 = vst [vmem:[#allocation11 + $0xa8] sm:$0x3] %v2804
        %2816 = vst [vmem:[#allocation11 + $0xb0] sm:$0x3] %v2805
        %2817 = vst.msk [vmem:[#allocation11 + $0xb8] sm:$0x3] %vm2549, %v2802
        %v2818 = vld [vmem:[#allocation5] sm:$0x77]
        %v2819 = vld [vmem:[#allocation5 + $0x8] sm:$0x77]
        %2822 = vst [vmem:[#allocation1] ss:$2 sm:$0xff] %v2818
        %s2823 = scalar_lea.vmem [#allocation1], 16
        %2824 = vst [vmem:[%s2823] ss:$2 sm:$0xff] %v2819
        %v2825 = vld.sshfl [vmem:[#allocation1] sm:$0xff pattern:$0x75316420]
        %v2826 = vld.sshfl [vmem:[#allocation1 + $0x8] sm:$0xff pattern:$0x75316420]
        %v2827 = vld.sshfl [vmem:[#allocation1 + $0x10] sm:$0xff pattern:$0x75316420]
        %v2828 = vld.sshfl [vmem:[#allocation1 + $0x18] sm:$0xff pattern:$0x75316420]
        %v2829 = vrot.slane %v2825, 6
        %v2830 = vrot.slane %v2826, 6
        %v2831 = vrot.slane %v2827, 6
        %v2832 = vrot.slane %v2828, 6
        %2833 = vrot.lane.b32.xlu0 %v2829, 66
        %v2834 = vpop.permute.xlu0 %2833
        %2835 = vrot.lane.b32.xlu0 %v2830, 66
        %v2836 = vpop.permute.xlu0 %2835
        %2837 = vrot.lane.b32.xlu0 %v2831, 66
        %v2838 = vpop.permute.xlu0 %2837
        %2839 = vrot.lane.b32.xlu0 %v2832, 66
        %v2840 = vpop.permute.xlu0 %2839
        %vm2841 = vcmask 539648
        %v2842 = vsel %vm2841, %v2834, %v2836
        %v2843 = vsel %vm2841, %v2836, %v2838
        %v2844 = vsel %vm2841, %v2838, %v2840
        %2849 = vst [vmem:[#allocation11 + $0xa0] sm:$0x1c] %v2842
        %2850 = vst [vmem:[#allocation11 + $0xa8] sm:$0x1c] %v2843
        %2851 = vst [vmem:[#allocation11 + $0xb0] sm:$0x1c] %v2844
        %2852 = vst.msk [vmem:[#allocation11 + $0xb8] sm:$0x1c] %vm2585, %v2840
        %v2853 = vld [vmem:[#allocation2] sm:$0x7]
        %v2854 = vld [vmem:[#allocation2 + $0x8] sm:$0x7]
        %v2855 = vld [vmem:[#allocation2 + $0x10] sm:$0x7]
        %v2856 = vld [vmem:[#allocation2 + $0x18] sm:$0x7]
        %v2861 = vrot.slane %v2853, 3
        %v2862 = vrot.slane %v2854, 3
        %v2863 = vrot.slane %v2855, 3
        %v2864 = vrot.slane %v2856, 3
        %2865 = vrot.lane.b32.xlu0 %v2861, 66
        %v2866 = vpop.permute.xlu0 %2865
        %2867 = vrot.lane.b32.xlu0 %v2862, 66
        %v2868 = vpop.permute.xlu0 %2867
        %2869 = vrot.lane.b32.xlu0 %v2863, 66
        %v2870 = vpop.permute.xlu0 %2869
        %2871 = vrot.lane.b32.xlu0 %v2864, 66
        %v2872 = vpop.permute.xlu0 %2871
        %v2873 = vsel %vm2841, %v2866, %v2868
        %v2874 = vsel %vm2841, %v2868, %v2870
        %v2875 = vsel %vm2841, %v2870, %v2872
        %2880 = vst [vmem:[#allocation11 + $0xa0] sm:$0xe0] %v2873
        %2881 = vst [vmem:[#allocation11 + $0xa8] sm:$0xe0] %v2874
        %2882 = vst [vmem:[#allocation11 + $0xb0] sm:$0xe0] %v2875
        %2883 = vst.msk [vmem:[#allocation11 + $0xb8] sm:$0xe0] %vm2617, %v2872
        %v2884 = vld [vmem:[#allocation5] sm:$0x77]
        %v2885 = vld [vmem:[#allocation5 + $0x8] sm:$0x77]
        %2888 = vst [vmem:[#allocation1] ss:$2 sm:$0xff] %v2884
        %s2889 = scalar_lea.vmem [#allocation1], 16
        %2890 = vst [vmem:[%s2889] ss:$2 sm:$0xff] %v2885
        %v2891 = vld.sshfl [vmem:[#allocation1] sm:$0xff pattern:$0x75316420]
        %v2892 = vld.sshfl [vmem:[#allocation1 + $0x8] sm:$0xff pattern:$0x75316420]
        %v2893 = vld.sshfl [vmem:[#allocation1 + $0x10] sm:$0xff pattern:$0x75316420]
        %v2894 = vld.sshfl [vmem:[#allocation1 + $0x18] sm:$0xff pattern:$0x75316420]
        %2895 = vrot.lane.b32.xlu0 %v2891, 65
        %v2896 = vpop.permute.xlu0 %2895
        %2897 = vrot.lane.b32.xlu0 %v2892, 65
        %v2898 = vpop.permute.xlu0 %2897
        %2899 = vrot.lane.b32.xlu0 %v2893, 65
        %v2900 = vpop.permute.xlu0 %2899
        %2901 = vrot.lane.b32.xlu0 %v2894, 65
        %v2902 = vpop.permute.xlu0 %2901
        %vm2903 = vcmask 531456
        %v2904 = vsel %vm2903, %v2896, %v2898
        %v2905 = vsel %vm2903, %v2898, %v2900
        %v2906 = vsel %vm2903, %v2900, %v2902
        %2911 = vst [vmem:[#allocation11 + $0xc0] sm:$0x7] %v2904
        %2912 = vst [vmem:[#allocation11 + $0xc8] sm:$0x7] %v2905
        %2913 = vst [vmem:[#allocation11 + $0xd0] sm:$0x7] %v2906
        %2914 = vst.msk [vmem:[#allocation11 + $0xd8] sm:$0x7] %vm2374, %v2902
        %v2915 = vld [vmem:[#allocation2] sm:$0x7]
        %v2916 = vld [vmem:[#allocation2 + $0x8] sm:$0x7]
        %v2917 = vld [vmem:[#allocation2 + $0x10] sm:$0x7]
        %v2918 = vld [vmem:[#allocation2 + $0x18] sm:$0x7]
        %v2923 = vrot.slane %v2915, 5
        %v2924 = vrot.slane %v2916, 5
        %v2925 = vrot.slane %v2917, 5
        %v2926 = vrot.slane %v2918, 5
        %2927 = vrot.lane.b32.xlu0 %v2923, 65
        %v2928 = vpop.permute.xlu0 %2927
        %2929 = vrot.lane.b32.xlu0 %v2924, 65
        %v2930 = vpop.permute.xlu0 %2929
        %2931 = vrot.lane.b32.xlu0 %v2925, 65
        %v2932 = vpop.permute.xlu0 %2931
        %2933 = vrot.lane.b32.xlu0 %v2926, 65
        %v2934 = vpop.permute.xlu0 %2933
        %v2935 = vsel %vm2903, %v2928, %v2930
        %v2936 = vsel %vm2903, %v2930, %v2932
        %v2937 = vsel %vm2903, %v2932, %v2934
        %2942 = vst [vmem:[#allocation11 + $0xc0] sm:$0x38] %v2935
        %2943 = vst [vmem:[#allocation11 + $0xc8] sm:$0x38] %v2936
        %2944 = vst [vmem:[#allocation11 + $0xd0] sm:$0x38] %v2937
        %2945 = vst.msk [vmem:[#allocation11 + $0xd8] sm:$0x38] %vm2406, %v2934
        %v2946 = vld [vmem:[%s1] sm:$0x3f]
        %v2947 = vld [vmem:[#allocation11] sm:$0xff]
        %v2948 = vld [vmem:[#allocation11 + $0x8] sm:$0xff]
        %v2949 = vld [vmem:[#allocation11 + $0x10] sm:$0xff]
        %v2950 = vld [vmem:[#allocation11 + $0x18] sm:$0xff]
        %v2951 = vld [vmem:[#allocation11 + $0x20] sm:$0xff]
        %v2952 = vld [vmem:[#allocation11 + $0x28] sm:$0xff]
        %v2953 = vld [vmem:[#allocation11 + $0x30] sm:$0xff]
        %v2954 = vld [vmem:[#allocation11 + $0x38] sm:$0xff]
        %v2955 = vld [vmem:[#allocation11 + $0x40] sm:$0xff]
        %v2956 = vld [vmem:[#allocation11 + $0x48] sm:$0xff]
        %v2957 = vld [vmem:[#allocation11 + $0x50] sm:$0xff]
        %v2958 = vld [vmem:[#allocation11 + $0x58] sm:$0xff]
        %v2959 = vld [vmem:[#allocation11 + $0x60] sm:$0xff]
        %v2960 = vld [vmem:[#allocation11 + $0x68] sm:$0xff]
        %v2961 = vld [vmem:[#allocation11 + $0x70] sm:$0xff]
        %v2962 = vld [vmem:[#allocation11 + $0x78] sm:$0xff]
        %v2963 = vld [vmem:[#allocation11 + $0x80] sm:$0xff]
        %v2964 = vld [vmem:[#allocation11 + $0x88] sm:$0xff]
        %v2965 = vld [vmem:[#allocation11 + $0x90] sm:$0xff]
        %v2966 = vld [vmem:[#allocation11 + $0x98] sm:$0xff]
        %v2967 = vld [vmem:[#allocation11 + $0xa0] sm:$0xff]
        %v2968 = vld [vmem:[#allocation11 + $0xa8] sm:$0xff]
        %v2969 = vld [vmem:[#allocation11 + $0xb0] sm:$0xff]
        %v2970 = vld [vmem:[#allocation11 + $0xb8] sm:$0xff]
        %v2971 = vld [vmem:[#allocation11 + $0xc0] sm:$0x3f]
        %v2972 = vld [vmem:[#allocation11 + $0xc8] sm:$0x3f]
        %v2973 = vld [vmem:[#allocation11 + $0xd0] sm:$0x3f]
        %v2974 = vld [vmem:[#allocation11 + $0xd8] sm:$0x3f]
        %v2975 = vld [vmem:[%s2] sm:$0x3f]
        %2977 = vset.pattern.permute.xlu0 0
        %2978 = vperm.xlu0 %2977, %v2975
        %v2979 = vpop.permute.xlu0 %2978
        %vm2981 = vcmask 441344
        %v2983 = vsel %vm2981, %v2946, 0
        %vm2985 = vcmask 1045504
        %v2987 = vsel %vm2985, %v2971, 0
        %v2990 = vsel %vm2985, %v2972, 0
        %v2993 = vsel %vm2985, %v2973, 0
        %v2996 = vsel %vm2985, %v2974, 0
        %2998 = vmatpush.msra.mxu0 0.0
        %2999 = vmatpush.msra.mxu0 0.0
        %3000 = vmatpush.msra.mxu0 0.0
        %3001 = vmatpush.msra.mxu0 0.0
        %3002 = vmatpush.msra.mxu0 0.0
        %3003 = vmatpush.msra.mxu0 0.0
        %3004 = vmatpush.msra.mxu0 0.0
        %3005 = vmatpush.msra.mxu0 0.0
        %3006 = vmatpush.msra.mxu0 0.0
        %3007 = vmatpush.msra.mxu0 %v2987
        %3008 = vmatpush.msra.mxu0 %v2967
        %3009 = vmatpush.msra.mxu0 %v2963
        %3010 = vmatpush.msra.mxu0 %v2959
        %3011 = vmatpush.msra.mxu0 %v2955
        %3012 = vmatpush.msra.mxu0 %v2951
        %3013 = vmatpush.msra.mxu0 %v2947
        %3014 = vmatmul.f32.gmra.mxu0 %v2983
        %v3015 = vpop.f32.mrf.mxu0
        %v3016 = vadd.f32 %v2979, %v3015
        %3017 = vdwg.mxu0
        %3018 = vmatpush.msra.mxu0 0.0
        %3019 = vmatpush.msra.mxu0 0.0
        %3020 = vmatpush.msra.mxu0 0.0
        %3021 = vmatpush.msra.mxu0 0.0
        %3022 = vmatpush.msra.mxu0 0.0
        %3023 = vmatpush.msra.mxu0 0.0
        %3024 = vmatpush.msra.mxu0 0.0
        %3025 = vmatpush.msra.mxu0 0.0
        %3026 = vmatpush.msra.mxu0 0.0
        %3027 = vmatpush.msra.mxu0 %v2990
        %3028 = vmatpush.msra.mxu0 %v2968
        %3029 = vmatpush.msra.mxu0 %v2964
        %3030 = vmatpush.msra.mxu0 %v2960
        %3031 = vmatpush.msra.mxu0 %v2956
        %3032 = vmatpush.msra.mxu0 %v2952
        %3033 = vmatpush.msra.mxu0 %v2948
        %3034 = vmatmul.f32.gmra.mxu0 %v2983
        %v3035 = vpop.f32.mrf.mxu0
        %v3036 = vadd.f32 %v2979, %v3035
        %3037 = vdwg.mxu0
        %3038 = vmatpush.msra.mxu0 0.0
        %3039 = vmatpush.msra.mxu0 0.0
        %3040 = vmatpush.msra.mxu0 0.0
        %3041 = vmatpush.msra.mxu0 0.0
        %3042 = vmatpush.msra.mxu0 0.0
        %3043 = vmatpush.msra.mxu0 0.0
        %3044 = vmatpush.msra.mxu0 0.0
        %3045 = vmatpush.msra.mxu0 0.0
        %3046 = vmatpush.msra.mxu0 0.0
        %3047 = vmatpush.msra.mxu0 %v2993
        %3048 = vmatpush.msra.mxu0 %v2969
        %3049 = vmatpush.msra.mxu0 %v2965
        %3050 = vmatpush.msra.mxu0 %v2961
        %3051 = vmatpush.msra.mxu0 %v2957
        %3052 = vmatpush.msra.mxu0 %v2953
        %3053 = vmatpush.msra.mxu0 %v2949
        %3054 = vmatmul.f32.gmra.mxu0 %v2983
        %v3055 = vpop.f32.mrf.mxu0
        %v3056 = vadd.f32 %v2979, %v3055
        %3057 = vdwg.mxu0
        %3058 = vmatpush.msra.mxu0 0.0
        %3059 = vmatpush.msra.mxu0 0.0
        %3060 = vmatpush.msra.mxu0 0.0
        %3061 = vmatpush.msra.mxu0 0.0
        %3062 = vmatpush.msra.mxu0 0.0
        %3063 = vmatpush.msra.mxu0 0.0
        %3064 = vmatpush.msra.mxu0 0.0
        %3065 = vmatpush.msra.mxu0 0.0
        %3066 = vmatpush.msra.mxu0 0.0
        %3067 = vmatpush.msra.mxu0 %v2996
        %3068 = vmatpush.msra.mxu0 %v2970
        %3069 = vmatpush.msra.mxu0 %v2966
        %3070 = vmatpush.msra.mxu0 %v2962
        %3071 = vmatpush.msra.mxu0 %v2958
        %3072 = vmatpush.msra.mxu0 %v2954
        %3073 = vmatpush.msra.mxu0 %v2950
        %3074 = vmatmul.f32.gmra.mxu0 %v2983
        %v3075 = vpop.f32.mrf.mxu0
        %v3076 = vadd.f32 %v2979, %v3075
        %3077 = vdwg.mxu0
        %v3078 = vmax.f32 %v3016, 0.0
        %v3079 = vmax.f32 %v3036, 0.0
        %v3080 = vmax.f32 %v3056, 0.0
        %v3081 = vmax.f32 %v3076, 0.0
        %3082 = vrot.lane.b32.xlu0 %v2320, 86
        %v3083 = vpop.permute.xlu0 %3082
        %3084 = vrot.lane.b32.xlu0 %v2321, 86
        %v3085 = vpop.permute.xlu0 %3084
        %3086 = vrot.lane.b32.xlu0 %v2322, 86
        %v3087 = vpop.permute.xlu0 %3086
        %3088 = vrot.lane.b32.xlu0 %v2323, 86
        %v3089 = vpop.permute.xlu0 %3088
        %v3090 = vsel %vm2638, %v3083, %v3085
        %v3091 = vsel %vm2638, %v3085, %v3087
        %v3092 = vsel %vm2638, %v3087, %v3089
        %v3097 = vmul.f32 %v3078, %v3090
        %v3098 = vmul.f32 %v3079, %v3091
        %v3099 = vmul.f32 %v3080, %v3092
        %v3100 = vmul.f32 %v3081, %v3089
        %3105 = vrot.lane.b32.xlu0 %v3097, 42
        %v3106 = vpop.permute.xlu0 %3105
        %3107 = vrot.lane.b32.xlu0 %v3098, 42
        %v3108 = vpop.permute.xlu0 %3107
        %3109 = vrot.lane.b32.xlu0 %v3099, 42
        %v3110 = vpop.permute.xlu0 %3109
        %3111 = vrot.lane.b32.xlu0 %v3100, 42
        %v3112 = vpop.permute.xlu0 %3111
        %v3113 = vsel %vm477, %v3106, %v3108
        %v3114 = vsel %vm477, %v3108, %v3110
        %v3115 = vsel %vm477, %v3110, %v3112
        %vm3120 = vcmask 1045840
        %3121 = vst.msk [vmem:[#allocation6] sm:$0x3f] %vm3120, %v3106
        %3122 = vst [vmem:[#allocation6 + $0x8] sm:$0x3f] %v3113
        %3123 = vst [vmem:[#allocation6 + $0x10] sm:$0x3f] %v3114
        %vm3124 = vcmask 799744
        %3125 = vst.msk [vmem:[#allocation6 + $0x18] sm:$0x3f] %vm3124, %v3115
        %v3126 = vld [vmem:[#allocation6] sm:$0x3f]
        %v3127 = vld [vmem:[#allocation6 + $0x8] sm:$0x3f]
        %v3128 = vld [vmem:[#allocation6 + $0x10] sm:$0x3f]
        %v3129 = vld [vmem:[#allocation6 + $0x18] sm:$0x3f]
        %3134 = vrot.lane.b32.xlu0 %v3126, 107
        %v3135 = vpop.permute.xlu0 %3134
        %3136 = vrot.lane.b32.xlu0 %v3127, 107
        %v3137 = vpop.permute.xlu0 %3136
        %3138 = vrot.lane.b32.xlu0 %v3128, 107
        %v3139 = vpop.permute.xlu0 %3138
        %3140 = vrot.lane.b32.xlu0 %v3129, 107
        %v3141 = vpop.permute.xlu0 %3140
        %v3142 = vsel %vm2363, %v3135, %v3137
        %v3143 = vsel %vm2363, %v3137, %v3139
        %v3144 = vsel %vm2363, %v3139, %v3141
        %3149 = vst [vmem:[#allocation11] sm:$0x3f] %v3142
        %3150 = vst [vmem:[#allocation11 + $0x8] sm:$0x3f] %v3143
        %3151 = vst [vmem:[#allocation11 + $0x10] sm:$0x3f] %v3144
        %vm3152 = vcmask 455680
        %3153 = vst.msk [vmem:[#allocation11 + $0x18] sm:$0x3f] %vm3152, %v3141
        %v3154 = vld [vmem:[#allocation6] sm:$0x3f]
        %v3155 = vld [vmem:[#allocation6 + $0x8] sm:$0x3f]
        %v3156 = vld [vmem:[#allocation6 + $0x10] sm:$0x3f]
        %v3157 = vld [vmem:[#allocation6 + $0x18] sm:$0x3f]
        %v3162 = vrot.slane %v3154, 2
        %v3163 = vrot.slane %v3155, 2
        %v3164 = vrot.slane %v3156, 2
        %v3165 = vrot.slane %v3157, 2
        %3166 = vrot.lane.b32.xlu0 %v3162, 106
        %v3167 = vpop.permute.xlu0 %3166
        %3168 = vrot.lane.b32.xlu0 %v3163, 106
        %v3169 = vpop.permute.xlu0 %3168
        %3170 = vrot.lane.b32.xlu0 %v3164, 106
        %v3171 = vpop.permute.xlu0 %3170
        %3172 = vrot.lane.b32.xlu0 %v3165, 106
        %v3173 = vpop.permute.xlu0 %3172
        %v3174 = vsel %vm2431, %v3167, %v3169
        %v3175 = vsel %vm2431, %v3169, %v3171
        %v3176 = vsel %vm2431, %v3171, %v3173
        %3181 = vst [vmem:[#allocation11] sm:$0xc0] %v3174
        %3182 = vst [vmem:[#allocation11 + $0x8] sm:$0xc0] %v3175
        %3183 = vst [vmem:[#allocation11 + $0x10] sm:$0xc0] %v3176
        %3184 = vst.msk [vmem:[#allocation11 + $0x18] sm:$0xc0] %vm2442, %v3173
        %3185 = vst [vmem:[#allocation11 + $0x20] sm:$0xf] %v3174
        %3186 = vst [vmem:[#allocation11 + $0x28] sm:$0xf] %v3175
        %3187 = vst [vmem:[#allocation11 + $0x30] sm:$0xf] %v3176
        %vm3188 = vcmask 453632
        %3189 = vst.msk [vmem:[#allocation11 + $0x38] sm:$0xf] %vm3188, %v3173
        %v3190 = vld [vmem:[#allocation6] sm:$0x3f]
        %v3191 = vld [vmem:[#allocation6 + $0x8] sm:$0x3f]
        %v3192 = vld [vmem:[#allocation6 + $0x10] sm:$0x3f]
        %v3193 = vld [vmem:[#allocation6 + $0x18] sm:$0x3f]
        %v3198 = vrot.slane %v3190, 4
        %v3199 = vrot.slane %v3191, 4
        %v3200 = vrot.slane %v3192, 4
        %v3201 = vrot.slane %v3193, 4
        %3202 = vrot.lane.b32.xlu0 %v3198, 105
        %v3203 = vpop.permute.xlu0 %3202
        %3204 = vrot.lane.b32.xlu0 %v3199, 105
        %v3205 = vpop.permute.xlu0 %3204
        %3206 = vrot.lane.b32.xlu0 %v3200, 105
        %v3207 = vpop.permute.xlu0 %3206
        %3208 = vrot.lane.b32.xlu0 %v3201, 105
        %v3209 = vpop.permute.xlu0 %3208
        %v3210 = vsel %vm2501, %v3203, %v3205
        %v3211 = vsel %vm2501, %v3205, %v3207
        %v3212 = vsel %vm2501, %v3207, %v3209
        %3217 = vst [vmem:[#allocation11 + $0x20] sm:$0xf0] %v3210
        %3218 = vst [vmem:[#allocation11 + $0x28] sm:$0xf0] %v3211
        %3219 = vst [vmem:[#allocation11 + $0x30] sm:$0xf0] %v3212
        %vm3220 = vcmask 457732
        %3221 = vst.msk [vmem:[#allocation11 + $0x38] sm:$0xf0] %vm3220, %v3209
        %3222 = vst [vmem:[#allocation11 + $0x40] sm:$0x3] %v3210
        %3223 = vst [vmem:[#allocation11 + $0x48] sm:$0x3] %v3211
        %3224 = vst [vmem:[#allocation11 + $0x50] sm:$0x3] %v3212
        %3225 = vst.msk [vmem:[#allocation11 + $0x58] sm:$0x3] %vm2549, %v3209
        %v3226 = vld [vmem:[#allocation6] sm:$0x3f]
        %v3227 = vld [vmem:[#allocation6 + $0x8] sm:$0x3f]
        %v3228 = vld [vmem:[#allocation6 + $0x10] sm:$0x3f]
        %v3229 = vld [vmem:[#allocation6 + $0x18] sm:$0x3f]
        %v3234 = vrot.slane %v3226, 6
        %v3235 = vrot.slane %v3227, 6
        %v3236 = vrot.slane %v3228, 6
        %v3237 = vrot.slane %v3229, 6
        %3238 = vrot.lane.b32.xlu0 %v3234, 87
        %v3239 = vpop.permute.xlu0 %3238
        %3240 = vrot.lane.b32.xlu0 %v3235, 87
        %v3241 = vpop.permute.xlu0 %3240
        %3242 = vrot.lane.b32.xlu0 %v3236, 87
        %v3243 = vpop.permute.xlu0 %3242
        %3244 = vrot.lane.b32.xlu0 %v3237, 87
        %v3245 = vpop.permute.xlu0 %3244
        %v3246 = vsel %vm2574, %v3239, %v3241
        %v3247 = vsel %vm2574, %v3241, %v3243
        %v3248 = vsel %vm2574, %v3243, %v3245
        %3253 = vst [vmem:[#allocation11 + $0x40] sm:$0xfc] %v3246
        %3254 = vst [vmem:[#allocation11 + $0x48] sm:$0xfc] %v3247
        %3255 = vst [vmem:[#allocation11 + $0x50] sm:$0xfc] %v3248
        %vm3256 = vcmask 457730
        %3257 = vst.msk [vmem:[#allocation11 + $0x58] sm:$0xfc] %vm3256, %v3245
        %v3258 = vld [vmem:[#allocation6] sm:$0x3f]
        %v3259 = vld [vmem:[#allocation6 + $0x8] sm:$0x3f]
        %v3260 = vld [vmem:[#allocation6 + $0x10] sm:$0x3f]
        %v3261 = vld [vmem:[#allocation6 + $0x18] sm:$0x3f]
        %3266 = vrot.lane.b32.xlu0 %v3258, 86
        %v3267 = vpop.permute.xlu0 %3266
        %3268 = vrot.lane.b32.xlu0 %v3259, 86
        %v3269 = vpop.permute.xlu0 %3268
        %3270 = vrot.lane.b32.xlu0 %v3260, 86
        %v3271 = vpop.permute.xlu0 %3270
        %3272 = vrot.lane.b32.xlu0 %v3261, 86
        %v3273 = vpop.permute.xlu0 %3272
        %v3274 = vsel %vm2638, %v3267, %v3269
        %v3275 = vsel %vm2638, %v3269, %v3271
        %v3276 = vsel %vm2638, %v3271, %v3273
        %3281 = vst [vmem:[#allocation11 + $0x60] sm:$0x3f] %v3274
        %3282 = vst [vmem:[#allocation11 + $0x68] sm:$0x3f] %v3275
        %3283 = vst [vmem:[#allocation11 + $0x70] sm:$0x3f] %v3276
        %3284 = vst.msk [vmem:[#allocation11 + $0x78] sm:$0x3f] %vm3152, %v3273
        %v3285 = vld [vmem:[#allocation6] sm:$0x3f]
        %v3286 = vld [vmem:[#allocation6 + $0x8] sm:$0x3f]
        %v3287 = vld [vmem:[#allocation6 + $0x10] sm:$0x3f]
        %v3288 = vld [vmem:[#allocation6 + $0x18] sm:$0x3f]
        %v3293 = vrot.slane %v3285, 2
        %v3294 = vrot.slane %v3286, 2
        %v3295 = vrot.slane %v3287, 2
        %v3296 = vrot.slane %v3288, 2
        %3297 = vrot.lane.b32.xlu0 %v3293, 85
        %v3298 = vpop.permute.xlu0 %3297
        %3299 = vrot.lane.b32.xlu0 %v3294, 85
        %v3300 = vpop.permute.xlu0 %3299
        %3301 = vrot.lane.b32.xlu0 %v3295, 85
        %v3302 = vpop.permute.xlu0 %3301
        %3303 = vrot.lane.b32.xlu0 %v3296, 85
        %v3304 = vpop.permute.xlu0 %3303
        %v3305 = vsel %vm2704, %v3298, %v3300
        %v3306 = vsel %vm2704, %v3300, %v3302
        %v3307 = vsel %vm2704, %v3302, %v3304
        %3312 = vst [vmem:[#allocation11 + $0x60] sm:$0xc0] %v3305
        %3313 = vst [vmem:[#allocation11 + $0x68] sm:$0xc0] %v3306
        %3314 = vst [vmem:[#allocation11 + $0x70] sm:$0xc0] %v3307
        %3315 = vst.msk [vmem:[#allocation11 + $0x78] sm:$0xc0] %vm2442, %v3304
        %3316 = vst [vmem:[#allocation11 + $0x80] sm:$0xf] %v3305
        %3317 = vst [vmem:[#allocation11 + $0x88] sm:$0xf] %v3306
        %3318 = vst [vmem:[#allocation11 + $0x90] sm:$0xf] %v3307
        %3319 = vst.msk [vmem:[#allocation11 + $0x98] sm:$0xf] %vm3188, %v3304
        %v3320 = vld [vmem:[#allocation6] sm:$0x3f]
        %v3321 = vld [vmem:[#allocation6 + $0x8] sm:$0x3f]
        %v3322 = vld [vmem:[#allocation6 + $0x10] sm:$0x3f]
        %v3323 = vld [vmem:[#allocation6 + $0x18] sm:$0x3f]
        %v3328 = vrot.slane %v3320, 4
        %v3329 = vrot.slane %v3321, 4
        %v3330 = vrot.slane %v3322, 4
        %v3331 = vrot.slane %v3323, 4
        %3332 = vrot.lane.b32.xlu0 %v3328, 67
        %v3333 = vpop.permute.xlu0 %3332
        %3334 = vrot.lane.b32.xlu0 %v3329, 67
        %v3335 = vpop.permute.xlu0 %3334
        %3336 = vrot.lane.b32.xlu0 %v3330, 67
        %v3337 = vpop.permute.xlu0 %3336
        %3338 = vrot.lane.b32.xlu0 %v3331, 67
        %v3339 = vpop.permute.xlu0 %3338
        %v3340 = vsel %vm2771, %v3333, %v3335
        %v3341 = vsel %vm2771, %v3335, %v3337
        %v3342 = vsel %vm2771, %v3337, %v3339
        %3347 = vst [vmem:[#allocation11 + $0x80] sm:$0xf0] %v3340
        %3348 = vst [vmem:[#allocation11 + $0x88] sm:$0xf0] %v3341
        %3349 = vst [vmem:[#allocation11 + $0x90] sm:$0xf0] %v3342
        %3350 = vst.msk [vmem:[#allocation11 + $0x98] sm:$0xf0] %vm3220, %v3339
        %3351 = vst [vmem:[#allocation11 + $0xa0] sm:$0x3] %v3340
        %3352 = vst [vmem:[#allocation11 + $0xa8] sm:$0x3] %v3341
        %3353 = vst [vmem:[#allocation11 + $0xb0] sm:$0x3] %v3342
        %3354 = vst.msk [vmem:[#allocation11 + $0xb8] sm:$0x3] %vm2549, %v3339
        %v3355 = vld [vmem:[#allocation6] sm:$0x3f]
        %v3356 = vld [vmem:[#allocation6 + $0x8] sm:$0x3f]
        %v3357 = vld [vmem:[#allocation6 + $0x10] sm:$0x3f]
        %v3358 = vld [vmem:[#allocation6 + $0x18] sm:$0x3f]
        %v3363 = vrot.slane %v3355, 6
        %v3364 = vrot.slane %v3356, 6
        %v3365 = vrot.slane %v3357, 6
        %v3366 = vrot.slane %v3358, 6
        %3367 = vrot.lane.b32.xlu0 %v3363, 66
        %v3368 = vpop.permute.xlu0 %3367
        %3369 = vrot.lane.b32.xlu0 %v3364, 66
        %v3370 = vpop.permute.xlu0 %3369
        %3371 = vrot.lane.b32.xlu0 %v3365, 66
        %v3372 = vpop.permute.xlu0 %3371
        %3373 = vrot.lane.b32.xlu0 %v3366, 66
        %v3374 = vpop.permute.xlu0 %3373
        %v3375 = vsel %vm2841, %v3368, %v3370
        %v3376 = vsel %vm2841, %v3370, %v3372
        %v3377 = vsel %vm2841, %v3372, %v3374
        %3382 = vst [vmem:[#allocation11 + $0xa0] sm:$0xfc] %v3375
        %3383 = vst [vmem:[#allocation11 + $0xa8] sm:$0xfc] %v3376
        %3384 = vst [vmem:[#allocation11 + $0xb0] sm:$0xfc] %v3377
        %3385 = vst.msk [vmem:[#allocation11 + $0xb8] sm:$0xfc] %vm3256, %v3374
        %v3386 = vld [vmem:[#allocation6] sm:$0x3f]
        %v3387 = vld [vmem:[#allocation6 + $0x8] sm:$0x3f]
        %v3388 = vld [vmem:[#allocation6 + $0x10] sm:$0x3f]
        %v3389 = vld [vmem:[#allocation6 + $0x18] sm:$0x3f]
        %3394 = vrot.lane.b32.xlu0 %v3386, 65
        %v3395 = vpop.permute.xlu0 %3394
        %3396 = vrot.lane.b32.xlu0 %v3387, 65
        %v3397 = vpop.permute.xlu0 %3396
        %3398 = vrot.lane.b32.xlu0 %v3388, 65
        %v3399 = vpop.permute.xlu0 %3398
        %3400 = vrot.lane.b32.xlu0 %v3389, 65
        %v3401 = vpop.permute.xlu0 %3400
        %v3402 = vsel %vm2903, %v3395, %v3397
        %v3403 = vsel %vm2903, %v3397, %v3399
        %v3404 = vsel %vm2903, %v3399, %v3401
        %3409 = vst [vmem:[#allocation11 + $0xc0] sm:$0x3f] %v3402
        %3410 = vst [vmem:[#allocation11 + $0xc8] sm:$0x3f] %v3403
        %3411 = vst [vmem:[#allocation11 + $0xd0] sm:$0x3f] %v3404
        %3412 = vst.msk [vmem:[#allocation11 + $0xd8] sm:$0x3f] %vm3152, %v3401
        %v3413 = vld [vmem:[%s3] sm:$0xff]
        %v3414 = vld [vmem:[%s3 + $0x8] sm:$0xf]
        %v3415 = vld [vmem:[#allocation11] sm:$0xff]
        %v3416 = vld [vmem:[#allocation11 + $0x8] sm:$0xff]
        %v3417 = vld [vmem:[#allocation11 + $0x10] sm:$0xff]
        %v3418 = vld [vmem:[#allocation11 + $0x18] sm:$0xff]
        %v3419 = vld [vmem:[#allocation11 + $0x20] sm:$0xff]
        %v3420 = vld [vmem:[#allocation11 + $0x28] sm:$0xff]
        %v3421 = vld [vmem:[#allocation11 + $0x30] sm:$0xff]
        %v3422 = vld [vmem:[#allocation11 + $0x38] sm:$0xff]
        %v3423 = vld [vmem:[#allocation11 + $0x40] sm:$0xff]
        %v3424 = vld [vmem:[#allocation11 + $0x48] sm:$0xff]
        %v3425 = vld [vmem:[#allocation11 + $0x50] sm:$0xff]
        %v3426 = vld [vmem:[#allocation11 + $0x58] sm:$0xff]
        %v3427 = vld [vmem:[#allocation11 + $0x60] sm:$0xff]
        %v3428 = vld [vmem:[#allocation11 + $0x68] sm:$0xff]
        %v3429 = vld [vmem:[#allocation11 + $0x70] sm:$0xff]
        %v3430 = vld [vmem:[#allocation11 + $0x78] sm:$0xff]
        %v3431 = vld [vmem:[#allocation11 + $0x80] sm:$0xff]
        %v3432 = vld [vmem:[#allocation11 + $0x88] sm:$0xff]
        %v3433 = vld [vmem:[#allocation11 + $0x90] sm:$0xff]
        %v3434 = vld [vmem:[#allocation11 + $0x98] sm:$0xff]
        %v3435 = vld [vmem:[#allocation11 + $0xa0] sm:$0xff]
        %v3436 = vld [vmem:[#allocation11 + $0xa8] sm:$0xff]
        %v3437 = vld [vmem:[#allocation11 + $0xb0] sm:$0xff]
        %v3438 = vld [vmem:[#allocation11 + $0xb8] sm:$0xff]
        %v3439 = vld [vmem:[#allocation11 + $0xc0] sm:$0x3f]
        %v3440 = vld [vmem:[#allocation11 + $0xc8] sm:$0x3f]
        %v3441 = vld [vmem:[#allocation11 + $0xd0] sm:$0x3f]
        %v3442 = vld [vmem:[#allocation11 + $0xd8] sm:$0x3f]
        %v3443 = vld [vmem:[%s4] sm:$0xff]
        %v3444 = vld [vmem:[%s4 + $0x8] sm:$0xf]
        %3446 = vset.pattern.permute.xlu0 0
        %3447 = vperm.xlu0 %3446, %v3443
        %v3448 = vpop.permute.xlu0 %3447
        %3451 = vset.pattern.permute.xlu0 0
        %3452 = vperm.xlu0 %3451, %v3444
        %v3453 = vpop.permute.xlu0 %3452
        %v3456 = vsel %vm2981, %v3413, 0
        %v3459 = vsel %vm2981, %v3414, 0
        %v3462 = vsel %vm2985, %v3439, 0
        %v3465 = vsel %vm2985, %v3440, 0
        %v3468 = vsel %vm2985, %v3441, 0
        %v3471 = vsel %vm2985, %v3442, 0
        %3473 = vmatpush.msra.mxu0 0.0
        %3474 = vmatpush.msra.mxu0 0.0
        %3475 = vmatpush.msra.mxu0 0.0
        %3476 = vmatpush.msra.mxu0 0.0
        %3477 = vmatpush.msra.mxu0 0.0
        %3478 = vmatpush.msra.mxu0 0.0
        %3479 = vmatpush.msra.mxu0 0.0
        %3480 = vmatpush.msra.mxu0 0.0
        %3481 = vmatpush.msra.mxu0 0.0
        %3482 = vmatpush.msra.mxu0 %v3462
        %3483 = vmatpush.msra.mxu0 %v3435
        %3484 = vmatpush.msra.mxu0 %v3431
        %3485 = vmatpush.msra.mxu0 %v3427
        %3486 = vmatpush.msra.mxu0 %v3423
        %3487 = vmatpush.msra.mxu0 %v3419
        %3488 = vmatpush.msra.mxu0 %v3415
        %3489 = vmatmul.f32.gmra.mxu0 %v3456
        %v3490 = vpop.f32.mrf.mxu0
        %v3491 = vadd.f32 %v3448, %v3490
        %3492 = vmatmul.f32.gmra.mxu0 %v3459
        %v3493 = vpop.f32.mrf.mxu0
        %v3494 = vadd.f32 %v3453, %v3493
        %3495 = vdwg.mxu0
        %3496 = vmatpush.msra.mxu0 0.0
        %3497 = vmatpush.msra.mxu0 0.0
        %3498 = vmatpush.msra.mxu0 0.0
        %3499 = vmatpush.msra.mxu0 0.0
        %3500 = vmatpush.msra.mxu0 0.0
        %3501 = vmatpush.msra.mxu0 0.0
        %3502 = vmatpush.msra.mxu0 0.0
        %3503 = vmatpush.msra.mxu0 0.0
        %3504 = vmatpush.msra.mxu0 0.0
        %3505 = vmatpush.msra.mxu0 %v3465
        %3506 = vmatpush.msra.mxu0 %v3436
        %3507 = vmatpush.msra.mxu0 %v3432
        %3508 = vmatpush.msra.mxu0 %v3428
        %3509 = vmatpush.msra.mxu0 %v3424
        %3510 = vmatpush.msra.mxu0 %v3420
        %3511 = vmatpush.msra.mxu0 %v3416
        %3512 = vmatmul.f32.gmra.mxu0 %v3456
        %v3513 = vpop.f32.mrf.mxu0
        %v3514 = vadd.f32 %v3448, %v3513
        %3515 = vmatmul.f32.gmra.mxu0 %v3459
        %v3516 = vpop.f32.mrf.mxu0
        %v3517 = vadd.f32 %v3453, %v3516
        %3518 = vdwg.mxu0
        %3519 = vmatpush.msra.mxu0 0.0
        %3520 = vmatpush.msra.mxu0 0.0
        %3521 = vmatpush.msra.mxu0 0.0
        %3522 = vmatpush.msra.mxu0 0.0
        %3523 = vmatpush.msra.mxu0 0.0
        %3524 = vmatpush.msra.mxu0 0.0
        %3525 = vmatpush.msra.mxu0 0.0
        %3526 = vmatpush.msra.mxu0 0.0
        %3527 = vmatpush.msra.mxu0 0.0
        %3528 = vmatpush.msra.mxu0 %v3468
        %3529 = vmatpush.msra.mxu0 %v3437
        %3530 = vmatpush.msra.mxu0 %v3433
        %3531 = vmatpush.msra.mxu0 %v3429
        %3532 = vmatpush.msra.mxu0 %v3425
        %3533 = vmatpush.msra.mxu0 %v3421
        %3534 = vmatpush.msra.mxu0 %v3417
        %3535 = vmatmul.f32.gmra.mxu0 %v3456
        %v3536 = vpop.f32.mrf.mxu0
        %v3537 = vadd.f32 %v3448, %v3536
        %3538 = vmatmul.f32.gmra.mxu0 %v3459
        %v3539 = vpop.f32.mrf.mxu0
        %v3540 = vadd.f32 %v3453, %v3539
        %3541 = vdwg.mxu0
        %3542 = vmatpush.msra.mxu0 0.0
        %3543 = vmatpush.msra.mxu0 0.0
        %3544 = vmatpush.msra.mxu0 0.0
        %3545 = vmatpush.msra.mxu0 0.0
        %3546 = vmatpush.msra.mxu0 0.0
        %3547 = vmatpush.msra.mxu0 0.0
        %3548 = vmatpush.msra.mxu0 0.0
        %3549 = vmatpush.msra.mxu0 0.0
        %3550 = vmatpush.msra.mxu0 0.0
        %3551 = vmatpush.msra.mxu0 %v3471
        %3552 = vmatpush.msra.mxu0 %v3438
        %3553 = vmatpush.msra.mxu0 %v3434
        %3554 = vmatpush.msra.mxu0 %v3430
        %3555 = vmatpush.msra.mxu0 %v3426
        %3556 = vmatpush.msra.mxu0 %v3422
        %3557 = vmatpush.msra.mxu0 %v3418
        %3558 = vmatmul.f32.gmra.mxu0 %v3456
        %v3559 = vpop.f32.mrf.mxu0
        %v3560 = vadd.f32 %v3448, %v3559
        %3561 = vmatmul.f32.gmra.mxu0 %v3459
        %v3562 = vpop.f32.mrf.mxu0
        %v3563 = vadd.f32 %v3453, %v3562
        %3564 = vdwg.mxu0
        %v3565 = vmax.f32 %v3491, 0.0
        %v3566 = vmax.f32 %v3514, 0.0
        %v3567 = vmax.f32 %v3537, 0.0
        %v3568 = vmax.f32 %v3560, 0.0
        %v3569 = vmax.f32 %v3494, 0.0
        %v3570 = vmax.f32 %v3517, 0.0
        %v3571 = vmax.f32 %v3540, 0.0
        %v3572 = vmax.f32 %v3563, 0.0
        %v3573 = vmul.f32 %v3565, %v3090
        %v3574 = vmul.f32 %v3566, %v3091
        %v3575 = vmul.f32 %v3567, %v3092
        %v3576 = vmul.f32 %v3568, %v3089
        %v3577 = vmul.f32 %v3569, %v3090
        %v3578 = vmul.f32 %v3570, %v3091
        %v3579 = vmul.f32 %v3571, %v3092
        %v3580 = vmul.f32 %v3572, %v3089
        %3589 = vrot.lane.b32.xlu0 %v3573, 42
        %v3590 = vpop.permute.xlu0 %3589
        %3591 = vrot.lane.b32.xlu0 %v3574, 42
        %v3592 = vpop.permute.xlu0 %3591
        %3593 = vrot.lane.b32.xlu0 %v3575, 42
        %v3594 = vpop.permute.xlu0 %3593
        %3595 = vrot.lane.b32.xlu0 %v3576, 42
        %v3596 = vpop.permute.xlu0 %3595
        %3597 = vrot.lane.b32.xlu0 %v3577, 42
        %v3598 = vpop.permute.xlu0 %3597
        %3599 = vrot.lane.b32.xlu0 %v3578, 42
        %v3600 = vpop.permute.xlu0 %3599
        %3601 = vrot.lane.b32.xlu0 %v3579, 42
        %v3602 = vpop.permute.xlu0 %3601
        %3603 = vrot.lane.b32.xlu0 %v3580, 42
        %v3604 = vpop.permute.xlu0 %3603
        %v3605 = vsel %vm477, %v3590, %v3592
        %v3606 = vsel %vm477, %v3592, %v3594
        %v3607 = vsel %vm477, %v3594, %v3596
        %v3608 = vsel %vm477, %v3598, %v3600
        %v3609 = vsel %vm477, %v3600, %v3602
        %v3610 = vsel %vm477, %v3602, %v3604
        %vm3619 = vcmask 1047888
        %3620 = vst.msk [vmem:[#allocation7] sm:$0xff] %vm3619, %v3590
        %3621 = vst [vmem:[#allocation7 + $0x8] sm:$0xff] %v3605
        %3622 = vst [vmem:[#allocation7 + $0x10] sm:$0xff] %v3606
        %vm3623 = vcmask 801792
        %3624 = vst.msk [vmem:[#allocation7 + $0x18] sm:$0xff] %vm3623, %v3607
        %vm3625 = vcmask 1043792
        %3626 = vst.msk [vmem:[#allocation7 + $0x28] sm:$0xf] %vm3625, %v3598
        %3627 = vst [vmem:[#allocation7 + $0x30] sm:$0xf] %v3608
        %3628 = vst [vmem:[#allocation7 + $0x38] sm:$0xf] %v3609
        %vm3629 = vcmask 797696
        %3630 = vst.msk [vmem:[#allocation7 + $0x40] sm:$0xf] %vm3629, %v3610
        %v3631 = vld [vmem:[#allocation7] sm:$0xff]
        %v3632 = vld [vmem:[#allocation7 + $0x8] sm:$0xff]
        %v3633 = vld [vmem:[#allocation7 + $0x10] sm:$0xff]
        %v3634 = vld [vmem:[#allocation7 + $0x18] sm:$0xff]
        %v3635 = vld [vmem:[#allocation7 + $0x28] sm:$0xf]
        %v3636 = vld [vmem:[#allocation7 + $0x30] sm:$0xf]
        %v3637 = vld [vmem:[#allocation7 + $0x38] sm:$0xf]
        %v3638 = vld [vmem:[#allocation7 + $0x40] sm:$0xf]
        %3647 = vrot.lane.b32.xlu0 %v3631, 107
        %v3648 = vpop.permute.xlu0 %3647
        %3649 = vrot.lane.b32.xlu0 %v3632, 107
        %v3650 = vpop.permute.xlu0 %3649
        %3651 = vrot.lane.b32.xlu0 %v3633, 107
        %v3652 = vpop.permute.xlu0 %3651
        %3653 = vrot.lane.b32.xlu0 %v3634, 107
        %v3654 = vpop.permute.xlu0 %3653
        %3655 = vrot.lane.b32.xlu0 %v3635, 107
        %v3656 = vpop.permute.xlu0 %3655
        %3657 = vrot.lane.b32.xlu0 %v3636, 107
        %v3658 = vpop.permute.xlu0 %3657
        %3659 = vrot.lane.b32.xlu0 %v3637, 107
        %v3660 = vpop.permute.xlu0 %3659
        %3661 = vrot.lane.b32.xlu0 %v3638, 107
        %v3662 = vpop.permute.xlu0 %3661
        %v3663 = vsel %vm2363, %v3648, %v3650
        %v3664 = vsel %vm2363, %v3650, %v3652
        %v3665 = vsel %vm2363, %v3652, %v3654
        %v3666 = vsel %vm2363, %v3656, %v3658
        %v3667 = vsel %vm2363, %v3658, %v3660
        %v3668 = vsel %vm2363, %v3660, %v3662
        %3677 = vst [vmem:[#allocation11] sm:$0xff] %v3663
        %3678 = vst [vmem:[#allocation11 + $0x8] sm:$0xff] %v3664
        %3679 = vst [vmem:[#allocation11 + $0x10] sm:$0xff] %v3665
        %vm3680 = vcmask 457728
        %3681 = vst.msk [vmem:[#allocation11 + $0x18] sm:$0xff] %vm3680, %v3654
        %3682 = vst [vmem:[#allocation11 + $0x20] sm:$0xf] %v3666
        %3683 = vst [vmem:[#allocation11 + $0x28] sm:$0xf] %v3667
        %3684 = vst [vmem:[#allocation11 + $0x30] sm:$0xf] %v3668
        %3685 = vst.msk [vmem:[#allocation11 + $0x38] sm:$0xf] %vm3188, %v3662
        %v3686 = vld [vmem:[#allocation7] sm:$0xff]
        %v3687 = vld [vmem:[#allocation7 + $0x8] sm:$0xff]
        %v3688 = vld [vmem:[#allocation7 + $0x10] sm:$0xff]
        %v3689 = vld [vmem:[#allocation7 + $0x18] sm:$0xff]
        %v3690 = vld [vmem:[#allocation7 + $0x28] sm:$0xf]
        %v3691 = vld [vmem:[#allocation7 + $0x30] sm:$0xf]
        %v3692 = vld [vmem:[#allocation7 + $0x38] sm:$0xf]
        %v3693 = vld [vmem:[#allocation7 + $0x40] sm:$0xf]
        %v3702 = vrot.slane %v3686, 4
        %v3703 = vrot.slane %v3687, 4
        %v3704 = vrot.slane %v3688, 4
        %v3705 = vrot.slane %v3689, 4
        %v3706 = vrot.slane %v3690, 4
        %v3707 = vsel %vm2019, %v3702, %v3706
        %v3708 = vrot.slane %v3691, 4
        %v3709 = vsel %vm2019, %v3703, %v3708
        %v3710 = vrot.slane %v3692, 4
        %v3711 = vsel %vm2019, %v3704, %v3710
        %v3712 = vrot.slane %v3693, 4
        %v3713 = vsel %vm2019, %v3705, %v3712
        %3714 = vrot.lane.b32.xlu0 %v3702, 106
        %v3715 = vpop.permute.xlu0 %3714
        %3716 = vrot.lane.b32.xlu0 %v3703, 106
        %v3717 = vpop.permute.xlu0 %3716
        %3718 = vrot.lane.b32.xlu0 %v3704, 106
        %v3719 = vpop.permute.xlu0 %3718
        %3720 = vrot.lane.b32.xlu0 %v3705, 106
        %v3721 = vpop.permute.xlu0 %3720
        %3722 = vrot.lane.b32.xlu0 %v3707, 106
        %v3723 = vpop.permute.xlu0 %3722
        %3724 = vrot.lane.b32.xlu0 %v3709, 106
        %v3725 = vpop.permute.xlu0 %3724
        %3726 = vrot.lane.b32.xlu0 %v3711, 106
        %v3727 = vpop.permute.xlu0 %3726
        %3728 = vrot.lane.b32.xlu0 %v3713, 106
        %v3729 = vpop.permute.xlu0 %3728
        %v3730 = vsel %vm2431, %v3715, %v3717
        %v3731 = vsel %vm2431, %v3717, %v3719
        %v3732 = vsel %vm2431, %v3719, %v3721
        %v3733 = vsel %vm2431, %v3723, %v3725
        %v3734 = vsel %vm2431, %v3725, %v3727
        %v3735 = vsel %vm2431, %v3727, %v3729
        %3744 = vst [vmem:[#allocation11 + $0x20] sm:$0xf0] %v3730
        %3745 = vst [vmem:[#allocation11 + $0x28] sm:$0xf0] %v3731
        %3746 = vst [vmem:[#allocation11 + $0x30] sm:$0xf0] %v3732
        %3747 = vst.msk [vmem:[#allocation11 + $0x38] sm:$0xf0] %vm3220, %v3721
        %3748 = vst [vmem:[#allocation11 + $0x40] sm:$0xff] %v3733
        %3749 = vst [vmem:[#allocation11 + $0x48] sm:$0xff] %v3734
        %3750 = vst [vmem:[#allocation11 + $0x50] sm:$0xff] %v3735
        %3751 = vst.msk [vmem:[#allocation11 + $0x58] sm:$0xff] %vm3680, %v3729
        %v3752 = vld [vmem:[#allocation7] sm:$0xff]
        %v3753 = vld [vmem:[#allocation7 + $0x8] sm:$0xff]
        %v3754 = vld [vmem:[#allocation7 + $0x10] sm:$0xff]
        %v3755 = vld [vmem:[#allocation7 + $0x18] sm:$0xff]
        %v3756 = vld [vmem:[#allocation7 + $0x28] sm:$0xf]
        %v3757 = vld [vmem:[#allocation7 + $0x30] sm:$0xf]
        %v3758 = vld [vmem:[#allocation7 + $0x38] sm:$0xf]
        %v3759 = vld [vmem:[#allocation7 + $0x40] sm:$0xf]
        %3768 = vrot.lane.b32.xlu0 %v3752, 105
        %v3769 = vpop.permute.xlu0 %3768
        %3770 = vrot.lane.b32.xlu0 %v3753, 105
        %v3771 = vpop.permute.xlu0 %3770
        %3772 = vrot.lane.b32.xlu0 %v3754, 105
        %v3773 = vpop.permute.xlu0 %3772
        %3774 = vrot.lane.b32.xlu0 %v3755, 105
        %v3775 = vpop.permute.xlu0 %3774
        %3776 = vrot.lane.b32.xlu0 %v3756, 105
        %v3777 = vpop.permute.xlu0 %3776
        %3778 = vrot.lane.b32.xlu0 %v3757, 105
        %v3779 = vpop.permute.xlu0 %3778
        %3780 = vrot.lane.b32.xlu0 %v3758, 105
        %v3781 = vpop.permute.xlu0 %3780
        %3782 = vrot.lane.b32.xlu0 %v3759, 105
        %v3783 = vpop.permute.xlu0 %3782
        %v3784 = vsel %vm2501, %v3769, %v3771
        %v3785 = vsel %vm2501, %v3771, %v3773
        %v3786 = vsel %vm2501, %v3773, %v3775
        %v3787 = vsel %vm2501, %v3777, %v3779
        %v3788 = vsel %vm2501, %v3779, %v3781
        %v3789 = vsel %vm2501, %v3781, %v3783
        %3798 = vst [vmem:[#allocation11 + $0x60] sm:$0xff] %v3784
        %3799 = vst [vmem:[#allocation11 + $0x68] sm:$0xff] %v3785
        %3800 = vst [vmem:[#allocation11 + $0x70] sm:$0xff] %v3786
        %3801 = vst.msk [vmem:[#allocation11 + $0x78] sm:$0xff] %vm3680, %v3775
        %3802 = vst [vmem:[#allocation11 + $0x80] sm:$0xf] %v3787
        %3803 = vst [vmem:[#allocation11 + $0x88] sm:$0xf] %v3788
        %3804 = vst [vmem:[#allocation11 + $0x90] sm:$0xf] %v3789
        %3805 = vst.msk [vmem:[#allocation11 + $0x98] sm:$0xf] %vm3188, %v3783
        %v3806 = vld [vmem:[#allocation7] sm:$0xff]
        %v3807 = vld [vmem:[#allocation7 + $0x8] sm:$0xff]
        %v3808 = vld [vmem:[#allocation7 + $0x10] sm:$0xff]
        %v3809 = vld [vmem:[#allocation7 + $0x18] sm:$0xff]
        %v3810 = vld [vmem:[#allocation7 + $0x28] sm:$0xf]
        %v3811 = vld [vmem:[#allocation7 + $0x30] sm:$0xf]
        %v3812 = vld [vmem:[#allocation7 + $0x38] sm:$0xf]
        %v3813 = vld [vmem:[#allocation7 + $0x40] sm:$0xf]
        %v3822 = vrot.slane %v3806, 4
        %v3823 = vrot.slane %v3807, 4
        %v3824 = vrot.slane %v3808, 4
        %v3825 = vrot.slane %v3809, 4
        %v3826 = vrot.slane %v3810, 4
        %v3827 = vsel %vm2019, %v3822, %v3826
        %v3828 = vrot.slane %v3811, 4
        %v3829 = vsel %vm2019, %v3823, %v3828
        %v3830 = vrot.slane %v3812, 4
        %v3831 = vsel %vm2019, %v3824, %v3830
        %v3832 = vrot.slane %v3813, 4
        %v3833 = vsel %vm2019, %v3825, %v3832
        %3834 = vrot.lane.b32.xlu0 %v3822, 87
        %v3835 = vpop.permute.xlu0 %3834
        %3836 = vrot.lane.b32.xlu0 %v3823, 87
        %v3837 = vpop.permute.xlu0 %3836
        %3838 = vrot.lane.b32.xlu0 %v3824, 87
        %v3839 = vpop.permute.xlu0 %3838
        %3840 = vrot.lane.b32.xlu0 %v3825, 87
        %v3841 = vpop.permute.xlu0 %3840
        %3842 = vrot.lane.b32.xlu0 %v3827, 87
        %v3843 = vpop.permute.xlu0 %3842
        %3844 = vrot.lane.b32.xlu0 %v3829, 87
        %v3845 = vpop.permute.xlu0 %3844
        %3846 = vrot.lane.b32.xlu0 %v3831, 87
        %v3847 = vpop.permute.xlu0 %3846
        %3848 = vrot.lane.b32.xlu0 %v3833, 87
        %v3849 = vpop.permute.xlu0 %3848
        %v3850 = vsel %vm2574, %v3835, %v3837
        %v3851 = vsel %vm2574, %v3837, %v3839
        %v3852 = vsel %vm2574, %v3839, %v3841
        %v3853 = vsel %vm2574, %v3843, %v3845
        %v3854 = vsel %vm2574, %v3845, %v3847
        %v3855 = vsel %vm2574, %v3847, %v3849
        %3864 = vst [vmem:[#allocation11 + $0x80] sm:$0xf0] %v3850
        %3865 = vst [vmem:[#allocation11 + $0x88] sm:$0xf0] %v3851
        %3866 = vst [vmem:[#allocation11 + $0x90] sm:$0xf0] %v3852
        %3867 = vst.msk [vmem:[#allocation11 + $0x98] sm:$0xf0] %vm3220, %v3841
        %3868 = vst [vmem:[#allocation11 + $0xa0] sm:$0xff] %v3853
        %3869 = vst [vmem:[#allocation11 + $0xa8] sm:$0xff] %v3854
        %3870 = vst [vmem:[#allocation11 + $0xb0] sm:$0xff] %v3855
        %3871 = vst.msk [vmem:[#allocation11 + $0xb8] sm:$0xff] %vm3680, %v3849
        %v3872 = vld [vmem:[#allocation7] sm:$0xff]
        %v3873 = vld [vmem:[#allocation7 + $0x8] sm:$0xff]
        %v3874 = vld [vmem:[#allocation7 + $0x10] sm:$0xff]
        %v3875 = vld [vmem:[#allocation7 + $0x18] sm:$0xff]
        %v3876 = vld [vmem:[#allocation7 + $0x28] sm:$0xf]
        %v3877 = vld [vmem:[#allocation7 + $0x30] sm:$0xf]
        %v3878 = vld [vmem:[#allocation7 + $0x38] sm:$0xf]
        %v3879 = vld [vmem:[#allocation7 + $0x40] sm:$0xf]
        %3888 = vrot.lane.b32.xlu0 %v3872, 86
        %v3889 = vpop.permute.xlu0 %3888
        %3890 = vrot.lane.b32.xlu0 %v3873, 86
        %v3891 = vpop.permute.xlu0 %3890
        %3892 = vrot.lane.b32.xlu0 %v3874, 86
        %v3893 = vpop.permute.xlu0 %3892
        %3894 = vrot.lane.b32.xlu0 %v3875, 86
        %v3895 = vpop.permute.xlu0 %3894
        %3896 = vrot.lane.b32.xlu0 %v3876, 86
        %v3897 = vpop.permute.xlu0 %3896
        %3898 = vrot.lane.b32.xlu0 %v3877, 86
        %v3899 = vpop.permute.xlu0 %3898
        %3900 = vrot.lane.b32.xlu0 %v3878, 86
        %v3901 = vpop.permute.xlu0 %3900
        %3902 = vrot.lane.b32.xlu0 %v3879, 86
        %v3903 = vpop.permute.xlu0 %3902
        %v3904 = vsel %vm2638, %v3889, %v3891
        %v3905 = vsel %vm2638, %v3891, %v3893
        %v3906 = vsel %vm2638, %v3893, %v3895
        %v3907 = vsel %vm2638, %v3897, %v3899
        %v3908 = vsel %vm2638, %v3899, %v3901
        %v3909 = vsel %vm2638, %v3901, %v3903
        %3918 = vst [vmem:[#allocation11 + $0xc0] sm:$0xff] %v3904
        %3919 = vst [vmem:[#allocation11 + $0xc8] sm:$0xff] %v3905
        %3920 = vst [vmem:[#allocation11 + $0xd0] sm:$0xff] %v3906
        %3921 = vst.msk [vmem:[#allocation11 + $0xd8] sm:$0xff] %vm3680, %v3895
        %3922 = vst [vmem:[#allocation11 + $0xe0] sm:$0xf] %v3907
        %3923 = vst [vmem:[#allocation11 + $0xe8] sm:$0xf] %v3908
        %3924 = vst [vmem:[#allocation11 + $0xf0] sm:$0xf] %v3909
        %3925 = vst.msk [vmem:[#allocation11 + $0xf8] sm:$0xf] %vm3188, %v3903
        %v3926 = vld [vmem:[#allocation7] sm:$0xff]
        %v3927 = vld [vmem:[#allocation7 + $0x8] sm:$0xff]
        %v3928 = vld [vmem:[#allocation7 + $0x10] sm:$0xff]
        %v3929 = vld [vmem:[#allocation7 + $0x18] sm:$0xff]
        %v3930 = vld [vmem:[#allocation7 + $0x28] sm:$0xf]
        %v3931 = vld [vmem:[#allocation7 + $0x30] sm:$0xf]
        %v3932 = vld [vmem:[#allocation7 + $0x38] sm:$0xf]
        %v3933 = vld [vmem:[#allocation7 + $0x40] sm:$0xf]
        %v3942 = vrot.slane %v3926, 4
        %v3943 = vrot.slane %v3927, 4
        %v3944 = vrot.slane %v3928, 4
        %v3945 = vrot.slane %v3929, 4
        %v3946 = vrot.slane %v3930, 4
        %v3947 = vsel %vm2019, %v3942, %v3946
        %v3948 = vrot.slane %v3931, 4
        %v3949 = vsel %vm2019, %v3943, %v3948
        %v3950 = vrot.slane %v3932, 4
        %v3951 = vsel %vm2019, %v3944, %v3950
        %v3952 = vrot.slane %v3933, 4
        %v3953 = vsel %vm2019, %v3945, %v3952
        %3954 = vrot.lane.b32.xlu0 %v3942, 85
        %v3955 = vpop.permute.xlu0 %3954
        %3956 = vrot.lane.b32.xlu0 %v3943, 85
        %v3957 = vpop.permute.xlu0 %3956
        %3958 = vrot.lane.b32.xlu0 %v3944, 85
        %v3959 = vpop.permute.xlu0 %3958
        %3960 = vrot.lane.b32.xlu0 %v3945, 85
        %v3961 = vpop.permute.xlu0 %3960
        %3962 = vrot.lane.b32.xlu0 %v3947, 85
        %v3963 = vpop.permute.xlu0 %3962
        %3964 = vrot.lane.b32.xlu0 %v3949, 85
        %v3965 = vpop.permute.xlu0 %3964
        %3966 = vrot.lane.b32.xlu0 %v3951, 85
        %v3967 = vpop.permute.xlu0 %3966
        %3968 = vrot.lane.b32.xlu0 %v3953, 85
        %v3969 = vpop.permute.xlu0 %3968
        %v3970 = vsel %vm2704, %v3955, %v3957
        %v3971 = vsel %vm2704, %v3957, %v3959
        %v3972 = vsel %vm2704, %v3959, %v3961
        %v3973 = vsel %vm2704, %v3963, %v3965
        %v3974 = vsel %vm2704, %v3965, %v3967
        %v3975 = vsel %vm2704, %v3967, %v3969
        %3984 = vst [vmem:[#allocation11 + $0xe0] sm:$0xf0] %v3970
        %3985 = vst [vmem:[#allocation11 + $0xe8] sm:$0xf0] %v3971
        %3986 = vst [vmem:[#allocation11 + $0xf0] sm:$0xf0] %v3972
        %3987 = vst.msk [vmem:[#allocation11 + $0xf8] sm:$0xf0] %vm3220, %v3961
        %3988 = vst [vmem:[#allocation11 + $0x100] sm:$0xff] %v3973
        %3989 = vst [vmem:[#allocation11 + $0x108] sm:$0xff] %v3974
        %3990 = vst [vmem:[#allocation11 + $0x110] sm:$0xff] %v3975
        %3991 = vst.msk [vmem:[#allocation11 + $0x118] sm:$0xff] %vm3680, %v3969
        %v3992 = vld [vmem:[#allocation7] sm:$0xff]
        %v3993 = vld [vmem:[#allocation7 + $0x8] sm:$0xff]
        %v3994 = vld [vmem:[#allocation7 + $0x10] sm:$0xff]
        %v3995 = vld [vmem:[#allocation7 + $0x18] sm:$0xff]
        %v3996 = vld [vmem:[#allocation7 + $0x28] sm:$0xf]
        %v3997 = vld [vmem:[#allocation7 + $0x30] sm:$0xf]
        %v3998 = vld [vmem:[#allocation7 + $0x38] sm:$0xf]
        %v3999 = vld [vmem:[#allocation7 + $0x40] sm:$0xf]
        %4008 = vrot.lane.b32.xlu0 %v3992, 67
        %v4009 = vpop.permute.xlu0 %4008
        %4010 = vrot.lane.b32.xlu0 %v3993, 67
        %v4011 = vpop.permute.xlu0 %4010
        %4012 = vrot.lane.b32.xlu0 %v3994, 67
        %v4013 = vpop.permute.xlu0 %4012
        %4014 = vrot.lane.b32.xlu0 %v3995, 67
        %v4015 = vpop.permute.xlu0 %4014
        %4016 = vrot.lane.b32.xlu0 %v3996, 67
        %v4017 = vpop.permute.xlu0 %4016
        %4018 = vrot.lane.b32.xlu0 %v3997, 67
        %v4019 = vpop.permute.xlu0 %4018
        %4020 = vrot.lane.b32.xlu0 %v3998, 67
        %v4021 = vpop.permute.xlu0 %4020
        %4022 = vrot.lane.b32.xlu0 %v3999, 67
        %v4023 = vpop.permute.xlu0 %4022
        %v4024 = vsel %vm2771, %v4009, %v4011
        %v4025 = vsel %vm2771, %v4011, %v4013
        %v4026 = vsel %vm2771, %v4013, %v4015
        %v4027 = vsel %vm2771, %v4017, %v4019
        %v4028 = vsel %vm2771, %v4019, %v4021
        %v4029 = vsel %vm2771, %v4021, %v4023
        %4038 = vst [vmem:[#allocation11 + $0x120] sm:$0xff] %v4024
        %4039 = vst [vmem:[#allocation11 + $0x128] sm:$0xff] %v4025
        %4040 = vst [vmem:[#allocation11 + $0x130] sm:$0xff] %v4026
        %4041 = vst.msk [vmem:[#allocation11 + $0x138] sm:$0xff] %vm3680, %v4015
        %4042 = vst [vmem:[#allocation11 + $0x140] sm:$0xf] %v4027
        %4043 = vst [vmem:[#allocation11 + $0x148] sm:$0xf] %v4028
        %4044 = vst [vmem:[#allocation11 + $0x150] sm:$0xf] %v4029
        %4045 = vst.msk [vmem:[#allocation11 + $0x158] sm:$0xf] %vm3188, %v4023
        %v4046 = vld [vmem:[#allocation7] sm:$0xff]
        %v4047 = vld [vmem:[#allocation7 + $0x8] sm:$0xff]
        %v4048 = vld [vmem:[#allocation7 + $0x10] sm:$0xff]
        %v4049 = vld [vmem:[#allocation7 + $0x18] sm:$0xff]
        %v4050 = vld [vmem:[#allocation7 + $0x28] sm:$0xf]
        %v4051 = vld [vmem:[#allocation7 + $0x30] sm:$0xf]
        %v4052 = vld [vmem:[#allocation7 + $0x38] sm:$0xf]
        %v4053 = vld [vmem:[#allocation7 + $0x40] sm:$0xf]
        %v4062 = vrot.slane %v4046, 4
        %v4063 = vrot.slane %v4047, 4
        %v4064 = vrot.slane %v4048, 4
        %v4065 = vrot.slane %v4049, 4
        %v4066 = vrot.slane %v4050, 4
        %v4067 = vsel %vm2019, %v4062, %v4066
        %v4068 = vrot.slane %v4051, 4
        %v4069 = vsel %vm2019, %v4063, %v4068
        %v4070 = vrot.slane %v4052, 4
        %v4071 = vsel %vm2019, %v4064, %v4070
        %v4072 = vrot.slane %v4053, 4
        %v4073 = vsel %vm2019, %v4065, %v4072
        %4074 = vrot.lane.b32.xlu0 %v4062, 66
        %v4075 = vpop.permute.xlu0 %4074
        %4076 = vrot.lane.b32.xlu0 %v4063, 66
        %v4077 = vpop.permute.xlu0 %4076
        %4078 = vrot.lane.b32.xlu0 %v4064, 66
        %v4079 = vpop.permute.xlu0 %4078
        %4080 = vrot.lane.b32.xlu0 %v4065, 66
        %v4081 = vpop.permute.xlu0 %4080
        %4082 = vrot.lane.b32.xlu0 %v4067, 66
        %v4083 = vpop.permute.xlu0 %4082
        %4084 = vrot.lane.b32.xlu0 %v4069, 66
        %v4085 = vpop.permute.xlu0 %4084
        %4086 = vrot.lane.b32.xlu0 %v4071, 66
        %v4087 = vpop.permute.xlu0 %4086
        %4088 = vrot.lane.b32.xlu0 %v4073, 66
        %v4089 = vpop.permute.xlu0 %4088
        %v4090 = vsel %vm2841, %v4075, %v4077
        %v4091 = vsel %vm2841, %v4077, %v4079
        %v4092 = vsel %vm2841, %v4079, %v4081
        %v4093 = vsel %vm2841, %v4083, %v4085
        %v4094 = vsel %vm2841, %v4085, %v4087
        %v4095 = vsel %vm2841, %v4087, %v4089
        %4104 = vst [vmem:[#allocation11 + $0x140] sm:$0xf0] %v4090
        %4105 = vst [vmem:[#allocation11 + $0x148] sm:$0xf0] %v4091
        %4106 = vst [vmem:[#allocation11 + $0x150] sm:$0xf0] %v4092
        %4107 = vst.msk [vmem:[#allocation11 + $0x158] sm:$0xf0] %vm3220, %v4081
        %4108 = vst [vmem:[#allocation11 + $0x160] sm:$0xff] %v4093
        %4109 = vst [vmem:[#allocation11 + $0x168] sm:$0xff] %v4094
        %4110 = vst [vmem:[#allocation11 + $0x170] sm:$0xff] %v4095
        %4111 = vst.msk [vmem:[#allocation11 + $0x178] sm:$0xff] %vm3680, %v4089
        %v4112 = vld [vmem:[#allocation7] sm:$0xff]
        %v4113 = vld [vmem:[#allocation7 + $0x8] sm:$0xff]
        %v4114 = vld [vmem:[#allocation7 + $0x10] sm:$0xff]
        %v4115 = vld [vmem:[#allocation7 + $0x18] sm:$0xff]
        %v4116 = vld [vmem:[#allocation7 + $0x28] sm:$0xf]
        %v4117 = vld [vmem:[#allocation7 + $0x30] sm:$0xf]
        %v4118 = vld [vmem:[#allocation7 + $0x38] sm:$0xf]
        %v4119 = vld [vmem:[#allocation7 + $0x40] sm:$0xf]
        %4128 = vrot.lane.b32.xlu0 %v4112, 65
        %v4129 = vpop.permute.xlu0 %4128
        %4130 = vrot.lane.b32.xlu0 %v4113, 65
        %v4131 = vpop.permute.xlu0 %4130
        %4132 = vrot.lane.b32.xlu0 %v4114, 65
        %v4133 = vpop.permute.xlu0 %4132
        %4134 = vrot.lane.b32.xlu0 %v4115, 65
        %v4135 = vpop.permute.xlu0 %4134
        %4136 = vrot.lane.b32.xlu0 %v4116, 65
        %v4137 = vpop.permute.xlu0 %4136
        %4138 = vrot.lane.b32.xlu0 %v4117, 65
        %v4139 = vpop.permute.xlu0 %4138
        %4140 = vrot.lane.b32.xlu0 %v4118, 65
        %v4141 = vpop.permute.xlu0 %4140
        %4142 = vrot.lane.b32.xlu0 %v4119, 65
        %v4143 = vpop.permute.xlu0 %4142
        %v4144 = vsel %vm2903, %v4129, %v4131
        %v4145 = vsel %vm2903, %v4131, %v4133
        %v4146 = vsel %vm2903, %v4133, %v4135
        %v4147 = vsel %vm2903, %v4137, %v4139
        %v4148 = vsel %vm2903, %v4139, %v4141
        %v4149 = vsel %vm2903, %v4141, %v4143
        %4158 = vst [vmem:[#allocation11 + $0x180] sm:$0xff] %v4144
        %4159 = vst [vmem:[#allocation11 + $0x188] sm:$0xff] %v4145
        %4160 = vst [vmem:[#allocation11 + $0x190] sm:$0xff] %v4146
        %4161 = vst.msk [vmem:[#allocation11 + $0x198] sm:$0xff] %vm3680, %v4135
        %4162 = vst [vmem:[#allocation11 + $0x1a0] sm:$0xf] %v4147
        %4163 = vst [vmem:[#allocation11 + $0x1a8] sm:$0xf] %v4148
        %4164 = vst [vmem:[#allocation11 + $0x1b0] sm:$0xf] %v4149
        %4165 = vst.msk [vmem:[#allocation11 + $0x1b8] sm:$0xf] %vm3188, %v4143
        %v4166 = vld [vmem:[%s5] sm:$0x7]
        %v4167 = vld [vmem:[#allocation11] sm:$0xff]
        %v4168 = vld [vmem:[#allocation11 + $0x8] sm:$0xff]
        %v4169 = vld [vmem:[#allocation11 + $0x10] sm:$0xff]
        %v4170 = vld [vmem:[#allocation11 + $0x18] sm:$0xff]
        %v4171 = vld [vmem:[#allocation11 + $0x20] sm:$0xff]
        %v4172 = vld [vmem:[#allocation11 + $0x28] sm:$0xff]
        %v4173 = vld [vmem:[#allocation11 + $0x30] sm:$0xff]
        %v4174 = vld [vmem:[#allocation11 + $0x38] sm:$0xff]
        %v4175 = vld [vmem:[#allocation11 + $0x40] sm:$0xff]
        %v4176 = vld [vmem:[#allocation11 + $0x48] sm:$0xff]
        %v4177 = vld [vmem:[#allocation11 + $0x50] sm:$0xff]
        %v4178 = vld [vmem:[#allocation11 + $0x58] sm:$0xff]
        %v4179 = vld [vmem:[#allocation11 + $0x60] sm:$0xff]
        %v4180 = vld [vmem:[#allocation11 + $0x68] sm:$0xff]
        %v4181 = vld [vmem:[#allocation11 + $0x70] sm:$0xff]
        %v4182 = vld [vmem:[#allocation11 + $0x78] sm:$0xff]
        %v4183 = vld [vmem:[#allocation11 + $0x80] sm:$0xff]
        %v4184 = vld [vmem:[#allocation11 + $0x88] sm:$0xff]
        %v4185 = vld [vmem:[#allocation11 + $0x90] sm:$0xff]
        %v4186 = vld [vmem:[#allocation11 + $0x98] sm:$0xff]
        %v4187 = vld [vmem:[#allocation11 + $0xa0] sm:$0xff]
        %v4188 = vld [vmem:[#allocation11 + $0xa8] sm:$0xff]
        %v4189 = vld [vmem:[#allocation11 + $0xb0] sm:$0xff]
        %v4190 = vld [vmem:[#allocation11 + $0xb8] sm:$0xff]
        %v4191 = vld [vmem:[#allocation11 + $0xc0] sm:$0xff]
        %v4192 = vld [vmem:[#allocation11 + $0xc8] sm:$0xff]
        %v4193 = vld [vmem:[#allocation11 + $0xd0] sm:$0xff]
        %v4194 = vld [vmem:[#allocation11 + $0xd8] sm:$0xff]
        %v4195 = vld [vmem:[#allocation11 + $0xe0] sm:$0xff]
        %v4196 = vld [vmem:[#allocation11 + $0xe8] sm:$0xff]
        %v4197 = vld [vmem:[#allocation11 + $0xf0] sm:$0xff]
        %v4198 = vld [vmem:[#allocation11 + $0xf8] sm:$0xff]
        %v4199 = vld [vmem:[#allocation11 + $0x100] sm:$0xff]
        %v4200 = vld [vmem:[#allocation11 + $0x108] sm:$0xff]
        %v4201 = vld [vmem:[#allocation11 + $0x110] sm:$0xff]
        %v4202 = vld [vmem:[#allocation11 + $0x118] sm:$0xff]
        %v4203 = vld [vmem:[#allocation11 + $0x120] sm:$0xff]
        %v4204 = vld [vmem:[#allocation11 + $0x128] sm:$0xff]
        %v4205 = vld [vmem:[#allocation11 + $0x130] sm:$0xff]
        %v4206 = vld [vmem:[#allocation11 + $0x138] sm:$0xff]
        %v4207 = vld [vmem:[#allocation11 + $0x140] sm:$0xff]
        %v4208 = vld [vmem:[#allocation11 + $0x148] sm:$0xff]
        %v4209 = vld [vmem:[#allocation11 + $0x150] sm:$0xff]
        %v4210 = vld [vmem:[#allocation11 + $0x158] sm:$0xff]
        %v4211 = vld [vmem:[#allocation11 + $0x160] sm:$0xff]
        %v4212 = vld [vmem:[#allocation11 + $0x168] sm:$0xff]
        %v4213 = vld [vmem:[#allocation11 + $0x170] sm:$0xff]
        %v4214 = vld [vmem:[#allocation11 + $0x178] sm:$0xff]
        %v4215 = vld [vmem:[#allocation11 + $0x180] sm:$0xff]
        %v4216 = vld [vmem:[#allocation11 + $0x188] sm:$0xff]
        %v4217 = vld [vmem:[#allocation11 + $0x190] sm:$0xff]
        %v4218 = vld [vmem:[#allocation11 + $0x198] sm:$0xff]
        %v4219 = vld [vmem:[#allocation11 + $0x1a0] sm:$0xf]
        %v4220 = vld [vmem:[#allocation11 + $0x1a8] sm:$0xf]
        %v4221 = vld [vmem:[#allocation11 + $0x1b0] sm:$0xf]
        %v4222 = vld [vmem:[#allocation11 + $0x1b8] sm:$0xf]
        %v4223 = vld [vmem:[%s6] sm:$0x7]
        %4225 = vset.pattern.permute.xlu0 0
        %4226 = vperm.xlu0 %4225, %v4223
        %v4227 = vpop.permute.xlu0 %4226
        %v4230 = vsel %vm2079, %v4166, 0
        %v4233 = vsel %vm2019, %v4219, 0
        %v4236 = vsel %vm2019, %v4220, 0
        %v4239 = vsel %vm2019, %v4221, 0
        %v4242 = vsel %vm2019, %v4222, 0
        %4244 = vmatpush.msra.mxu0 0.0
        %4245 = vmatpush.msra.mxu0 0.0
        %4246 = vmatpush.msra.mxu0 %v4233
        %4247 = vmatpush.msra.mxu0 %v4215
        %4248 = vmatpush.msra.mxu0 %v4211
        %4249 = vmatpush.msra.mxu0 %v4207
        %4250 = vmatpush.msra.mxu0 %v4203
        %4251 = vmatpush.msra.mxu0 %v4199
        %4252 = vmatpush.msra.mxu0 %v4195
        %4253 = vmatpush.msra.mxu0 %v4191
        %4254 = vmatpush.msra.mxu0 %v4187
        %4255 = vmatpush.msra.mxu0 %v4183
        %4256 = vmatpush.msra.mxu0 %v4179
        %4257 = vmatpush.msra.mxu0 %v4175
        %4258 = vmatpush.msra.mxu0 %v4171
        %4259 = vmatpush.msra.mxu0 %v4167
        %4260 = vmatmul.f32.gmra.mxu0 %v4230
        %v4261 = vpop.f32.mrf.mxu0
        %v4262 = vadd.f32 %v4227, %v4261
        %4263 = vdwg.mxu0
        %4264 = vmatpush.msra.mxu0 0.0
        %4265 = vmatpush.msra.mxu0 0.0
        %4266 = vmatpush.msra.mxu0 %v4236
        %4267 = vmatpush.msra.mxu0 %v4216
        %4268 = vmatpush.msra.mxu0 %v4212
        %4269 = vmatpush.msra.mxu0 %v4208
        %4270 = vmatpush.msra.mxu0 %v4204
        %4271 = vmatpush.msra.mxu0 %v4200
        %4272 = vmatpush.msra.mxu0 %v4196
        %4273 = vmatpush.msra.mxu0 %v4192
        %4274 = vmatpush.msra.mxu0 %v4188
        %4275 = vmatpush.msra.mxu0 %v4184
        %4276 = vmatpush.msra.mxu0 %v4180
        %4277 = vmatpush.msra.mxu0 %v4176
        %4278 = vmatpush.msra.mxu0 %v4172
        %4279 = vmatpush.msra.mxu0 %v4168
        %4280 = vmatmul.f32.gmra.mxu0 %v4230
        %v4281 = vpop.f32.mrf.mxu0
        %v4282 = vadd.f32 %v4227, %v4281
        %4283 = vdwg.mxu0
        %4284 = vmatpush.msra.mxu0 0.0
        %4285 = vmatpush.msra.mxu0 0.0
        %4286 = vmatpush.msra.mxu0 %v4239
        %4287 = vmatpush.msra.mxu0 %v4217
        %4288 = vmatpush.msra.mxu0 %v4213
        %4289 = vmatpush.msra.mxu0 %v4209
        %4290 = vmatpush.msra.mxu0 %v4205
        %4291 = vmatpush.msra.mxu0 %v4201
        %4292 = vmatpush.msra.mxu0 %v4197
        %4293 = vmatpush.msra.mxu0 %v4193
        %4294 = vmatpush.msra.mxu0 %v4189
        %4295 = vmatpush.msra.mxu0 %v4185
        %4296 = vmatpush.msra.mxu0 %v4181
        %4297 = vmatpush.msra.mxu0 %v4177
        %4298 = vmatpush.msra.mxu0 %v4173
        %4299 = vmatpush.msra.mxu0 %v4169
        %4300 = vmatmul.f32.gmra.mxu0 %v4230
        %v4301 = vpop.f32.mrf.mxu0
        %v4302 = vadd.f32 %v4227, %v4301
        %4303 = vdwg.mxu0
        %4304 = vmatpush.msra.mxu0 0.0
        %4305 = vmatpush.msra.mxu0 0.0
        %4306 = vmatpush.msra.mxu0 %v4242
        %4307 = vmatpush.msra.mxu0 %v4218
        %4308 = vmatpush.msra.mxu0 %v4214
        %4309 = vmatpush.msra.mxu0 %v4210
        %4310 = vmatpush.msra.mxu0 %v4206
        %4311 = vmatpush.msra.mxu0 %v4202
        %4312 = vmatpush.msra.mxu0 %v4198
        %4313 = vmatpush.msra.mxu0 %v4194
        %4314 = vmatpush.msra.mxu0 %v4190
        %4315 = vmatpush.msra.mxu0 %v4186
        %4316 = vmatpush.msra.mxu0 %v4182
        %4317 = vmatpush.msra.mxu0 %v4178
        %4318 = vmatpush.msra.mxu0 %v4174
        %4319 = vmatpush.msra.mxu0 %v4170
        %4320 = vmatmul.f32.gmra.mxu0 %v4230
        %v4321 = vpop.f32.mrf.mxu0
        %v4322 = vadd.f32 %v4227, %v4321
        %4323 = vdwg.mxu0
        %v4324 = vmul.f32 %v4262, %v3090
        %v4325 = vmul.f32 %v4282, %v3091
        %v4326 = vmul.f32 %v4302, %v3092
        %v4327 = vmul.f32 %v4322, %v3089
        %v4332 = vrot.slane %v4325, 4
        %v4333 = vrot.slane %v4327, 4
        %v4334 = vsel %vm2019, %v4324, %v4332
        %v4335 = vsel %vm2019, %v4326, %v4333
        %4336 = vrot.lane.b32.xlu0 %v4334, 42
        %v4337 = vpop.permute.xlu0 %4336
        %4338 = vrot.lane.b32.xlu0 %v4335, 42
        %v4339 = vpop.permute.xlu0 %4338
        %v4340 = vrot.slane %v4337, 4
        %v4341 = vrot.slane %v4339, 4
        %v4342 = vsel %vm477, %v4340, %v4337
        %v4343 = vsel %vm2019, %v4340, %v4341
        %v4344 = vsel %vm477, %v4343, %v4339
        %4347 = vst.msk [vmem:[#allocation8] sm:$0x77] %vm2035, %v4342
        %4348 = vst.msk [vmem:[#allocation8 + $0x8] sm:$0x77] %vm2039, %v4344
        %v4349 = vld [vmem:[#allocation2] sm:$0x7f]
        %v4350 = vld [vmem:[#allocation2 + $0x8] sm:$0x7f]
        %v4351 = vld [vmem:[#allocation2 + $0x10] sm:$0x7f]
        %v4352 = vld [vmem:[#allocation2 + $0x18] sm:$0x7f]
        %vm4353 = vcmask 1046864
        %4354 = vst.msk [vmem:[#allocation9] sm:$0x7f] %vm4353, %v4349
        %4355 = vst [vmem:[#allocation9 + $0x8] sm:$0x7f] %v4350
        %4356 = vst [vmem:[#allocation9 + $0x10] sm:$0x7f] %v4351
        %vm4357 = vcmask 800768
        %4358 = vst.msk [vmem:[#allocation9 + $0x18] sm:$0x7f] %vm4357, %v4352
        %v4359 = vld [vmem:[#allocation8] sm:$0x77]
        %v4360 = vld [vmem:[#allocation8 + $0x8] sm:$0x77]
        %4363 = vst [vmem:[#allocation1] ss:$2 sm:$0xff] %v4359
        %s4364 = scalar_lea.vmem [#allocation1], 16
        %4365 = vst [vmem:[%s4364] ss:$2 sm:$0xff] %v4360
        %v4366 = vld.sshfl [vmem:[#allocation1] sm:$0xff pattern:$0x75316420]
        %v4367 = vld.sshfl [vmem:[#allocation1 + $0x8] sm:$0xff pattern:$0x75316420]
        %v4368 = vld.sshfl [vmem:[#allocation1 + $0x10] sm:$0xff pattern:$0x75316420]
        %v4369 = vld.sshfl [vmem:[#allocation1 + $0x18] sm:$0xff pattern:$0x75316420]
        %4370 = vrot.lane.b32.xlu0 %v4366, 107
        %v4371 = vpop.permute.xlu0 %4370
        %4372 = vrot.lane.b32.xlu0 %v4367, 107
        %v4373 = vpop.permute.xlu0 %4372
        %4374 = vrot.lane.b32.xlu0 %v4368, 107
        %v4375 = vpop.permute.xlu0 %4374
        %4376 = vrot.lane.b32.xlu0 %v4369, 107
        %v4377 = vpop.permute.xlu0 %4376
        %v4378 = vsel %vm2363, %v4371, %v4373
        %v4379 = vsel %vm2363, %v4373, %v4375
        %v4380 = vsel %vm2363, %v4375, %v4377
        %4385 = vst [vmem:[#allocation11] sm:$0x7] %v4378
        %4386 = vst [vmem:[#allocation11 + $0x8] sm:$0x7] %v4379
        %4387 = vst [vmem:[#allocation11 + $0x10] sm:$0x7] %v4380
        %4388 = vst.msk [vmem:[#allocation11 + $0x18] sm:$0x7] %vm2374, %v4377
        %v4389 = vld [vmem:[#allocation2] sm:$0xf8]
        %v4390 = vld [vmem:[#allocation2 + $0x8] sm:$0xf8]
        %v4391 = vld [vmem:[#allocation2 + $0x10] sm:$0xf8]
        %v4392 = vld [vmem:[#allocation2 + $0x18] sm:$0xf8]
        %4397 = vrot.lane.b32.xlu0 %v4389, 107
        %v4398 = vpop.permute.xlu0 %4397
        %4399 = vrot.lane.b32.xlu0 %v4390, 107
        %v4400 = vpop.permute.xlu0 %4399
        %4401 = vrot.lane.b32.xlu0 %v4391, 107
        %v4402 = vpop.permute.xlu0 %4401
        %4403 = vrot.lane.b32.xlu0 %v4392, 107
        %v4404 = vpop.permute.xlu0 %4403
        %v4405 = vsel %vm2363, %v4398, %v4400
        %v4406 = vsel %vm2363, %v4400, %v4402
        %v4407 = vsel %vm2363, %v4402, %v4404
        %4412 = vst [vmem:[#allocation11] sm:$0xf8] %v4405
        %4413 = vst [vmem:[#allocation11 + $0x8] sm:$0xf8] %v4406
        %4414 = vst [vmem:[#allocation11 + $0x10] sm:$0xf8] %v4407
        %vm4415 = vcmask 457731
        %4416 = vst.msk [vmem:[#allocation11 + $0x18] sm:$0xf8] %vm4415, %v4404
        %v4417 = vld [vmem:[#allocation8] sm:$0x77]
        %v4418 = vld [vmem:[#allocation8 + $0x8] sm:$0x77]
        %4421 = vst [vmem:[#allocation1] ss:$2 sm:$0xff] %v4417
        %s4422 = scalar_lea.vmem [#allocation1], 16
        %4423 = vst [vmem:[%s4422] ss:$2 sm:$0xff] %v4418
        %v4424 = vld.sshfl [vmem:[#allocation1] sm:$0xff pattern:$0x75316420]
        %v4425 = vld.sshfl [vmem:[#allocation1 + $0x8] sm:$0xff pattern:$0x75316420]
        %v4426 = vld.sshfl [vmem:[#allocation1 + $0x10] sm:$0xff pattern:$0x75316420]
        %v4427 = vld.sshfl [vmem:[#allocation1 + $0x18] sm:$0xff pattern:$0x75316420]
        %4428 = vrot.lane.b32.xlu0 %v4424, 106
        %v4429 = vpop.permute.xlu0 %4428
        %4430 = vrot.lane.b32.xlu0 %v4425, 106
        %v4431 = vpop.permute.xlu0 %4430
        %4432 = vrot.lane.b32.xlu0 %v4426, 106
        %v4433 = vpop.permute.xlu0 %4432
        %4434 = vrot.lane.b32.xlu0 %v4427, 106
        %v4435 = vpop.permute.xlu0 %4434
        %v4436 = vsel %vm2431, %v4429, %v4431
        %v4437 = vsel %vm2431, %v4431, %v4433
        %v4438 = vsel %vm2431, %v4433, %v4435
        %4443 = vst [vmem:[#allocation11 + $0x20] sm:$0x7] %v4436
        %4444 = vst [vmem:[#allocation11 + $0x28] sm:$0x7] %v4437
        %4445 = vst [vmem:[#allocation11 + $0x30] sm:$0x7] %v4438
        %4446 = vst.msk [vmem:[#allocation11 + $0x38] sm:$0x7] %vm2374, %v4435
        %v4447 = vld [vmem:[#allocation2] sm:$0xf8]
        %v4448 = vld [vmem:[#allocation2 + $0x8] sm:$0xf8]
        %v4449 = vld [vmem:[#allocation2 + $0x10] sm:$0xf8]
        %v4450 = vld [vmem:[#allocation2 + $0x18] sm:$0xf8]
        %4455 = vrot.lane.b32.xlu0 %v4447, 106
        %v4456 = vpop.permute.xlu0 %4455
        %4457 = vrot.lane.b32.xlu0 %v4448, 106
        %v4458 = vpop.permute.xlu0 %4457
        %4459 = vrot.lane.b32.xlu0 %v4449, 106
        %v4460 = vpop.permute.xlu0 %4459
        %4461 = vrot.lane.b32.xlu0 %v4450, 106
        %v4462 = vpop.permute.xlu0 %4461
        %v4463 = vsel %vm2431, %v4456, %v4458
        %v4464 = vsel %vm2431, %v4458, %v4460
        %v4465 = vsel %vm2431, %v4460, %v4462
        %4470 = vst [vmem:[#allocation11 + $0x20] sm:$0xf8] %v4463
        %4471 = vst [vmem:[#allocation11 + $0x28] sm:$0xf8] %v4464
        %4472 = vst [vmem:[#allocation11 + $0x30] sm:$0xf8] %v4465
        %4473 = vst.msk [vmem:[#allocation11 + $0x38] sm:$0xf8] %vm4415, %v4462
        %v4474 = vld [vmem:[#allocation8] sm:$0x77]
        %v4475 = vld [vmem:[#allocation8 + $0x8] sm:$0x77]
        %4478 = vst [vmem:[#allocation1] ss:$2 sm:$0xff] %v4474
        %s4479 = scalar_lea.vmem [#allocation1], 16
        %4480 = vst [vmem:[%s4479] ss:$2 sm:$0xff] %v4475
        %v4481 = vld.sshfl [vmem:[#allocation1] sm:$0xff pattern:$0x75316420]
        %v4482 = vld.sshfl [vmem:[#allocation1 + $0x8] sm:$0xff pattern:$0x75316420]
        %v4483 = vld.sshfl [vmem:[#allocation1 + $0x10] sm:$0xff pattern:$0x75316420]
        %v4484 = vld.sshfl [vmem:[#allocation1 + $0x18] sm:$0xff pattern:$0x75316420]
        %4485 = vrot.lane.b32.xlu0 %v4481, 105
        %v4486 = vpop.permute.xlu0 %4485
        %4487 = vrot.lane.b32.xlu0 %v4482, 105
        %v4488 = vpop.permute.xlu0 %4487
        %4489 = vrot.lane.b32.xlu0 %v4483, 105
        %v4490 = vpop.permute.xlu0 %4489
        %4491 = vrot.lane.b32.xlu0 %v4484, 105
        %v4492 = vpop.permute.xlu0 %4491
        %v4493 = vsel %vm2501, %v4486, %v4488
        %v4494 = vsel %vm2501, %v4488, %v4490
        %v4495 = vsel %vm2501, %v4490, %v4492
        %4500 = vst [vmem:[#allocation11 + $0x40] sm:$0x7] %v4493
        %4501 = vst [vmem:[#allocation11 + $0x48] sm:$0x7] %v4494
        %4502 = vst [vmem:[#allocation11 + $0x50] sm:$0x7] %v4495
        %4503 = vst.msk [vmem:[#allocation11 + $0x58] sm:$0x7] %vm2374, %v4492
        %v4504 = vld [vmem:[#allocation2] sm:$0xf8]
        %v4505 = vld [vmem:[#allocation2 + $0x8] sm:$0xf8]
        %v4506 = vld [vmem:[#allocation2 + $0x10] sm:$0xf8]
        %v4507 = vld [vmem:[#allocation2 + $0x18] sm:$0xf8]
        %4512 = vrot.lane.b32.xlu0 %v4504, 105
        %v4513 = vpop.permute.xlu0 %4512
        %4514 = vrot.lane.b32.xlu0 %v4505, 105
        %v4515 = vpop.permute.xlu0 %4514
        %4516 = vrot.lane.b32.xlu0 %v4506, 105
        %v4517 = vpop.permute.xlu0 %4516
        %4518 = vrot.lane.b32.xlu0 %v4507, 105
        %v4519 = vpop.permute.xlu0 %4518
        %v4520 = vsel %vm2501, %v4513, %v4515
        %v4521 = vsel %vm2501, %v4515, %v4517
        %v4522 = vsel %vm2501, %v4517, %v4519
        %4527 = vst [vmem:[#allocation11 + $0x40] sm:$0xf8] %v4520
        %4528 = vst [vmem:[#allocation11 + $0x48] sm:$0xf8] %v4521
        %4529 = vst [vmem:[#allocation11 + $0x50] sm:$0xf8] %v4522
        %4530 = vst.msk [vmem:[#allocation11 + $0x58] sm:$0xf8] %vm4415, %v4519
        %v4531 = vld [vmem:[#allocation8] sm:$0x77]
        %v4532 = vld [vmem:[#allocation8 + $0x8] sm:$0x77]
        %4535 = vst [vmem:[#allocation1] ss:$2 sm:$0xff] %v4531
        %s4536 = scalar_lea.vmem [#allocation1], 16
        %4537 = vst [vmem:[%s4536] ss:$2 sm:$0xff] %v4532
        %v4538 = vld.sshfl [vmem:[#allocation1] sm:$0xff pattern:$0x75316420]
        %v4539 = vld.sshfl [vmem:[#allocation1 + $0x8] sm:$0xff pattern:$0x75316420]
        %v4540 = vld.sshfl [vmem:[#allocation1 + $0x10] sm:$0xff pattern:$0x75316420]
        %v4541 = vld.sshfl [vmem:[#allocation1 + $0x18] sm:$0xff pattern:$0x75316420]
        %4542 = vrot.lane.b32.xlu0 %v4538, 87
        %v4543 = vpop.permute.xlu0 %4542
        %4544 = vrot.lane.b32.xlu0 %v4539, 87
        %v4545 = vpop.permute.xlu0 %4544
        %4546 = vrot.lane.b32.xlu0 %v4540, 87
        %v4547 = vpop.permute.xlu0 %4546
        %4548 = vrot.lane.b32.xlu0 %v4541, 87
        %v4549 = vpop.permute.xlu0 %4548
        %v4550 = vsel %vm2574, %v4543, %v4545
        %v4551 = vsel %vm2574, %v4545, %v4547
        %v4552 = vsel %vm2574, %v4547, %v4549
        %4557 = vst [vmem:[#allocation11 + $0x60] sm:$0x7] %v4550
        %4558 = vst [vmem:[#allocation11 + $0x68] sm:$0x7] %v4551
        %4559 = vst [vmem:[#allocation11 + $0x70] sm:$0x7] %v4552
        %4560 = vst.msk [vmem:[#allocation11 + $0x78] sm:$0x7] %vm2374, %v4549
        %v4561 = vld [vmem:[#allocation2] sm:$0xf8]
        %v4562 = vld [vmem:[#allocation2 + $0x8] sm:$0xf8]
        %v4563 = vld [vmem:[#allocation2 + $0x10] sm:$0xf8]
        %v4564 = vld [vmem:[#allocation2 + $0x18] sm:$0xf8]
        %4569 = vrot.lane.b32.xlu0 %v4561, 87
        %v4570 = vpop.permute.xlu0 %4569
        %4571 = vrot.lane.b32.xlu0 %v4562, 87
        %v4572 = vpop.permute.xlu0 %4571
        %4573 = vrot.lane.b32.xlu0 %v4563, 87
        %v4574 = vpop.permute.xlu0 %4573
        %4575 = vrot.lane.b32.xlu0 %v4564, 87
        %v4576 = vpop.permute.xlu0 %4575
        %v4577 = vsel %vm2574, %v4570, %v4572
        %v4578 = vsel %vm2574, %v4572, %v4574
        %v4579 = vsel %vm2574, %v4574, %v4576
        %4584 = vst [vmem:[#allocation11 + $0x60] sm:$0xf8] %v4577
        %4585 = vst [vmem:[#allocation11 + $0x68] sm:$0xf8] %v4578
        %4586 = vst [vmem:[#allocation11 + $0x70] sm:$0xf8] %v4579
        %4587 = vst.msk [vmem:[#allocation11 + $0x78] sm:$0xf8] %vm4415, %v4576
        %v4588 = vld [vmem:[#allocation8] sm:$0x77]
        %v4589 = vld [vmem:[#allocation8 + $0x8] sm:$0x77]
        %4592 = vst [vmem:[#allocation1] ss:$2 sm:$0xff] %v4588
        %s4593 = scalar_lea.vmem [#allocation1], 16
        %4594 = vst [vmem:[%s4593] ss:$2 sm:$0xff] %v4589
        %v4595 = vld.sshfl [vmem:[#allocation1] sm:$0xff pattern:$0x75316420]
        %v4596 = vld.sshfl [vmem:[#allocation1 + $0x8] sm:$0xff pattern:$0x75316420]
        %v4597 = vld.sshfl [vmem:[#allocation1 + $0x10] sm:$0xff pattern:$0x75316420]
        %v4598 = vld.sshfl [vmem:[#allocation1 + $0x18] sm:$0xff pattern:$0x75316420]
        %4599 = vrot.lane.b32.xlu0 %v4595, 86
        %v4600 = vpop.permute.xlu0 %4599
        %4601 = vrot.lane.b32.xlu0 %v4596, 86
        %v4602 = vpop.permute.xlu0 %4601
        %4603 = vrot.lane.b32.xlu0 %v4597, 86
        %v4604 = vpop.permute.xlu0 %4603
        %4605 = vrot.lane.b32.xlu0 %v4598, 86
        %v4606 = vpop.permute.xlu0 %4605
        %v4607 = vsel %vm2638, %v4600, %v4602
        %v4608 = vsel %vm2638, %v4602, %v4604
        %v4609 = vsel %vm2638, %v4604, %v4606
        %4614 = vst [vmem:[#allocation11 + $0x80] sm:$0x7] %v4607
        %4615 = vst [vmem:[#allocation11 + $0x88] sm:$0x7] %v4608
        %4616 = vst [vmem:[#allocation11 + $0x90] sm:$0x7] %v4609
        %4617 = vst.msk [vmem:[#allocation11 + $0x98] sm:$0x7] %vm2374, %v4606
        %v4618 = vld [vmem:[#allocation2] sm:$0xf8]
        %v4619 = vld [vmem:[#allocation2 + $0x8] sm:$0xf8]
        %v4620 = vld [vmem:[#allocation2 + $0x10] sm:$0xf8]
        %v4621 = vld [vmem:[#allocation2 + $0x18] sm:$0xf8]
        %4626 = vrot.lane.b32.xlu0 %v4618, 86
        %v4627 = vpop.permute.xlu0 %4626
        %4628 = vrot.lane.b32.xlu0 %v4619, 86
        %v4629 = vpop.permute.xlu0 %4628
        %4630 = vrot.lane.b32.xlu0 %v4620, 86
        %v4631 = vpop.permute.xlu0 %4630
        %4632 = vrot.lane.b32.xlu0 %v4621, 86
        %v4633 = vpop.permute.xlu0 %4632
        %v4634 = vsel %vm2638, %v4627, %v4629
        %v4635 = vsel %vm2638, %v4629, %v4631
        %v4636 = vsel %vm2638, %v4631, %v4633
        %4641 = vst [vmem:[#allocation11 + $0x80] sm:$0xf8] %v4634
        %4642 = vst [vmem:[#allocation11 + $0x88] sm:$0xf8] %v4635
        %4643 = vst [vmem:[#allocation11 + $0x90] sm:$0xf8] %v4636
        %4644 = vst.msk [vmem:[#allocation11 + $0x98] sm:$0xf8] %vm4415, %v4633
        %v4645 = vld [vmem:[#allocation8] sm:$0x77]
        %v4646 = vld [vmem:[#allocation8 + $0x8] sm:$0x77]
        %4649 = vst [vmem:[#allocation1] ss:$2 sm:$0xff] %v4645
        %s4650 = scalar_lea.vmem [#allocation1], 16
        %4651 = vst [vmem:[%s4650] ss:$2 sm:$0xff] %v4646
        %v4652 = vld.sshfl [vmem:[#allocation1] sm:$0xff pattern:$0x75316420]
        %v4653 = vld.sshfl [vmem:[#allocation1 + $0x8] sm:$0xff pattern:$0x75316420]
        %v4654 = vld.sshfl [vmem:[#allocation1 + $0x10] sm:$0xff pattern:$0x75316420]
        %v4655 = vld.sshfl [vmem:[#allocation1 + $0x18] sm:$0xff pattern:$0x75316420]
        %4656 = vrot.lane.b32.xlu0 %v4652, 85
        %v4657 = vpop.permute.xlu0 %4656
        %4658 = vrot.lane.b32.xlu0 %v4653, 85
        %v4659 = vpop.permute.xlu0 %4658
        %4660 = vrot.lane.b32.xlu0 %v4654, 85
        %v4661 = vpop.permute.xlu0 %4660
        %4662 = vrot.lane.b32.xlu0 %v4655, 85
        %v4663 = vpop.permute.xlu0 %4662
        %v4664 = vsel %vm2704, %v4657, %v4659
        %v4665 = vsel %vm2704, %v4659, %v4661
        %v4666 = vsel %vm2704, %v4661, %v4663
        %4671 = vst [vmem:[#allocation11 + $0xa0] sm:$0x7] %v4664
        %4672 = vst [vmem:[#allocation11 + $0xa8] sm:$0x7] %v4665
        %4673 = vst [vmem:[#allocation11 + $0xb0] sm:$0x7] %v4666
        %4674 = vst.msk [vmem:[#allocation11 + $0xb8] sm:$0x7] %vm2374, %v4663
        %v4675 = vld [vmem:[#allocation2] sm:$0xf8]
        %v4676 = vld [vmem:[#allocation2 + $0x8] sm:$0xf8]
        %v4677 = vld [vmem:[#allocation2 + $0x10] sm:$0xf8]
        %v4678 = vld [vmem:[#allocation2 + $0x18] sm:$0xf8]
        %4683 = vrot.lane.b32.xlu0 %v4675, 85
        %v4684 = vpop.permute.xlu0 %4683
        %4685 = vrot.lane.b32.xlu0 %v4676, 85
        %v4686 = vpop.permute.xlu0 %4685
        %4687 = vrot.lane.b32.xlu0 %v4677, 85
        %v4688 = vpop.permute.xlu0 %4687
        %4689 = vrot.lane.b32.xlu0 %v4678, 85
        %v4690 = vpop.permute.xlu0 %4689
        %v4691 = vsel %vm2704, %v4684, %v4686
        %v4692 = vsel %vm2704, %v4686, %v4688
        %v4693 = vsel %vm2704, %v4688, %v4690
        %4698 = vst [vmem:[#allocation11 + $0xa0] sm:$0xf8] %v4691
        %4699 = vst [vmem:[#allocation11 + $0xa8] sm:$0xf8] %v4692
        %4700 = vst [vmem:[#allocation11 + $0xb0] sm:$0xf8] %v4693
        %4701 = vst.msk [vmem:[#allocation11 + $0xb8] sm:$0xf8] %vm4415, %v4690
        %v4702 = vld [vmem:[#allocation8] sm:$0x77]
        %v4703 = vld [vmem:[#allocation8 + $0x8] sm:$0x77]
        %4706 = vst [vmem:[#allocation1] ss:$2 sm:$0xff] %v4702
        %s4707 = scalar_lea.vmem [#allocation1], 16
        %4708 = vst [vmem:[%s4707] ss:$2 sm:$0xff] %v4703
        %v4709 = vld.sshfl [vmem:[#allocation1] sm:$0xff pattern:$0x75316420]
        %v4710 = vld.sshfl [vmem:[#allocation1 + $0x8] sm:$0xff pattern:$0x75316420]
        %v4711 = vld.sshfl [vmem:[#allocation1 + $0x10] sm:$0xff pattern:$0x75316420]
        %v4712 = vld.sshfl [vmem:[#allocation1 + $0x18] sm:$0xff pattern:$0x75316420]
        %4713 = vrot.lane.b32.xlu0 %v4709, 67
        %v4714 = vpop.permute.xlu0 %4713
        %4715 = vrot.lane.b32.xlu0 %v4710, 67
        %v4716 = vpop.permute.xlu0 %4715
        %4717 = vrot.lane.b32.xlu0 %v4711, 67
        %v4718 = vpop.permute.xlu0 %4717
        %4719 = vrot.lane.b32.xlu0 %v4712, 67
        %v4720 = vpop.permute.xlu0 %4719
        %v4721 = vsel %vm2771, %v4714, %v4716
        %v4722 = vsel %vm2771, %v4716, %v4718
        %v4723 = vsel %vm2771, %v4718, %v4720
        %4728 = vst [vmem:[#allocation11 + $0xc0] sm:$0x7] %v4721
        %4729 = vst [vmem:[#allocation11 + $0xc8] sm:$0x7] %v4722
        %4730 = vst [vmem:[#allocation11 + $0xd0] sm:$0x7] %v4723
        %4731 = vst.msk [vmem:[#allocation11 + $0xd8] sm:$0x7] %vm2374, %v4720
        %v4732 = vld [vmem:[#allocation2] sm:$0xf8]
        %v4733 = vld [vmem:[#allocation2 + $0x8] sm:$0xf8]
        %v4734 = vld [vmem:[#allocation2 + $0x10] sm:$0xf8]
        %v4735 = vld [vmem:[#allocation2 + $0x18] sm:$0xf8]
        %4740 = vrot.lane.b32.xlu0 %v4732, 67
        %v4741 = vpop.permute.xlu0 %4740
        %4742 = vrot.lane.b32.xlu0 %v4733, 67
        %v4743 = vpop.permute.xlu0 %4742
        %4744 = vrot.lane.b32.xlu0 %v4734, 67
        %v4745 = vpop.permute.xlu0 %4744
        %4746 = vrot.lane.b32.xlu0 %v4735, 67
        %v4747 = vpop.permute.xlu0 %4746
        %v4748 = vsel %vm2771, %v4741, %v4743
        %v4749 = vsel %vm2771, %v4743, %v4745
        %v4750 = vsel %vm2771, %v4745, %v4747
        %4755 = vst [vmem:[#allocation11 + $0xc0] sm:$0xf8] %v4748
        %4756 = vst [vmem:[#allocation11 + $0xc8] sm:$0xf8] %v4749
        %4757 = vst [vmem:[#allocation11 + $0xd0] sm:$0xf8] %v4750
        %4758 = vst.msk [vmem:[#allocation11 + $0xd8] sm:$0xf8] %vm4415, %v4747
        %v4759 = vld [vmem:[#allocation8] sm:$0x77]
        %v4760 = vld [vmem:[#allocation8 + $0x8] sm:$0x77]
        %4763 = vst [vmem:[#allocation1] ss:$2 sm:$0xff] %v4759
        %s4764 = scalar_lea.vmem [#allocation1], 16
        %4765 = vst [vmem:[%s4764] ss:$2 sm:$0xff] %v4760
        %v4766 = vld.sshfl [vmem:[#allocation1] sm:$0xff pattern:$0x75316420]
        %v4767 = vld.sshfl [vmem:[#allocation1 + $0x8] sm:$0xff pattern:$0x75316420]
        %v4768 = vld.sshfl [vmem:[#allocation1 + $0x10] sm:$0xff pattern:$0x75316420]
        %v4769 = vld.sshfl [vmem:[#allocation1 + $0x18] sm:$0xff pattern:$0x75316420]
        %4770 = vrot.lane.b32.xlu0 %v4766, 66
        %v4771 = vpop.permute.xlu0 %4770
        %4772 = vrot.lane.b32.xlu0 %v4767, 66
        %v4773 = vpop.permute.xlu0 %4772
        %4774 = vrot.lane.b32.xlu0 %v4768, 66
        %v4775 = vpop.permute.xlu0 %4774
        %4776 = vrot.lane.b32.xlu0 %v4769, 66
        %v4777 = vpop.permute.xlu0 %4776
        %v4778 = vsel %vm2841, %v4771, %v4773
        %v4779 = vsel %vm2841, %v4773, %v4775
        %v4780 = vsel %vm2841, %v4775, %v4777
        %4785 = vst [vmem:[#allocation11 + $0xe0] sm:$0x7] %v4778
        %4786 = vst [vmem:[#allocation11 + $0xe8] sm:$0x7] %v4779
        %4787 = vst [vmem:[#allocation11 + $0xf0] sm:$0x7] %v4780
        %4788 = vst.msk [vmem:[#allocation11 + $0xf8] sm:$0x7] %vm2374, %v4777
        %v4789 = vld [vmem:[#allocation2] sm:$0xf8]
        %v4790 = vld [vmem:[#allocation2 + $0x8] sm:$0xf8]
        %v4791 = vld [vmem:[#allocation2 + $0x10] sm:$0xf8]
        %v4792 = vld [vmem:[#allocation2 + $0x18] sm:$0xf8]
        %4797 = vrot.lane.b32.xlu0 %v4789, 66
        %v4798 = vpop.permute.xlu0 %4797
        %4799 = vrot.lane.b32.xlu0 %v4790, 66
        %v4800 = vpop.permute.xlu0 %4799
        %4801 = vrot.lane.b32.xlu0 %v4791, 66
        %v4802 = vpop.permute.xlu0 %4801
        %4803 = vrot.lane.b32.xlu0 %v4792, 66
        %v4804 = vpop.permute.xlu0 %4803
        %v4805 = vsel %vm2841, %v4798, %v4800
        %v4806 = vsel %vm2841, %v4800, %v4802
        %v4807 = vsel %vm2841, %v4802, %v4804
        %4812 = vst [vmem:[#allocation11 + $0xe0] sm:$0xf8] %v4805
        %4813 = vst [vmem:[#allocation11 + $0xe8] sm:$0xf8] %v4806
        %4814 = vst [vmem:[#allocation11 + $0xf0] sm:$0xf8] %v4807
        %4815 = vst.msk [vmem:[#allocation11 + $0xf8] sm:$0xf8] %vm4415, %v4804
        %v4816 = vld [vmem:[#allocation8] sm:$0x77]
        %v4817 = vld [vmem:[#allocation8 + $0x8] sm:$0x77]
        %4820 = vst [vmem:[#allocation1] ss:$2 sm:$0xff] %v4816
        %s4821 = scalar_lea.vmem [#allocation1], 16
        %4822 = vst [vmem:[%s4821] ss:$2 sm:$0xff] %v4817
        %v4823 = vld.sshfl [vmem:[#allocation1] sm:$0xff pattern:$0x75316420]
        %v4824 = vld.sshfl [vmem:[#allocation1 + $0x8] sm:$0xff pattern:$0x75316420]
        %v4825 = vld.sshfl [vmem:[#allocation1 + $0x10] sm:$0xff pattern:$0x75316420]
        %v4826 = vld.sshfl [vmem:[#allocation1 + $0x18] sm:$0xff pattern:$0x75316420]
        %4827 = vrot.lane.b32.xlu0 %v4823, 65
        %v4828 = vpop.permute.xlu0 %4827
        %4829 = vrot.lane.b32.xlu0 %v4824, 65
        %v4830 = vpop.permute.xlu0 %4829
        %4831 = vrot.lane.b32.xlu0 %v4825, 65
        %v4832 = vpop.permute.xlu0 %4831
        %4833 = vrot.lane.b32.xlu0 %v4826, 65
        %v4834 = vpop.permute.xlu0 %4833
        %v4835 = vsel %vm2903, %v4828, %v4830
        %v4836 = vsel %vm2903, %v4830, %v4832
        %v4837 = vsel %vm2903, %v4832, %v4834
        %4842 = vst [vmem:[#allocation11 + $0x100] sm:$0x7] %v4835
        %4843 = vst [vmem:[#allocation11 + $0x108] sm:$0x7] %v4836
        %4844 = vst [vmem:[#allocation11 + $0x110] sm:$0x7] %v4837
        %4845 = vst.msk [vmem:[#allocation11 + $0x118] sm:$0x7] %vm2374, %v4834
        %v4846 = vld [vmem:[#allocation2] sm:$0xf8]
        %v4847 = vld [vmem:[#allocation2 + $0x8] sm:$0xf8]
        %v4848 = vld [vmem:[#allocation2 + $0x10] sm:$0xf8]
        %v4849 = vld [vmem:[#allocation2 + $0x18] sm:$0xf8]
        %4854 = vrot.lane.b32.xlu0 %v4846, 65
        %v4855 = vpop.permute.xlu0 %4854
        %4856 = vrot.lane.b32.xlu0 %v4847, 65
        %v4857 = vpop.permute.xlu0 %4856
        %4858 = vrot.lane.b32.xlu0 %v4848, 65
        %v4859 = vpop.permute.xlu0 %4858
        %4860 = vrot.lane.b32.xlu0 %v4849, 65
        %v4861 = vpop.permute.xlu0 %4860
        %v4862 = vsel %vm2903, %v4855, %v4857
        %v4863 = vsel %vm2903, %v4857, %v4859
        %v4864 = vsel %vm2903, %v4859, %v4861
        %4869 = vst [vmem:[#allocation11 + $0x100] sm:$0xf8] %v4862
        %4870 = vst [vmem:[#allocation11 + $0x108] sm:$0xf8] %v4863
        %4871 = vst [vmem:[#allocation11 + $0x110] sm:$0xf8] %v4864
        %4872 = vst.msk [vmem:[#allocation11 + $0x118] sm:$0xf8] %vm4415, %v4861
        %v4873 = vld [vmem:[%s7] sm:$0xff]
        %v4874 = vld [vmem:[#allocation11] sm:$0xff]
        %v4875 = vld [vmem:[#allocation11 + $0x8] sm:$0xff]
        %v4876 = vld [vmem:[#allocation11 + $0x10] sm:$0xff]
        %v4877 = vld [vmem:[#allocation11 + $0x18] sm:$0xff]
        %v4878 = vld [vmem:[#allocation11 + $0x20] sm:$0xff]
        %v4879 = vld [vmem:[#allocation11 + $0x28] sm:$0xff]
        %v4880 = vld [vmem:[#allocation11 + $0x30] sm:$0xff]
        %v4881 = vld [vmem:[#allocation11 + $0x38] sm:$0xff]
        %v4882 = vld [vmem:[#allocation11 + $0x40] sm:$0xff]
        %v4883 = vld [vmem:[#allocation11 + $0x48] sm:$0xff]
        %v4884 = vld [vmem:[#allocation11 + $0x50] sm:$0xff]
        %v4885 = vld [vmem:[#allocation11 + $0x58] sm:$0xff]
        %v4886 = vld [vmem:[#allocation11 + $0x60] sm:$0xff]
        %v4887 = vld [vmem:[#allocation11 + $0x68] sm:$0xff]
        %v4888 = vld [vmem:[#allocation11 + $0x70] sm:$0xff]
        %v4889 = vld [vmem:[#allocation11 + $0x78] sm:$0xff]
        %v4890 = vld [vmem:[#allocation11 + $0x80] sm:$0xff]
        %v4891 = vld [vmem:[#allocation11 + $0x88] sm:$0xff]
        %v4892 = vld [vmem:[#allocation11 + $0x90] sm:$0xff]
        %v4893 = vld [vmem:[#allocation11 + $0x98] sm:$0xff]
        %v4894 = vld [vmem:[#allocation11 + $0xa0] sm:$0xff]
        %v4895 = vld [vmem:[#allocation11 + $0xa8] sm:$0xff]
        %v4896 = vld [vmem:[#allocation11 + $0xb0] sm:$0xff]
        %v4897 = vld [vmem:[#allocation11 + $0xb8] sm:$0xff]
        %v4898 = vld [vmem:[#allocation11 + $0xc0] sm:$0xff]
        %v4899 = vld [vmem:[#allocation11 + $0xc8] sm:$0xff]
        %v4900 = vld [vmem:[#allocation11 + $0xd0] sm:$0xff]
        %v4901 = vld [vmem:[#allocation11 + $0xd8] sm:$0xff]
        %v4902 = vld [vmem:[#allocation11 + $0xe0] sm:$0xff]
        %v4903 = vld [vmem:[#allocation11 + $0xe8] sm:$0xff]
        %v4904 = vld [vmem:[#allocation11 + $0xf0] sm:$0xff]
        %v4905 = vld [vmem:[#allocation11 + $0xf8] sm:$0xff]
        %v4906 = vld [vmem:[#allocation11 + $0x100] sm:$0xff]
        %v4907 = vld [vmem:[#allocation11 + $0x108] sm:$0xff]
        %v4908 = vld [vmem:[#allocation11 + $0x110] sm:$0xff]
        %v4909 = vld [vmem:[#allocation11 + $0x118] sm:$0xff]
        %v4910 = vld [vmem:[%s8] sm:$0xff]
        %4912 = vset.pattern.permute.xlu0 0
        %4913 = vperm.xlu0 %4912, %v4910
        %v4914 = vpop.permute.xlu0 %4913
        %vm4916 = vcmask 588800
        %v4918 = vsel %vm4916, %v4873, 0
        %4920 = vmatpush.msra.mxu0 0.0
        %4921 = vmatpush.msra.mxu0 0.0
        %4922 = vmatpush.msra.mxu0 0.0
        %4923 = vmatpush.msra.mxu0 0.0
        %4924 = vmatpush.msra.mxu0 0.0
        %4925 = vmatpush.msra.mxu0 0.0
        %4926 = vmatpush.msra.mxu0 0.0
        %4927 = vmatpush.msra.mxu0 %v4906
        %4928 = vmatpush.msra.mxu0 %v4902
        %4929 = vmatpush.msra.mxu0 %v4898
        %4930 = vmatpush.msra.mxu0 %v4894
        %4931 = vmatpush.msra.mxu0 %v4890
        %4932 = vmatpush.msra.mxu0 %v4886
        %4933 = vmatpush.msra.mxu0 %v4882
        %4934 = vmatpush.msra.mxu0 %v4878
        %4935 = vmatpush.msra.mxu0 %v4874
        %4936 = vmatmul.f32.gmra.mxu0 %v4918
        %v4937 = vpop.f32.mrf.mxu0
        %v4938 = vadd.f32 %v4914, %v4937
        %4939 = vdwg.mxu0
        %4940 = vmatpush.msra.mxu0 0.0
        %4941 = vmatpush.msra.mxu0 0.0
        %4942 = vmatpush.msra.mxu0 0.0
        %4943 = vmatpush.msra.mxu0 0.0
        %4944 = vmatpush.msra.mxu0 0.0
        %4945 = vmatpush.msra.mxu0 0.0
        %4946 = vmatpush.msra.mxu0 0.0
        %4947 = vmatpush.msra.mxu0 %v4907
        %4948 = vmatpush.msra.mxu0 %v4903
        %4949 = vmatpush.msra.mxu0 %v4899
        %4950 = vmatpush.msra.mxu0 %v4895
        %4951 = vmatpush.msra.mxu0 %v4891
        %4952 = vmatpush.msra.mxu0 %v4887
        %4953 = vmatpush.msra.mxu0 %v4883
        %4954 = vmatpush.msra.mxu0 %v4879
        %4955 = vmatpush.msra.mxu0 %v4875
        %4956 = vmatmul.f32.gmra.mxu0 %v4918
        %v4957 = vpop.f32.mrf.mxu0
        %v4958 = vadd.f32 %v4914, %v4957
        %4959 = vdwg.mxu0
        %4960 = vmatpush.msra.mxu0 0.0
        %4961 = vmatpush.msra.mxu0 0.0
        %4962 = vmatpush.msra.mxu0 0.0
        %4963 = vmatpush.msra.mxu0 0.0
        %4964 = vmatpush.msra.mxu0 0.0
        %4965 = vmatpush.msra.mxu0 0.0
        %4966 = vmatpush.msra.mxu0 0.0
        %4967 = vmatpush.msra.mxu0 %v4908
        %4968 = vmatpush.msra.mxu0 %v4904
        %4969 = vmatpush.msra.mxu0 %v4900
        %4970 = vmatpush.msra.mxu0 %v4896
        %4971 = vmatpush.msra.mxu0 %v4892
        %4972 = vmatpush.msra.mxu0 %v4888
        %4973 = vmatpush.msra.mxu0 %v4884
        %4974 = vmatpush.msra.mxu0 %v4880
        %4975 = vmatpush.msra.mxu0 %v4876
        %4976 = vmatmul.f32.gmra.mxu0 %v4918
        %v4977 = vpop.f32.mrf.mxu0
        %v4978 = vadd.f32 %v4914, %v4977
        %4979 = vdwg.mxu0
        %4980 = vmatpush.msra.mxu0 0.0
        %4981 = vmatpush.msra.mxu0 0.0
        %4982 = vmatpush.msra.mxu0 0.0
        %4983 = vmatpush.msra.mxu0 0.0
        %4984 = vmatpush.msra.mxu0 0.0
        %4985 = vmatpush.msra.mxu0 0.0
        %4986 = vmatpush.msra.mxu0 0.0
        %4987 = vmatpush.msra.mxu0 %v4909
        %4988 = vmatpush.msra.mxu0 %v4905
        %4989 = vmatpush.msra.mxu0 %v4901
        %4990 = vmatpush.msra.mxu0 %v4897
        %4991 = vmatpush.msra.mxu0 %v4893
        %4992 = vmatpush.msra.mxu0 %v4889
        %4993 = vmatpush.msra.mxu0 %v4885
        %4994 = vmatpush.msra.mxu0 %v4881
        %4995 = vmatpush.msra.mxu0 %v4877
        %4996 = vmatmul.f32.gmra.mxu0 %v4918
        %v4997 = vpop.f32.mrf.mxu0
        %v4998 = vadd.f32 %v4914, %v4997
        %4999 = vdwg.mxu0
        %v5000 = vmax.f32 %v4938, 0.0
        %v5001 = vmax.f32 %v4958, 0.0
        %v5002 = vmax.f32 %v4978, 0.0
        %v5003 = vmax.f32 %v4998, 0.0
        %v5004 = vmul.f32 %v5000, %v3090
        %v5005 = vmul.f32 %v5001, %v3091
        %v5006 = vmul.f32 %v5002, %v3092
        %v5007 = vmul.f32 %v5003, %v3089
        %v5012 = vrot.slane %v5004, 1
        %v5013 = vrot.slane %v5005, 1
        %v5014 = vrot.slane %v5006, 1
        %v5015 = vrot.slane %v5007, 1
        %5016 = vrot.lane.b32.xlu0 %v5012, 42
        %v5017 = vpop.permute.xlu0 %5016
        %5018 = vrot.lane.b32.xlu0 %v5013, 42
        %v5019 = vpop.permute.xlu0 %5018
        %5020 = vrot.lane.b32.xlu0 %v5014, 42
        %v5021 = vpop.permute.xlu0 %5020
        %5022 = vrot.lane.b32.xlu0 %v5015, 42
        %v5023 = vpop.permute.xlu0 %5022
        %v5024 = vsel %vm477, %v5017, %v5019
        %v5025 = vsel %vm477, %v5019, %v5021
        %v5026 = vsel %vm477, %v5021, %v5023
        %vm5031 = vcmask 1047895
        %5032 = vst.msk [vmem:[#allocation9] sm:$0x80] %vm5031, %v5017
        %5033 = vst [vmem:[#allocation9 + $0x8] sm:$0x80] %v5024
        %5034 = vst [vmem:[#allocation9 + $0x10] sm:$0x80] %v5025
        %vm5035 = vcmask 801799
        %5036 = vst.msk [vmem:[#allocation9 + $0x18] sm:$0x80] %vm5035, %v5026
        %5037 = vst.msk [vmem:[#allocation9 + $0x28] sm:$0x7f] %vm4353, %v5017
        %5038 = vst [vmem:[#allocation9 + $0x30] sm:$0x7f] %v5024
        %5039 = vst [vmem:[#allocation9 + $0x38] sm:$0x7f] %v5025
        %5040 = vst.msk [vmem:[#allocation9 + $0x40] sm:$0x7f] %vm4357, %v5026
        %v5041 = vld [vmem:[#allocation16] sm:$0xff]
        %v5042 = vld [vmem:[#allocation9 + $0x8] sm:$0xff]
        %v5043 = vld [vmem:[#allocation9 + $0x10] sm:$0xff]
        %v5044 = vld [vmem:[#allocation9 + $0x30] sm:$0x7f]
        %v5045 = vld [vmem:[#allocation9 + $0x38] sm:$0x7f]
        %v5046 = vld [vmem:[#allocation10 + $0x1] sm:$0x3]
        %5051 = vrot.lane.b32.xlu0 %v5042, 21
        %v5052 = vpop.permute.xlu0 %5051
        %5053 = vrot.lane.b32.xlu0 %v5043, 21
        %v5054 = vpop.permute.xlu0 %5053
        %5055 = vrot.lane.b32.xlu0 %v5044, 21
        %v5056 = vpop.permute.xlu0 %5055
        %5057 = vrot.lane.b32.xlu0 %v5045, 21
        %v5058 = vpop.permute.xlu0 %5057
        %vm5059 = vcmask 171008
        %v5060 = vsel %vm5059, %v5052, %v5054
        %v5061 = vsel %vm5059, %v5056, %v5058
        %v5066 = vsub.f32 %v5042, %v5052
        %v5067 = vsub.f32 %v5043, %v5060
        %v5068 = vsub.f32 %v5044, %v5056
        %v5069 = vsub.f32 %v5045, %v5061
        %v5070 = vmul.f32 %v5066, %v5066
        %v5071 = vmul.f32 %v5067, %v5067
        %v5072 = vmul.f32 %v5068, %v5068
        %v5073 = vmul.f32 %v5069, %v5069
        %5078 = vrot.lane.b32.xlu0 %v5070, 74
        %v5079 = vpop.permute.xlu0 %5078
        %5080 = vrot.lane.b32.xlu0 %v5071, 74
        %v5081 = vpop.permute.xlu0 %5080
        %5082 = vrot.lane.b32.xlu0 %v5072, 74
        %v5083 = vpop.permute.xlu0 %5082
        %5084 = vrot.lane.b32.xlu0 %v5073, 74
        %v5085 = vpop.permute.xlu0 %5084
        %vm5086 = vcmask 605184
        %v5087 = vsel %vm5086, %v5079, %v5081
        %v5088 = vsel %vm5086, %v5083, %v5085
        %vm5091 = vcmask 121856
        %v5093 = vsel %vm5091, %v5041, 0
        %vm5095 = vcmask 1046528
        %v5096 = vsel %vm5095, %v5088, 0
        %v5098 = vsel %vm5095, %v5085, 0
        %5100 = vmatpush.msra.mxu0 0.0
        %5101 = vmatpush.msra.mxu0 0.0
        %5102 = vmatpush.msra.mxu0 0.0
        %5103 = vmatpush.msra.mxu0 0.0
        %5104 = vmatpush.msra.mxu0 0.0
        %5105 = vmatpush.msra.mxu0 0.0
        %5106 = vmatpush.msra.mxu0 0.0
        %5107 = vmatpush.msra.mxu0 0.0
        %5108 = vmatpush.msra.mxu0 0.0
        %5109 = vmatpush.msra.mxu0 0.0
        %5110 = vmatpush.msra.mxu0 0.0
        %5111 = vmatpush.msra.mxu0 0.0
        %5112 = vmatpush.msra.mxu0 0.0
        %5113 = vmatpush.msra.mxu0 0.0
        %5114 = vmatpush.msra.mxu0 %v5096
        %5115 = vmatpush.msra.mxu0 %v5087
        %5116 = vmatmul.f32.gmra.mxu0 %v5093
        %v5117 = vpop.f32.mrf.mxu0
        %v5118 = vadd.f32 0.0, %v5117
        %5119 = vdwg.mxu0
        %5120 = vmatpush.msra.mxu0 0.0
        %5121 = vmatpush.msra.mxu0 0.0
        %5122 = vmatpush.msra.mxu0 0.0
        %5123 = vmatpush.msra.mxu0 0.0
        %5124 = vmatpush.msra.mxu0 0.0
        %5125 = vmatpush.msra.mxu0 0.0
        %5126 = vmatpush.msra.mxu0 0.0
        %5127 = vmatpush.msra.mxu0 0.0
        %5128 = vmatpush.msra.mxu0 0.0
        %5129 = vmatpush.msra.mxu0 0.0
        %5130 = vmatpush.msra.mxu0 0.0
        %5131 = vmatpush.msra.mxu0 0.0
        %5132 = vmatpush.msra.mxu0 0.0
        %5133 = vmatpush.msra.mxu0 0.0
        %5134 = vmatpush.msra.mxu0 %v5098
        %5135 = vmatpush.msra.mxu0 %v5081
        %5136 = vmatmul.f32.gmra.mxu0 %v5093
        %v5137 = vpop.f32.mrf.mxu0
        %v5138 = vadd.f32 0.0, %v5137
        %5139 = vdwg.mxu0
        %s5140 = sld [smem:[#allocation18]]
        %v5141 = vstv %s5140
        %v5142 = vadd.f32 %v5118, %v5141
        %v5143 = vadd.f32 %v5138, %v5141
        %v5144 = vmul.f32 %v5142, 1.442695
        %v5145 = vpow.pop %v5144
        %v5146 = vmul.f32 %v5143, 1.442695
        %v5147 = vpow.pop %v5146
        %v5149 = vperm.slane %v5046, 0
        %v5150 = vperm.slane %v5046, 1
        %5151 = vrot.lane.b32.xlu0 %v5149, 95
        %v5152 = vpop.permute.xlu0 %5151
        %5153 = vrot.lane.b32.xlu0 %v5150, 95
        %v5154 = vpop.permute.xlu0 %5153
        %vm5155 = vcmask 777216
        %v5156 = vsel %vm5155, %v5152, %v5154
        %v5159 = vmul.f32 %v5145, %v5156
        %v5160 = vmul.f32 %v5147, %v5154
        %v5161 = vperm.slane %v5159, 0
        %v5162 = vperm.slane %v5160, 0
        %5163 = vrot.lane.b32.xlu0 %v5042, 95
        %v5164 = vpop.permute.xlu0 %5163
        %5165 = vrot.lane.b32.xlu0 %v5043, 95
        %v5166 = vpop.permute.xlu0 %5165
        %v5167 = vsel %vm5155, %v5164, %v5166
        %v5170 = vmul.f32 %v5161, %v5167
        %v5171 = vmul.f32 %v5162, %v5166
        %v5172 = vadd.f32 %v5170, 0.0
        %v5173 = vadd.f32 %v5171, 0.0
        %v5174 = vadd.f32 %v5159, 0.0
        %v5175 = vadd.f32 %v5160, 0.0
        %5176 = vrot.lane.b32.xlu0 %v5042, 20
        %v5177 = vpop.permute.xlu0 %5176
        %5178 = vrot.lane.b32.xlu0 %v5043, 20
        %v5179 = vpop.permute.xlu0 %5178
        %5180 = vrot.lane.b32.xlu0 %v5044, 20
        %v5181 = vpop.permute.xlu0 %5180
        %5182 = vrot.lane.b32.xlu0 %v5045, 20
        %v5183 = vpop.permute.xlu0 %5182
        %vm5184 = vcmask 162816
        %v5185 = vsel %vm5184, %v5177, %v5179
        %v5186 = vsel %vm5184, %v5181, %v5183
        %v5191 = vsub.f32 %v5042, %v5177
        %v5192 = vsub.f32 %v5043, %v5185
        %v5193 = vsub.f32 %v5044, %v5181
        %v5194 = vsub.f32 %v5045, %v5186
        %v5195 = vmul.f32 %v5191, %v5191
        %v5196 = vmul.f32 %v5192, %v5192
        %v5197 = vmul.f32 %v5193, %v5193
        %v5198 = vmul.f32 %v5194, %v5194
        %5203 = vrot.lane.b32.xlu0 %v5195, 74
        %v5204 = vpop.permute.xlu0 %5203
        %5205 = vrot.lane.b32.xlu0 %v5196, 74
        %v5206 = vpop.permute.xlu0 %5205
        %5207 = vrot.lane.b32.xlu0 %v5197, 74
        %v5208 = vpop.permute.xlu0 %5207
        %5209 = vrot.lane.b32.xlu0 %v5198, 74
        %v5210 = vpop.permute.xlu0 %5209
        %v5211 = vsel %vm5086, %v5204, %v5206
        %v5212 = vsel %vm5086, %v5208, %v5210
        %v5215 = vsel %vm5095, %v5212, 0
        %v5217 = vsel %vm5095, %v5210, 0
        %5219 = vmatpush.msra.mxu0 0.0
        %5220 = vmatpush.msra.mxu0 0.0
        %5221 = vmatpush.msra.mxu0 0.0
        %5222 = vmatpush.msra.mxu0 0.0
        %5223 = vmatpush.msra.mxu0 0.0
        %5224 = vmatpush.msra.mxu0 0.0
        %5225 = vmatpush.msra.mxu0 0.0
        %5226 = vmatpush.msra.mxu0 0.0
        %5227 = vmatpush.msra.mxu0 0.0
        %5228 = vmatpush.msra.mxu0 0.0
        %5229 = vmatpush.msra.mxu0 0.0
        %5230 = vmatpush.msra.mxu0 0.0
        %5231 = vmatpush.msra.mxu0 0.0
        %5232 = vmatpush.msra.mxu0 0.0
        %5233 = vmatpush.msra.mxu0 %v5215
        %5234 = vmatpush.msra.mxu0 %v5211
        %5235 = vmatmul.f32.gmra.mxu0 %v5093
        %v5236 = vpop.f32.mrf.mxu0
        %v5237 = vadd.f32 0.0, %v5236
        %5238 = vdwg.mxu0
        %5239 = vmatpush.msra.mxu0 0.0
        %5240 = vmatpush.msra.mxu0 0.0
        %5241 = vmatpush.msra.mxu0 0.0
        %5242 = vmatpush.msra.mxu0 0.0
        %5243 = vmatpush.msra.mxu0 0.0
        %5244 = vmatpush.msra.mxu0 0.0
        %5245 = vmatpush.msra.mxu0 0.0
        %5246 = vmatpush.msra.mxu0 0.0
        %5247 = vmatpush.msra.mxu0 0.0
        %5248 = vmatpush.msra.mxu0 0.0
        %5249 = vmatpush.msra.mxu0 0.0
        %5250 = vmatpush.msra.mxu0 0.0
        %5251 = vmatpush.msra.mxu0 0.0
        %5252 = vmatpush.msra.mxu0 0.0
        %5253 = vmatpush.msra.mxu0 %v5217
        %5254 = vmatpush.msra.mxu0 %v5206
        %5255 = vmatmul.f32.gmra.mxu0 %v5093
        %v5256 = vpop.f32.mrf.mxu0
        %v5257 = vadd.f32 0.0, %v5256
        %5258 = vdwg.mxu0
        %s5259 = sld [smem:[#allocation18 + $0x1]]
        %v5260 = vstv %s5259
        %v5261 = vadd.f32 %v5237, %v5260
        %v5262 = vadd.f32 %v5257, %v5260
        %v5263 = vmul.f32 %v5261, 1.442695
        %v5264 = vpow.pop %v5263
        %v5265 = vmul.f32 %v5262, 1.442695
        %v5266 = vpow.pop %v5265
        %5267 = vrot.lane.b32.xlu0 %v5149, 94
        %v5268 = vpop.permute.xlu0 %5267
        %5269 = vrot.lane.b32.xlu0 %v5150, 94
        %v5270 = vpop.permute.xlu0 %5269
        %vm5271 = vcmask 769024
        %v5272 = vsel %vm5271, %v5268, %v5270
        %v5275 = vmul.f32 %v5264, %v5272
        %v5276 = vmul.f32 %v5266, %v5270
        %v5277 = vperm.slane %v5275, 0
        %v5278 = vperm.slane %v5276, 0
        %5279 = vrot.lane.b32.xlu0 %v5042, 94
        %v5280 = vpop.permute.xlu0 %5279
        %5281 = vrot.lane.b32.xlu0 %v5043, 94
        %v5282 = vpop.permute.xlu0 %5281
        %v5283 = vsel %vm5271, %v5280, %v5282
        %v5286 = vmul.f32 %v5277, %v5283
        %v5287 = vmul.f32 %v5278, %v5282
        %v5288 = vadd.f32 %v5172, %v5286
        %v5289 = vadd.f32 %v5173, %v5287
        %v5290 = vadd.f32 %v5174, %v5275
        %v5291 = vadd.f32 %v5175, %v5276
        %5292 = vrot.lane.b32.xlu0 %v5042, 19
        %v5293 = vpop.permute.xlu0 %5292
        %5294 = vrot.lane.b32.xlu0 %v5043, 19
        %v5295 = vpop.permute.xlu0 %5294
        %5296 = vrot.lane.b32.xlu0 %v5044, 19
        %v5297 = vpop.permute.xlu0 %5296
        %5298 = vrot.lane.b32.xlu0 %v5045, 19
        %v5299 = vpop.permute.xlu0 %5298
        %vm5300 = vcmask 154624
        %v5301 = vsel %vm5300, %v5293, %v5295
        %v5302 = vsel %vm5300, %v5297, %v5299
        %v5307 = vsub.f32 %v5042, %v5293
        %v5308 = vsub.f32 %v5043, %v5301
        %v5309 = vsub.f32 %v5044, %v5297
        %v5310 = vsub.f32 %v5045, %v5302
        %v5311 = vmul.f32 %v5307, %v5307
        %v5312 = vmul.f32 %v5308, %v5308
        %v5313 = vmul.f32 %v5309, %v5309
        %v5314 = vmul.f32 %v5310, %v5310
        %5319 = vrot.lane.b32.xlu0 %v5311, 74
        %v5320 = vpop.permute.xlu0 %5319
        %5321 = vrot.lane.b32.xlu0 %v5312, 74
        %v5322 = vpop.permute.xlu0 %5321
        %5323 = vrot.lane.b32.xlu0 %v5313, 74
        %v5324 = vpop.permute.xlu0 %5323
        %5325 = vrot.lane.b32.xlu0 %v5314, 74
        %v5326 = vpop.permute.xlu0 %5325
        %v5327 = vsel %vm5086, %v5320, %v5322
        %v5328 = vsel %vm5086, %v5324, %v5326
        %v5331 = vsel %vm5095, %v5328, 0
        %v5333 = vsel %vm5095, %v5326, 0
        %5335 = vmatpush.msra.mxu0 0.0
        %5336 = vmatpush.msra.mxu0 0.0
        %5337 = vmatpush.msra.mxu0 0.0
        %5338 = vmatpush.msra.mxu0 0.0
        %5339 = vmatpush.msra.mxu0 0.0
        %5340 = vmatpush.msra.mxu0 0.0
        %5341 = vmatpush.msra.mxu0 0.0
        %5342 = vmatpush.msra.mxu0 0.0
        %5343 = vmatpush.msra.mxu0 0.0
        %5344 = vmatpush.msra.mxu0 0.0
        %5345 = vmatpush.msra.mxu0 0.0
        %5346 = vmatpush.msra.mxu0 0.0
        %5347 = vmatpush.msra.mxu0 0.0
        %5348 = vmatpush.msra.mxu0 0.0
        %5349 = vmatpush.msra.mxu0 %v5331
        %5350 = vmatpush.msra.mxu0 %v5327
        %5351 = vmatmul.f32.gmra.mxu0 %v5093
        %v5352 = vpop.f32.mrf.mxu0
        %v5353 = vadd.f32 0.0, %v5352
        %5354 = vdwg.mxu0
        %5355 = vmatpush.msra.mxu0 0.0
        %5356 = vmatpush.msra.mxu0 0.0
        %5357 = vmatpush.msra.mxu0 0.0
        %5358 = vmatpush.msra.mxu0 0.0
        %5359 = vmatpush.msra.mxu0 0.0
        %5360 = vmatpush.msra.mxu0 0.0
        %5361 = vmatpush.msra.mxu0 0.0
        %5362 = vmatpush.msra.mxu0 0.0
        %5363 = vmatpush.msra.mxu0 0.0
        %5364 = vmatpush.msra.mxu0 0.0
        %5365 = vmatpush.msra.mxu0 0.0
        %5366 = vmatpush.msra.mxu0 0.0
        %5367 = vmatpush.msra.mxu0 0.0
        %5368 = vmatpush.msra.mxu0 0.0
        %5369 = vmatpush.msra.mxu0 %v5333
        %5370 = vmatpush.msra.mxu0 %v5322
        %5371 = vmatmul.f32.gmra.mxu0 %v5093
        %v5372 = vpop.f32.mrf.mxu0
        %v5373 = vadd.f32 0.0, %v5372
        %5374 = vdwg.mxu0
        %s5375 = sld [smem:[#allocation18 + $0x2]]
        %v5376 = vstv %s5375
        %v5377 = vadd.f32 %v5353, %v5376
        %v5378 = vadd.f32 %v5373, %v5376
        %v5379 = vmul.f32 %v5377, 1.442695
        %v5380 = vpow.pop %v5379
        %v5381 = vmul.f32 %v5378, 1.442695
        %v5382 = vpow.pop %v5381
        %5383 = vrot.lane.b32.xlu0 %v5149, 93
        %v5384 = vpop.permute.xlu0 %5383
        %5385 = vrot.lane.b32.xlu0 %v5150, 93
        %v5386 = vpop.permute.xlu0 %5385
        %vm5387 = vcmask 760832
        %v5388 = vsel %vm5387, %v5384, %v5386
        %v5391 = vmul.f32 %v5380, %v5388
        %v5392 = vmul.f32 %v5382, %v5386
        %v5393 = vperm.slane %v5391, 0
        %v5394 = vperm.slane %v5392, 0
        %5395 = vrot.lane.b32.xlu0 %v5042, 93
        %v5396 = vpop.permute.xlu0 %5395
        %5397 = vrot.lane.b32.xlu0 %v5043, 93
        %v5398 = vpop.permute.xlu0 %5397
        %v5399 = vsel %vm5387, %v5396, %v5398
        %v5402 = vmul.f32 %v5393, %v5399
        %v5403 = vmul.f32 %v5394, %v5398
        %v5404 = vadd.f32 %v5288, %v5402
        %v5405 = vadd.f32 %v5289, %v5403
        %v5406 = vadd.f32 %v5290, %v5391
        %v5407 = vadd.f32 %v5291, %v5392
        %5408 = vrot.lane.b32.xlu0 %v5042, 1
        %v5409 = vpop.permute.xlu0 %5408
        %5410 = vrot.lane.b32.xlu0 %v5043, 1
        %v5411 = vpop.permute.xlu0 %5410
        %5412 = vrot.lane.b32.xlu0 %v5044, 1
        %v5413 = vpop.permute.xlu0 %5412
        %5414 = vrot.lane.b32.xlu0 %v5045, 1
        %v5415 = vpop.permute.xlu0 %5414
        %vm5416 = vcmask 7168
        %v5417 = vsel %vm5416, %v5409, %v5411
        %v5418 = vsel %vm5416, %v5413, %v5415
        %v5423 = vsub.f32 %v5042, %v5409
        %v5424 = vsub.f32 %v5043, %v5417
        %v5425 = vsub.f32 %v5044, %v5413
        %v5426 = vsub.f32 %v5045, %v5418
        %v5427 = vmul.f32 %v5423, %v5423
        %v5428 = vmul.f32 %v5424, %v5424
        %v5429 = vmul.f32 %v5425, %v5425
        %v5430 = vmul.f32 %v5426, %v5426
        %5435 = vrot.lane.b32.xlu0 %v5427, 74
        %v5436 = vpop.permute.xlu0 %5435
        %5437 = vrot.lane.b32.xlu0 %v5428, 74
        %v5438 = vpop.permute.xlu0 %5437
        %5439 = vrot.lane.b32.xlu0 %v5429, 74
        %v5440 = vpop.permute.xlu0 %5439
        %5441 = vrot.lane.b32.xlu0 %v5430, 74
        %v5442 = vpop.permute.xlu0 %5441
        %v5443 = vsel %vm5086, %v5436, %v5438
        %v5444 = vsel %vm5086, %v5440, %v5442
        %v5447 = vsel %vm5095, %v5444, 0
        %v5449 = vsel %vm5095, %v5442, 0
        %5451 = vmatpush.msra.mxu0 0.0
        %5452 = vmatpush.msra.mxu0 0.0
        %5453 = vmatpush.msra.mxu0 0.0
        %5454 = vmatpush.msra.mxu0 0.0
        %5455 = vmatpush.msra.mxu0 0.0
        %5456 = vmatpush.msra.mxu0 0.0
        %5457 = vmatpush.msra.mxu0 0.0
        %5458 = vmatpush.msra.mxu0 0.0
        %5459 = vmatpush.msra.mxu0 0.0
        %5460 = vmatpush.msra.mxu0 0.0
        %5461 = vmatpush.msra.mxu0 0.0
        %5462 = vmatpush.msra.mxu0 0.0
        %5463 = vmatpush.msra.mxu0 0.0
        %5464 = vmatpush.msra.mxu0 0.0
        %5465 = vmatpush.msra.mxu0 %v5447
        %5466 = vmatpush.msra.mxu0 %v5443
        %5467 = vmatmul.f32.gmra.mxu0 %v5093
        %v5468 = vpop.f32.mrf.mxu0
        %v5469 = vadd.f32 0.0, %v5468
        %5470 = vdwg.mxu0
        %5471 = vmatpush.msra.mxu0 0.0
        %5472 = vmatpush.msra.mxu0 0.0
        %5473 = vmatpush.msra.mxu0 0.0
        %5474 = vmatpush.msra.mxu0 0.0
        %5475 = vmatpush.msra.mxu0 0.0
        %5476 = vmatpush.msra.mxu0 0.0
        %5477 = vmatpush.msra.mxu0 0.0
        %5478 = vmatpush.msra.mxu0 0.0
        %5479 = vmatpush.msra.mxu0 0.0
        %5480 = vmatpush.msra.mxu0 0.0
        %5481 = vmatpush.msra.mxu0 0.0
        %5482 = vmatpush.msra.mxu0 0.0
        %5483 = vmatpush.msra.mxu0 0.0
        %5484 = vmatpush.msra.mxu0 0.0
        %5485 = vmatpush.msra.mxu0 %v5449
        %5486 = vmatpush.msra.mxu0 %v5438
        %5487 = vmatmul.f32.gmra.mxu0 %v5093
        %v5488 = vpop.f32.mrf.mxu0
        %v5489 = vadd.f32 0.0, %v5488
        %5490 = vdwg.mxu0
        %s5491 = sld [smem:[#allocation18 + $0x3]]
        %v5492 = vstv %s5491
        %v5493 = vadd.f32 %v5469, %v5492
        %v5494 = vadd.f32 %v5489, %v5492
        %v5495 = vmul.f32 %v5493, 1.442695
        %v5496 = vpow.pop %v5495
        %v5497 = vmul.f32 %v5494, 1.442695
        %v5498 = vpow.pop %v5497
        %5499 = vrot.lane.b32.xlu0 %v5149, 75
        %v5500 = vpop.permute.xlu0 %5499
        %5501 = vrot.lane.b32.xlu0 %v5150, 75
        %v5502 = vpop.permute.xlu0 %5501
        %vm5503 = vcmask 613376
        %v5504 = vsel %vm5503, %v5500, %v5502
        %v5507 = vmul.f32 %v5496, %v5504
        %v5508 = vmul.f32 %v5498, %v5502
        %v5509 = vperm.slane %v5507, 0
        %v5510 = vperm.slane %v5508, 0
        %5511 = vrot.lane.b32.xlu0 %v5042, 75
        %v5512 = vpop.permute.xlu0 %5511
        %5513 = vrot.lane.b32.xlu0 %v5043, 75
        %v5514 = vpop.permute.xlu0 %5513
        %v5515 = vsel %vm5503, %v5512, %v5514
        %v5518 = vmul.f32 %v5509, %v5515
        %v5519 = vmul.f32 %v5510, %v5514
        %v5520 = vadd.f32 %v5404, %v5518
        %v5521 = vadd.f32 %v5405, %v5519
        %v5522 = vadd.f32 %v5406, %v5507
        %v5523 = vadd.f32 %v5407, %v5508
        %v5524 = vsub.f32 %v5042, %v5042
        %v5525 = vsub.f32 %v5043, %v5043
        %v5526 = vsub.f32 %v5044, %v5044
        %v5527 = vsub.f32 %v5045, %v5045
        %v5528 = vmul.f32 %v5524, %v5524
        %v5529 = vmul.f32 %v5525, %v5525
        %v5530 = vmul.f32 %v5526, %v5526
        %v5531 = vmul.f32 %v5527, %v5527
        %5536 = vrot.lane.b32.xlu0 %v5528, 74
        %v5537 = vpop.permute.xlu0 %5536
        %5538 = vrot.lane.b32.xlu0 %v5529, 74
        %v5539 = vpop.permute.xlu0 %5538
        %5540 = vrot.lane.b32.xlu0 %v5530, 74
        %v5541 = vpop.permute.xlu0 %5540
        %5542 = vrot.lane.b32.xlu0 %v5531, 74
        %v5543 = vpop.permute.xlu0 %5542
        %v5544 = vsel %vm5086, %v5537, %v5539
        %v5545 = vsel %vm5086, %v5541, %v5543
        %v5548 = vsel %vm5095, %v5545, 0
        %v5550 = vsel %vm5095, %v5543, 0
        %5552 = vmatpush.msra.mxu0 0.0
        %5553 = vmatpush.msra.mxu0 0.0
        %5554 = vmatpush.msra.mxu0 0.0
        %5555 = vmatpush.msra.mxu0 0.0
        %5556 = vmatpush.msra.mxu0 0.0
        %5557 = vmatpush.msra.mxu0 0.0
        %5558 = vmatpush.msra.mxu0 0.0
        %5559 = vmatpush.msra.mxu0 0.0
        %5560 = vmatpush.msra.mxu0 0.0
        %5561 = vmatpush.msra.mxu0 0.0
        %5562 = vmatpush.msra.mxu0 0.0
        %5563 = vmatpush.msra.mxu0 0.0
        %5564 = vmatpush.msra.mxu0 0.0
        %5565 = vmatpush.msra.mxu0 0.0
        %5566 = vmatpush.msra.mxu0 %v5548
        %5567 = vmatpush.msra.mxu0 %v5544
        %5568 = vmatmul.f32.gmra.mxu0 %v5093
        %v5569 = vpop.f32.mrf.mxu0
        %v5570 = vadd.f32 0.0, %v5569
        %5571 = vdwg.mxu0
        %5572 = vmatpush.msra.mxu0 0.0
        %5573 = vmatpush.msra.mxu0 0.0
        %5574 = vmatpush.msra.mxu0 0.0
        %5575 = vmatpush.msra.mxu0 0.0
        %5576 = vmatpush.msra.mxu0 0.0
        %5577 = vmatpush.msra.mxu0 0.0
        %5578 = vmatpush.msra.mxu0 0.0
        %5579 = vmatpush.msra.mxu0 0.0
        %5580 = vmatpush.msra.mxu0 0.0
        %5581 = vmatpush.msra.mxu0 0.0
        %5582 = vmatpush.msra.mxu0 0.0
        %5583 = vmatpush.msra.mxu0 0.0
        %5584 = vmatpush.msra.mxu0 0.0
        %5585 = vmatpush.msra.mxu0 0.0
        %5586 = vmatpush.msra.mxu0 %v5550
        %5587 = vmatpush.msra.mxu0 %v5539
        %5588 = vmatmul.f32.gmra.mxu0 %v5093
        %v5589 = vpop.f32.mrf.mxu0
        %v5590 = vadd.f32 0.0, %v5589
        %5591 = vdwg.mxu0
        %s5592 = sld [smem:[#allocation18 + $0x4]]
        %v5593 = vstv %s5592
        %v5594 = vadd.f32 %v5570, %v5593
        %v5595 = vadd.f32 %v5590, %v5593
        %v5596 = vmul.f32 %v5594, 1.442695
        %v5597 = vpow.pop %v5596
        %v5598 = vmul.f32 %v5595, 1.442695
        %v5599 = vpow.pop %v5598
        %5600 = vrot.lane.b32.xlu0 %v5149, 74
        %v5601 = vpop.permute.xlu0 %5600
        %5602 = vrot.lane.b32.xlu0 %v5150, 74
        %v5603 = vpop.permute.xlu0 %5602
        %v5604 = vsel %vm5086, %v5601, %v5603
        %v5607 = vmul.f32 %v5597, %v5604
        %v5608 = vmul.f32 %v5599, %v5603
        %v5609 = vperm.slane %v5607, 0
        %v5610 = vperm.slane %v5608, 0
        %5611 = vrot.lane.b32.xlu0 %v5042, 74
        %v5612 = vpop.permute.xlu0 %5611
        %5613 = vrot.lane.b32.xlu0 %v5043, 74
        %v5614 = vpop.permute.xlu0 %5613
        %v5615 = vsel %vm5086, %v5612, %v5614
        %v5618 = vmul.f32 %v5609, %v5615
        %v5619 = vmul.f32 %v5610, %v5614
        %v5620 = vadd.f32 %v5520, %v5618
        %v5621 = vadd.f32 %v5521, %v5619
        %v5622 = vadd.f32 %v5522, %v5607
        %v5623 = vadd.f32 %v5523, %v5608
        %5624 = vrot.lane.b32.xlu0 %v5042, 127
        %v5625 = vpop.permute.xlu0 %5624
        %5626 = vrot.lane.b32.xlu0 %v5043, 127
        %v5627 = vpop.permute.xlu0 %5626
        %5628 = vrot.lane.b32.xlu0 %v5044, 127
        %v5629 = vpop.permute.xlu0 %5628
        %5630 = vrot.lane.b32.xlu0 %v5045, 127
        %v5631 = vpop.permute.xlu0 %5630
        %v5632 = vsel %vm1861, %v5625, %v5627
        %v5633 = vsel %vm1861, %v5629, %v5631
        %v5638 = vsub.f32 %v5042, %v5632
        %v5639 = vsub.f32 %v5043, %v5627
        %v5640 = vsub.f32 %v5044, %v5633
        %v5641 = vsub.f32 %v5045, %v5631
        %v5642 = vmul.f32 %v5638, %v5638
        %v5643 = vmul.f32 %v5639, %v5639
        %v5644 = vmul.f32 %v5640, %v5640
        %v5645 = vmul.f32 %v5641, %v5641
        %5650 = vrot.lane.b32.xlu0 %v5642, 74
        %v5651 = vpop.permute.xlu0 %5650
        %5652 = vrot.lane.b32.xlu0 %v5643, 74
        %v5653 = vpop.permute.xlu0 %5652
        %5654 = vrot.lane.b32.xlu0 %v5644, 74
        %v5655 = vpop.permute.xlu0 %5654
        %5656 = vrot.lane.b32.xlu0 %v5645, 74
        %v5657 = vpop.permute.xlu0 %5656
        %v5658 = vsel %vm5086, %v5651, %v5653
        %v5659 = vsel %vm5086, %v5655, %v5657
        %v5662 = vsel %vm5095, %v5659, 0
        %v5664 = vsel %vm5095, %v5657, 0
        %5666 = vmatpush.msra.mxu0 0.0
        %5667 = vmatpush.msra.mxu0 0.0
        %5668 = vmatpush.msra.mxu0 0.0
        %5669 = vmatpush.msra.mxu0 0.0
        %5670 = vmatpush.msra.mxu0 0.0
        %5671 = vmatpush.msra.mxu0 0.0
        %5672 = vmatpush.msra.mxu0 0.0
        %5673 = vmatpush.msra.mxu0 0.0
        %5674 = vmatpush.msra.mxu0 0.0
        %5675 = vmatpush.msra.mxu0 0.0
        %5676 = vmatpush.msra.mxu0 0.0
        %5677 = vmatpush.msra.mxu0 0.0
        %5678 = vmatpush.msra.mxu0 0.0
        %5679 = vmatpush.msra.mxu0 0.0
        %5680 = vmatpush.msra.mxu0 %v5662
        %5681 = vmatpush.msra.mxu0 %v5658
        %5682 = vmatmul.f32.gmra.mxu0 %v5093
        %v5683 = vpop.f32.mrf.mxu0
        %v5684 = vadd.f32 0.0, %v5683
        %5685 = vdwg.mxu0
        %5686 = vmatpush.msra.mxu0 0.0
        %5687 = vmatpush.msra.mxu0 0.0
        %5688 = vmatpush.msra.mxu0 0.0
        %5689 = vmatpush.msra.mxu0 0.0
        %5690 = vmatpush.msra.mxu0 0.0
        %5691 = vmatpush.msra.mxu0 0.0
        %5692 = vmatpush.msra.mxu0 0.0
        %5693 = vmatpush.msra.mxu0 0.0
        %5694 = vmatpush.msra.mxu0 0.0
        %5695 = vmatpush.msra.mxu0 0.0
        %5696 = vmatpush.msra.mxu0 0.0
        %5697 = vmatpush.msra.mxu0 0.0
        %5698 = vmatpush.msra.mxu0 0.0
        %5699 = vmatpush.msra.mxu0 0.0
        %5700 = vmatpush.msra.mxu0 %v5664
        %5701 = vmatpush.msra.mxu0 %v5653
        %5702 = vmatmul.f32.gmra.mxu0 %v5093
        %v5703 = vpop.f32.mrf.mxu0
        %v5704 = vadd.f32 0.0, %v5703
        %5705 = vdwg.mxu0
        %s5706 = sld [smem:[#allocation18 + $0x5]]
        %v5707 = vstv %s5706
        %v5708 = vadd.f32 %v5684, %v5707
        %v5709 = vadd.f32 %v5704, %v5707
        %v5710 = vmul.f32 %v5708, 1.442695
        %v5711 = vpow.pop %v5710
        %v5712 = vmul.f32 %v5709, 1.442695
        %v5713 = vpow.pop %v5712
        %5714 = vrot.lane.b32.xlu0 %v5149, 73
        %v5715 = vpop.permute.xlu0 %5714
        %5716 = vrot.lane.b32.xlu0 %v5150, 73
        %v5717 = vpop.permute.xlu0 %5716
        %vm5718 = vcmask 596992
        %v5719 = vsel %vm5718, %v5715, %v5717
        %v5722 = vmul.f32 %v5711, %v5719
        %v5723 = vmul.f32 %v5713, %v5717
        %v5724 = vperm.slane %v5722, 0
        %v5725 = vperm.slane %v5723, 0
        %5726 = vrot.lane.b32.xlu0 %v5042, 73
        %v5727 = vpop.permute.xlu0 %5726
        %5728 = vrot.lane.b32.xlu0 %v5043, 73
        %v5729 = vpop.permute.xlu0 %5728
        %v5730 = vsel %vm5718, %v5727, %v5729
        %v5733 = vmul.f32 %v5724, %v5730
        %v5734 = vmul.f32 %v5725, %v5729
        %v5735 = vadd.f32 %v5620, %v5733
        %v5736 = vadd.f32 %v5621, %v5734
        %v5737 = vadd.f32 %v5622, %v5722
        %v5738 = vadd.f32 %v5623, %v5723
        %5739 = vrot.lane.b32.xlu0 %v5042, 109
        %v5740 = vpop.permute.xlu0 %5739
        %5741 = vrot.lane.b32.xlu0 %v5043, 109
        %v5742 = vpop.permute.xlu0 %5741
        %5743 = vrot.lane.b32.xlu0 %v5044, 109
        %v5744 = vpop.permute.xlu0 %5743
        %5745 = vrot.lane.b32.xlu0 %v5045, 109
        %v5746 = vpop.permute.xlu0 %5745
        %vm5747 = vcmask 891904
        %v5748 = vsel %vm5747, %v5740, %v5742
        %v5749 = vsel %vm5747, %v5744, %v5746
        %v5754 = vsub.f32 %v5042, %v5748
        %v5755 = vsub.f32 %v5043, %v5742
        %v5756 = vsub.f32 %v5044, %v5749
        %v5757 = vsub.f32 %v5045, %v5746
        %v5758 = vmul.f32 %v5754, %v5754
        %v5759 = vmul.f32 %v5755, %v5755
        %v5760 = vmul.f32 %v5756, %v5756
        %v5761 = vmul.f32 %v5757, %v5757
        %5766 = vrot.lane.b32.xlu0 %v5758, 74
        %v5767 = vpop.permute.xlu0 %5766
        %5768 = vrot.lane.b32.xlu0 %v5759, 74
        %v5769 = vpop.permute.xlu0 %5768
        %5770 = vrot.lane.b32.xlu0 %v5760, 74
        %v5771 = vpop.permute.xlu0 %5770
        %5772 = vrot.lane.b32.xlu0 %v5761, 74
        %v5773 = vpop.permute.xlu0 %5772
        %v5774 = vsel %vm5086, %v5767, %v5769
        %v5775 = vsel %vm5086, %v5771, %v5773
        %v5778 = vsel %vm5095, %v5775, 0
        %v5780 = vsel %vm5095, %v5773, 0
        %5782 = vmatpush.msra.mxu0 0.0
        %5783 = vmatpush.msra.mxu0 0.0
        %5784 = vmatpush.msra.mxu0 0.0
        %5785 = vmatpush.msra.mxu0 0.0
        %5786 = vmatpush.msra.mxu0 0.0
        %5787 = vmatpush.msra.mxu0 0.0
        %5788 = vmatpush.msra.mxu0 0.0
        %5789 = vmatpush.msra.mxu0 0.0
        %5790 = vmatpush.msra.mxu0 0.0
        %5791 = vmatpush.msra.mxu0 0.0
        %5792 = vmatpush.msra.mxu0 0.0
        %5793 = vmatpush.msra.mxu0 0.0
        %5794 = vmatpush.msra.mxu0 0.0
        %5795 = vmatpush.msra.mxu0 0.0
        %5796 = vmatpush.msra.mxu0 %v5778
        %5797 = vmatpush.msra.mxu0 %v5774
        %5798 = vmatmul.f32.gmra.mxu0 %v5093
        %v5799 = vpop.f32.mrf.mxu0
        %v5800 = vadd.f32 0.0, %v5799
        %5801 = vdwg.mxu0
        %5802 = vmatpush.msra.mxu0 0.0
        %5803 = vmatpush.msra.mxu0 0.0
        %5804 = vmatpush.msra.mxu0 0.0
        %5805 = vmatpush.msra.mxu0 0.0
        %5806 = vmatpush.msra.mxu0 0.0
        %5807 = vmatpush.msra.mxu0 0.0
        %5808 = vmatpush.msra.mxu0 0.0
        %5809 = vmatpush.msra.mxu0 0.0
        %5810 = vmatpush.msra.mxu0 0.0
        %5811 = vmatpush.msra.mxu0 0.0
        %5812 = vmatpush.msra.mxu0 0.0
        %5813 = vmatpush.msra.mxu0 0.0
        %5814 = vmatpush.msra.mxu0 0.0
        %5815 = vmatpush.msra.mxu0 0.0
        %5816 = vmatpush.msra.mxu0 %v5780
        %5817 = vmatpush.msra.mxu0 %v5769
        %5818 = vmatmul.f32.gmra.mxu0 %v5093
        %v5819 = vpop.f32.mrf.mxu0
        %v5820 = vadd.f32 0.0, %v5819
        %5821 = vdwg.mxu0
        %s5822 = sld [smem:[#allocation18 + $0x6]]
        %v5823 = vstv %s5822
        %v5824 = vadd.f32 %v5800, %v5823
        %v5825 = vadd.f32 %v5820, %v5823
        %v5826 = vmul.f32 %v5824, 1.442695
        %v5827 = vpow.pop %v5826
        %v5828 = vmul.f32 %v5825, 1.442695
        %v5829 = vpow.pop %v5828
        %5830 = vrot.lane.b32.xlu0 %v5149, 55
        %v5831 = vpop.permute.xlu0 %5830
        %5832 = vrot.lane.b32.xlu0 %v5150, 55
        %v5833 = vpop.permute.xlu0 %5832
        %vm5834 = vcmask 449536
        %v5835 = vsel %vm5834, %v5831, %v5833
        %v5838 = vmul.f32 %v5827, %v5835
        %v5839 = vmul.f32 %v5829, %v5833
        %v5840 = vperm.slane %v5838, 0
        %v5841 = vperm.slane %v5839, 0
        %5842 = vrot.lane.b32.xlu0 %v5042, 55
        %v5843 = vpop.permute.xlu0 %5842
        %5844 = vrot.lane.b32.xlu0 %v5043, 55
        %v5845 = vpop.permute.xlu0 %5844
        %v5846 = vsel %vm5834, %v5843, %v5845
        %v5849 = vmul.f32 %v5840, %v5846
        %v5850 = vmul.f32 %v5841, %v5845
        %v5851 = vadd.f32 %v5735, %v5849
        %v5852 = vadd.f32 %v5736, %v5850
        %v5853 = vadd.f32 %v5737, %v5838
        %v5854 = vadd.f32 %v5738, %v5839
        %5855 = vrot.lane.b32.xlu0 %v5042, 108
        %v5856 = vpop.permute.xlu0 %5855
        %5857 = vrot.lane.b32.xlu0 %v5043, 108
        %v5858 = vpop.permute.xlu0 %5857
        %5859 = vrot.lane.b32.xlu0 %v5044, 108
        %v5860 = vpop.permute.xlu0 %5859
        %5861 = vrot.lane.b32.xlu0 %v5045, 108
        %v5862 = vpop.permute.xlu0 %5861
        %v5863 = vsel %vm2079, %v5856, %v5858
        %v5864 = vsel %vm2079, %v5860, %v5862
        %v5869 = vsub.f32 %v5042, %v5863
        %v5870 = vsub.f32 %v5043, %v5858
        %v5871 = vsub.f32 %v5044, %v5864
        %v5872 = vsub.f32 %v5045, %v5862
        %v5873 = vmul.f32 %v5869, %v5869
        %v5874 = vmul.f32 %v5870, %v5870
        %v5875 = vmul.f32 %v5871, %v5871
        %v5876 = vmul.f32 %v5872, %v5872
        %5881 = vrot.lane.b32.xlu0 %v5873, 74
        %v5882 = vpop.permute.xlu0 %5881
        %5883 = vrot.lane.b32.xlu0 %v5874, 74
        %v5884 = vpop.permute.xlu0 %5883
        %5885 = vrot.lane.b32.xlu0 %v5875, 74
        %v5886 = vpop.permute.xlu0 %5885
        %5887 = vrot.lane.b32.xlu0 %v5876, 74
        %v5888 = vpop.permute.xlu0 %5887
        %v5889 = vsel %vm5086, %v5882, %v5884
        %v5890 = vsel %vm5086, %v5886, %v5888
        %v5893 = vsel %vm5095, %v5890, 0
        %v5895 = vsel %vm5095, %v5888, 0
        %5897 = vmatpush.msra.mxu0 0.0
        %5898 = vmatpush.msra.mxu0 0.0
        %5899 = vmatpush.msra.mxu0 0.0
        %5900 = vmatpush.msra.mxu0 0.0
        %5901 = vmatpush.msra.mxu0 0.0
        %5902 = vmatpush.msra.mxu0 0.0
        %5903 = vmatpush.msra.mxu0 0.0
        %5904 = vmatpush.msra.mxu0 0.0
        %5905 = vmatpush.msra.mxu0 0.0
        %5906 = vmatpush.msra.mxu0 0.0
        %5907 = vmatpush.msra.mxu0 0.0
        %5908 = vmatpush.msra.mxu0 0.0
        %5909 = vmatpush.msra.mxu0 0.0
        %5910 = vmatpush.msra.mxu0 0.0
        %5911 = vmatpush.msra.mxu0 %v5893
        %5912 = vmatpush.msra.mxu0 %v5889
        %5913 = vmatmul.f32.gmra.mxu0 %v5093
        %v5914 = vpop.f32.mrf.mxu0
        %v5915 = vadd.f32 0.0, %v5914
        %5916 = vdwg.mxu0
        %5917 = vmatpush.msra.mxu0 0.0
        %5918 = vmatpush.msra.mxu0 0.0
        %5919 = vmatpush.msra.mxu0 0.0
        %5920 = vmatpush.msra.mxu0 0.0
        %5921 = vmatpush.msra.mxu0 0.0
        %5922 = vmatpush.msra.mxu0 0.0
        %5923 = vmatpush.msra.mxu0 0.0
        %5924 = vmatpush.msra.mxu0 0.0
        %5925 = vmatpush.msra.mxu0 0.0
        %5926 = vmatpush.msra.mxu0 0.0
        %5927 = vmatpush.msra.mxu0 0.0
        %5928 = vmatpush.msra.mxu0 0.0
        %5929 = vmatpush.msra.mxu0 0.0
        %5930 = vmatpush.msra.mxu0 0.0
        %5931 = vmatpush.msra.mxu0 %v5895
        %5932 = vmatpush.msra.mxu0 %v5884
        %5933 = vmatmul.f32.gmra.mxu0 %v5093
        %v5934 = vpop.f32.mrf.mxu0
        %v5935 = vadd.f32 0.0, %v5934
        %5936 = vdwg.mxu0
        %s5937 = sld [smem:[#allocation18 + $0x7]]
        %v5938 = vstv %s5937
        %v5939 = vadd.f32 %v5915, %v5938
        %v5940 = vadd.f32 %v5935, %v5938
        %v5941 = vmul.f32 %v5939, 1.442695
        %v5942 = vpow.pop %v5941
        %v5943 = vmul.f32 %v5940, 1.442695
        %v5944 = vpow.pop %v5943
        %5945 = vrot.lane.b32.xlu0 %v5149, 54
        %v5946 = vpop.permute.xlu0 %5945
        %5947 = vrot.lane.b32.xlu0 %v5150, 54
        %v5948 = vpop.permute.xlu0 %5947
        %v5949 = vsel %vm2981, %v5946, %v5948
        %v5952 = vmul.f32 %v5942, %v5949
        %v5953 = vmul.f32 %v5944, %v5948
        %v5954 = vperm.slane %v5952, 0
        %v5955 = vperm.slane %v5953, 0
        %5956 = vrot.lane.b32.xlu0 %v5042, 54
        %v5957 = vpop.permute.xlu0 %5956
        %5958 = vrot.lane.b32.xlu0 %v5043, 54
        %v5959 = vpop.permute.xlu0 %5958
        %v5960 = vsel %vm2981, %v5957, %v5959
        %v5963 = vmul.f32 %v5954, %v5960
        %v5964 = vmul.f32 %v5955, %v5959
        %v5965 = vadd.f32 %v5851, %v5963
        %v5966 = vadd.f32 %v5852, %v5964
        %v5967 = vadd.f32 %v5853, %v5952
        %v5968 = vadd.f32 %v5854, %v5953
        %5969 = vrot.lane.b32.xlu0 %v5042, 107
        %v5970 = vpop.permute.xlu0 %5969
        %5971 = vrot.lane.b32.xlu0 %v5043, 107
        %v5972 = vpop.permute.xlu0 %5971
        %5973 = vrot.lane.b32.xlu0 %v5044, 107
        %v5974 = vpop.permute.xlu0 %5973
        %5975 = vrot.lane.b32.xlu0 %v5045, 107
        %v5976 = vpop.permute.xlu0 %5975
        %v5977 = vsel %vm2363, %v5970, %v5972
        %v5978 = vsel %vm2363, %v5974, %v5976
        %v5983 = vsub.f32 %v5042, %v5977
        %v5984 = vsub.f32 %v5043, %v5972
        %v5985 = vsub.f32 %v5044, %v5978
        %v5986 = vsub.f32 %v5045, %v5976
        %v5987 = vmul.f32 %v5983, %v5983
        %v5988 = vmul.f32 %v5984, %v5984
        %v5989 = vmul.f32 %v5985, %v5985
        %v5990 = vmul.f32 %v5986, %v5986
        %5995 = vrot.lane.b32.xlu0 %v5987, 74
        %v5996 = vpop.permute.xlu0 %5995
        %5997 = vrot.lane.b32.xlu0 %v5988, 74
        %v5998 = vpop.permute.xlu0 %5997
        %5999 = vrot.lane.b32.xlu0 %v5989, 74
        %v6000 = vpop.permute.xlu0 %5999
        %6001 = vrot.lane.b32.xlu0 %v5990, 74
        %v6002 = vpop.permute.xlu0 %6001
        %v6003 = vsel %vm5086, %v5996, %v5998
        %v6004 = vsel %vm5086, %v6000, %v6002
        %v6007 = vsel %vm5095, %v6004, 0
        %v6009 = vsel %vm5095, %v6002, 0
        %6011 = vmatpush.msra.mxu0 0.0
        %6012 = vmatpush.msra.mxu0 0.0
        %6013 = vmatpush.msra.mxu0 0.0
        %6014 = vmatpush.msra.mxu0 0.0
        %6015 = vmatpush.msra.mxu0 0.0
        %6016 = vmatpush.msra.mxu0 0.0
        %6017 = vmatpush.msra.mxu0 0.0
        %6018 = vmatpush.msra.mxu0 0.0
        %6019 = vmatpush.msra.mxu0 0.0
        %6020 = vmatpush.msra.mxu0 0.0
        %6021 = vmatpush.msra.mxu0 0.0
        %6022 = vmatpush.msra.mxu0 0.0
        %6023 = vmatpush.msra.mxu0 0.0
        %6024 = vmatpush.msra.mxu0 0.0
        %6025 = vmatpush.msra.mxu0 %v6007
        %6026 = vmatpush.msra.mxu0 %v6003
        %6027 = vmatmul.f32.gmra.mxu0 %v5093
        %v6028 = vpop.f32.mrf.mxu0
        %v6029 = vadd.f32 0.0, %v6028
        %6030 = vdwg.mxu0
        %6031 = vmatpush.msra.mxu0 0.0
        %6032 = vmatpush.msra.mxu0 0.0
        %6033 = vmatpush.msra.mxu0 0.0
        %6034 = vmatpush.msra.mxu0 0.0
        %6035 = vmatpush.msra.mxu0 0.0
        %6036 = vmatpush.msra.mxu0 0.0
        %6037 = vmatpush.msra.mxu0 0.0
        %6038 = vmatpush.msra.mxu0 0.0
        %6039 = vmatpush.msra.mxu0 0.0
        %6040 = vmatpush.msra.mxu0 0.0
        %6041 = vmatpush.msra.mxu0 0.0
        %6042 = vmatpush.msra.mxu0 0.0
        %6043 = vmatpush.msra.mxu0 0.0
        %6044 = vmatpush.msra.mxu0 0.0
        %6045 = vmatpush.msra.mxu0 %v6009
        %6046 = vmatpush.msra.mxu0 %v5998
        %6047 = vmatmul.f32.gmra.mxu0 %v5093
        %v6048 = vpop.f32.mrf.mxu0
        %v6049 = vadd.f32 0.0, %v6048
        %6050 = vdwg.mxu0
        %s6051 = sld [smem:[#allocation18 + $0x8]]
        %v6052 = vstv %s6051
        %v6053 = vadd.f32 %v6029, %v6052
        %v6054 = vadd.f32 %v6049, %v6052
        %v6055 = vmul.f32 %v6053, 1.442695
        %v6056 = vpow.pop %v6055
        %v6057 = vmul.f32 %v6054, 1.442695
        %v6058 = vpow.pop %v6057
        %6059 = vrot.lane.b32.xlu0 %v5149, 53
        %v6060 = vpop.permute.xlu0 %6059
        %6061 = vrot.lane.b32.xlu0 %v5150, 53
        %v6062 = vpop.permute.xlu0 %6061
        %vm6063 = vcmask 433152
        %v6064 = vsel %vm6063, %v6060, %v6062
        %v6067 = vmul.f32 %v6056, %v6064
        %v6068 = vmul.f32 %v6058, %v6062
        %v6069 = vperm.slane %v6067, 0
        %v6070 = vperm.slane %v6068, 0
        %6071 = vrot.lane.b32.xlu0 %v5042, 53
        %v6072 = vpop.permute.xlu0 %6071
        %6073 = vrot.lane.b32.xlu0 %v5043, 53
        %v6074 = vpop.permute.xlu0 %6073
        %v6075 = vsel %vm6063, %v6072, %v6074
        %v6078 = vmul.f32 %v6069, %v6075
        %v6079 = vmul.f32 %v6070, %v6074
        %v6080 = vadd.f32 %v5965, %v6078
        %v6081 = vadd.f32 %v5966, %v6079
        %v6082 = vadd.f32 %v5967, %v6067
        %v6083 = vadd.f32 %v5968, %v6068
        %v6084 = vsub.f32 1.0, %v5046
        %v6086 = vperm.slane %v6084, 0
        %v6087 = vperm.slane %v6084, 1
        %6088 = vrot.lane.b32.xlu0 %v6086, 74
        %v6089 = vpop.permute.xlu0 %6088
        %6090 = vrot.lane.b32.xlu0 %v6087, 74
        %v6091 = vpop.permute.xlu0 %6090
        %v6092 = vsel %vm5086, %v6089, %v6091
        %v6095 = vadd.f32 %v6082, %v6092
        %v6096 = vadd.f32 %v6083, %v6091
        %v6097 = vrcp.pop %v6095
        %v6098 = vrcp.pop %v6096
        %v6099 = vperm.slane %v6097, 0
        %v6100 = vperm.slane %v6098, 0
        %v6101 = vmul.f32 %v6080, %v6099
        %v6102 = vmul.f32 %v6081, %v6100
        %v6104 = vrot.slane %v6101, 1
        %v6105 = vrot.slane %v6101, 2
        %v6106 = vrot.slane %v6101, 3
        %v6107 = vrot.slane %v6101, 4
        %v6108 = vrot.slane %v6101, 5
        %v6109 = vrot.slane %v6101, 6
        %vm6116 = vcmask 122880
        %6117 = vst.msk [vmem:[%s449] sm:$0x1] %vm6116, %v6101
        %6118 = vst.msk [vmem:[%s449 + $0x8] sm:$0x1] %vm6116, %v6104
        %6119 = vst.msk [vmem:[%s449 + $0x10] sm:$0x1] %vm6116, %v6105
        %6120 = vst.msk [vmem:[%s449 + $0x18] sm:$0x1] %vm6116, %v6106
        %6121 = vst.msk [vmem:[%s449 + $0x20] sm:$0x1] %vm6116, %v6107
        %6122 = vst.msk [vmem:[%s449 + $0x28] sm:$0x1] %vm6116, %v6108
        %6123 = vst.msk [vmem:[%s449 + $0x30] sm:$0x1] %vm6116, %v6109
        %v6124 = vperm.slane %v6101, 0
        %v6125 = vperm.slane %v6104, 0
        %v6126 = vperm.slane %v6105, 0
        %v6127 = vperm.slane %v6106, 0
        %v6128 = vperm.slane %v6107, 0
        %v6129 = vperm.slane %v6108, 0
        %v6130 = vperm.slane %v6109, 0
        %6131 = vrot.lane.b32.xlu0 %v6124, 108
        %v6132 = vpop.permute.xlu0 %6131
        %6133 = vrot.lane.b32.xlu0 %v6125, 108
        %v6134 = vpop.permute.xlu0 %6133
        %6135 = vrot.lane.b32.xlu0 %v6126, 108
        %v6136 = vpop.permute.xlu0 %6135
        %6137 = vrot.lane.b32.xlu0 %v6127, 108
        %v6138 = vpop.permute.xlu0 %6137
        %6139 = vrot.lane.b32.xlu0 %v6128, 108
        %v6140 = vpop.permute.xlu0 %6139
        %6141 = vrot.lane.b32.xlu0 %v6129, 108
        %v6142 = vpop.permute.xlu0 %6141
        %6143 = vrot.lane.b32.xlu0 %v6130, 108
        %v6144 = vpop.permute.xlu0 %6143
        %6152 = vst.msk [vmem:[%s449 + $0x1] sm:$0x1] %vm6116, %v6132
        %6153 = vst.msk [vmem:[%s449 + $0x9] sm:$0x1] %vm6116, %v6134
        %6154 = vst.msk [vmem:[%s449 + $0x11] sm:$0x1] %vm6116, %v6136
        %6155 = vst.msk [vmem:[%s449 + $0x19] sm:$0x1] %vm6116, %v6138
        %6156 = vst.msk [vmem:[%s449 + $0x21] sm:$0x1] %vm6116, %v6140
        %6157 = vst.msk [vmem:[%s449 + $0x29] sm:$0x1] %vm6116, %v6142
        %6158 = vst.msk [vmem:[%s449 + $0x31] sm:$0x1] %vm6116, %v6144
        %6159 = vrot.lane.b32.xlu0 %v6124, 88
        %v6160 = vpop.permute.xlu0 %6159
        %6161 = vrot.lane.b32.xlu0 %v6125, 88
        %v6162 = vpop.permute.xlu0 %6161
        %6163 = vrot.lane.b32.xlu0 %v6126, 88
        %v6164 = vpop.permute.xlu0 %6163
        %6165 = vrot.lane.b32.xlu0 %v6127, 88
        %v6166 = vpop.permute.xlu0 %6165
        %6167 = vrot.lane.b32.xlu0 %v6128, 88
        %v6168 = vpop.permute.xlu0 %6167
        %6169 = vrot.lane.b32.xlu0 %v6129, 88
        %v6170 = vpop.permute.xlu0 %6169
        %6171 = vrot.lane.b32.xlu0 %v6130, 88
        %v6172 = vpop.permute.xlu0 %6171
        %6180 = vst.msk [vmem:[%s449 + $0x2] sm:$0x1] %vm6116, %v6160
        %6181 = vst.msk [vmem:[%s449 + $0xa] sm:$0x1] %vm6116, %v6162
        %6182 = vst.msk [vmem:[%s449 + $0x12] sm:$0x1] %vm6116, %v6164
        %6183 = vst.msk [vmem:[%s449 + $0x1a] sm:$0x1] %vm6116, %v6166
        %6184 = vst.msk [vmem:[%s449 + $0x22] sm:$0x1] %vm6116, %v6168
        %6185 = vst.msk [vmem:[%s449 + $0x2a] sm:$0x1] %vm6116, %v6170
        %6186 = vst.msk [vmem:[%s449 + $0x32] sm:$0x1] %vm6116, %v6172
        %6187 = vrot.lane.b32.xlu0 %v6124, 68
        %v6188 = vpop.permute.xlu0 %6187
        %6189 = vrot.lane.b32.xlu0 %v6125, 68
        %v6190 = vpop.permute.xlu0 %6189
        %6191 = vrot.lane.b32.xlu0 %v6126, 68
        %v6192 = vpop.permute.xlu0 %6191
        %6193 = vrot.lane.b32.xlu0 %v6127, 68
        %v6194 = vpop.permute.xlu0 %6193
        %6195 = vrot.lane.b32.xlu0 %v6128, 68
        %v6196 = vpop.permute.xlu0 %6195
        %6197 = vrot.lane.b32.xlu0 %v6129, 68
        %v6198 = vpop.permute.xlu0 %6197
        %6199 = vrot.lane.b32.xlu0 %v6130, 68
        %v6200 = vpop.permute.xlu0 %6199
        %6208 = vst.msk [vmem:[%s449 + $0x3] sm:$0x1] %vm6116, %v6188
        %6209 = vst.msk [vmem:[%s449 + $0xb] sm:$0x1] %vm6116, %v6190
        %6210 = vst.msk [vmem:[%s449 + $0x13] sm:$0x1] %vm6116, %v6192
        %6211 = vst.msk [vmem:[%s449 + $0x1b] sm:$0x1] %vm6116, %v6194
        %6212 = vst.msk [vmem:[%s449 + $0x23] sm:$0x1] %vm6116, %v6196
        %6213 = vst.msk [vmem:[%s449 + $0x2b] sm:$0x1] %vm6116, %v6198
        %6214 = vst.msk [vmem:[%s449 + $0x33] sm:$0x1] %vm6116, %v6200
        %6215 = vrot.lane.b32.xlu0 %v6124, 48
        %v6216 = vpop.permute.xlu0 %6215
        %6217 = vrot.lane.b32.xlu0 %v6125, 48
        %v6218 = vpop.permute.xlu0 %6217
        %6219 = vrot.lane.b32.xlu0 %v6126, 48
        %v6220 = vpop.permute.xlu0 %6219
        %6221 = vrot.lane.b32.xlu0 %v6127, 48
        %v6222 = vpop.permute.xlu0 %6221
        %6223 = vrot.lane.b32.xlu0 %v6128, 48
        %v6224 = vpop.permute.xlu0 %6223
        %6225 = vrot.lane.b32.xlu0 %v6129, 48
        %v6226 = vpop.permute.xlu0 %6225
        %6227 = vrot.lane.b32.xlu0 %v6130, 48
        %v6228 = vpop.permute.xlu0 %6227
        %6236 = vst.msk [vmem:[%s449 + $0x4] sm:$0x1] %vm6116, %v6216
        %6237 = vst.msk [vmem:[%s449 + $0xc] sm:$0x1] %vm6116, %v6218
        %6238 = vst.msk [vmem:[%s449 + $0x14] sm:$0x1] %vm6116, %v6220
        %6239 = vst.msk [vmem:[%s449 + $0x1c] sm:$0x1] %vm6116, %v6222
        %6240 = vst.msk [vmem:[%s449 + $0x24] sm:$0x1] %vm6116, %v6224
        %6241 = vst.msk [vmem:[%s449 + $0x2c] sm:$0x1] %vm6116, %v6226
        %6242 = vst.msk [vmem:[%s449 + $0x34] sm:$0x1] %vm6116, %v6228
        %6243 = vrot.lane.b32.xlu0 %v6124, 28
        %v6244 = vpop.permute.xlu0 %6243
        %6245 = vrot.lane.b32.xlu0 %v6125, 28
        %v6246 = vpop.permute.xlu0 %6245
        %6247 = vrot.lane.b32.xlu0 %v6126, 28
        %v6248 = vpop.permute.xlu0 %6247
        %6249 = vrot.lane.b32.xlu0 %v6127, 28
        %v6250 = vpop.permute.xlu0 %6249
        %6251 = vrot.lane.b32.xlu0 %v6128, 28
        %v6252 = vpop.permute.xlu0 %6251
        %6253 = vrot.lane.b32.xlu0 %v6129, 28
        %v6254 = vpop.permute.xlu0 %6253
        %6255 = vrot.lane.b32.xlu0 %v6130, 28
        %v6256 = vpop.permute.xlu0 %6255
        %6264 = vst.msk [vmem:[%s449 + $0x5] sm:$0x1] %vm6116, %v6244
        %6265 = vst.msk [vmem:[%s449 + $0xd] sm:$0x1] %vm6116, %v6246
        %6266 = vst.msk [vmem:[%s449 + $0x15] sm:$0x1] %vm6116, %v6248
        %6267 = vst.msk [vmem:[%s449 + $0x1d] sm:$0x1] %vm6116, %v6250
        %6268 = vst.msk [vmem:[%s449 + $0x25] sm:$0x1] %vm6116, %v6252
        %6269 = vst.msk [vmem:[%s449 + $0x2d] sm:$0x1] %vm6116, %v6254
        %6270 = vst.msk [vmem:[%s449 + $0x35] sm:$0x1] %vm6116, %v6256
        %v6272 = vrot.slane %v6102, 7
        %vm6273 = vcmask 1040384
        %v6274 = vsel %vm6273, %v6101, %v6272
        %v6275 = vsel %vm538, %v6101, %v6272
        %v6276 = vrot.slane %v6275, 1
        %v6277 = vsel %vm541, %v6101, %v6272
        %v6278 = vrot.slane %v6277, 2
        %v6279 = vsel %vm544, %v6101, %v6272
        %v6280 = vrot.slane %v6279, 3
        %v6281 = vsel %vm547, %v6101, %v6272
        %v6282 = vrot.slane %v6281, 4
        %v6283 = vsel %vm550, %v6101, %v6272
        %v6284 = vrot.slane %v6283, 5
        %v6285 = vsel %vm553, %v6101, %v6272
        %v6286 = vrot.slane %v6285, 6
        %v6287 = vperm.slane %v6274, 0
        %v6288 = vperm.slane %v6274, 1
        %v6289 = vperm.slane %v6276, 0
        %v6290 = vperm.slane %v6276, 1
        %v6291 = vperm.slane %v6278, 0
        %v6292 = vperm.slane %v6278, 1
        %v6293 = vperm.slane %v6280, 0
        %v6294 = vperm.slane %v6280, 1
        %v6295 = vperm.slane %v6282, 0
        %v6296 = vperm.slane %v6282, 1
        %v6297 = vperm.slane %v6284, 0
        %v6298 = vperm.slane %v6284, 1
        %v6299 = vperm.slane %v6286, 0
        %v6300 = vperm.slane %v6286, 1
        %6301 = vrot.lane.b32.xlu0 %v6287, 8
        %v6302 = vpop.permute.xlu0 %6301
        %6303 = vrot.lane.b32.xlu0 %v6288, 8
        %v6304 = vpop.permute.xlu0 %6303
        %6305 = vrot.lane.b32.xlu0 %v6289, 8
        %v6306 = vpop.permute.xlu0 %6305
        %6307 = vrot.lane.b32.xlu0 %v6290, 8
        %v6308 = vpop.permute.xlu0 %6307
        %6309 = vrot.lane.b32.xlu0 %v6291, 8
        %v6310 = vpop.permute.xlu0 %6309
        %6311 = vrot.lane.b32.xlu0 %v6292, 8
        %v6312 = vpop.permute.xlu0 %6311
        %6313 = vrot.lane.b32.xlu0 %v6293, 8
        %v6314 = vpop.permute.xlu0 %6313
        %6315 = vrot.lane.b32.xlu0 %v6294, 8
        %v6316 = vpop.permute.xlu0 %6315
        %6317 = vrot.lane.b32.xlu0 %v6295, 8
        %v6318 = vpop.permute.xlu0 %6317
        %6319 = vrot.lane.b32.xlu0 %v6296, 8
        %v6320 = vpop.permute.xlu0 %6319
        %6321 = vrot.lane.b32.xlu0 %v6297, 8
        %v6322 = vpop.permute.xlu0 %6321
        %6323 = vrot.lane.b32.xlu0 %v6298, 8
        %v6324 = vpop.permute.xlu0 %6323
        %6325 = vrot.lane.b32.xlu0 %v6299, 8
        %v6326 = vpop.permute.xlu0 %6325
        %6327 = vrot.lane.b32.xlu0 %v6300, 8
        %v6328 = vpop.permute.xlu0 %6327
        %vm6329 = vcmask 64512
        %v6330 = vsel %vm6329, %v6302, %v6304
        %v6331 = vsel %vm6329, %v6306, %v6308
        %v6332 = vsel %vm6329, %v6310, %v6312
        %v6333 = vsel %vm6329, %v6314, %v6316
        %v6334 = vsel %vm6329, %v6318, %v6320
        %v6335 = vsel %vm6329, %v6322, %v6324
        %v6336 = vsel %vm6329, %v6326, %v6328
        %6344 = vst.msk [vmem:[%s449 + $0x6] sm:$0x1] %vm6116, %v6330
        %6345 = vst.msk [vmem:[%s449 + $0xe] sm:$0x1] %vm6116, %v6331
        %6346 = vst.msk [vmem:[%s449 + $0x16] sm:$0x1] %vm6116, %v6332
        %6347 = vst.msk [vmem:[%s449 + $0x1e] sm:$0x1] %vm6116, %v6333
        %6348 = vst.msk [vmem:[%s449 + $0x26] sm:$0x1] %vm6116, %v6334
        %6349 = vst.msk [vmem:[%s449 + $0x2e] sm:$0x1] %vm6116, %v6335
        %6350 = vst.msk [vmem:[%s449 + $0x36] sm:$0x1] %vm6116, %v6336
        %v6351 = vrot.slane %v6102, 1
        %v6352 = vrot.slane %v6102, 2
        %v6353 = vrot.slane %v6102, 3
        %v6354 = vrot.slane %v6102, 4
        %v6355 = vrot.slane %v6102, 5
        %v6356 = vrot.slane %v6102, 6
        %v6357 = vperm.slane %v6102, 0
        %v6358 = vperm.slane %v6351, 0
        %v6359 = vperm.slane %v6352, 0
        %v6360 = vperm.slane %v6353, 0
        %v6361 = vperm.slane %v6354, 0
        %v6362 = vperm.slane %v6355, 0
        %v6363 = vperm.slane %v6356, 0
        %6364 = vrot.lane.b32.xlu0 %v6357, 116
        %v6365 = vpop.permute.xlu0 %6364
        %6366 = vrot.lane.b32.xlu0 %v6358, 116
        %v6367 = vpop.permute.xlu0 %6366
        %6368 = vrot.lane.b32.xlu0 %v6359, 116
        %v6369 = vpop.permute.xlu0 %6368
        %6370 = vrot.lane.b32.xlu0 %v6360, 116
        %v6371 = vpop.permute.xlu0 %6370
        %6372 = vrot.lane.b32.xlu0 %v6361, 116
        %v6373 = vpop.permute.xlu0 %6372
        %6374 = vrot.lane.b32.xlu0 %v6362, 116
        %v6375 = vpop.permute.xlu0 %6374
        %6376 = vrot.lane.b32.xlu0 %v6363, 116
        %v6377 = vpop.permute.xlu0 %6376
        %6385 = vst.msk [vmem:[%s449 + $0x7] sm:$0x1] %vm6116, %v6365
        %6386 = vst.msk [vmem:[%s449 + $0xf] sm:$0x1] %vm6116, %v6367
        %6387 = vst.msk [vmem:[%s449 + $0x17] sm:$0x1] %vm6116, %v6369
        %6388 = vst.msk [vmem:[%s449 + $0x1f] sm:$0x1] %vm6116, %v6371
        %6389 = vst.msk [vmem:[%s449 + $0x27] sm:$0x1] %vm6116, %v6373
        %6390 = vst.msk [vmem:[%s449 + $0x2f] sm:$0x1] %vm6116, %v6375
        %6391 = vst.msk [vmem:[%s449 + $0x37] sm:$0x1] %vm6116, %v6377
        %v6392 = vld [vmem:[#allocation9 + $0x8] sm:$0x80]
        %v6393 = vld [vmem:[#allocation9 + $0x30] sm:$0x7f]
        %6396 = vst [vmem:[#allocation1] sm:$0xff] %v6392
        %s6397 = scalar_lea.vmem [#allocation1], 7
        %v6398 = vld [vmem:[%s6397] ss:$9 sm:$0xff]
        %6399 = vst [vmem:[#allocation1] sm:$0xff] %v6393
        %v6400 = vld [vmem:[#allocation1] ss:$9 sm:$0xff]
        %s6401 = scalar_lea.vmem [#allocation1], 1
        %v6402 = vld [vmem:[%s6401] ss:$9 sm:$0xff]
        %s6403 = scalar_lea.vmem [#allocation1], 2
        %v6404 = vld [vmem:[%s6403] ss:$9 sm:$0xff]
        %s6405 = scalar_lea.vmem [#allocation1], 3
        %v6406 = vld [vmem:[%s6405] ss:$9 sm:$0xff]
        %s6407 = scalar_lea.vmem [#allocation1], 4
        %v6408 = vld [vmem:[%s6407] ss:$9 sm:$0xff]
        %s6409 = scalar_lea.vmem [#allocation1], 5
        %v6410 = vld [vmem:[%s6409] ss:$9 sm:$0xff]
        %s6411 = scalar_lea.vmem [#allocation1], 6
        %v6412 = vld [vmem:[%s6411] ss:$9 sm:$0xff]
        %v6413 = vperm.slane %v6398, 0
        %v6414 = vperm.slane %v6400, 0
        %v6415 = vperm.slane %v6402, 0
        %v6416 = vperm.slane %v6404, 0
        %v6417 = vperm.slane %v6406, 0
        %v6418 = vperm.slane %v6408, 0
        %v6419 = vperm.slane %v6410, 0
        %v6420 = vperm.slane %v6412, 0
        %6421 = vrot.lane.b32.xlu0 %v6413, 74
        %v6422 = vpop.permute.xlu0 %6421
        %6423 = vrot.lane.b32.xlu0 %v6414, 74
        %v6424 = vpop.permute.xlu0 %6423
        %6425 = vrot.lane.b32.xlu0 %v6415, 74
        %v6426 = vpop.permute.xlu0 %6425
        %6427 = vrot.lane.b32.xlu0 %v6416, 74
        %v6428 = vpop.permute.xlu0 %6427
        %6429 = vrot.lane.b32.xlu0 %v6417, 74
        %v6430 = vpop.permute.xlu0 %6429
        %6431 = vrot.lane.b32.xlu0 %v6418, 74
        %v6432 = vpop.permute.xlu0 %6431
        %6433 = vrot.lane.b32.xlu0 %v6419, 74
        %v6434 = vpop.permute.xlu0 %6433
        %6435 = vrot.lane.b32.xlu0 %v6420, 74
        %v6436 = vpop.permute.xlu0 %6435
        %s6445 = scalar_lea.vmem %s449, 56 [#allocation19]
        %6446 = vst.msk [vmem:[%s6445] sm:$0x1] %vm6116, %v6422
        %6447 = vst.msk [vmem:[%s6445 + $0x8] sm:$0x1] %vm6116, %v6424
        %6448 = vst.msk [vmem:[%s6445 + $0x10] sm:$0x1] %vm6116, %v6426
        %6449 = vst.msk [vmem:[%s6445 + $0x18] sm:$0x1] %vm6116, %v6428
        %6450 = vst.msk [vmem:[%s6445 + $0x20] sm:$0x1] %vm6116, %v6430
        %6451 = vst.msk [vmem:[%s6445 + $0x28] sm:$0x1] %vm6116, %v6432
        %6452 = vst.msk [vmem:[%s6445 + $0x30] sm:$0x1] %vm6116, %v6434
        %6453 = vst.msk [vmem:[%s6445 + $0x38] sm:$0x1] %vm6116, %v6436
        %v6454 = vld [vmem:[#allocation9 + $0x8] sm:$0x80]
        %v6455 = vld [vmem:[#allocation9 + $0x30] sm:$0x7f]
        %6458 = vst [vmem:[#allocation1] sm:$0xff] %v6454
        %s6459 = scalar_lea.vmem [#allocation1], 7
        %v6460 = vld [vmem:[%s6459] ss:$9 sm:$0xff]
        %6461 = vst [vmem:[#allocation1] sm:$0xff] %v6455
        %v6462 = vld [vmem:[#allocation1] ss:$9 sm:$0xff]
        %s6463 = scalar_lea.vmem [#allocation1], 1
        %v6464 = vld [vmem:[%s6463] ss:$9 sm:$0xff]
        %s6465 = scalar_lea.vmem [#allocation1], 2
        %v6466 = vld [vmem:[%s6465] ss:$9 sm:$0xff]
        %s6467 = scalar_lea.vmem [#allocation1], 3
        %v6468 = vld [vmem:[%s6467] ss:$9 sm:$0xff]
        %s6469 = scalar_lea.vmem [#allocation1], 4
        %v6470 = vld [vmem:[%s6469] ss:$9 sm:$0xff]
        %s6471 = scalar_lea.vmem [#allocation1], 5
        %v6472 = vld [vmem:[%s6471] ss:$9 sm:$0xff]
        %s6473 = scalar_lea.vmem [#allocation1], 6
        %v6474 = vld [vmem:[%s6473] ss:$9 sm:$0xff]
        %v6475 = vperm.slane %v6460, 0
        %v6476 = vperm.slane %v6462, 0
        %v6477 = vperm.slane %v6464, 0
        %v6478 = vperm.slane %v6466, 0
        %v6479 = vperm.slane %v6468, 0
        %v6480 = vperm.slane %v6470, 0
        %v6481 = vperm.slane %v6472, 0
        %v6482 = vperm.slane %v6474, 0
        %6483 = vrot.lane.b32.xlu0 %v6475, 54
        %v6484 = vpop.permute.xlu0 %6483
        %6485 = vrot.lane.b32.xlu0 %v6476, 54
        %v6486 = vpop.permute.xlu0 %6485
        %6487 = vrot.lane.b32.xlu0 %v6477, 54
        %v6488 = vpop.permute.xlu0 %6487
        %6489 = vrot.lane.b32.xlu0 %v6478, 54
        %v6490 = vpop.permute.xlu0 %6489
        %6491 = vrot.lane.b32.xlu0 %v6479, 54
        %v6492 = vpop.permute.xlu0 %6491
        %6493 = vrot.lane.b32.xlu0 %v6480, 54
        %v6494 = vpop.permute.xlu0 %6493
        %6495 = vrot.lane.b32.xlu0 %v6481, 54
        %v6496 = vpop.permute.xlu0 %6495
        %6497 = vrot.lane.b32.xlu0 %v6482, 54
        %v6498 = vpop.permute.xlu0 %6497
        %6507 = vst.msk [vmem:[%s6445 + $0x1] sm:$0x1] %vm6116, %v6484
        %6508 = vst.msk [vmem:[%s6445 + $0x9] sm:$0x1] %vm6116, %v6486
        %6509 = vst.msk [vmem:[%s6445 + $0x11] sm:$0x1] %vm6116, %v6488
        %6510 = vst.msk [vmem:[%s6445 + $0x19] sm:$0x1] %vm6116, %v6490
        %6511 = vst.msk [vmem:[%s6445 + $0x21] sm:$0x1] %vm6116, %v6492
        %6512 = vst.msk [vmem:[%s6445 + $0x29] sm:$0x1] %vm6116, %v6494
        %6513 = vst.msk [vmem:[%s6445 + $0x31] sm:$0x1] %vm6116, %v6496
        %6514 = vst.msk [vmem:[%s6445 + $0x39] sm:$0x1] %vm6116, %v6498
        %v6515 = vld [vmem:[#allocation9 + $0x8] sm:$0x80]
        %v6516 = vld [vmem:[#allocation9 + $0x30] sm:$0x7f]
        %6519 = vst [vmem:[#allocation1] sm:$0xff] %v6515
        %s6520 = scalar_lea.vmem [#allocation1], 7
        %v6521 = vld [vmem:[%s6520] ss:$9 sm:$0xff]
        %6522 = vst [vmem:[#allocation1] sm:$0xff] %v6516
        %v6523 = vld [vmem:[#allocation1] ss:$9 sm:$0xff]
        %s6524 = scalar_lea.vmem [#allocation1], 1
        %v6525 = vld [vmem:[%s6524] ss:$9 sm:$0xff]
        %s6526 = scalar_lea.vmem [#allocation1], 2
        %v6527 = vld [vmem:[%s6526] ss:$9 sm:$0xff]
        %s6528 = scalar_lea.vmem [#allocation1], 3
        %v6529 = vld [vmem:[%s6528] ss:$9 sm:$0xff]
        %s6530 = scalar_lea.vmem [#allocation1], 4
        %v6531 = vld [vmem:[%s6530] ss:$9 sm:$0xff]
        %s6532 = scalar_lea.vmem [#allocation1], 5
        %v6533 = vld [vmem:[%s6532] ss:$9 sm:$0xff]
        %s6534 = scalar_lea.vmem [#allocation1], 6
        %v6535 = vld [vmem:[%s6534] ss:$9 sm:$0xff]
        %v6536 = vperm.slane %v6521, 0
        %v6537 = vperm.slane %v6523, 0
        %v6538 = vperm.slane %v6525, 0
        %v6539 = vperm.slane %v6527, 0
        %v6540 = vperm.slane %v6529, 0
        %v6541 = vperm.slane %v6531, 0
        %v6542 = vperm.slane %v6533, 0
        %v6543 = vperm.slane %v6535, 0
        %6544 = vrot.lane.b32.xlu0 %v6536, 34
        %v6545 = vpop.permute.xlu0 %6544
        %6546 = vrot.lane.b32.xlu0 %v6537, 34
        %v6547 = vpop.permute.xlu0 %6546
        %6548 = vrot.lane.b32.xlu0 %v6538, 34
        %v6549 = vpop.permute.xlu0 %6548
        %6550 = vrot.lane.b32.xlu0 %v6539, 34
        %v6551 = vpop.permute.xlu0 %6550
        %6552 = vrot.lane.b32.xlu0 %v6540, 34
        %v6553 = vpop.permute.xlu0 %6552
        %6554 = vrot.lane.b32.xlu0 %v6541, 34
        %v6555 = vpop.permute.xlu0 %6554
        %6556 = vrot.lane.b32.xlu0 %v6542, 34
        %v6557 = vpop.permute.xlu0 %6556
        %6558 = vrot.lane.b32.xlu0 %v6543, 34
        %v6559 = vpop.permute.xlu0 %6558
        %6568 = vst.msk [vmem:[%s6445 + $0x2] sm:$0x1] %vm6116, %v6545
        %6569 = vst.msk [vmem:[%s6445 + $0xa] sm:$0x1] %vm6116, %v6547
        %6570 = vst.msk [vmem:[%s6445 + $0x12] sm:$0x1] %vm6116, %v6549
        %6571 = vst.msk [vmem:[%s6445 + $0x1a] sm:$0x1] %vm6116, %v6551
        %6572 = vst.msk [vmem:[%s6445 + $0x22] sm:$0x1] %vm6116, %v6553
        %6573 = vst.msk [vmem:[%s6445 + $0x2a] sm:$0x1] %vm6116, %v6555
        %6574 = vst.msk [vmem:[%s6445 + $0x32] sm:$0x1] %vm6116, %v6557
        %6575 = vst.msk [vmem:[%s6445 + $0x3a] sm:$0x1] %vm6116, %v6559
        %v6576 = vld [vmem:[#allocation9 + $0x8] sm:$0x80]
        %v6577 = vld [vmem:[#allocation9 + $0x10] sm:$0x80]
        %v6578 = vld [vmem:[#allocation9 + $0x30] sm:$0x7f]
        %v6579 = vld [vmem:[#allocation9 + $0x38] sm:$0x7f]
        %6584 = vst [vmem:[#allocation1] sm:$0xff] %v6576
        %6585 = vst [vmem:[#allocation1 + $0x9] sm:$0xff] %v6577
        %s6586 = scalar_lea.vmem [#allocation1], 7
        %v6587 = vld [vmem:[%s6586] ss:$9 sm:$0xff]
        %6588 = vst [vmem:[#allocation1] sm:$0xff] %v6578
        %6589 = vst [vmem:[#allocation1 + $0x9] sm:$0xff] %v6579
        %v6590 = vld [vmem:[#allocation1] ss:$9 sm:$0xff]
        %s6591 = scalar_lea.vmem [#allocation1], 1
        %v6592 = vld [vmem:[%s6591] ss:$9 sm:$0xff]
        %s6593 = scalar_lea.vmem [#allocation1], 2
        %v6594 = vld [vmem:[%s6593] ss:$9 sm:$0xff]
        %s6595 = scalar_lea.vmem [#allocation1], 3
        %v6596 = vld [vmem:[%s6595] ss:$9 sm:$0xff]
        %s6597 = scalar_lea.vmem [#allocation1], 4
        %v6598 = vld [vmem:[%s6597] ss:$9 sm:$0xff]
        %s6599 = scalar_lea.vmem [#allocation1], 5
        %v6600 = vld [vmem:[%s6599] ss:$9 sm:$0xff]
        %s6601 = scalar_lea.vmem [#allocation1], 6
        %v6602 = vld [vmem:[%s6601] ss:$9 sm:$0xff]
        %v6603 = vperm.slane %v6587, 0
        %v6604 = vperm.slane %v6587, 1
        %v6605 = vperm.slane %v6590, 0
        %v6606 = vperm.slane %v6590, 1
        %v6607 = vperm.slane %v6592, 0
        %v6608 = vperm.slane %v6592, 1
        %v6609 = vperm.slane %v6594, 0
        %v6610 = vperm.slane %v6594, 1
        %v6611 = vperm.slane %v6596, 0
        %v6612 = vperm.slane %v6596, 1
        %v6613 = vperm.slane %v6598, 0
        %v6614 = vperm.slane %v6598, 1
        %v6615 = vperm.slane %v6600, 0
        %v6616 = vperm.slane %v6600, 1
        %v6617 = vperm.slane %v6602, 0
        %v6618 = vperm.slane %v6602, 1
        %6619 = vrot.lane.b32.xlu0 %v6603, 14
        %v6620 = vpop.permute.xlu0 %6619
        %6621 = vrot.lane.b32.xlu0 %v6604, 14
        %v6622 = vpop.permute.xlu0 %6621
        %6623 = vrot.lane.b32.xlu0 %v6605, 14
        %v6624 = vpop.permute.xlu0 %6623
        %6625 = vrot.lane.b32.xlu0 %v6606, 14
        %v6626 = vpop.permute.xlu0 %6625
        %6627 = vrot.lane.b32.xlu0 %v6607, 14
        %v6628 = vpop.permute.xlu0 %6627
        %6629 = vrot.lane.b32.xlu0 %v6608, 14
        %v6630 = vpop.permute.xlu0 %6629
        %6631 = vrot.lane.b32.xlu0 %v6609, 14
        %v6632 = vpop.permute.xlu0 %6631
        %6633 = vrot.lane.b32.xlu0 %v6610, 14
        %v6634 = vpop.permute.xlu0 %6633
        %6635 = vrot.lane.b32.xlu0 %v6611, 14
        %v6636 = vpop.permute.xlu0 %6635
        %6637 = vrot.lane.b32.xlu0 %v6612, 14
        %v6638 = vpop.permute.xlu0 %6637
        %6639 = vrot.lane.b32.xlu0 %v6613, 14
        %v6640 = vpop.permute.xlu0 %6639
        %6641 = vrot.lane.b32.xlu0 %v6614, 14
        %v6642 = vpop.permute.xlu0 %6641
        %6643 = vrot.lane.b32.xlu0 %v6615, 14
        %v6644 = vpop.permute.xlu0 %6643
        %6645 = vrot.lane.b32.xlu0 %v6616, 14
        %v6646 = vpop.permute.xlu0 %6645
        %6647 = vrot.lane.b32.xlu0 %v6617, 14
        %v6648 = vpop.permute.xlu0 %6647
        %6649 = vrot.lane.b32.xlu0 %v6618, 14
        %v6650 = vpop.permute.xlu0 %6649
        %v6651 = vsel %vm1586, %v6620, %v6622
        %v6652 = vsel %vm1586, %v6624, %v6626
        %v6653 = vsel %vm1586, %v6628, %v6630
        %v6654 = vsel %vm1586, %v6632, %v6634
        %v6655 = vsel %vm1586, %v6636, %v6638
        %v6656 = vsel %vm1586, %v6640, %v6642
        %v6657 = vsel %vm1586, %v6644, %v6646
        %v6658 = vsel %vm1586, %v6648, %v6650
        %6667 = vst.msk [vmem:[%s6445 + $0x3] sm:$0x1] %vm6116, %v6651
        %6668 = vst.msk [vmem:[%s6445 + $0xb] sm:$0x1] %vm6116, %v6652
        %6669 = vst.msk [vmem:[%s6445 + $0x13] sm:$0x1] %vm6116, %v6653
        %6670 = vst.msk [vmem:[%s6445 + $0x1b] sm:$0x1] %vm6116, %v6654
        %6671 = vst.msk [vmem:[%s6445 + $0x23] sm:$0x1] %vm6116, %v6655
        %6672 = vst.msk [vmem:[%s6445 + $0x2b] sm:$0x1] %vm6116, %v6656
        %6673 = vst.msk [vmem:[%s6445 + $0x33] sm:$0x1] %vm6116, %v6657
        %6674 = vst.msk [vmem:[%s6445 + $0x3b] sm:$0x1] %vm6116, %v6658
        %v6675 = vld [vmem:[#allocation9 + $0x10] sm:$0x80]
        %v6676 = vld [vmem:[#allocation9 + $0x38] sm:$0x7f]
        %6679 = vst [vmem:[#allocation1] sm:$0xff] %v6675
        %s6680 = scalar_lea.vmem [#allocation1], 7
        %v6681 = vld [vmem:[%s6680] ss:$9 sm:$0xff]
        %6682 = vst [vmem:[#allocation1] sm:$0xff] %v6676
        %v6683 = vld [vmem:[#allocation1] ss:$9 sm:$0xff]
        %s6684 = scalar_lea.vmem [#allocation1], 1
        %v6685 = vld [vmem:[%s6684] ss:$9 sm:$0xff]
        %s6686 = scalar_lea.vmem [#allocation1], 2
        %v6687 = vld [vmem:[%s6686] ss:$9 sm:$0xff]
        %s6688 = scalar_lea.vmem [#allocation1], 3
        %v6689 = vld [vmem:[%s6688] ss:$9 sm:$0xff]
        %s6690 = scalar_lea.vmem [#allocation1], 4
        %v6691 = vld [vmem:[%s6690] ss:$9 sm:$0xff]
        %s6692 = scalar_lea.vmem [#allocation1], 5
        %v6693 = vld [vmem:[%s6692] ss:$9 sm:$0xff]
        %s6694 = scalar_lea.vmem [#allocation1], 6
        %v6695 = vld [vmem:[%s6694] ss:$9 sm:$0xff]
        %v6696 = vperm.slane %v6681, 0
        %v6697 = vperm.slane %v6683, 0
        %v6698 = vperm.slane %v6685, 0
        %v6699 = vperm.slane %v6687, 0
        %v6700 = vperm.slane %v6689, 0
        %v6701 = vperm.slane %v6691, 0
        %v6702 = vperm.slane %v6693, 0
        %v6703 = vperm.slane %v6695, 0
        %6704 = vrot.lane.b32.xlu0 %v6696, 122
        %v6705 = vpop.permute.xlu0 %6704
        %6706 = vrot.lane.b32.xlu0 %v6697, 122
        %v6707 = vpop.permute.xlu0 %6706
        %6708 = vrot.lane.b32.xlu0 %v6698, 122
        %v6709 = vpop.permute.xlu0 %6708
        %6710 = vrot.lane.b32.xlu0 %v6699, 122
        %v6711 = vpop.permute.xlu0 %6710
        %6712 = vrot.lane.b32.xlu0 %v6700, 122
        %v6713 = vpop.permute.xlu0 %6712
        %6714 = vrot.lane.b32.xlu0 %v6701, 122
        %v6715 = vpop.permute.xlu0 %6714
        %6716 = vrot.lane.b32.xlu0 %v6702, 122
        %v6717 = vpop.permute.xlu0 %6716
        %6718 = vrot.lane.b32.xlu0 %v6703, 122
        %v6719 = vpop.permute.xlu0 %6718
        %6728 = vst.msk [vmem:[%s6445 + $0x4] sm:$0x1] %vm6116, %v6705
        %6729 = vst.msk [vmem:[%s6445 + $0xc] sm:$0x1] %vm6116, %v6707
        %6730 = vst.msk [vmem:[%s6445 + $0x14] sm:$0x1] %vm6116, %v6709
        %6731 = vst.msk [vmem:[%s6445 + $0x1c] sm:$0x1] %vm6116, %v6711
        %6732 = vst.msk [vmem:[%s6445 + $0x24] sm:$0x1] %vm6116, %v6713
        %6733 = vst.msk [vmem:[%s6445 + $0x2c] sm:$0x1] %vm6116, %v6715
        %6734 = vst.msk [vmem:[%s6445 + $0x34] sm:$0x1] %vm6116, %v6717
        %6735 = vst.msk [vmem:[%s6445 + $0x3c] sm:$0x1] %vm6116, %v6719
        %v6736 = vld [vmem:[#allocation9 + $0x10] sm:$0x80]
        %v6737 = vld [vmem:[#allocation9 + $0x38] sm:$0x7f]
        %6740 = vst [vmem:[#allocation1] sm:$0xff] %v6736
        %s6741 = scalar_lea.vmem [#allocation1], 7
        %v6742 = vld [vmem:[%s6741] ss:$9 sm:$0xff]
        %6743 = vst [vmem:[#allocation1] sm:$0xff] %v6737
        %v6744 = vld [vmem:[#allocation1] ss:$9 sm:$0xff]
        %s6745 = scalar_lea.vmem [#allocation1], 1
        %v6746 = vld [vmem:[%s6745] ss:$9 sm:$0xff]
        %s6747 = scalar_lea.vmem [#allocation1], 2
        %v6748 = vld [vmem:[%s6747] ss:$9 sm:$0xff]
        %s6749 = scalar_lea.vmem [#allocation1], 3
        %v6750 = vld [vmem:[%s6749] ss:$9 sm:$0xff]
        %s6751 = scalar_lea.vmem [#allocation1], 4
        %v6752 = vld [vmem:[%s6751] ss:$9 sm:$0xff]
        %s6753 = scalar_lea.vmem [#allocation1], 5
        %v6754 = vld [vmem:[%s6753] ss:$9 sm:$0xff]
        %s6755 = scalar_lea.vmem [#allocation1], 6
        %v6756 = vld [vmem:[%s6755] ss:$9 sm:$0xff]
        %v6757 = vperm.slane %v6742, 0
        %v6758 = vperm.slane %v6744, 0
        %v6759 = vperm.slane %v6746, 0
        %v6760 = vperm.slane %v6748, 0
        %v6761 = vperm.slane %v6750, 0
        %v6762 = vperm.slane %v6752, 0
        %v6763 = vperm.slane %v6754, 0
        %v6764 = vperm.slane %v6756, 0
        %6765 = vrot.lane.b32.xlu0 %v6757, 102
        %v6766 = vpop.permute.xlu0 %6765
        %6767 = vrot.lane.b32.xlu0 %v6758, 102
        %v6768 = vpop.permute.xlu0 %6767
        %6769 = vrot.lane.b32.xlu0 %v6759, 102
        %v6770 = vpop.permute.xlu0 %6769
        %6771 = vrot.lane.b32.xlu0 %v6760, 102
        %v6772 = vpop.permute.xlu0 %6771
        %6773 = vrot.lane.b32.xlu0 %v6761, 102
        %v6774 = vpop.permute.xlu0 %6773
        %6775 = vrot.lane.b32.xlu0 %v6762, 102
        %v6776 = vpop.permute.xlu0 %6775
        %6777 = vrot.lane.b32.xlu0 %v6763, 102
        %v6778 = vpop.permute.xlu0 %6777
        %6779 = vrot.lane.b32.xlu0 %v6764, 102
        %v6780 = vpop.permute.xlu0 %6779
        %6789 = vst.msk [vmem:[%s6445 + $0x5] sm:$0x1] %vm6116, %v6766
        %6790 = vst.msk [vmem:[%s6445 + $0xd] sm:$0x1] %vm6116, %v6768
        %6791 = vst.msk [vmem:[%s6445 + $0x15] sm:$0x1] %vm6116, %v6770
        %6792 = vst.msk [vmem:[%s6445 + $0x1d] sm:$0x1] %vm6116, %v6772
        %6793 = vst.msk [vmem:[%s6445 + $0x25] sm:$0x1] %vm6116, %v6774
        %6794 = vst.msk [vmem:[%s6445 + $0x2d] sm:$0x1] %vm6116, %v6776
        %6795 = vst.msk [vmem:[%s6445 + $0x35] sm:$0x1] %vm6116, %v6778
        %6796 = vst.msk [vmem:[%s6445 + $0x3d] sm:$0x1] %vm6116, %v6780
        %v6797 = vld [vmem:[#allocation9 + $0x10] sm:$0x80]
        %v6798 = vld [vmem:[#allocation9 + $0x38] sm:$0x7f]
        %6801 = vst [vmem:[#allocation1] sm:$0xff] %v6797
        %s6802 = scalar_lea.vmem [#allocation1], 7
        %v6803 = vld [vmem:[%s6802] ss:$9 sm:$0xff]
        %6804 = vst [vmem:[#allocation1] sm:$0xff] %v6798
        %v6805 = vld [vmem:[#allocation1] ss:$9 sm:$0xff]
        %s6806 = scalar_lea.vmem [#allocation1], 1
        %v6807 = vld [vmem:[%s6806] ss:$9 sm:$0xff]
        %s6808 = scalar_lea.vmem [#allocation1], 2
        %v6809 = vld [vmem:[%s6808] ss:$9 sm:$0xff]
        %s6810 = scalar_lea.vmem [#allocation1], 3
        %v6811 = vld [vmem:[%s6810] ss:$9 sm:$0xff]
        %s6812 = scalar_lea.vmem [#allocation1], 4
        %v6813 = vld [vmem:[%s6812] ss:$9 sm:$0xff]
        %s6814 = scalar_lea.vmem [#allocation1], 5
        %v6815 = vld [vmem:[%s6814] ss:$9 sm:$0xff]
        %s6816 = scalar_lea.vmem [#allocation1], 6
        %v6817 = vld [vmem:[%s6816] ss:$9 sm:$0xff]
        %v6818 = vperm.slane %v6803, 0
        %v6819 = vperm.slane %v6805, 0
        %v6820 = vperm.slane %v6807, 0
        %v6821 = vperm.slane %v6809, 0
        %v6822 = vperm.slane %v6811, 0
        %v6823 = vperm.slane %v6813, 0
        %v6824 = vperm.slane %v6815, 0
        %v6825 = vperm.slane %v6817, 0
        %6826 = vrot.lane.b32.xlu0 %v6818, 82
        %v6827 = vpop.permute.xlu0 %6826
        %6828 = vrot.lane.b32.xlu0 %v6819, 82
        %v6829 = vpop.permute.xlu0 %6828
        %6830 = vrot.lane.b32.xlu0 %v6820, 82
        %v6831 = vpop.permute.xlu0 %6830
        %6832 = vrot.lane.b32.xlu0 %v6821, 82
        %v6833 = vpop.permute.xlu0 %6832
        %6834 = vrot.lane.b32.xlu0 %v6822, 82
        %v6835 = vpop.permute.xlu0 %6834
        %6836 = vrot.lane.b32.xlu0 %v6823, 82
        %v6837 = vpop.permute.xlu0 %6836
        %6838 = vrot.lane.b32.xlu0 %v6824, 82
        %v6839 = vpop.permute.xlu0 %6838
        %6840 = vrot.lane.b32.xlu0 %v6825, 82
        %v6841 = vpop.permute.xlu0 %6840
        %6850 = vst.msk [vmem:[%s6445 + $0x6] sm:$0x1] %vm6116, %v6827
        %6851 = vst.msk [vmem:[%s6445 + $0xe] sm:$0x1] %vm6116, %v6829
        %6852 = vst.msk [vmem:[%s6445 + $0x16] sm:$0x1] %vm6116, %v6831
        %6853 = vst.msk [vmem:[%s6445 + $0x1e] sm:$0x1] %vm6116, %v6833
        %6854 = vst.msk [vmem:[%s6445 + $0x26] sm:$0x1] %vm6116, %v6835
        %6855 = vst.msk [vmem:[%s6445 + $0x2e] sm:$0x1] %vm6116, %v6837
        %6856 = vst.msk [vmem:[%s6445 + $0x36] sm:$0x1] %vm6116, %v6839
        %6857 = vst.msk [vmem:[%s6445 + $0x3e] sm:$0x1] %vm6116, %v6841
        %v6858 = vld [vmem:[#allocation9 + $0x10] sm:$0x80]
        %v6859 = vld [vmem:[#allocation9 + $0x38] sm:$0x7f]
        %6862 = vst [vmem:[#allocation1] sm:$0xff] %v6858
        %s6863 = scalar_lea.vmem [#allocation1], 7
        %v6864 = vld [vmem:[%s6863] ss:$9 sm:$0xff]
        %6865 = vst [vmem:[#allocation1] sm:$0xff] %v6859
        %v6866 = vld [vmem:[#allocation1] ss:$9 sm:$0xff]
        %s6867 = scalar_lea.vmem [#allocation1], 1
        %v6868 = vld [vmem:[%s6867] ss:$9 sm:$0xff]
        %s6869 = scalar_lea.vmem [#allocation1], 2
        %v6870 = vld [vmem:[%s6869] ss:$9 sm:$0xff]
        %s6871 = scalar_lea.vmem [#allocation1], 3
        %v6872 = vld [vmem:[%s6871] ss:$9 sm:$0xff]
        %s6873 = scalar_lea.vmem [#allocation1], 4
        %v6874 = vld [vmem:[%s6873] ss:$9 sm:$0xff]
        %s6875 = scalar_lea.vmem [#allocation1], 5
        %v6876 = vld [vmem:[%s6875] ss:$9 sm:$0xff]
        %s6877 = scalar_lea.vmem [#allocation1], 6
        %v6878 = vld [vmem:[%s6877] ss:$9 sm:$0xff]
        %v6879 = vperm.slane %v6864, 0
        %v6880 = vperm.slane %v6866, 0
        %v6881 = vperm.slane %v6868, 0
        %v6882 = vperm.slane %v6870, 0
        %v6883 = vperm.slane %v6872, 0
        %v6884 = vperm.slane %v6874, 0
        %v6885 = vperm.slane %v6876, 0
        %v6886 = vperm.slane %v6878, 0
        %6887 = vrot.lane.b32.xlu0 %v6879, 62
        %v6888 = vpop.permute.xlu0 %6887
        %6889 = vrot.lane.b32.xlu0 %v6880, 62
        %v6890 = vpop.permute.xlu0 %6889
        %6891 = vrot.lane.b32.xlu0 %v6881, 62
        %v6892 = vpop.permute.xlu0 %6891
        %6893 = vrot.lane.b32.xlu0 %v6882, 62
        %v6894 = vpop.permute.xlu0 %6893
        %6895 = vrot.lane.b32.xlu0 %v6883, 62
        %v6896 = vpop.permute.xlu0 %6895
        %6897 = vrot.lane.b32.xlu0 %v6884, 62
        %v6898 = vpop.permute.xlu0 %6897
        %6899 = vrot.lane.b32.xlu0 %v6885, 62
        %v6900 = vpop.permute.xlu0 %6899
        %6901 = vrot.lane.b32.xlu0 %v6886, 62
        %v6902 = vpop.permute.xlu0 %6901
        %6911 = vst.msk [vmem:[%s6445 + $0x7] sm:$0x1] %vm6116, %v6888
        %6912 = vst.msk [vmem:[%s6445 + $0xf] sm:$0x1] %vm6116, %v6890
        %6913 = vst.msk [vmem:[%s6445 + $0x17] sm:$0x1] %vm6116, %v6892
        %6914 = vst.msk [vmem:[%s6445 + $0x1f] sm:$0x1] %vm6116, %v6894
        %6915 = vst.msk [vmem:[%s6445 + $0x27] sm:$0x1] %vm6116, %v6896
        %6916 = vst.msk [vmem:[%s6445 + $0x2f] sm:$0x1] %vm6116, %v6898
        %6917 = vst.msk [vmem:[%s6445 + $0x37] sm:$0x1] %vm6116, %v6900
        %6918 = vst.msk [vmem:[%s6445 + $0x3f] sm:$0x1] %vm6116, %v6902
        %s6919 = sand.u32 %s288, 1
        %s6920 = scalar_lea.sflag [#allocation14], %s6919
        %s6921 = sand.u32 %s288, 1
        %s6922 = smul.addr %s6921, 120
        %s6923 = scalar_lea.vmem [#allocation19], %s6922
        // Predicated region
        $region77: #{tpu_custom_call.1} parent=63 // pred_check
          %p6924 = pneg %p298
        $region78: #{tpu_custom_call.1} parent=63 // pred_check_branch
          %6926 = sbr.rel (%p6924) target = $region80
        $region79: #{tpu_custom_call.1} parent=63 // pred_region
          %6928 = vsyncadd %s6920, 0
          %s6929 = smul.addr %s34, 30
          %s6930 = sadd.s32 %s35, %s6929
          %s6931 = smul.addr %s6930, 8
          %s6932 = scalar_lea.hbm %s11, %s6931
          %s6933 = sshll.u32 %s6923, 4
          %s6934 = int_to_ptr.vmem [resolvable:$true] %s6933
          %s6935 = sshll.u32 %s6932, 4
          %s6936 = int_to_ptr.hbm [resolvable:$true] %s6935
          %6941 = dma.vmem_to_hbm [thread:$0]  %s6934, 1920, %s6936, %s6920, 128, 256, 8
        $region80: #{tpu_custom_call.1} parent=63 // pred_fallthru
          _
      $region64: #{tpu_custom_call.1} parent=5 // pred_fallthru
        _
      %p6942 = scmp.le.s32.totalorder 2, %s25
      // Predicated region
      $region81: #{tpu_custom_call.1} parent=5 // pred_check
        %p6943 = pneg %p6942
      $region82: #{tpu_custom_call.1} parent=5 // pred_check_branch
        %6945 = sbr.rel (%p6943) target = $region84
      $region83: #{tpu_custom_call.1} parent=5 // pred_region
        %s6946 = ssub.s32 %s25, 2
        // Predicated region
        $region85: #{tpu_custom_call.1} parent=83 // pred_check
          %p6947 = pneg %p304
        $region86: #{tpu_custom_call.1} parent=83 // pred_check_branch
          %6949 = sbr.rel (%p6947) target = $region88
        $region87: #{tpu_custom_call.1} parent=83 // pred_region
          %s6950 = sand.u32 %s289, 1
          %s6951 = scalar_lea.sflag [#allocation14], %s6950
          %s6952 = sand.u32 %s289, 1
          %s6953 = smul.addr %s6952, 120
          %s6954 = scalar_lea.vmem [#allocation19], %s6953
          %6956 = dma.done %s6951, 1920
        $region88: #{tpu_custom_call.1} parent=83 // pred_fallthru
          _
      $region84: #{tpu_custom_call.1} parent=5 // pred_fallthru
        _
    $region6: #{tpu_custom_call.1} parent=1 // loop_footer
      %s29 = sadd.s32 1, %s25
    $region7: #{tpu_custom_call.1} parent=1 // loop_footer_branch
      %24 = sbr.rel target = $region3
    $region8: #{tpu_custom_call.1} parent=1 // loop_exit
      _
    %6957 = vsyncpa [#allocation13], 1
    %s6958 = scalar_lea.sflag [#allocation13], 1
    %6959 = vsyncpa %s6958, 1
    %6960 = vsyncpa [#allocation17], 1
    %6961 = vsyncpa [#allocation14], 1
    %s6962 = scalar_lea.sflag [#allocation14], 1
    %6963 = vsyncpa %s6962, 1
    %6964 = vsyncpa [#allocation15], 1
    %s6965 = scalar_lea.sflag [#allocation15], 1
    %6966 = vsyncpa %s6965, 1

</llo_original>
